<compile_context>
chip_gen: v7x
topology: tpu7x:2x2x1
jax: 0.10.0
libtpu: 0.0.40
codegen_flags: <defaults>
</compile_context>

<pallas_src>
import jax
import jax.numpy as jnp
from jax.experimental import pallas as pl
from jax.experimental.pallas import tpu as pltpu

_K = 3  # conv kernel size for both conv layers


# ----------------------------- Fused kernel -------------------------------- #

def _deep_retina_kernel(x_ref, w1_ref, b1_ref, w2_ref, b2_ref, w3_ref, b3_ref,
                        o_ref):
    """One grid step = one image through the full network.

    x_ref : (1, H, W, Cin)       NHWC image
    w1_ref: (K*K*Cin, C1)        conv1 weight, rows in (kh, kw, cin) order
    b1_ref: (1, C1)
    w2_ref: (K*K*C1, C2)         conv2 weight, rows in (kh, kw, c1) order
    b2_ref: (1, C2)
    w3_ref: (U, C2*Ho2*Wo2)      linear weight (transposed); cols in CHW order
    b3_ref: (U, 1)
    o_ref : (1, U, 1)
    """
    x = x_ref[0]                                            # (H, W, Cin)
    H, W, Cin = x.shape
    Ho1, Wo1 = H - _K + 1, W - _K + 1                       # 14, 14
    Ho2, Wo2 = Ho1 - _K + 1, Wo1 - _K + 1                   # 12, 12
    C1 = w1_ref.shape[1]
    C2 = w2_ref.shape[1]

    # ---- conv1 (3x3 valid) + ReLU: im2col in VMEM values, ONE MXU matmul ---
    p1 = jnp.concatenate(
        [x[kh:kh + Ho1, kw:kw + Wo1, :].reshape(Ho1 * Wo1, Cin)
         for kh in range(_K) for kw in range(_K)], axis=1)  # (196, K*K*Cin)
    a1 = jnp.dot(p1, w1_ref[...], preferred_element_type=jnp.float32)
    a1 = jnp.maximum(a1 + b1_ref[...], 0.0)                 # (196, C1)
    a1 = a1.reshape(Ho1, Wo1, C1)

    # ---- conv2 (3x3 valid) + ReLU: single matmul again ---------------------
    p2 = jnp.concatenate(
        [a1[kh:kh + Ho2, kw:kw + Wo2, :].reshape(Ho2 * Wo2, C1)
         for kh in range(_K) for kw in range(_K)], axis=1)  # (144, K*K*C1)
    a2 = jnp.dot(p2, w2_ref[...], preferred_element_type=jnp.float32)
    a2 = jnp.maximum(a2 + b2_ref[...], 0.0)                 # (144, C2)

    # ---- flatten in PyTorch (C,H,W) order + linear + softplus --------------
    # Channel-major feature column built directly from VMEM values (no HBM
    # round trip, no XLA transpose); the linear layer is one matmul.
    flat = jnp.concatenate([a2[:, c:c + 1] for c in range(C2)],
                           axis=0)                          # (C2*Ho2*Wo2, 1)
    z = jnp.dot(w3_ref[...], flat, preferred_element_type=jnp.float32)
    z = z + b3_ref[...]                                     # (U, 1)
    # Numerically stable softplus: max(z, 0) + log1p(exp(-|z|))
    sp = jnp.maximum(z, 0.0) + jnp.log1p(jnp.exp(-jnp.abs(z)))
    o_ref[0] = sp.astype(o_ref.dtype)


# ------------------------------ Wrapper ------------------------------------ #

def deep_retina_forward(x_nchw, params):
    """Full DeepRetinaModel forward as one fused Pallas call."""
    N, Cin, H, W = x_nchw.shape
    K = params["w1"].shape[0]
    C1 = params["w1"].shape[3]
    C2 = params["w2"].shape[3]
    U = params["w3"].shape[1]
    Ho1, Wo1 = H - K + 1, W - K + 1
    Ho2, Wo2 = Ho1 - K + 1, Wo1 - K + 1
    F = C2 * Ho2 * Wo2

    x_nhwc = jnp.transpose(x_nchw, (0, 2, 3, 1))            # NCHW -> NHWC
    # One-time weight layout prep (hoisted out of the kernel, fused by XLA).
    w1m = params["w1"].reshape(K * K * Cin, C1)             # rows = (kh,kw,cin)
    w2m = params["w2"].reshape(K * K * C1, C2)              # rows = (kh,kw,c1)
    w3t = params["w3"].T                                    # (U, F), F in CHW order
    b1 = params["b1"].reshape(1, C1)
    b2 = params["b2"].reshape(1, C2)
    b3 = params["b3"].reshape(U, 1)

    out = pl.pallas_call(
        _deep_retina_kernel,
        out_shape=jax.ShapeDtypeStruct((N, U, 1), x_nchw.dtype),
        grid=(N,),
        in_specs=[
            pl.BlockSpec((1, H, W, Cin), lambda n: (n, 0, 0, 0)),
            pl.BlockSpec((K * K * Cin, C1), lambda n: (0, 0)),
            pl.BlockSpec((1, C1), lambda n: (0, 0)),
            pl.BlockSpec((K * K * C1, C2), lambda n: (0, 0)),
            pl.BlockSpec((1, C2), lambda n: (0, 0)),
            pl.BlockSpec((U, F), lambda n: (0, 0)),
            pl.BlockSpec((U, 1), lambda n: (0, 0)),
        ],
        out_specs=pl.BlockSpec((1, U, 1), lambda n: (n, 0, 0)),
        compiler_params=pltpu.CompilerParams(
            dimension_semantics=("parallel",)),
    )(x_nhwc, w1m, b1, w2m, b2, w3t, b3)
    return out.reshape(N, U)


# ------------------------------ Reference ----------------------------------- #

def _reference_forward(x_nchw, params):
    dn = jax.lax.conv_dimension_numbers(
        (1, 1, 1, 1), (1, 1, 1, 1), ("NHWC", "HWIO", "NHWC"))
    x = jnp.transpose(x_nchw, (0, 2, 3, 1))
    x = jax.lax.conv_general_dilated(x, params["w1"], (1, 1), "VALID",
                                     dimension_numbers=dn)
    x = jnp.maximum(x + params["b1"][None, None, None, :], 0.0)
    x = jax.lax.conv_general_dilated(x, params["w2"], (1, 1), "VALID",
                                     dimension_numbers=dn)
    x = jnp.maximum(x + params["b2"][None, None, None, :], 0.0)
    x = jnp.transpose(x, (0, 3, 1, 2)).reshape(x.shape[0], -1)
    z = x @ params["w3"] + params["b3"][None, :]
    return jax.nn.softplus(z)


# -------------------------------- Main -------------------------------------- #

if __name__ == "__main__":
    key = jax.random.PRNGKey(0)
    k_x, k_w1, k_b1, k_w2, k_b2, k_w3, k_b3 = jax.random.split(key, 7)

    # Small shapes implied by the forward pass: batch=2, channels=4, spatial=16.
    N, Cin, H, W = 2, 4, 16, 16
    C1, C2, KSIZE = 8, 16, 3
    Ho = H - 2 * (KSIZE - 1)        # 12 after two valid 3x3 convs
    F = C2 * Ho * Ho                # 16 * 12 * 12 = 2304
    U = 5                           # number of predicted retinal units

    x = jax.random.normal(k_x, (N, Cin, H, W), jnp.float32)

    params = {
        "w1": jax.random.normal(k_w1, (KSIZE, KSIZE, Cin, C1), jnp.float32) * 0.1,
        "b1": jax.random.normal(k_b1, (C1,), jnp.float32) * 0.1,
        "w2": jax.random.normal(k_w2, (KSIZE, KSIZE, C1, C2), jnp.float32) * 0.1,
        "b2": jax.random.normal(k_b2, (C2,), jnp.float32) * 0.1,
        "w3": jax.random.normal(k_w3, (F, U), jnp.float32) * 0.02,
        "b3": jax.random.normal(k_b3, (U,), jnp.float32) * 0.1,
    }

    fwd = jax.jit(deep_retina_forward)
    out = jax.block_until_ready(fwd(x, params))
    assert out.shape == (N, U), out.shape

    ref = _reference_forward(x, params)
    assert jnp.allclose(out, ref, atol=1e-4, rtol=1e-4), (
        float(jnp.max(jnp.abs(out - ref))))

    print("KERNEL_OK")
</pallas_src>

<mosaic_0001>
module attributes {stable_mosaic.version = 11 : i64} {
  func.func @_deep_retina_kernel(%arg0: i32, %arg1: memref<1x16x16x4xf32, #tpu.memory_space<vmem>>, %arg2: memref<36x8xf32, #tpu.memory_space<vmem>>, %arg3: memref<1x8xf32, #tpu.memory_space<vmem>>, %arg4: memref<72x16xf32, #tpu.memory_space<vmem>>, %arg5: memref<1x16xf32, #tpu.memory_space<vmem>>, %arg6: memref<5x2304xf32, #tpu.memory_space<vmem>>, %arg7: memref<5x1xf32, #tpu.memory_space<vmem>>, %arg8: memref<1x5x1xf32, #tpu.memory_space<vmem>>) attributes {dimension_semantics = [#tpu.dimension_semantics<parallel>], iteration_bounds = array<i64: 2>, scalar_prefetch = 0 : i64, scratch_operands = 0 : i64, tpu.core_type = #tpu.core_type<tc>, window_params = [{transform_indices = @transform_0, window_bounds = array<i64: 1, 16, 16, 4>}, {pipeline_mode = #tpu.pipeline_mode<synchronous>, transform_indices = @transform_1, window_bounds = array<i64: 36, 8>}, {pipeline_mode = #tpu.pipeline_mode<synchronous>, transform_indices = @transform_2, window_bounds = array<i64: 1, 8>}, {pipeline_mode = #tpu.pipeline_mode<synchronous>, transform_indices = @transform_3, window_bounds = array<i64: 72, 16>}, {pipeline_mode = #tpu.pipeline_mode<synchronous>, transform_indices = @transform_4, window_bounds = array<i64: 1, 16>}, {pipeline_mode = #tpu.pipeline_mode<synchronous>, transform_indices = @transform_5, window_bounds = array<i64: 5, 2304>}, {pipeline_mode = #tpu.pipeline_mode<synchronous>, transform_indices = @transform_6, window_bounds = array<i64: 5, 1>}, {transform_indices = @transform_7, window_bounds = array<i64: 1, 5, 1>}]} {
    %c0 = arith.constant 0 : index
    %c0_0 = arith.constant 0 : index
    %c0_1 = arith.constant 0 : index
    %c0_2 = arith.constant 0 : index
    %0 = vector.load %arg1[%c0, %c0_0, %c0_1, %c0_2] : memref<1x16x16x4xf32, #tpu.memory_space<vmem>>, vector<1x16x16x4xf32>
    %1 = vector.shape_cast %0 : vector<1x16x16x4xf32> to vector<16x16x4xf32>
    %2 = vector.extract_strided_slice %1 {offsets = [0, 0, 0], sizes = [14, 14, 4], strides = [1, 1, 1]} : vector<16x16x4xf32> to vector<14x14x4xf32>
    %3 = vector.shape_cast %2 : vector<14x14x4xf32> to vector<196x4xf32>
    %4 = vector.extract_strided_slice %1 {offsets = [0, 1, 0], sizes = [14, 14, 4], strides = [1, 1, 1]} : vector<16x16x4xf32> to vector<14x14x4xf32>
    %5 = vector.shape_cast %4 : vector<14x14x4xf32> to vector<196x4xf32>
    %6 = vector.extract_strided_slice %1 {offsets = [0, 2, 0], sizes = [14, 14, 4], strides = [1, 1, 1]} : vector<16x16x4xf32> to vector<14x14x4xf32>
    %7 = vector.shape_cast %6 : vector<14x14x4xf32> to vector<196x4xf32>
    %8 = vector.extract_strided_slice %1 {offsets = [1, 0, 0], sizes = [14, 14, 4], strides = [1, 1, 1]} : vector<16x16x4xf32> to vector<14x14x4xf32>
    %9 = vector.shape_cast %8 : vector<14x14x4xf32> to vector<196x4xf32>
    %10 = vector.extract_strided_slice %1 {offsets = [1, 1, 0], sizes = [14, 14, 4], strides = [1, 1, 1]} : vector<16x16x4xf32> to vector<14x14x4xf32>
    %11 = vector.shape_cast %10 : vector<14x14x4xf32> to vector<196x4xf32>
    %12 = vector.extract_strided_slice %1 {offsets = [1, 2, 0], sizes = [14, 14, 4], strides = [1, 1, 1]} : vector<16x16x4xf32> to vector<14x14x4xf32>
    %13 = vector.shape_cast %12 : vector<14x14x4xf32> to vector<196x4xf32>
    %14 = vector.extract_strided_slice %1 {offsets = [2, 0, 0], sizes = [14, 14, 4], strides = [1, 1, 1]} : vector<16x16x4xf32> to vector<14x14x4xf32>
    %15 = vector.shape_cast %14 : vector<14x14x4xf32> to vector<196x4xf32>
    %16 = vector.extract_strided_slice %1 {offsets = [2, 1, 0], sizes = [14, 14, 4], strides = [1, 1, 1]} : vector<16x16x4xf32> to vector<14x14x4xf32>
    %17 = vector.shape_cast %16 : vector<14x14x4xf32> to vector<196x4xf32>
    %18 = vector.extract_strided_slice %1 {offsets = [2, 2, 0], sizes = [14, 14, 4], strides = [1, 1, 1]} : vector<16x16x4xf32> to vector<14x14x4xf32>
    %19 = vector.shape_cast %18 : vector<14x14x4xf32> to vector<196x4xf32>
    %20 = tpu.concatenate %3, %5, %7, %9, %11, %13, %15, %17, %19 in 1 : vector<196x4xf32>, vector<196x4xf32>, vector<196x4xf32>, vector<196x4xf32>, vector<196x4xf32>, vector<196x4xf32>, vector<196x4xf32>, vector<196x4xf32>, vector<196x4xf32> -> vector<196x36xf32>
    %c0_3 = arith.constant 0 : index
    %c0_4 = arith.constant 0 : index
    %21 = vector.load %arg2[%c0_3, %c0_4] : memref<36x8xf32, #tpu.memory_space<vmem>>, vector<36x8xf32>
    %cst = arith.constant dense<0.000000e+00> : vector<196x8xf32>
    %22 = tpu.matmul %20, %21, %cst {dimension_numbers = #tpu.dot_dimension_numbers<[1], [0], [0], [1], [0, 0, 1, 1], [], []>} : vector<196x36xf32>, vector<36x8xf32>, vector<196x8xf32> -> vector<196x8xf32>
    %c0_5 = arith.constant 0 : index
    %c0_6 = arith.constant 0 : index
    %23 = vector.load %arg3[%c0_5, %c0_6] : memref<1x8xf32, #tpu.memory_space<vmem>>, vector<1x8xf32>
    %24 = vector.broadcast %23 : vector<1x8xf32> to vector<196x8xf32>
    %25 = arith.addf %22, %24 : vector<196x8xf32>
    %cst_7 = arith.constant 0.000000e+00 : f32
    %26 = vector.broadcast %cst_7 : f32 to vector<196x8xf32>
    %27 = arith.maximumf %25, %26 : vector<196x8xf32>
    %28 = vector.shape_cast %27 : vector<196x8xf32> to vector<14x14x8xf32>
    %29 = vector.extract_strided_slice %28 {offsets = [0, 0, 0], sizes = [12, 12, 8], strides = [1, 1, 1]} : vector<14x14x8xf32> to vector<12x12x8xf32>
    %30 = vector.shape_cast %29 : vector<12x12x8xf32> to vector<144x8xf32>
    %31 = vector.extract_strided_slice %28 {offsets = [0, 1, 0], sizes = [12, 12, 8], strides = [1, 1, 1]} : vector<14x14x8xf32> to vector<12x12x8xf32>
    %32 = vector.shape_cast %31 : vector<12x12x8xf32> to vector<144x8xf32>
    %33 = vector.extract_strided_slice %28 {offsets = [0, 2, 0], sizes = [12, 12, 8], strides = [1, 1, 1]} : vector<14x14x8xf32> to vector<12x12x8xf32>
    %34 = vector.shape_cast %33 : vector<12x12x8xf32> to vector<144x8xf32>
    %35 = vector.extract_strided_slice %28 {offsets = [1, 0, 0], sizes = [12, 12, 8], strides = [1, 1, 1]} : vector<14x14x8xf32> to vector<12x12x8xf32>
    %36 = vector.shape_cast %35 : vector<12x12x8xf32> to vector<144x8xf32>
    %37 = vector.extract_strided_slice %28 {offsets = [1, 1, 0], sizes = [12, 12, 8], strides = [1, 1, 1]} : vector<14x14x8xf32> to vector<12x12x8xf32>
    %38 = vector.shape_cast %37 : vector<12x12x8xf32> to vector<144x8xf32>
    %39 = vector.extract_strided_slice %28 {offsets = [1, 2, 0], sizes = [12, 12, 8], strides = [1, 1, 1]} : vector<14x14x8xf32> to vector<12x12x8xf32>
    %40 = vector.shape_cast %39 : vector<12x12x8xf32> to vector<144x8xf32>
    %41 = vector.extract_strided_slice %28 {offsets = [2, 0, 0], sizes = [12, 12, 8], strides = [1, 1, 1]} : vector<14x14x8xf32> to vector<12x12x8xf32>
    %42 = vector.shape_cast %41 : vector<12x12x8xf32> to vector<144x8xf32>
    %43 = vector.extract_strided_slice %28 {offsets = [2, 1, 0], sizes = [12, 12, 8], strides = [1, 1, 1]} : vector<14x14x8xf32> to vector<12x12x8xf32>
    %44 = vector.shape_cast %43 : vector<12x12x8xf32> to vector<144x8xf32>
    %45 = vector.extract_strided_slice %28 {offsets = [2, 2, 0], sizes = [12, 12, 8], strides = [1, 1, 1]} : vector<14x14x8xf32> to vector<12x12x8xf32>
    %46 = vector.shape_cast %45 : vector<12x12x8xf32> to vector<144x8xf32>
    %47 = tpu.concatenate %30, %32, %34, %36, %38, %40, %42, %44, %46 in 1 : vector<144x8xf32>, vector<144x8xf32>, vector<144x8xf32>, vector<144x8xf32>, vector<144x8xf32>, vector<144x8xf32>, vector<144x8xf32>, vector<144x8xf32>, vector<144x8xf32> -> vector<144x72xf32>
    %c0_8 = arith.constant 0 : index
    %c0_9 = arith.constant 0 : index
    %48 = vector.load %arg4[%c0_8, %c0_9] : memref<72x16xf32, #tpu.memory_space<vmem>>, vector<72x16xf32>
    %cst_10 = arith.constant dense<0.000000e+00> : vector<144x16xf32>
    %49 = tpu.matmul %47, %48, %cst_10 {dimension_numbers = #tpu.dot_dimension_numbers<[1], [0], [0], [1], [0, 0, 1, 1], [], []>} : vector<144x72xf32>, vector<72x16xf32>, vector<144x16xf32> -> vector<144x16xf32>
    %c0_11 = arith.constant 0 : index
    %c0_12 = arith.constant 0 : index
    %50 = vector.load %arg5[%c0_11, %c0_12] : memref<1x16xf32, #tpu.memory_space<vmem>>, vector<1x16xf32>
    %51 = vector.broadcast %50 : vector<1x16xf32> to vector<144x16xf32>
    %52 = arith.addf %49, %51 : vector<144x16xf32>
    %cst_13 = arith.constant 0.000000e+00 : f32
    %53 = vector.broadcast %cst_13 : f32 to vector<144x16xf32>
    %54 = arith.maximumf %52, %53 : vector<144x16xf32>
    %55 = vector.extract_strided_slice %54 {offsets = [0, 0], sizes = [144, 1], strides = [1, 1]} : vector<144x16xf32> to vector<144x1xf32>
    %56 = vector.extract_strided_slice %54 {offsets = [0, 1], sizes = [144, 1], strides = [1, 1]} : vector<144x16xf32> to vector<144x1xf32>
    %57 = vector.extract_strided_slice %54 {offsets = [0, 2], sizes = [144, 1], strides = [1, 1]} : vector<144x16xf32> to vector<144x1xf32>
    %58 = vector.extract_strided_slice %54 {offsets = [0, 3], sizes = [144, 1], strides = [1, 1]} : vector<144x16xf32> to vector<144x1xf32>
    %59 = vector.extract_strided_slice %54 {offsets = [0, 4], sizes = [144, 1], strides = [1, 1]} : vector<144x16xf32> to vector<144x1xf32>
    %60 = vector.extract_strided_slice %54 {offsets = [0, 5], sizes = [144, 1], strides = [1, 1]} : vector<144x16xf32> to vector<144x1xf32>
    %61 = vector.extract_strided_slice %54 {offsets = [0, 6], sizes = [144, 1], strides = [1, 1]} : vector<144x16xf32> to vector<144x1xf32>
    %62 = vector.extract_strided_slice %54 {offsets = [0, 7], sizes = [144, 1], strides = [1, 1]} : vector<144x16xf32> to vector<144x1xf32>
    %63 = vector.extract_strided_slice %54 {offsets = [0, 8], sizes = [144, 1], strides = [1, 1]} : vector<144x16xf32> to vector<144x1xf32>
    %64 = vector.extract_strided_slice %54 {offsets = [0, 9], sizes = [144, 1], strides = [1, 1]} : vector<144x16xf32> to vector<144x1xf32>
    %65 = vector.extract_strided_slice %54 {offsets = [0, 10], sizes = [144, 1], strides = [1, 1]} : vector<144x16xf32> to vector<144x1xf32>
    %66 = vector.extract_strided_slice %54 {offsets = [0, 11], sizes = [144, 1], strides = [1, 1]} : vector<144x16xf32> to vector<144x1xf32>
    %67 = vector.extract_strided_slice %54 {offsets = [0, 12], sizes = [144, 1], strides = [1, 1]} : vector<144x16xf32> to vector<144x1xf32>
    %68 = vector.extract_strided_slice %54 {offsets = [0, 13], sizes = [144, 1], strides = [1, 1]} : vector<144x16xf32> to vector<144x1xf32>
    %69 = vector.extract_strided_slice %54 {offsets = [0, 14], sizes = [144, 1], strides = [1, 1]} : vector<144x16xf32> to vector<144x1xf32>
    %70 = vector.extract_strided_slice %54 {offsets = [0, 15], sizes = [144, 1], strides = [1, 1]} : vector<144x16xf32> to vector<144x1xf32>
    %71 = tpu.concatenate %55, %56, %57, %58, %59, %60, %61, %62, %63, %64, %65, %66, %67, %68, %69, %70 in 0 : vector<144x1xf32>, vector<144x1xf32>, vector<144x1xf32>, vector<144x1xf32>, vector<144x1xf32>, vector<144x1xf32>, vector<144x1xf32>, vector<144x1xf32>, vector<144x1xf32>, vector<144x1xf32>, vector<144x1xf32>, vector<144x1xf32>, vector<144x1xf32>, vector<144x1xf32>, vector<144x1xf32>, vector<144x1xf32> -> vector<2304x1xf32>
    %c0_14 = arith.constant 0 : index
    %c0_15 = arith.constant 0 : index
    %72 = vector.load %arg6[%c0_14, %c0_15] : memref<5x2304xf32, #tpu.memory_space<vmem>>, vector<5x2304xf32>
    %cst_16 = arith.constant dense<0.000000e+00> : vector<5x1xf32>
    %73 = tpu.matmul %72, %71, %cst_16 {dimension_numbers = #tpu.dot_dimension_numbers<[1], [0], [0], [1], [0, 0, 1, 1], [], []>} : vector<5x2304xf32>, vector<2304x1xf32>, vector<5x1xf32> -> vector<5x1xf32>
    %c0_17 = arith.constant 0 : index
    %c0_18 = arith.constant 0 : index
    %74 = vector.load %arg7[%c0_17, %c0_18] : memref<5x1xf32, #tpu.memory_space<vmem>>, vector<5x1xf32>
    %75 = arith.addf %73, %74 : vector<5x1xf32>
    %cst_19 = arith.constant 0.000000e+00 : f32
    %76 = vector.broadcast %cst_19 : f32 to vector<5x1xf32>
    %77 = arith.maximumf %75, %76 : vector<5x1xf32>
    %78 = math.absf %75 : vector<5x1xf32>
    %cst_20 = arith.constant 0.000000e+00 : f32
    %79 = vector.broadcast %cst_20 : f32 to vector<5x1xf32>
    %80 = arith.subf %79, %78 : vector<5x1xf32>
    %81 = math.exp %80 : vector<5x1xf32>
    %82 = math.log1p %81 : vector<5x1xf32>
    %83 = arith.addf %77, %82 : vector<5x1xf32>
    %c0_21 = arith.constant 0 : index
    %c0_22 = arith.constant 0 : index
    %c0_23 = arith.constant 0 : index
    %84 = vector.load %arg8[%c0_21, %c0_22, %c0_23] : memref<1x5x1xf32, #tpu.memory_space<vmem>>, vector<1x5x1xf32>
    %85 = vector.shape_cast %84 : vector<1x5x1xf32> to vector<5x1xf32>
    %86 = vector.shape_cast %83 : vector<5x1xf32> to vector<1x5x1xf32>
    tpu.vector_store %arg8[%c0_21, %c0_22, %c0_23], %86 {strides = array<i32>} : memref<1x5x1xf32, #tpu.memory_space<vmem>>, vector<1x5x1xf32>,
    return
  }
  func.func @transform_0(%arg0: i32) -> (i32, i32, i32, i32) {
    %c0_i32 = arith.constant 0 : i32
    %c0_i32_0 = arith.constant 0 : i32
    %c0_i32_1 = arith.constant 0 : i32
    %c0_i32_2 = arith.constant 0 : i32
    return %arg0, %c0_i32, %c0_i32_0, %c0_i32_1 : i32, i32, i32, i32
  }
  func.func @transform_1(%arg0: i32) -> (i32, i32) {
    %c0_i32 = arith.constant 0 : i32
    %c0_i32_0 = arith.constant 0 : i32
    %c0_i32_1 = arith.constant 0 : i32
    return %c0_i32, %c0_i32_0 : i32, i32
  }
  func.func @transform_2(%arg0: i32) -> (i32, i32) {
    %c0_i32 = arith.constant 0 : i32
    %c0_i32_0 = arith.constant 0 : i32
    %c0_i32_1 = arith.constant 0 : i32
    return %c0_i32, %c0_i32_0 : i32, i32
  }
  func.func @transform_3(%arg0: i32) -> (i32, i32) {
    %c0_i32 = arith.constant 0 : i32
    %c0_i32_0 = arith.constant 0 : i32
    %c0_i32_1 = arith.constant 0 : i32
    return %c0_i32, %c0_i32_0 : i32, i32
  }
  func.func @transform_4(%arg0: i32) -> (i32, i32) {
    %c0_i32 = arith.constant 0 : i32
    %c0_i32_0 = arith.constant 0 : i32
    %c0_i32_1 = arith.constant 0 : i32
    return %c0_i32, %c0_i32_0 : i32, i32
  }
  func.func @transform_5(%arg0: i32) -> (i32, i32) {
    %c0_i32 = arith.constant 0 : i32
    %c0_i32_0 = arith.constant 0 : i32
    %c0_i32_1 = arith.constant 0 : i32
    return %c0_i32, %c0_i32_0 : i32, i32
  }
  func.func @transform_6(%arg0: i32) -> (i32, i32) {
    %c0_i32 = arith.constant 0 : i32
    %c0_i32_0 = arith.constant 0 : i32
    %c0_i32_1 = arith.constant 0 : i32
    return %c0_i32, %c0_i32_0 : i32, i32
  }
  func.func @transform_7(%arg0: i32) -> (i32, i32, i32) {
    %c0_i32 = arith.constant 0 : i32
    %c0_i32_0 = arith.constant 0 : i32
    %c0_i32_1 = arith.constant 0 : i32
    return %arg0, %c0_i32, %c0_i32_0 : i32, i32, i32
  }
}

</mosaic_0001>

<llo_original>
// kernel: deep_retina_forward.1
$region0: #{deep_retina_forward.1}
  #allocation0 [shape = 'u32[]', space=smem, size = 0x4, offset = 0x4, fixed_abs, tag = 'smem constant byte address 0x4 - core index']
  #allocation1 [shape = 'u32[144,128]{1,0:T(1,128)}', space=vmem, size = 0x12000, scoped, tag = 'internal scratch']
  %s0 = inlined_call_operand.vmem [shape: f32[2,16,16,4], index: 0, kind: input, shape index: {}]
  %s1 = inlined_call_operand.vmem [shape: f32[36,8], index: 1, kind: input, shape index: {}]
  %s2 = inlined_call_operand.vmem [shape: f32[1,8], index: 2, kind: input, shape index: {}]
  %s3 = inlined_call_operand.vmem [shape: f32[72,16], index: 3, kind: input, shape index: {}]
  %s4 = inlined_call_operand.vmem [shape: f32[1,16], index: 4, kind: input, shape index: {}]
  %s5 = inlined_call_operand.vmem [shape: f32[5,2304], index: 5, kind: input, shape index: {}]
  %s6 = inlined_call_operand.vmem [shape: f32[5,1], index: 6, kind: input, shape index: {}]
  %s7 = inlined_call_operand.vmem [shape: f32[2,5,1], index: 7, kind: output, shape index: {}]
  %s8 = sld [smem:[#allocation0]]
  $region61: #{deep_retina_forward.1} parent=0
    _
  %s10 = ssub.s32 1, %s8
  %s11 = scalar_select 0, %s10, %s8
  loop: start=0, step=1, limit=4
  $region2: #{deep_retina_forward.1} parent=0 // loop_pre_header
    _
  $region3: #{deep_retina_forward.1} parent=0 // loop_header
    %s13 = sphi 0, %s17
    %p14 = scmp.ge.s32.totalorder %s13, 4
    %s23 = sphi 0, %s25
    %s26 = sphi 0, %s23
    %s27 = sphi 0, %s26
    %s43 = sphi 0, %s27
    %s47 = sphi 0, %s47
    %s49 = sphi 0, %s47
    %s50 = sphi 0, %s49
    %s64 = sphi 0, %s50
    %s68 = sphi 0, %s68
    %s70 = sphi 0, %s68
    %s71 = sphi 0, %s70
    %s85 = sphi 0, %s71
    %s89 = sphi 0, %s89
    %s91 = sphi 0, %s89
    %s92 = sphi 0, %s91
    %s106 = sphi 0, %s92
    %s110 = sphi 0, %s110
    %s112 = sphi 0, %s110
    %s113 = sphi 0, %s112
    %s127 = sphi 0, %s113
    %s131 = sphi 0, %s131
    %s133 = sphi 0, %s131
    %s134 = sphi 0, %s133
    %s148 = sphi 0, %s134
    %s152 = sphi 0, %s152
    %s154 = sphi 0, %s152
    %s155 = sphi 0, %s154
    %s169 = sphi 0, %s155
    %s175 = sphi 0, %s177
    %s178 = sphi 0, %s175
    %s179 = sphi 0, %s178
    %s195 = sphi 0, %s179
  $region4: #{deep_retina_forward.1} parent=0 // loop_header_branch
    %16 = sbr.rel (%p14) target = $region8
  $region5: #{deep_retina_forward.1} parent=0 // loop_body
    %s18 = ssub.s32 %s13, 1
    %s19 = ssub.s32 %s13, 2
    %s20 = sadd.s32 %s13, 1
    %s21 = ssub.s32 %s13, %s20
    %p22 = scmp.eq.s32.totalorder %s21, 0
    %s24 = sadd.s32 %s23, 1
    %s25 = scalar_select %p22, %s23, %s24
    %p28 = pneg %p22
    %p29 = scmp.eq.s32.totalorder %s13, 1
    %p30 = por %p28, %p29
    %p31 = scmp.ne.s32.totalorder %s23, %s26
    %p32 = scmp.eq.s32.totalorder %s13, 0
    %p33 = por %p31, %p32
    %p34 = scmp.ne.s32.totalorder %s23, %s26
    %p35 = scmp.eq.s32.totalorder %s18, 1
    %p36 = por %p34, %p35
    %p37 = scmp.ne.s32.totalorder %s26, %s27
    %p38 = scmp.eq.s32.totalorder %s18, 0
    %p39 = por %p37, %p38
    %p40 = scmp.ne.s32.totalorder %s26, %s27
    %p41 = scmp.eq.s32.totalorder %s19, 1
    %p42 = por %p40, %p41
    %p44 = scmp.ne.s32.totalorder %s27, %s43
    %p45 = scmp.eq.s32.totalorder %s19, 0
    %p46 = por %p44, %p45
    %s48 = sadd.s32 %s47, 1
    %p51 = scmp.eq.s32.totalorder %s13, 1
    %p52 = scmp.ne.s32.totalorder %s47, %s49
    %p53 = scmp.eq.s32.totalorder %s13, 0
    %p54 = por %p52, %p53
    %p55 = scmp.ne.s32.totalorder %s47, %s49
    %p56 = scmp.eq.s32.totalorder %s18, 1
    %p57 = por %p55, %p56
    %p58 = scmp.ne.s32.totalorder %s49, %s50
    %p59 = scmp.eq.s32.totalorder %s18, 0
    %p60 = por %p58, %p59
    %p61 = scmp.ne.s32.totalorder %s49, %s50
    %p62 = scmp.eq.s32.totalorder %s19, 1
    %p63 = por %p61, %p62
    %p65 = scmp.ne.s32.totalorder %s50, %s64
    %p66 = scmp.eq.s32.totalorder %s19, 0
    %p67 = por %p65, %p66
    %s69 = sadd.s32 %s68, 1
    %p72 = scmp.eq.s32.totalorder %s13, 1
    %p73 = scmp.ne.s32.totalorder %s68, %s70
    %p74 = scmp.eq.s32.totalorder %s13, 0
    %p75 = por %p73, %p74
    %p76 = scmp.ne.s32.totalorder %s68, %s70
    %p77 = scmp.eq.s32.totalorder %s18, 1
    %p78 = por %p76, %p77
    %p79 = scmp.ne.s32.totalorder %s70, %s71
    %p80 = scmp.eq.s32.totalorder %s18, 0
    %p81 = por %p79, %p80
    %p82 = scmp.ne.s32.totalorder %s70, %s71
    %p83 = scmp.eq.s32.totalorder %s19, 1
    %p84 = por %p82, %p83
    %p86 = scmp.ne.s32.totalorder %s71, %s85
    %p87 = scmp.eq.s32.totalorder %s19, 0
    %p88 = por %p86, %p87
    %s90 = sadd.s32 %s89, 1
    %p93 = scmp.eq.s32.totalorder %s13, 1
    %p94 = scmp.ne.s32.totalorder %s89, %s91
    %p95 = scmp.eq.s32.totalorder %s13, 0
    %p96 = por %p94, %p95
    %p97 = scmp.ne.s32.totalorder %s89, %s91
    %p98 = scmp.eq.s32.totalorder %s18, 1
    %p99 = por %p97, %p98
    %p100 = scmp.ne.s32.totalorder %s91, %s92
    %p101 = scmp.eq.s32.totalorder %s18, 0
    %p102 = por %p100, %p101
    %p103 = scmp.ne.s32.totalorder %s91, %s92
    %p104 = scmp.eq.s32.totalorder %s19, 1
    %p105 = por %p103, %p104
    %p107 = scmp.ne.s32.totalorder %s92, %s106
    %p108 = scmp.eq.s32.totalorder %s19, 0
    %p109 = por %p107, %p108
    %s111 = sadd.s32 %s110, 1
    %p114 = scmp.eq.s32.totalorder %s13, 1
    %p115 = scmp.ne.s32.totalorder %s110, %s112
    %p116 = scmp.eq.s32.totalorder %s13, 0
    %p117 = por %p115, %p116
    %p118 = scmp.ne.s32.totalorder %s110, %s112
    %p119 = scmp.eq.s32.totalorder %s18, 1
    %p120 = por %p118, %p119
    %p121 = scmp.ne.s32.totalorder %s112, %s113
    %p122 = scmp.eq.s32.totalorder %s18, 0
    %p123 = por %p121, %p122
    %p124 = scmp.ne.s32.totalorder %s112, %s113
    %p125 = scmp.eq.s32.totalorder %s19, 1
    %p126 = por %p124, %p125
    %p128 = scmp.ne.s32.totalorder %s113, %s127
    %p129 = scmp.eq.s32.totalorder %s19, 0
    %p130 = por %p128, %p129
    %s132 = sadd.s32 %s131, 1
    %p135 = scmp.eq.s32.totalorder %s13, 1
    %p136 = scmp.ne.s32.totalorder %s131, %s133
    %p137 = scmp.eq.s32.totalorder %s13, 0
    %p138 = por %p136, %p137
    %p139 = scmp.ne.s32.totalorder %s131, %s133
    %p140 = scmp.eq.s32.totalorder %s18, 1
    %p141 = por %p139, %p140
    %p142 = scmp.ne.s32.totalorder %s133, %s134
    %p143 = scmp.eq.s32.totalorder %s18, 0
    %p144 = por %p142, %p143
    %p145 = scmp.ne.s32.totalorder %s133, %s134
    %p146 = scmp.eq.s32.totalorder %s19, 1
    %p147 = por %p145, %p146
    %p149 = scmp.ne.s32.totalorder %s134, %s148
    %p150 = scmp.eq.s32.totalorder %s19, 0
    %p151 = por %p149, %p150
    %s153 = sadd.s32 %s152, 1
    %p156 = scmp.eq.s32.totalorder %s13, 1
    %p157 = scmp.ne.s32.totalorder %s152, %s154
    %p158 = scmp.eq.s32.totalorder %s13, 0
    %p159 = por %p157, %p158
    %p160 = scmp.ne.s32.totalorder %s152, %s154
    %p161 = scmp.eq.s32.totalorder %s18, 1
    %p162 = por %p160, %p161
    %p163 = scmp.ne.s32.totalorder %s154, %s155
    %p164 = scmp.eq.s32.totalorder %s18, 0
    %p165 = por %p163, %p164
    %p166 = scmp.ne.s32.totalorder %s154, %s155
    %p167 = scmp.eq.s32.totalorder %s19, 1
    %p168 = por %p166, %p167
    %p170 = scmp.ne.s32.totalorder %s155, %s169
    %p171 = scmp.eq.s32.totalorder %s19, 0
    %p172 = por %p170, %p171
    %s173 = ssub.s32 %s13, %s20
    %p174 = scmp.eq.s32.totalorder %s173, 0
    %s176 = sadd.s32 %s175, 1
    %s177 = scalar_select %p174, %s175, %s176
    %p180 = pneg %p174
    %p181 = scmp.eq.s32.totalorder %s13, 1
    %p182 = por %p180, %p181
    %p183 = scmp.ne.s32.totalorder %s175, %s178
    %p184 = scmp.eq.s32.totalorder %s13, 0
    %p185 = por %p183, %p184
    %p186 = scmp.ne.s32.totalorder %s175, %s178
    %p187 = scmp.eq.s32.totalorder %s18, 1
    %p188 = por %p186, %p187
    %p189 = scmp.ne.s32.totalorder %s178, %s179
    %p190 = scmp.eq.s32.totalorder %s18, 0
    %p191 = por %p189, %p190
    %p192 = scmp.ne.s32.totalorder %s178, %s179
    %p193 = scmp.eq.s32.totalorder %s19, 1
    %p194 = por %p192, %p193
    %p196 = scmp.ne.s32.totalorder %s179, %s195
    %p197 = scmp.eq.s32.totalorder %s19, 0
    %p198 = por %p196, %p197
    %p199 = scmp.le.s32.totalorder 1, %s13
    %p200 = scmp.lt.s32.totalorder %s13, 3
    %p201 = pnand %p199, %p200
    %p202 = pneg %p201
    // Predicated region
    $region9: #{deep_retina_forward.1} parent=5 // pred_check
      _
    $region10: #{deep_retina_forward.1} parent=5 // pred_check_branch
      %204 = sbr.rel (%p201) target = $region12
    $region11: #{deep_retina_forward.1} parent=5 // pred_region
      %s205 = ssub.s32 %s13, 1
      // Predicated region
      $region13: #{deep_retina_forward.1} parent=11 // pred_check
        %p206 = pneg %p60
      $region14: #{deep_retina_forward.1} parent=11 // pred_check_branch
        %208 = sbr.rel (%p206) target = $region16
      $region15: #{deep_retina_forward.1} parent=11 // pred_region
        _
      $region16: #{deep_retina_forward.1} parent=11 // pred_fallthru
        _
      // Predicated region
      $region17: #{deep_retina_forward.1} parent=11 // pred_check
        %p209 = pneg %p81
      $region18: #{deep_retina_forward.1} parent=11 // pred_check_branch
        %211 = sbr.rel (%p209) target = $region20
      $region19: #{deep_retina_forward.1} parent=11 // pred_region
        _
      $region20: #{deep_retina_forward.1} parent=11 // pred_fallthru
        _
      // Predicated region
      $region21: #{deep_retina_forward.1} parent=11 // pred_check
        %p212 = pneg %p102
      $region22: #{deep_retina_forward.1} parent=11 // pred_check_branch
        %214 = sbr.rel (%p212) target = $region24
      $region23: #{deep_retina_forward.1} parent=11 // pred_region
        _
      $region24: #{deep_retina_forward.1} parent=11 // pred_fallthru
        _
      // Predicated region
      $region25: #{deep_retina_forward.1} parent=11 // pred_check
        %p215 = pneg %p123
      $region26: #{deep_retina_forward.1} parent=11 // pred_check_branch
        %217 = sbr.rel (%p215) target = $region28
      $region27: #{deep_retina_forward.1} parent=11 // pred_region
        _
      $region28: #{deep_retina_forward.1} parent=11 // pred_fallthru
        _
      // Predicated region
      $region29: #{deep_retina_forward.1} parent=11 // pred_check
        %p218 = pneg %p144
      $region30: #{deep_retina_forward.1} parent=11 // pred_check_branch
        %220 = sbr.rel (%p218) target = $region32
      $region31: #{deep_retina_forward.1} parent=11 // pred_region
        _
      $region32: #{deep_retina_forward.1} parent=11 // pred_fallthru
        _
      // Predicated region
      $region33: #{deep_retina_forward.1} parent=11 // pred_check
        %p221 = pneg %p165
      $region34: #{deep_retina_forward.1} parent=11 // pred_check_branch
        %223 = sbr.rel (%p221) target = $region36
      $region35: #{deep_retina_forward.1} parent=11 // pred_region
        _
      $region36: #{deep_retina_forward.1} parent=11 // pred_fallthru
        _
    $region12: #{deep_retina_forward.1} parent=5 // pred_fallthru
      _
    %p224 = scmp.lt.s32.totalorder %s13, 2
    // Predicated region
    $region37: #{deep_retina_forward.1} parent=5 // pred_check
      %p225 = pneg %p224
    $region38: #{deep_retina_forward.1} parent=5 // pred_check_branch
      %227 = sbr.rel (%p225) target = $region40
    $region39: #{deep_retina_forward.1} parent=5 // pred_region
      // Predicated region
      $region41: #{deep_retina_forward.1} parent=39 // pred_check
        %p228 = pneg %p33
      $region42: #{deep_retina_forward.1} parent=39 // pred_check_branch
        %230 = sbr.rel (%p228) target = $region44
      $region43: #{deep_retina_forward.1} parent=39 // pred_region
        %p231 = scmp.lt.s32.totalorder %s13, 1
        %s232 = scalar_select %p231, %s13, 1
        %s233 = smul.addr %s232, 32
        %s234 = smul.addr %s233, 8
        %s235 = scalar_lea.vmem %s0, %s234
      $region44: #{deep_retina_forward.1} parent=39 // pred_fallthru
        _
    $region40: #{deep_retina_forward.1} parent=5 // pred_fallthru
      _
    %p236 = scmp.le.s32.totalorder 1, %s13
    %p237 = scmp.lt.s32.totalorder %s13, 3
    %p238 = pnand %p236, %p237
    %p239 = pneg %p238
    // Predicated region
    $region45: #{deep_retina_forward.1} parent=5 // pred_check
      _
    $region46: #{deep_retina_forward.1} parent=5 // pred_check_branch
      %241 = sbr.rel (%p238) target = $region48
    $region47: #{deep_retina_forward.1} parent=5 // pred_region
      %s242 = ssub.s32 %s13, 1
      %p243 = scmp.lt.s32.totalorder %s18, 1
      %s244 = scalar_select %p243, %s18, 1
      %s245 = smul.addr %s244, 32
      %s246 = smul.addr %s245, 8
      %s247 = scalar_lea.vmem %s0, %s246
      %p248 = pneg %p39
      %p249 = pneg %p36
      %p250 = pneg %p60
      %p251 = pneg %p57
      %p252 = pneg %p81
      %p253 = pneg %p78
      %p254 = pneg %p102
      %p255 = pneg %p99
      %p256 = pneg %p123
      %p257 = pneg %p120
      %p258 = pneg %p144
      %p259 = pneg %p141
      %p260 = pneg %p165
      %p261 = pneg %p162
      %p262 = pneg %p191
      %p263 = pneg %p188
      %p264 = scmp.lt.s32.totalorder %s18, 1
      %s265 = scalar_select %p264, %s18, 1
      %s266 = smul.addr %s265, 8
      %s267 = scalar_lea.vmem %s7, %s266
      %p268 = scmp.lt.s32.totalorder %s18, 1
      %s269 = scalar_select %p268, %s18, 1
      %s270 = smul.addr %s269, 32
      %s271 = smul.addr %s270, 8
      %s272 = scalar_lea.vmem %s0, %s271
      %p273 = scmp.lt.s32.totalorder %s18, 1
      %s274 = scalar_select %p273, %s18, 1
      %s275 = smul.addr %s274, 8
      %s276 = scalar_lea.vmem %s7, %s275
      %v277 = vld [vmem:[%s272] sm:$0xff]
      %v278 = vld [vmem:[%s272 + $0x8] sm:$0xff]
      %v279 = vld [vmem:[%s272 + $0x10] sm:$0xff]
      %v280 = vld [vmem:[%s272 + $0x18] sm:$0xff]
      %v281 = vld [vmem:[%s272 + $0x20] sm:$0xff]
      %v282 = vld [vmem:[%s272 + $0x28] sm:$0xff]
      %v283 = vld [vmem:[%s272 + $0x30] sm:$0xff]
      %v284 = vld [vmem:[%s272 + $0x38] sm:$0xff]
      %v285 = vld [vmem:[%s272 + $0x40] sm:$0xff]
      %v286 = vld [vmem:[%s272 + $0x48] sm:$0xff]
      %v287 = vld [vmem:[%s272 + $0x50] sm:$0xff]
      %v288 = vld [vmem:[%s272 + $0x58] sm:$0xff]
      %v289 = vld [vmem:[%s272 + $0x60] sm:$0xff]
      %v290 = vld [vmem:[%s272 + $0x68] sm:$0xff]
      %v291 = vld [vmem:[%s272 + $0x70] sm:$0xff]
      %v292 = vld [vmem:[%s272 + $0x78] sm:$0xff]
      %v293 = vld [vmem:[%s272 + $0x80] sm:$0xff]
      %v294 = vld [vmem:[%s272 + $0x88] sm:$0xff]
      %v295 = vld [vmem:[%s272 + $0x90] sm:$0xff]
      %v296 = vld [vmem:[%s272 + $0x98] sm:$0xff]
      %v297 = vld [vmem:[%s272 + $0xa0] sm:$0xff]
      %v298 = vld [vmem:[%s272 + $0xa8] sm:$0xff]
      %v299 = vld [vmem:[%s272 + $0xb0] sm:$0xff]
      %v300 = vld [vmem:[%s272 + $0xb8] sm:$0xff]
      %v301 = vld [vmem:[%s272 + $0xc0] sm:$0xff]
      %v302 = vld [vmem:[%s272 + $0xc8] sm:$0xff]
      %v303 = vld [vmem:[%s272 + $0xd0] sm:$0xff]
      %v304 = vld [vmem:[%s272 + $0xd8] sm:$0xff]
      %v305 = vld [vmem:[%s272 + $0xe0] sm:$0xff]
      %v306 = vld [vmem:[%s272 + $0xe8] sm:$0xff]
      %v307 = vld [vmem:[%s272 + $0xf0] sm:$0xff]
      %v308 = vld [vmem:[%s272 + $0xf8] sm:$0xff]
      %v337 = vcombine.high %v277, %v277
      %v339 = vunpack.c.l.s4 1983009808
      %v340 = vunpack.c.0.s8 %v339
      %v341 = vlaneseq
      %v342 = vshrl.u32 %v341, 7
      %v343 = vsub.s32 %v340, %v342
      %v344 = vrot.slane %v277, %v343
      %v346 = vunpack.c.l.s4 1983009808
      %v347 = vunpack.c.0.s8 %v346
      %v348 = vlaneseq
      %v349 = vshrl.u32 %v348, 7
      %v350 = vsub.s32 %v347, %v349
      %v351 = vrot.slane %v337, %v350
      %v352 = vcombine.high %v344, %v344
      %v353 = vcombine.high %v351, %v351
      %v354 = vcombine.high %v278, %v278
      %v356 = vunpack.c.l.s4 1983009808
      %v357 = vunpack.c.0.s8 %v356
      %v358 = vlaneseq
      %v359 = vshrl.u32 %v358, 7
      %v360 = vsub.s32 %v357, %v359
      %v361 = vrot.slane %v278, %v360
      %v363 = vunpack.c.l.s4 1983009808
      %v364 = vunpack.c.0.s8 %v363
      %v365 = vlaneseq
      %v366 = vshrl.u32 %v365, 7
      %v367 = vsub.s32 %v364, %v366
      %v368 = vrot.slane %v354, %v367
      %v369 = vcombine.high %v361, %v361
      %v370 = vcombine.high %v279, %v279
      %v372 = vunpack.c.l.s4 1983009808
      %v373 = vunpack.c.0.s8 %v372
      %v374 = vlaneseq
      %v375 = vshrl.u32 %v374, 7
      %v376 = vsub.s32 %v373, %v375
      %v377 = vrot.slane %v279, %v376
      %v379 = vunpack.c.l.s4 1983009808
      %v380 = vunpack.c.0.s8 %v379
      %v381 = vlaneseq
      %v382 = vshrl.u32 %v381, 7
      %v383 = vsub.s32 %v380, %v382
      %v384 = vrot.slane %v370, %v383
      %v385 = vcombine.high %v377, %v377
      %v386 = vcombine.high %v384, %v384
      %v387 = vcombine.high %v280, %v280
      %v389 = vunpack.c.l.s4 1983009808
      %v390 = vunpack.c.0.s8 %v389
      %v391 = vlaneseq
      %v392 = vshrl.u32 %v391, 7
      %v393 = vsub.s32 %v390, %v392
      %v394 = vrot.slane %v280, %v393
      %v396 = vunpack.c.l.s4 1983009808
      %v397 = vunpack.c.0.s8 %v396
      %v398 = vlaneseq
      %v399 = vshrl.u32 %v398, 7
      %v400 = vsub.s32 %v397, %v399
      %v401 = vrot.slane %v387, %v400
      %v402 = vcombine.high %v394, %v394
      %v403 = vcombine.high %v281, %v281
      %v405 = vunpack.c.l.s4 1983009808
      %v406 = vunpack.c.0.s8 %v405
      %v407 = vlaneseq
      %v408 = vshrl.u32 %v407, 7
      %v409 = vsub.s32 %v406, %v408
      %v410 = vrot.slane %v281, %v409
      %v412 = vunpack.c.l.s4 1983009808
      %v413 = vunpack.c.0.s8 %v412
      %v414 = vlaneseq
      %v415 = vshrl.u32 %v414, 7
      %v416 = vsub.s32 %v413, %v415
      %v417 = vrot.slane %v403, %v416
      %v418 = vcombine.high %v410, %v410
      %v419 = vcombine.high %v417, %v417
      %v420 = vcombine.high %v282, %v282
      %v422 = vunpack.c.l.s4 1983009808
      %v423 = vunpack.c.0.s8 %v422
      %v424 = vlaneseq
      %v425 = vshrl.u32 %v424, 7
      %v426 = vsub.s32 %v423, %v425
      %v427 = vrot.slane %v282, %v426
      %v429 = vunpack.c.l.s4 1983009808
      %v430 = vunpack.c.0.s8 %v429
      %v431 = vlaneseq
      %v432 = vshrl.u32 %v431, 7
      %v433 = vsub.s32 %v430, %v432
      %v434 = vrot.slane %v420, %v433
      %v435 = vcombine.high %v427, %v427
      %v436 = vcombine.high %v283, %v283
      %v438 = vunpack.c.l.s4 1983009808
      %v439 = vunpack.c.0.s8 %v438
      %v440 = vlaneseq
      %v441 = vshrl.u32 %v440, 7
      %v442 = vsub.s32 %v439, %v441
      %v443 = vrot.slane %v283, %v442
      %v445 = vunpack.c.l.s4 1983009808
      %v446 = vunpack.c.0.s8 %v445
      %v447 = vlaneseq
      %v448 = vshrl.u32 %v447, 7
      %v449 = vsub.s32 %v446, %v448
      %v450 = vrot.slane %v436, %v449
      %v451 = vcombine.high %v443, %v443
      %v452 = vcombine.high %v450, %v450
      %v453 = vcombine.high %v284, %v284
      %v455 = vunpack.c.l.s4 1983009808
      %v456 = vunpack.c.0.s8 %v455
      %v457 = vlaneseq
      %v458 = vshrl.u32 %v457, 7
      %v459 = vsub.s32 %v456, %v458
      %v460 = vrot.slane %v284, %v459
      %v462 = vunpack.c.l.s4 1983009808
      %v463 = vunpack.c.0.s8 %v462
      %v464 = vlaneseq
      %v465 = vshrl.u32 %v464, 7
      %v466 = vsub.s32 %v463, %v465
      %v467 = vrot.slane %v453, %v466
      %v468 = vcombine.high %v460, %v460
      %v469 = vcombine.high %v285, %v285
      %v471 = vunpack.c.l.s4 1983009808
      %v472 = vunpack.c.0.s8 %v471
      %v473 = vlaneseq
      %v474 = vshrl.u32 %v473, 7
      %v475 = vsub.s32 %v472, %v474
      %v476 = vrot.slane %v285, %v475
      %v478 = vunpack.c.l.s4 1983009808
      %v479 = vunpack.c.0.s8 %v478
      %v480 = vlaneseq
      %v481 = vshrl.u32 %v480, 7
      %v482 = vsub.s32 %v479, %v481
      %v483 = vrot.slane %v469, %v482
      %v484 = vcombine.high %v476, %v476
      %v485 = vcombine.high %v483, %v483
      %v486 = vcombine.high %v286, %v286
      %v488 = vunpack.c.l.s4 1983009808
      %v489 = vunpack.c.0.s8 %v488
      %v490 = vlaneseq
      %v491 = vshrl.u32 %v490, 7
      %v492 = vsub.s32 %v489, %v491
      %v493 = vrot.slane %v286, %v492
      %v495 = vunpack.c.l.s4 1983009808
      %v496 = vunpack.c.0.s8 %v495
      %v497 = vlaneseq
      %v498 = vshrl.u32 %v497, 7
      %v499 = vsub.s32 %v496, %v498
      %v500 = vrot.slane %v486, %v499
      %v501 = vcombine.high %v493, %v493
      %v502 = vcombine.high %v287, %v287
      %v504 = vunpack.c.l.s4 1983009808
      %v505 = vunpack.c.0.s8 %v504
      %v506 = vlaneseq
      %v507 = vshrl.u32 %v506, 7
      %v508 = vsub.s32 %v505, %v507
      %v509 = vrot.slane %v287, %v508
      %v511 = vunpack.c.l.s4 1983009808
      %v512 = vunpack.c.0.s8 %v511
      %v513 = vlaneseq
      %v514 = vshrl.u32 %v513, 7
      %v515 = vsub.s32 %v512, %v514
      %v516 = vrot.slane %v502, %v515
      %v517 = vcombine.high %v509, %v509
      %v518 = vcombine.high %v516, %v516
      %v519 = vcombine.high %v288, %v288
      %v521 = vunpack.c.l.s4 1983009808
      %v522 = vunpack.c.0.s8 %v521
      %v523 = vlaneseq
      %v524 = vshrl.u32 %v523, 7
      %v525 = vsub.s32 %v522, %v524
      %v526 = vrot.slane %v288, %v525
      %v528 = vunpack.c.l.s4 1983009808
      %v529 = vunpack.c.0.s8 %v528
      %v530 = vlaneseq
      %v531 = vshrl.u32 %v530, 7
      %v532 = vsub.s32 %v529, %v531
      %v533 = vrot.slane %v519, %v532
      %v534 = vcombine.high %v526, %v526
      %v535 = vcombine.high %v289, %v289
      %v537 = vunpack.c.l.s4 1983009808
      %v538 = vunpack.c.0.s8 %v537
      %v539 = vlaneseq
      %v540 = vshrl.u32 %v539, 7
      %v541 = vsub.s32 %v538, %v540
      %v542 = vrot.slane %v289, %v541
      %v544 = vunpack.c.l.s4 1983009808
      %v545 = vunpack.c.0.s8 %v544
      %v546 = vlaneseq
      %v547 = vshrl.u32 %v546, 7
      %v548 = vsub.s32 %v545, %v547
      %v549 = vrot.slane %v535, %v548
      %v550 = vcombine.high %v542, %v542
      %v551 = vcombine.high %v549, %v549
      %v552 = vcombine.high %v290, %v290
      %v554 = vunpack.c.l.s4 1983009808
      %v555 = vunpack.c.0.s8 %v554
      %v556 = vlaneseq
      %v557 = vshrl.u32 %v556, 7
      %v558 = vsub.s32 %v555, %v557
      %v559 = vrot.slane %v290, %v558
      %v561 = vunpack.c.l.s4 1983009808
      %v562 = vunpack.c.0.s8 %v561
      %v563 = vlaneseq
      %v564 = vshrl.u32 %v563, 7
      %v565 = vsub.s32 %v562, %v564
      %v566 = vrot.slane %v552, %v565
      %v567 = vcombine.high %v559, %v559
      %v568 = vcombine.high %v291, %v291
      %v570 = vunpack.c.l.s4 1983009808
      %v571 = vunpack.c.0.s8 %v570
      %v572 = vlaneseq
      %v573 = vshrl.u32 %v572, 7
      %v574 = vsub.s32 %v571, %v573
      %v575 = vrot.slane %v291, %v574
      %v577 = vunpack.c.l.s4 1983009808
      %v578 = vunpack.c.0.s8 %v577
      %v579 = vlaneseq
      %v580 = vshrl.u32 %v579, 7
      %v581 = vsub.s32 %v578, %v580
      %v582 = vrot.slane %v568, %v581
      %v583 = vcombine.high %v575, %v575
      %v584 = vcombine.high %v582, %v582
      %v585 = vcombine.high %v292, %v292
      %v587 = vunpack.c.l.s4 1983009808
      %v588 = vunpack.c.0.s8 %v587
      %v589 = vlaneseq
      %v590 = vshrl.u32 %v589, 7
      %v591 = vsub.s32 %v588, %v590
      %v592 = vrot.slane %v292, %v591
      %v594 = vunpack.c.l.s4 1983009808
      %v595 = vunpack.c.0.s8 %v594
      %v596 = vlaneseq
      %v597 = vshrl.u32 %v596, 7
      %v598 = vsub.s32 %v595, %v597
      %v599 = vrot.slane %v585, %v598
      %v600 = vcombine.high %v592, %v592
      %v601 = vcombine.high %v293, %v293
      %v603 = vunpack.c.l.s4 1983009808
      %v604 = vunpack.c.0.s8 %v603
      %v605 = vlaneseq
      %v606 = vshrl.u32 %v605, 7
      %v607 = vsub.s32 %v604, %v606
      %v608 = vrot.slane %v293, %v607
      %v610 = vunpack.c.l.s4 1983009808
      %v611 = vunpack.c.0.s8 %v610
      %v612 = vlaneseq
      %v613 = vshrl.u32 %v612, 7
      %v614 = vsub.s32 %v611, %v613
      %v615 = vrot.slane %v601, %v614
      %v616 = vcombine.high %v608, %v608
      %v617 = vcombine.high %v615, %v615
      %v618 = vcombine.high %v294, %v294
      %v620 = vunpack.c.l.s4 1983009808
      %v621 = vunpack.c.0.s8 %v620
      %v622 = vlaneseq
      %v623 = vshrl.u32 %v622, 7
      %v624 = vsub.s32 %v621, %v623
      %v625 = vrot.slane %v294, %v624
      %v627 = vunpack.c.l.s4 1983009808
      %v628 = vunpack.c.0.s8 %v627
      %v629 = vlaneseq
      %v630 = vshrl.u32 %v629, 7
      %v631 = vsub.s32 %v628, %v630
      %v632 = vrot.slane %v618, %v631
      %v633 = vcombine.high %v625, %v625
      %v634 = vcombine.high %v295, %v295
      %v636 = vunpack.c.l.s4 1983009808
      %v637 = vunpack.c.0.s8 %v636
      %v638 = vlaneseq
      %v639 = vshrl.u32 %v638, 7
      %v640 = vsub.s32 %v637, %v639
      %v641 = vrot.slane %v295, %v640
      %v643 = vunpack.c.l.s4 1983009808
      %v644 = vunpack.c.0.s8 %v643
      %v645 = vlaneseq
      %v646 = vshrl.u32 %v645, 7
      %v647 = vsub.s32 %v644, %v646
      %v648 = vrot.slane %v634, %v647
      %v649 = vcombine.high %v641, %v641
      %v650 = vcombine.high %v648, %v648
      %v651 = vcombine.high %v296, %v296
      %v653 = vunpack.c.l.s4 1983009808
      %v654 = vunpack.c.0.s8 %v653
      %v655 = vlaneseq
      %v656 = vshrl.u32 %v655, 7
      %v657 = vsub.s32 %v654, %v656
      %v658 = vrot.slane %v296, %v657
      %v660 = vunpack.c.l.s4 1983009808
      %v661 = vunpack.c.0.s8 %v660
      %v662 = vlaneseq
      %v663 = vshrl.u32 %v662, 7
      %v664 = vsub.s32 %v661, %v663
      %v665 = vrot.slane %v651, %v664
      %v666 = vcombine.high %v658, %v658
      %v667 = vcombine.high %v297, %v297
      %v669 = vunpack.c.l.s4 1983009808
      %v670 = vunpack.c.0.s8 %v669
      %v671 = vlaneseq
      %v672 = vshrl.u32 %v671, 7
      %v673 = vsub.s32 %v670, %v672
      %v674 = vrot.slane %v297, %v673
      %v676 = vunpack.c.l.s4 1983009808
      %v677 = vunpack.c.0.s8 %v676
      %v678 = vlaneseq
      %v679 = vshrl.u32 %v678, 7
      %v680 = vsub.s32 %v677, %v679
      %v681 = vrot.slane %v667, %v680
      %v682 = vcombine.high %v674, %v674
      %v683 = vcombine.high %v681, %v681
      %v684 = vcombine.high %v298, %v298
      %v686 = vunpack.c.l.s4 1983009808
      %v687 = vunpack.c.0.s8 %v686
      %v688 = vlaneseq
      %v689 = vshrl.u32 %v688, 7
      %v690 = vsub.s32 %v687, %v689
      %v691 = vrot.slane %v298, %v690
      %v693 = vunpack.c.l.s4 1983009808
      %v694 = vunpack.c.0.s8 %v693
      %v695 = vlaneseq
      %v696 = vshrl.u32 %v695, 7
      %v697 = vsub.s32 %v694, %v696
      %v698 = vrot.slane %v684, %v697
      %v699 = vcombine.high %v691, %v691
      %v700 = vcombine.high %v299, %v299
      %v702 = vunpack.c.l.s4 1983009808
      %v703 = vunpack.c.0.s8 %v702
      %v704 = vlaneseq
      %v705 = vshrl.u32 %v704, 7
      %v706 = vsub.s32 %v703, %v705
      %v707 = vrot.slane %v299, %v706
      %v709 = vunpack.c.l.s4 1983009808
      %v710 = vunpack.c.0.s8 %v709
      %v711 = vlaneseq
      %v712 = vshrl.u32 %v711, 7
      %v713 = vsub.s32 %v710, %v712
      %v714 = vrot.slane %v700, %v713
      %v715 = vcombine.high %v707, %v707
      %v716 = vcombine.high %v714, %v714
      %v717 = vcombine.high %v300, %v300
      %v719 = vunpack.c.l.s4 1983009808
      %v720 = vunpack.c.0.s8 %v719
      %v721 = vlaneseq
      %v722 = vshrl.u32 %v721, 7
      %v723 = vsub.s32 %v720, %v722
      %v724 = vrot.slane %v300, %v723
      %v726 = vunpack.c.l.s4 1983009808
      %v727 = vunpack.c.0.s8 %v726
      %v728 = vlaneseq
      %v729 = vshrl.u32 %v728, 7
      %v730 = vsub.s32 %v727, %v729
      %v731 = vrot.slane %v717, %v730
      %v732 = vcombine.high %v724, %v724
      %v733 = vcombine.high %v301, %v301
      %v735 = vunpack.c.l.s4 1983009808
      %v736 = vunpack.c.0.s8 %v735
      %v737 = vlaneseq
      %v738 = vshrl.u32 %v737, 7
      %v739 = vsub.s32 %v736, %v738
      %v740 = vrot.slane %v301, %v739
      %v742 = vunpack.c.l.s4 1983009808
      %v743 = vunpack.c.0.s8 %v742
      %v744 = vlaneseq
      %v745 = vshrl.u32 %v744, 7
      %v746 = vsub.s32 %v743, %v745
      %v747 = vrot.slane %v733, %v746
      %v748 = vcombine.high %v740, %v740
      %v749 = vcombine.high %v747, %v747
      %v750 = vcombine.high %v302, %v302
      %v752 = vunpack.c.l.s4 1983009808
      %v753 = vunpack.c.0.s8 %v752
      %v754 = vlaneseq
      %v755 = vshrl.u32 %v754, 7
      %v756 = vsub.s32 %v753, %v755
      %v757 = vrot.slane %v302, %v756
      %v759 = vunpack.c.l.s4 1983009808
      %v760 = vunpack.c.0.s8 %v759
      %v761 = vlaneseq
      %v762 = vshrl.u32 %v761, 7
      %v763 = vsub.s32 %v760, %v762
      %v764 = vrot.slane %v750, %v763
      %v765 = vcombine.high %v757, %v757
      %v766 = vcombine.high %v303, %v303
      %v768 = vunpack.c.l.s4 1983009808
      %v769 = vunpack.c.0.s8 %v768
      %v770 = vlaneseq
      %v771 = vshrl.u32 %v770, 7
      %v772 = vsub.s32 %v769, %v771
      %v773 = vrot.slane %v303, %v772
      %v775 = vunpack.c.l.s4 1983009808
      %v776 = vunpack.c.0.s8 %v775
      %v777 = vlaneseq
      %v778 = vshrl.u32 %v777, 7
      %v779 = vsub.s32 %v776, %v778
      %v780 = vrot.slane %v766, %v779
      %v781 = vcombine.high %v773, %v773
      %v782 = vcombine.high %v780, %v780
      %v783 = vcombine.high %v304, %v304
      %v785 = vunpack.c.l.s4 1983009808
      %v786 = vunpack.c.0.s8 %v785
      %v787 = vlaneseq
      %v788 = vshrl.u32 %v787, 7
      %v789 = vsub.s32 %v786, %v788
      %v790 = vrot.slane %v304, %v789
      %v792 = vunpack.c.l.s4 1983009808
      %v793 = vunpack.c.0.s8 %v792
      %v794 = vlaneseq
      %v795 = vshrl.u32 %v794, 7
      %v796 = vsub.s32 %v793, %v795
      %v797 = vrot.slane %v783, %v796
      %v798 = vcombine.high %v790, %v790
      %v799 = vcombine.high %v368, %v368
      %v800 = vcombine.high %v401, %v401
      %v801 = vcombine.high %v434, %v434
      %v802 = vcombine.high %v467, %v467
      %v803 = vcombine.high %v500, %v500
      %v804 = vcombine.high %v533, %v533
      %v805 = vcombine.high %v566, %v566
      %v806 = vcombine.high %v599, %v599
      %v807 = vcombine.high %v632, %v632
      %v808 = vcombine.high %v665, %v665
      %v809 = vcombine.high %v698, %v698
      %v810 = vcombine.high %v731, %v731
      %v811 = vcombine.high %v764, %v764
      %v812 = vcombine.high %v797, %v797
      %vm813 = vcmask 1040384
      %vm814 = vcmask 1042434
      %vm815 = vmor %vm813, %vm814
      %vm816 = vcmask 1044484
      %vm817 = vmor %vm815, %vm816
      %vm818 = vcmask 1046534
      %vm819 = vmor %vm817, %vm818
      %v820 = vrot.slane %v344, 7
      %v821 = vrot.slane %v820, 2
      %v822 = vrot.slane %v352, 7
      %v823 = vsel %vm819, %v821, %v822
      %v824 = vrot.slane %v822, 2
      %v825 = vrot.slane %v351, 7
      %v826 = vsel %vm819, %v824, %v825
      %v827 = vrot.slane %v825, 2
      %v828 = vrot.slane %v353, 7
      %v829 = vsel %vm819, %v827, %v828
      %v830 = vrot.slane %v828, 2
      %v831 = vrot.slane %v361, 7
      %v832 = vsel %vm819, %v830, %v831
      %v833 = vrot.slane %v831, 2
      %v834 = vrot.slane %v369, 7
      %v835 = vsel %vm819, %v833, %v834
      %v836 = vrot.slane %v834, 2
      %v837 = vrot.slane %v368, 7
      %v838 = vsel %vm819, %v836, %v837
      %v839 = vrot.slane %v837, 2
      %v840 = vrot.slane %v799, 7
      %v841 = vsel %vm819, %v839, %v840
      %v842 = vrot.slane %v377, 7
      %v843 = vrot.slane %v842, 2
      %v844 = vrot.slane %v385, 7
      %v845 = vsel %vm819, %v843, %v844
      %v846 = vrot.slane %v844, 2
      %v847 = vrot.slane %v384, 7
      %v848 = vsel %vm819, %v846, %v847
      %v849 = vrot.slane %v847, 2
      %v850 = vrot.slane %v386, 7
      %v851 = vsel %vm819, %v849, %v850
      %v852 = vrot.slane %v850, 2
      %v853 = vrot.slane %v394, 7
      %v854 = vsel %vm819, %v852, %v853
      %v855 = vrot.slane %v853, 2
      %v856 = vrot.slane %v402, 7
      %v857 = vsel %vm819, %v855, %v856
      %v858 = vrot.slane %v856, 2
      %v859 = vrot.slane %v401, 7
      %v860 = vsel %vm819, %v858, %v859
      %v861 = vrot.slane %v859, 2
      %v862 = vrot.slane %v800, 7
      %v863 = vsel %vm819, %v861, %v862
      %v864 = vrot.slane %v410, 7
      %v865 = vrot.slane %v864, 2
      %v866 = vrot.slane %v418, 7
      %v867 = vsel %vm819, %v865, %v866
      %v868 = vrot.slane %v866, 2
      %v869 = vrot.slane %v417, 7
      %v870 = vsel %vm819, %v868, %v869
      %v871 = vrot.slane %v869, 2
      %v872 = vrot.slane %v419, 7
      %v873 = vsel %vm819, %v871, %v872
      %v874 = vrot.slane %v872, 2
      %v875 = vrot.slane %v427, 7
      %v876 = vsel %vm819, %v874, %v875
      %v877 = vrot.slane %v875, 2
      %v878 = vrot.slane %v435, 7
      %v879 = vsel %vm819, %v877, %v878
      %v880 = vrot.slane %v878, 2
      %v881 = vrot.slane %v434, 7
      %v882 = vsel %vm819, %v880, %v881
      %v883 = vrot.slane %v881, 2
      %v884 = vrot.slane %v801, 7
      %v885 = vsel %vm819, %v883, %v884
      %v886 = vrot.slane %v443, 7
      %v887 = vrot.slane %v886, 2
      %v888 = vrot.slane %v451, 7
      %v889 = vsel %vm819, %v887, %v888
      %v890 = vrot.slane %v888, 2
      %v891 = vrot.slane %v450, 7
      %v892 = vsel %vm819, %v890, %v891
      %v893 = vrot.slane %v891, 2
      %v894 = vrot.slane %v452, 7
      %v895 = vsel %vm819, %v893, %v894
      %v896 = vrot.slane %v894, 2
      %v897 = vrot.slane %v460, 7
      %v898 = vsel %vm819, %v896, %v897
      %v899 = vrot.slane %v897, 2
      %v900 = vrot.slane %v468, 7
      %v901 = vsel %vm819, %v899, %v900
      %v902 = vrot.slane %v900, 2
      %v903 = vrot.slane %v467, 7
      %v904 = vsel %vm819, %v902, %v903
      %v905 = vrot.slane %v903, 2
      %v906 = vrot.slane %v802, 7
      %v907 = vsel %vm819, %v905, %v906
      %v908 = vrot.slane %v476, 7
      %v909 = vrot.slane %v908, 2
      %v910 = vrot.slane %v484, 7
      %v911 = vsel %vm819, %v909, %v910
      %v912 = vrot.slane %v910, 2
      %v913 = vrot.slane %v483, 7
      %v914 = vsel %vm819, %v912, %v913
      %v915 = vrot.slane %v913, 2
      %v916 = vrot.slane %v485, 7
      %v917 = vsel %vm819, %v915, %v916
      %v918 = vrot.slane %v916, 2
      %v919 = vrot.slane %v493, 7
      %v920 = vsel %vm819, %v918, %v919
      %v921 = vrot.slane %v919, 2
      %v922 = vrot.slane %v501, 7
      %v923 = vsel %vm819, %v921, %v922
      %v924 = vrot.slane %v922, 2
      %v925 = vrot.slane %v500, 7
      %v926 = vsel %vm819, %v924, %v925
      %v927 = vrot.slane %v925, 2
      %v928 = vrot.slane %v803, 7
      %v929 = vsel %vm819, %v927, %v928
      %v930 = vrot.slane %v509, 7
      %v931 = vrot.slane %v930, 2
      %v932 = vrot.slane %v517, 7
      %v933 = vsel %vm819, %v931, %v932
      %v934 = vrot.slane %v932, 2
      %v935 = vrot.slane %v516, 7
      %v936 = vsel %vm819, %v934, %v935
      %v937 = vrot.slane %v935, 2
      %v938 = vrot.slane %v518, 7
      %v939 = vsel %vm819, %v937, %v938
      %v940 = vrot.slane %v938, 2
      %v941 = vrot.slane %v526, 7
      %v942 = vsel %vm819, %v940, %v941
      %v943 = vrot.slane %v941, 2
      %v944 = vrot.slane %v534, 7
      %v945 = vsel %vm819, %v943, %v944
      %v946 = vrot.slane %v944, 2
      %v947 = vrot.slane %v533, 7
      %v948 = vsel %vm819, %v946, %v947
      %v949 = vrot.slane %v947, 2
      %v950 = vrot.slane %v804, 7
      %v951 = vsel %vm819, %v949, %v950
      %v952 = vrot.slane %v542, 7
      %v953 = vrot.slane %v952, 2
      %v954 = vrot.slane %v550, 7
      %v955 = vsel %vm819, %v953, %v954
      %v956 = vrot.slane %v954, 2
      %v957 = vrot.slane %v549, 7
      %v958 = vsel %vm819, %v956, %v957
      %v959 = vrot.slane %v957, 2
      %v960 = vrot.slane %v551, 7
      %v961 = vsel %vm819, %v959, %v960
      %v962 = vrot.slane %v960, 2
      %v963 = vrot.slane %v559, 7
      %v964 = vsel %vm819, %v962, %v963
      %v965 = vrot.slane %v963, 2
      %v966 = vrot.slane %v567, 7
      %v967 = vsel %vm819, %v965, %v966
      %v968 = vrot.slane %v966, 2
      %v969 = vrot.slane %v566, 7
      %v970 = vsel %vm819, %v968, %v969
      %v971 = vrot.slane %v969, 2
      %v972 = vrot.slane %v805, 7
      %v973 = vsel %vm819, %v971, %v972
      %v974 = vrot.slane %v575, 7
      %v975 = vrot.slane %v974, 2
      %v976 = vrot.slane %v583, 7
      %v977 = vsel %vm819, %v975, %v976
      %v978 = vrot.slane %v976, 2
      %v979 = vrot.slane %v582, 7
      %v980 = vsel %vm819, %v978, %v979
      %v981 = vrot.slane %v979, 2
      %v982 = vrot.slane %v584, 7
      %v983 = vsel %vm819, %v981, %v982
      %v984 = vrot.slane %v982, 2
      %v985 = vrot.slane %v592, 7
      %v986 = vsel %vm819, %v984, %v985
      %v987 = vrot.slane %v985, 2
      %v988 = vrot.slane %v600, 7
      %v989 = vsel %vm819, %v987, %v988
      %v990 = vrot.slane %v988, 2
      %v991 = vrot.slane %v599, 7
      %v992 = vsel %vm819, %v990, %v991
      %v993 = vrot.slane %v991, 2
      %v994 = vrot.slane %v806, 7
      %v995 = vsel %vm819, %v993, %v994
      %v996 = vrot.slane %v608, 7
      %v997 = vrot.slane %v996, 2
      %v998 = vrot.slane %v616, 7
      %v999 = vsel %vm819, %v997, %v998
      %v1000 = vrot.slane %v998, 2
      %v1001 = vrot.slane %v615, 7
      %v1002 = vsel %vm819, %v1000, %v1001
      %v1003 = vrot.slane %v1001, 2
      %v1004 = vrot.slane %v617, 7
      %v1005 = vsel %vm819, %v1003, %v1004
      %v1006 = vrot.slane %v1004, 2
      %v1007 = vrot.slane %v625, 7
      %v1008 = vsel %vm819, %v1006, %v1007
      %v1009 = vrot.slane %v1007, 2
      %v1010 = vrot.slane %v633, 7
      %v1011 = vsel %vm819, %v1009, %v1010
      %v1012 = vrot.slane %v1010, 2
      %v1013 = vrot.slane %v632, 7
      %v1014 = vsel %vm819, %v1012, %v1013
      %v1015 = vrot.slane %v1013, 2
      %v1016 = vrot.slane %v807, 7
      %v1017 = vsel %vm819, %v1015, %v1016
      %v1018 = vrot.slane %v641, 7
      %v1019 = vrot.slane %v1018, 2
      %v1020 = vrot.slane %v649, 7
      %v1021 = vsel %vm819, %v1019, %v1020
      %v1022 = vrot.slane %v1020, 2
      %v1023 = vrot.slane %v648, 7
      %v1024 = vsel %vm819, %v1022, %v1023
      %v1025 = vrot.slane %v1023, 2
      %v1026 = vrot.slane %v650, 7
      %v1027 = vsel %vm819, %v1025, %v1026
      %v1028 = vrot.slane %v1026, 2
      %v1029 = vrot.slane %v658, 7
      %v1030 = vsel %vm819, %v1028, %v1029
      %v1031 = vrot.slane %v1029, 2
      %v1032 = vrot.slane %v666, 7
      %v1033 = vsel %vm819, %v1031, %v1032
      %v1034 = vrot.slane %v1032, 2
      %v1035 = vrot.slane %v665, 7
      %v1036 = vsel %vm819, %v1034, %v1035
      %v1037 = vrot.slane %v1035, 2
      %v1038 = vrot.slane %v808, 7
      %v1039 = vsel %vm819, %v1037, %v1038
      %v1040 = vrot.slane %v674, 7
      %v1041 = vrot.slane %v1040, 2
      %v1042 = vrot.slane %v682, 7
      %v1043 = vsel %vm819, %v1041, %v1042
      %v1044 = vrot.slane %v1042, 2
      %v1045 = vrot.slane %v681, 7
      %v1046 = vsel %vm819, %v1044, %v1045
      %v1047 = vrot.slane %v1045, 2
      %v1048 = vrot.slane %v683, 7
      %v1049 = vsel %vm819, %v1047, %v1048
      %v1050 = vrot.slane %v1048, 2
      %v1051 = vrot.slane %v691, 7
      %v1052 = vsel %vm819, %v1050, %v1051
      %v1053 = vrot.slane %v1051, 2
      %v1054 = vrot.slane %v699, 7
      %v1055 = vsel %vm819, %v1053, %v1054
      %v1056 = vrot.slane %v1054, 2
      %v1057 = vrot.slane %v698, 7
      %v1058 = vsel %vm819, %v1056, %v1057
      %v1059 = vrot.slane %v1057, 2
      %v1060 = vrot.slane %v809, 7
      %v1061 = vsel %vm819, %v1059, %v1060
      %v1062 = vrot.slane %v707, 7
      %v1063 = vrot.slane %v1062, 2
      %v1064 = vrot.slane %v715, 7
      %v1065 = vsel %vm819, %v1063, %v1064
      %v1066 = vrot.slane %v1064, 2
      %v1067 = vrot.slane %v714, 7
      %v1068 = vsel %vm819, %v1066, %v1067
      %v1069 = vrot.slane %v1067, 2
      %v1070 = vrot.slane %v716, 7
      %v1071 = vsel %vm819, %v1069, %v1070
      %v1072 = vrot.slane %v1070, 2
      %v1073 = vrot.slane %v724, 7
      %v1074 = vsel %vm819, %v1072, %v1073
      %v1075 = vrot.slane %v1073, 2
      %v1076 = vrot.slane %v732, 7
      %v1077 = vsel %vm819, %v1075, %v1076
      %v1078 = vrot.slane %v1076, 2
      %v1079 = vrot.slane %v731, 7
      %v1080 = vsel %vm819, %v1078, %v1079
      %v1081 = vrot.slane %v1079, 2
      %v1082 = vrot.slane %v810, 7
      %v1083 = vsel %vm819, %v1081, %v1082
      %v1084 = vrot.slane %v740, 7
      %v1085 = vrot.slane %v1084, 2
      %v1086 = vrot.slane %v748, 7
      %v1087 = vsel %vm819, %v1085, %v1086
      %v1088 = vrot.slane %v1086, 2
      %v1089 = vrot.slane %v747, 7
      %v1090 = vsel %vm819, %v1088, %v1089
      %v1091 = vrot.slane %v1089, 2
      %v1092 = vrot.slane %v749, 7
      %v1093 = vsel %vm819, %v1091, %v1092
      %v1094 = vrot.slane %v1092, 2
      %v1095 = vrot.slane %v757, 7
      %v1096 = vsel %vm819, %v1094, %v1095
      %v1097 = vrot.slane %v1095, 2
      %v1098 = vrot.slane %v765, 7
      %v1099 = vsel %vm819, %v1097, %v1098
      %v1100 = vrot.slane %v1098, 2
      %v1101 = vrot.slane %v764, 7
      %v1102 = vsel %vm819, %v1100, %v1101
      %v1103 = vrot.slane %v1101, 2
      %v1104 = vrot.slane %v811, 7
      %v1105 = vsel %vm819, %v1103, %v1104
      %v1106 = vrot.slane %v773, 7
      %v1107 = vrot.slane %v1106, 2
      %v1108 = vrot.slane %v781, 7
      %v1109 = vsel %vm819, %v1107, %v1108
      %v1110 = vrot.slane %v1108, 2
      %v1111 = vrot.slane %v780, 7
      %v1112 = vsel %vm819, %v1110, %v1111
      %v1113 = vrot.slane %v1111, 2
      %v1114 = vrot.slane %v782, 7
      %v1115 = vsel %vm819, %v1113, %v1114
      %v1116 = vrot.slane %v1114, 2
      %v1117 = vrot.slane %v790, 7
      %v1118 = vsel %vm819, %v1116, %v1117
      %v1119 = vrot.slane %v1117, 2
      %v1120 = vrot.slane %v798, 7
      %v1121 = vsel %vm819, %v1119, %v1120
      %v1122 = vrot.slane %v1120, 2
      %v1123 = vrot.slane %v797, 7
      %v1124 = vsel %vm819, %v1122, %v1123
      %v1125 = vrot.slane %v1123, 2
      %v1126 = vrot.slane %v812, 7
      %v1127 = vsel %vm819, %v1125, %v1126
      %v1130 = vcombine.high %v305, %v305
      %v1132 = vunpack.c.l.s4 1983009808
      %v1133 = vunpack.c.0.s8 %v1132
      %v1134 = vlaneseq
      %v1135 = vshrl.u32 %v1134, 7
      %v1136 = vsub.s32 %v1133, %v1135
      %v1137 = vrot.slane %v305, %v1136
      %v1139 = vunpack.c.l.s4 1983009808
      %v1140 = vunpack.c.0.s8 %v1139
      %v1141 = vlaneseq
      %v1142 = vshrl.u32 %v1141, 7
      %v1143 = vsub.s32 %v1140, %v1142
      %v1144 = vrot.slane %v1130, %v1143
      %v1145 = vcombine.high %v1137, %v1137
      %v1146 = vcombine.high %v1144, %v1144
      %v1147 = vcombine.high %v306, %v306
      %v1149 = vunpack.c.l.s4 1983009808
      %v1150 = vunpack.c.0.s8 %v1149
      %v1151 = vlaneseq
      %v1152 = vshrl.u32 %v1151, 7
      %v1153 = vsub.s32 %v1150, %v1152
      %v1154 = vrot.slane %v306, %v1153
      %v1156 = vunpack.c.l.s4 1983009808
      %v1157 = vunpack.c.0.s8 %v1156
      %v1158 = vlaneseq
      %v1159 = vshrl.u32 %v1158, 7
      %v1160 = vsub.s32 %v1157, %v1159
      %v1161 = vrot.slane %v1147, %v1160
      %v1162 = vcombine.high %v1154, %v1154
      %v1163 = vcombine.high %v1161, %v1161
      %v1164 = vrot.slane %v1137, 7
      %v1165 = vrot.slane %v1164, 2
      %v1166 = vrot.slane %v1145, 7
      %v1167 = vsel %vm819, %v1165, %v1166
      %v1168 = vrot.slane %v1166, 2
      %v1169 = vrot.slane %v1144, 7
      %v1170 = vsel %vm819, %v1168, %v1169
      %v1171 = vrot.slane %v1169, 2
      %v1172 = vrot.slane %v1146, 7
      %v1173 = vsel %vm819, %v1171, %v1172
      %v1174 = vrot.slane %v1172, 2
      %v1175 = vrot.slane %v1154, 7
      %v1176 = vsel %vm819, %v1174, %v1175
      %v1177 = vrot.slane %v1175, 2
      %v1178 = vrot.slane %v1162, 7
      %v1179 = vsel %vm819, %v1177, %v1178
      %v1180 = vrot.slane %v1178, 2
      %v1181 = vrot.slane %v1161, 7
      %v1182 = vsel %vm819, %v1180, %v1181
      %v1183 = vrot.slane %v1181, 2
      %v1184 = vrot.slane %v1163, 7
      %v1185 = vsel %vm819, %v1183, %v1184
      %v1188 = vcombine.high %v307, %v307
      %v1190 = vunpack.c.l.s4 1983009808
      %v1191 = vunpack.c.0.s8 %v1190
      %v1192 = vlaneseq
      %v1193 = vshrl.u32 %v1192, 7
      %v1194 = vsub.s32 %v1191, %v1193
      %v1195 = vrot.slane %v307, %v1194
      %v1197 = vunpack.c.l.s4 1983009808
      %v1198 = vunpack.c.0.s8 %v1197
      %v1199 = vlaneseq
      %v1200 = vshrl.u32 %v1199, 7
      %v1201 = vsub.s32 %v1198, %v1200
      %v1202 = vrot.slane %v1188, %v1201
      %v1203 = vcombine.high %v1195, %v1195
      %v1204 = vcombine.high %v1202, %v1202
      %v1205 = vcombine.high %v308, %v308
      %v1207 = vunpack.c.l.s4 1983009808
      %v1208 = vunpack.c.0.s8 %v1207
      %v1209 = vlaneseq
      %v1210 = vshrl.u32 %v1209, 7
      %v1211 = vsub.s32 %v1208, %v1210
      %v1212 = vrot.slane %v308, %v1211
      %v1214 = vunpack.c.l.s4 1983009808
      %v1215 = vunpack.c.0.s8 %v1214
      %v1216 = vlaneseq
      %v1217 = vshrl.u32 %v1216, 7
      %v1218 = vsub.s32 %v1215, %v1217
      %v1219 = vrot.slane %v1205, %v1218
      %v1220 = vcombine.high %v1212, %v1212
      %v1221 = vcombine.high %v1219, %v1219
      %v1222 = vrot.slane %v1195, 7
      %v1223 = vrot.slane %v1222, 2
      %v1224 = vrot.slane %v1203, 7
      %v1225 = vsel %vm819, %v1223, %v1224
      %v1226 = vrot.slane %v1224, 2
      %v1227 = vrot.slane %v1202, 7
      %v1228 = vsel %vm819, %v1226, %v1227
      %v1229 = vrot.slane %v1227, 2
      %v1230 = vrot.slane %v1204, 7
      %v1231 = vsel %vm819, %v1229, %v1230
      %v1232 = vrot.slane %v1230, 2
      %v1233 = vrot.slane %v1212, 7
      %v1234 = vsel %vm819, %v1232, %v1233
      %v1235 = vrot.slane %v1233, 2
      %v1236 = vrot.slane %v1220, 7
      %v1237 = vsel %vm819, %v1235, %v1236
      %v1238 = vrot.slane %v1236, 2
      %v1239 = vrot.slane %v1219, 7
      %v1240 = vsel %vm819, %v1238, %v1239
      %v1241 = vrot.slane %v1239, 2
      %v1242 = vrot.slane %v1221, 7
      %v1243 = vsel %vm819, %v1241, %v1242
      %v1244 = vcombine.low %v344, %v352
      %v1245 = vcombine.low %v351, %v353
      %v1247 = vunpack.c.l.s4 1983009808
      %v1248 = vunpack.c.0.s8 %v1247
      %v1249 = vlaneseq
      %v1250 = vshrl.u32 %v1249, 7
      %v1251 = vsub.s32 %v1248, %v1250
      %v1252 = vrot.slane %v1244, %v1251
      %v1254 = vunpack.c.l.s4 1983009808
      %v1255 = vunpack.c.0.s8 %v1254
      %v1256 = vlaneseq
      %v1257 = vshrl.u32 %v1256, 7
      %v1258 = vsub.s32 %v1255, %v1257
      %v1259 = vrot.slane %v1245, %v1258
      %v1260 = vcombine.low %v1252, %v1259
      %v1261 = vcombine.low %v361, %v369
      %v1262 = vcombine.low %v368, %v377
      %v1264 = vunpack.c.l.s4 1983009808
      %v1265 = vunpack.c.0.s8 %v1264
      %v1266 = vlaneseq
      %v1267 = vshrl.u32 %v1266, 7
      %v1268 = vsub.s32 %v1265, %v1267
      %v1269 = vrot.slane %v1261, %v1268
      %v1271 = vunpack.c.l.s4 1983009808
      %v1272 = vunpack.c.0.s8 %v1271
      %v1273 = vlaneseq
      %v1274 = vshrl.u32 %v1273, 7
      %v1275 = vsub.s32 %v1272, %v1274
      %v1276 = vrot.slane %v1262, %v1275
      %v1277 = vcombine.low %v1269, %v1276
      %v1278 = vcombine.low %v385, %v384
      %v1279 = vcombine.low %v386, %v394
      %v1281 = vunpack.c.l.s4 1983009808
      %v1282 = vunpack.c.0.s8 %v1281
      %v1283 = vlaneseq
      %v1284 = vshrl.u32 %v1283, 7
      %v1285 = vsub.s32 %v1282, %v1284
      %v1286 = vrot.slane %v1278, %v1285
      %v1288 = vunpack.c.l.s4 1983009808
      %v1289 = vunpack.c.0.s8 %v1288
      %v1290 = vlaneseq
      %v1291 = vshrl.u32 %v1290, 7
      %v1292 = vsub.s32 %v1289, %v1291
      %v1293 = vrot.slane %v1279, %v1292
      %v1294 = vcombine.low %v1286, %v1293
      %v1295 = vcombine.low %v402, %v401
      %v1296 = vcombine.low %v410, %v418
      %v1298 = vunpack.c.l.s4 1983009808
      %v1299 = vunpack.c.0.s8 %v1298
      %v1300 = vlaneseq
      %v1301 = vshrl.u32 %v1300, 7
      %v1302 = vsub.s32 %v1299, %v1301
      %v1303 = vrot.slane %v1295, %v1302
      %v1305 = vunpack.c.l.s4 1983009808
      %v1306 = vunpack.c.0.s8 %v1305
      %v1307 = vlaneseq
      %v1308 = vshrl.u32 %v1307, 7
      %v1309 = vsub.s32 %v1306, %v1308
      %v1310 = vrot.slane %v1296, %v1309
      %v1311 = vcombine.low %v1303, %v1310
      %v1312 = vcombine.low %v417, %v419
      %v1313 = vcombine.low %v427, %v435
      %v1315 = vunpack.c.l.s4 1983009808
      %v1316 = vunpack.c.0.s8 %v1315
      %v1317 = vlaneseq
      %v1318 = vshrl.u32 %v1317, 7
      %v1319 = vsub.s32 %v1316, %v1318
      %v1320 = vrot.slane %v1312, %v1319
      %v1322 = vunpack.c.l.s4 1983009808
      %v1323 = vunpack.c.0.s8 %v1322
      %v1324 = vlaneseq
      %v1325 = vshrl.u32 %v1324, 7
      %v1326 = vsub.s32 %v1323, %v1325
      %v1327 = vrot.slane %v1313, %v1326
      %v1328 = vcombine.low %v1320, %v1327
      %v1329 = vcombine.low %v434, %v443
      %v1330 = vcombine.low %v451, %v450
      %v1332 = vunpack.c.l.s4 1983009808
      %v1333 = vunpack.c.0.s8 %v1332
      %v1334 = vlaneseq
      %v1335 = vshrl.u32 %v1334, 7
      %v1336 = vsub.s32 %v1333, %v1335
      %v1337 = vrot.slane %v1329, %v1336
      %v1339 = vunpack.c.l.s4 1983009808
      %v1340 = vunpack.c.0.s8 %v1339
      %v1341 = vlaneseq
      %v1342 = vshrl.u32 %v1341, 7
      %v1343 = vsub.s32 %v1340, %v1342
      %v1344 = vrot.slane %v1330, %v1343
      %v1345 = vcombine.low %v1337, %v1344
      %v1346 = vcombine.low %v452, %v460
      %v1347 = vcombine.low %v468, %v467
      %v1349 = vunpack.c.l.s4 1983009808
      %v1350 = vunpack.c.0.s8 %v1349
      %v1351 = vlaneseq
      %v1352 = vshrl.u32 %v1351, 7
      %v1353 = vsub.s32 %v1350, %v1352
      %v1354 = vrot.slane %v1346, %v1353
      %v1356 = vunpack.c.l.s4 1983009808
      %v1357 = vunpack.c.0.s8 %v1356
      %v1358 = vlaneseq
      %v1359 = vshrl.u32 %v1358, 7
      %v1360 = vsub.s32 %v1357, %v1359
      %v1361 = vrot.slane %v1347, %v1360
      %v1362 = vcombine.low %v1354, %v1361
      %v1363 = vcombine.low %v476, %v484
      %v1364 = vcombine.low %v483, %v485
      %v1366 = vunpack.c.l.s4 1983009808
      %v1367 = vunpack.c.0.s8 %v1366
      %v1368 = vlaneseq
      %v1369 = vshrl.u32 %v1368, 7
      %v1370 = vsub.s32 %v1367, %v1369
      %v1371 = vrot.slane %v1363, %v1370
      %v1373 = vunpack.c.l.s4 1983009808
      %v1374 = vunpack.c.0.s8 %v1373
      %v1375 = vlaneseq
      %v1376 = vshrl.u32 %v1375, 7
      %v1377 = vsub.s32 %v1374, %v1376
      %v1378 = vrot.slane %v1364, %v1377
      %v1379 = vcombine.low %v1371, %v1378
      %v1380 = vcombine.low %v493, %v501
      %v1381 = vcombine.low %v500, %v509
      %v1383 = vunpack.c.l.s4 1983009808
      %v1384 = vunpack.c.0.s8 %v1383
      %v1385 = vlaneseq
      %v1386 = vshrl.u32 %v1385, 7
      %v1387 = vsub.s32 %v1384, %v1386
      %v1388 = vrot.slane %v1380, %v1387
      %v1390 = vunpack.c.l.s4 1983009808
      %v1391 = vunpack.c.0.s8 %v1390
      %v1392 = vlaneseq
      %v1393 = vshrl.u32 %v1392, 7
      %v1394 = vsub.s32 %v1391, %v1393
      %v1395 = vrot.slane %v1381, %v1394
      %v1396 = vcombine.low %v1388, %v1395
      %v1397 = vcombine.low %v517, %v516
      %v1398 = vcombine.low %v518, %v526
      %v1400 = vunpack.c.l.s4 1983009808
      %v1401 = vunpack.c.0.s8 %v1400
      %v1402 = vlaneseq
      %v1403 = vshrl.u32 %v1402, 7
      %v1404 = vsub.s32 %v1401, %v1403
      %v1405 = vrot.slane %v1397, %v1404
      %v1407 = vunpack.c.l.s4 1983009808
      %v1408 = vunpack.c.0.s8 %v1407
      %v1409 = vlaneseq
      %v1410 = vshrl.u32 %v1409, 7
      %v1411 = vsub.s32 %v1408, %v1410
      %v1412 = vrot.slane %v1398, %v1411
      %v1413 = vcombine.low %v1405, %v1412
      %v1414 = vcombine.low %v534, %v533
      %v1415 = vcombine.low %v542, %v550
      %v1417 = vunpack.c.l.s4 1983009808
      %v1418 = vunpack.c.0.s8 %v1417
      %v1419 = vlaneseq
      %v1420 = vshrl.u32 %v1419, 7
      %v1421 = vsub.s32 %v1418, %v1420
      %v1422 = vrot.slane %v1414, %v1421
      %v1424 = vunpack.c.l.s4 1983009808
      %v1425 = vunpack.c.0.s8 %v1424
      %v1426 = vlaneseq
      %v1427 = vshrl.u32 %v1426, 7
      %v1428 = vsub.s32 %v1425, %v1427
      %v1429 = vrot.slane %v1415, %v1428
      %v1430 = vcombine.low %v1422, %v1429
      %v1431 = vcombine.low %v549, %v551
      %v1432 = vcombine.low %v559, %v567
      %v1434 = vunpack.c.l.s4 1983009808
      %v1435 = vunpack.c.0.s8 %v1434
      %v1436 = vlaneseq
      %v1437 = vshrl.u32 %v1436, 7
      %v1438 = vsub.s32 %v1435, %v1437
      %v1439 = vrot.slane %v1431, %v1438
      %v1441 = vunpack.c.l.s4 1983009808
      %v1442 = vunpack.c.0.s8 %v1441
      %v1443 = vlaneseq
      %v1444 = vshrl.u32 %v1443, 7
      %v1445 = vsub.s32 %v1442, %v1444
      %v1446 = vrot.slane %v1432, %v1445
      %v1447 = vcombine.low %v1439, %v1446
      %v1448 = vcombine.low %v566, %v575
      %v1449 = vcombine.low %v583, %v582
      %v1451 = vunpack.c.l.s4 1983009808
      %v1452 = vunpack.c.0.s8 %v1451
      %v1453 = vlaneseq
      %v1454 = vshrl.u32 %v1453, 7
      %v1455 = vsub.s32 %v1452, %v1454
      %v1456 = vrot.slane %v1448, %v1455
      %v1458 = vunpack.c.l.s4 1983009808
      %v1459 = vunpack.c.0.s8 %v1458
      %v1460 = vlaneseq
      %v1461 = vshrl.u32 %v1460, 7
      %v1462 = vsub.s32 %v1459, %v1461
      %v1463 = vrot.slane %v1449, %v1462
      %v1464 = vcombine.low %v1456, %v1463
      %v1465 = vcombine.low %v584, %v592
      %v1466 = vcombine.low %v600, %v599
      %v1468 = vunpack.c.l.s4 1983009808
      %v1469 = vunpack.c.0.s8 %v1468
      %v1470 = vlaneseq
      %v1471 = vshrl.u32 %v1470, 7
      %v1472 = vsub.s32 %v1469, %v1471
      %v1473 = vrot.slane %v1465, %v1472
      %v1475 = vunpack.c.l.s4 1983009808
      %v1476 = vunpack.c.0.s8 %v1475
      %v1477 = vlaneseq
      %v1478 = vshrl.u32 %v1477, 7
      %v1479 = vsub.s32 %v1476, %v1478
      %v1480 = vrot.slane %v1466, %v1479
      %v1481 = vcombine.low %v1473, %v1480
      %v1482 = vcombine.low %v608, %v616
      %v1483 = vcombine.low %v615, %v617
      %v1485 = vunpack.c.l.s4 1983009808
      %v1486 = vunpack.c.0.s8 %v1485
      %v1487 = vlaneseq
      %v1488 = vshrl.u32 %v1487, 7
      %v1489 = vsub.s32 %v1486, %v1488
      %v1490 = vrot.slane %v1482, %v1489
      %v1492 = vunpack.c.l.s4 1983009808
      %v1493 = vunpack.c.0.s8 %v1492
      %v1494 = vlaneseq
      %v1495 = vshrl.u32 %v1494, 7
      %v1496 = vsub.s32 %v1493, %v1495
      %v1497 = vrot.slane %v1483, %v1496
      %v1498 = vcombine.low %v1490, %v1497
      %v1499 = vcombine.low %v625, %v633
      %v1500 = vcombine.low %v632, %v641
      %v1502 = vunpack.c.l.s4 1983009808
      %v1503 = vunpack.c.0.s8 %v1502
      %v1504 = vlaneseq
      %v1505 = vshrl.u32 %v1504, 7
      %v1506 = vsub.s32 %v1503, %v1505
      %v1507 = vrot.slane %v1499, %v1506
      %v1509 = vunpack.c.l.s4 1983009808
      %v1510 = vunpack.c.0.s8 %v1509
      %v1511 = vlaneseq
      %v1512 = vshrl.u32 %v1511, 7
      %v1513 = vsub.s32 %v1510, %v1512
      %v1514 = vrot.slane %v1500, %v1513
      %v1515 = vcombine.low %v1507, %v1514
      %v1516 = vcombine.low %v649, %v648
      %v1517 = vcombine.low %v650, %v658
      %v1519 = vunpack.c.l.s4 1983009808
      %v1520 = vunpack.c.0.s8 %v1519
      %v1521 = vlaneseq
      %v1522 = vshrl.u32 %v1521, 7
      %v1523 = vsub.s32 %v1520, %v1522
      %v1524 = vrot.slane %v1516, %v1523
      %v1526 = vunpack.c.l.s4 1983009808
      %v1527 = vunpack.c.0.s8 %v1526
      %v1528 = vlaneseq
      %v1529 = vshrl.u32 %v1528, 7
      %v1530 = vsub.s32 %v1527, %v1529
      %v1531 = vrot.slane %v1517, %v1530
      %v1532 = vcombine.low %v1524, %v1531
      %v1533 = vcombine.low %v666, %v665
      %v1534 = vcombine.low %v674, %v682
      %v1536 = vunpack.c.l.s4 1983009808
      %v1537 = vunpack.c.0.s8 %v1536
      %v1538 = vlaneseq
      %v1539 = vshrl.u32 %v1538, 7
      %v1540 = vsub.s32 %v1537, %v1539
      %v1541 = vrot.slane %v1533, %v1540
      %v1543 = vunpack.c.l.s4 1983009808
      %v1544 = vunpack.c.0.s8 %v1543
      %v1545 = vlaneseq
      %v1546 = vshrl.u32 %v1545, 7
      %v1547 = vsub.s32 %v1544, %v1546
      %v1548 = vrot.slane %v1534, %v1547
      %v1549 = vcombine.low %v1541, %v1548
      %v1550 = vcombine.low %v681, %v683
      %v1551 = vcombine.low %v691, %v699
      %v1553 = vunpack.c.l.s4 1983009808
      %v1554 = vunpack.c.0.s8 %v1553
      %v1555 = vlaneseq
      %v1556 = vshrl.u32 %v1555, 7
      %v1557 = vsub.s32 %v1554, %v1556
      %v1558 = vrot.slane %v1550, %v1557
      %v1560 = vunpack.c.l.s4 1983009808
      %v1561 = vunpack.c.0.s8 %v1560
      %v1562 = vlaneseq
      %v1563 = vshrl.u32 %v1562, 7
      %v1564 = vsub.s32 %v1561, %v1563
      %v1565 = vrot.slane %v1551, %v1564
      %v1566 = vcombine.low %v1558, %v1565
      %v1567 = vcombine.low %v698, %v707
      %v1568 = vcombine.low %v715, %v714
      %v1570 = vunpack.c.l.s4 1983009808
      %v1571 = vunpack.c.0.s8 %v1570
      %v1572 = vlaneseq
      %v1573 = vshrl.u32 %v1572, 7
      %v1574 = vsub.s32 %v1571, %v1573
      %v1575 = vrot.slane %v1567, %v1574
      %v1577 = vunpack.c.l.s4 1983009808
      %v1578 = vunpack.c.0.s8 %v1577
      %v1579 = vlaneseq
      %v1580 = vshrl.u32 %v1579, 7
      %v1581 = vsub.s32 %v1578, %v1580
      %v1582 = vrot.slane %v1568, %v1581
      %v1583 = vcombine.low %v1575, %v1582
      %v1584 = vcombine.low %v716, %v724
      %v1585 = vcombine.low %v732, %v731
      %v1587 = vunpack.c.l.s4 1983009808
      %v1588 = vunpack.c.0.s8 %v1587
      %v1589 = vlaneseq
      %v1590 = vshrl.u32 %v1589, 7
      %v1591 = vsub.s32 %v1588, %v1590
      %v1592 = vrot.slane %v1584, %v1591
      %v1594 = vunpack.c.l.s4 1983009808
      %v1595 = vunpack.c.0.s8 %v1594
      %v1596 = vlaneseq
      %v1597 = vshrl.u32 %v1596, 7
      %v1598 = vsub.s32 %v1595, %v1597
      %v1599 = vrot.slane %v1585, %v1598
      %v1600 = vcombine.low %v1592, %v1599
      %v1601 = vcombine.low %v740, %v748
      %v1602 = vcombine.low %v747, %v749
      %v1604 = vunpack.c.l.s4 1983009808
      %v1605 = vunpack.c.0.s8 %v1604
      %v1606 = vlaneseq
      %v1607 = vshrl.u32 %v1606, 7
      %v1608 = vsub.s32 %v1605, %v1607
      %v1609 = vrot.slane %v1601, %v1608
      %v1611 = vunpack.c.l.s4 1983009808
      %v1612 = vunpack.c.0.s8 %v1611
      %v1613 = vlaneseq
      %v1614 = vshrl.u32 %v1613, 7
      %v1615 = vsub.s32 %v1612, %v1614
      %v1616 = vrot.slane %v1602, %v1615
      %v1617 = vcombine.low %v1609, %v1616
      %v1618 = vcombine.low %v757, %v765
      %v1619 = vcombine.low %v764, %v773
      %v1621 = vunpack.c.l.s4 1983009808
      %v1622 = vunpack.c.0.s8 %v1621
      %v1623 = vlaneseq
      %v1624 = vshrl.u32 %v1623, 7
      %v1625 = vsub.s32 %v1622, %v1624
      %v1626 = vrot.slane %v1618, %v1625
      %v1628 = vunpack.c.l.s4 1983009808
      %v1629 = vunpack.c.0.s8 %v1628
      %v1630 = vlaneseq
      %v1631 = vshrl.u32 %v1630, 7
      %v1632 = vsub.s32 %v1629, %v1631
      %v1633 = vrot.slane %v1619, %v1632
      %v1634 = vcombine.low %v1626, %v1633
      %v1635 = vcombine.low %v781, %v780
      %v1636 = vcombine.low %v782, %v790
      %v1638 = vunpack.c.l.s4 1983009808
      %v1639 = vunpack.c.0.s8 %v1638
      %v1640 = vlaneseq
      %v1641 = vshrl.u32 %v1640, 7
      %v1642 = vsub.s32 %v1639, %v1641
      %v1643 = vrot.slane %v1635, %v1642
      %v1645 = vunpack.c.l.s4 1983009808
      %v1646 = vunpack.c.0.s8 %v1645
      %v1647 = vlaneseq
      %v1648 = vshrl.u32 %v1647, 7
      %v1649 = vsub.s32 %v1646, %v1648
      %v1650 = vrot.slane %v1636, %v1649
      %v1651 = vcombine.low %v1643, %v1650
      %v1652 = vcombine.low %v798, %v797
      %v1654 = vunpack.c.l.s4 1983009808
      %v1655 = vunpack.c.0.s8 %v1654
      %v1656 = vlaneseq
      %v1657 = vshrl.u32 %v1656, 7
      %v1658 = vsub.s32 %v1655, %v1657
      %v1659 = vrot.slane %v1652, %v1658
      %v1685 = vcombine.low %v823, %v826
      %v1686 = vcombine.low %v829, %v832
      %v1688 = vunpack.c.l.s4 1983009808
      %v1689 = vunpack.c.0.s8 %v1688
      %v1690 = vlaneseq
      %v1691 = vshrl.u32 %v1690, 7
      %v1692 = vsub.s32 %v1689, %v1691
      %v1693 = vrot.slane %v1685, %v1692
      %v1695 = vunpack.c.l.s4 1983009808
      %v1696 = vunpack.c.0.s8 %v1695
      %v1697 = vlaneseq
      %v1698 = vshrl.u32 %v1697, 7
      %v1699 = vsub.s32 %v1696, %v1698
      %v1700 = vrot.slane %v1686, %v1699
      %v1701 = vcombine.low %v1693, %v1700
      %v1702 = vcombine.low %v835, %v838
      %v1703 = vcombine.low %v841, %v845
      %v1705 = vunpack.c.l.s4 1983009808
      %v1706 = vunpack.c.0.s8 %v1705
      %v1707 = vlaneseq
      %v1708 = vshrl.u32 %v1707, 7
      %v1709 = vsub.s32 %v1706, %v1708
      %v1710 = vrot.slane %v1702, %v1709
      %v1712 = vunpack.c.l.s4 1983009808
      %v1713 = vunpack.c.0.s8 %v1712
      %v1714 = vlaneseq
      %v1715 = vshrl.u32 %v1714, 7
      %v1716 = vsub.s32 %v1713, %v1715
      %v1717 = vrot.slane %v1703, %v1716
      %v1718 = vcombine.low %v1710, %v1717
      %v1719 = vcombine.low %v848, %v851
      %v1720 = vcombine.low %v854, %v857
      %v1722 = vunpack.c.l.s4 1983009808
      %v1723 = vunpack.c.0.s8 %v1722
      %v1724 = vlaneseq
      %v1725 = vshrl.u32 %v1724, 7
      %v1726 = vsub.s32 %v1723, %v1725
      %v1727 = vrot.slane %v1719, %v1726
      %v1729 = vunpack.c.l.s4 1983009808
      %v1730 = vunpack.c.0.s8 %v1729
      %v1731 = vlaneseq
      %v1732 = vshrl.u32 %v1731, 7
      %v1733 = vsub.s32 %v1730, %v1732
      %v1734 = vrot.slane %v1720, %v1733
      %v1735 = vcombine.low %v1727, %v1734
      %v1736 = vcombine.low %v860, %v863
      %v1737 = vcombine.low %v867, %v870
      %v1739 = vunpack.c.l.s4 1983009808
      %v1740 = vunpack.c.0.s8 %v1739
      %v1741 = vlaneseq
      %v1742 = vshrl.u32 %v1741, 7
      %v1743 = vsub.s32 %v1740, %v1742
      %v1744 = vrot.slane %v1736, %v1743
      %v1746 = vunpack.c.l.s4 1983009808
      %v1747 = vunpack.c.0.s8 %v1746
      %v1748 = vlaneseq
      %v1749 = vshrl.u32 %v1748, 7
      %v1750 = vsub.s32 %v1747, %v1749
      %v1751 = vrot.slane %v1737, %v1750
      %v1752 = vcombine.low %v1744, %v1751
      %v1753 = vcombine.low %v873, %v876
      %v1754 = vcombine.low %v879, %v882
      %v1756 = vunpack.c.l.s4 1983009808
      %v1757 = vunpack.c.0.s8 %v1756
      %v1758 = vlaneseq
      %v1759 = vshrl.u32 %v1758, 7
      %v1760 = vsub.s32 %v1757, %v1759
      %v1761 = vrot.slane %v1753, %v1760
      %v1763 = vunpack.c.l.s4 1983009808
      %v1764 = vunpack.c.0.s8 %v1763
      %v1765 = vlaneseq
      %v1766 = vshrl.u32 %v1765, 7
      %v1767 = vsub.s32 %v1764, %v1766
      %v1768 = vrot.slane %v1754, %v1767
      %v1769 = vcombine.low %v1761, %v1768
      %v1770 = vcombine.low %v885, %v889
      %v1771 = vcombine.low %v892, %v895
      %v1773 = vunpack.c.l.s4 1983009808
      %v1774 = vunpack.c.0.s8 %v1773
      %v1775 = vlaneseq
      %v1776 = vshrl.u32 %v1775, 7
      %v1777 = vsub.s32 %v1774, %v1776
      %v1778 = vrot.slane %v1770, %v1777
      %v1780 = vunpack.c.l.s4 1983009808
      %v1781 = vunpack.c.0.s8 %v1780
      %v1782 = vlaneseq
      %v1783 = vshrl.u32 %v1782, 7
      %v1784 = vsub.s32 %v1781, %v1783
      %v1785 = vrot.slane %v1771, %v1784
      %v1786 = vcombine.low %v1778, %v1785
      %v1787 = vcombine.low %v898, %v901
      %v1788 = vcombine.low %v904, %v907
      %v1790 = vunpack.c.l.s4 1983009808
      %v1791 = vunpack.c.0.s8 %v1790
      %v1792 = vlaneseq
      %v1793 = vshrl.u32 %v1792, 7
      %v1794 = vsub.s32 %v1791, %v1793
      %v1795 = vrot.slane %v1787, %v1794
      %v1797 = vunpack.c.l.s4 1983009808
      %v1798 = vunpack.c.0.s8 %v1797
      %v1799 = vlaneseq
      %v1800 = vshrl.u32 %v1799, 7
      %v1801 = vsub.s32 %v1798, %v1800
      %v1802 = vrot.slane %v1788, %v1801
      %v1803 = vcombine.low %v1795, %v1802
      %v1804 = vcombine.low %v911, %v914
      %v1805 = vcombine.low %v917, %v920
      %v1807 = vunpack.c.l.s4 1983009808
      %v1808 = vunpack.c.0.s8 %v1807
      %v1809 = vlaneseq
      %v1810 = vshrl.u32 %v1809, 7
      %v1811 = vsub.s32 %v1808, %v1810
      %v1812 = vrot.slane %v1804, %v1811
      %v1814 = vunpack.c.l.s4 1983009808
      %v1815 = vunpack.c.0.s8 %v1814
      %v1816 = vlaneseq
      %v1817 = vshrl.u32 %v1816, 7
      %v1818 = vsub.s32 %v1815, %v1817
      %v1819 = vrot.slane %v1805, %v1818
      %v1820 = vcombine.low %v1812, %v1819
      %v1821 = vcombine.low %v923, %v926
      %v1822 = vcombine.low %v929, %v933
      %v1824 = vunpack.c.l.s4 1983009808
      %v1825 = vunpack.c.0.s8 %v1824
      %v1826 = vlaneseq
      %v1827 = vshrl.u32 %v1826, 7
      %v1828 = vsub.s32 %v1825, %v1827
      %v1829 = vrot.slane %v1821, %v1828
      %v1831 = vunpack.c.l.s4 1983009808
      %v1832 = vunpack.c.0.s8 %v1831
      %v1833 = vlaneseq
      %v1834 = vshrl.u32 %v1833, 7
      %v1835 = vsub.s32 %v1832, %v1834
      %v1836 = vrot.slane %v1822, %v1835
      %v1837 = vcombine.low %v1829, %v1836
      %v1838 = vcombine.low %v936, %v939
      %v1839 = vcombine.low %v942, %v945
      %v1841 = vunpack.c.l.s4 1983009808
      %v1842 = vunpack.c.0.s8 %v1841
      %v1843 = vlaneseq
      %v1844 = vshrl.u32 %v1843, 7
      %v1845 = vsub.s32 %v1842, %v1844
      %v1846 = vrot.slane %v1838, %v1845
      %v1848 = vunpack.c.l.s4 1983009808
      %v1849 = vunpack.c.0.s8 %v1848
      %v1850 = vlaneseq
      %v1851 = vshrl.u32 %v1850, 7
      %v1852 = vsub.s32 %v1849, %v1851
      %v1853 = vrot.slane %v1839, %v1852
      %v1854 = vcombine.low %v1846, %v1853
      %v1855 = vcombine.low %v948, %v951
      %v1856 = vcombine.low %v955, %v958
      %v1858 = vunpack.c.l.s4 1983009808
      %v1859 = vunpack.c.0.s8 %v1858
      %v1860 = vlaneseq
      %v1861 = vshrl.u32 %v1860, 7
      %v1862 = vsub.s32 %v1859, %v1861
      %v1863 = vrot.slane %v1855, %v1862
      %v1865 = vunpack.c.l.s4 1983009808
      %v1866 = vunpack.c.0.s8 %v1865
      %v1867 = vlaneseq
      %v1868 = vshrl.u32 %v1867, 7
      %v1869 = vsub.s32 %v1866, %v1868
      %v1870 = vrot.slane %v1856, %v1869
      %v1871 = vcombine.low %v1863, %v1870
      %v1872 = vcombine.low %v961, %v964
      %v1873 = vcombine.low %v967, %v970
      %v1875 = vunpack.c.l.s4 1983009808
      %v1876 = vunpack.c.0.s8 %v1875
      %v1877 = vlaneseq
      %v1878 = vshrl.u32 %v1877, 7
      %v1879 = vsub.s32 %v1876, %v1878
      %v1880 = vrot.slane %v1872, %v1879
      %v1882 = vunpack.c.l.s4 1983009808
      %v1883 = vunpack.c.0.s8 %v1882
      %v1884 = vlaneseq
      %v1885 = vshrl.u32 %v1884, 7
      %v1886 = vsub.s32 %v1883, %v1885
      %v1887 = vrot.slane %v1873, %v1886
      %v1888 = vcombine.low %v1880, %v1887
      %v1889 = vcombine.low %v973, %v977
      %v1890 = vcombine.low %v980, %v983
      %v1892 = vunpack.c.l.s4 1983009808
      %v1893 = vunpack.c.0.s8 %v1892
      %v1894 = vlaneseq
      %v1895 = vshrl.u32 %v1894, 7
      %v1896 = vsub.s32 %v1893, %v1895
      %v1897 = vrot.slane %v1889, %v1896
      %v1899 = vunpack.c.l.s4 1983009808
      %v1900 = vunpack.c.0.s8 %v1899
      %v1901 = vlaneseq
      %v1902 = vshrl.u32 %v1901, 7
      %v1903 = vsub.s32 %v1900, %v1902
      %v1904 = vrot.slane %v1890, %v1903
      %v1905 = vcombine.low %v1897, %v1904
      %v1906 = vcombine.low %v986, %v989
      %v1907 = vcombine.low %v992, %v995
      %v1909 = vunpack.c.l.s4 1983009808
      %v1910 = vunpack.c.0.s8 %v1909
      %v1911 = vlaneseq
      %v1912 = vshrl.u32 %v1911, 7
      %v1913 = vsub.s32 %v1910, %v1912
      %v1914 = vrot.slane %v1906, %v1913
      %v1916 = vunpack.c.l.s4 1983009808
      %v1917 = vunpack.c.0.s8 %v1916
      %v1918 = vlaneseq
      %v1919 = vshrl.u32 %v1918, 7
      %v1920 = vsub.s32 %v1917, %v1919
      %v1921 = vrot.slane %v1907, %v1920
      %v1922 = vcombine.low %v1914, %v1921
      %v1923 = vcombine.low %v999, %v1002
      %v1924 = vcombine.low %v1005, %v1008
      %v1926 = vunpack.c.l.s4 1983009808
      %v1927 = vunpack.c.0.s8 %v1926
      %v1928 = vlaneseq
      %v1929 = vshrl.u32 %v1928, 7
      %v1930 = vsub.s32 %v1927, %v1929
      %v1931 = vrot.slane %v1923, %v1930
      %v1933 = vunpack.c.l.s4 1983009808
      %v1934 = vunpack.c.0.s8 %v1933
      %v1935 = vlaneseq
      %v1936 = vshrl.u32 %v1935, 7
      %v1937 = vsub.s32 %v1934, %v1936
      %v1938 = vrot.slane %v1924, %v1937
      %v1939 = vcombine.low %v1931, %v1938
      %v1940 = vcombine.low %v1011, %v1014
      %v1941 = vcombine.low %v1017, %v1021
      %v1943 = vunpack.c.l.s4 1983009808
      %v1944 = vunpack.c.0.s8 %v1943
      %v1945 = vlaneseq
      %v1946 = vshrl.u32 %v1945, 7
      %v1947 = vsub.s32 %v1944, %v1946
      %v1948 = vrot.slane %v1940, %v1947
      %v1950 = vunpack.c.l.s4 1983009808
      %v1951 = vunpack.c.0.s8 %v1950
      %v1952 = vlaneseq
      %v1953 = vshrl.u32 %v1952, 7
      %v1954 = vsub.s32 %v1951, %v1953
      %v1955 = vrot.slane %v1941, %v1954
      %v1956 = vcombine.low %v1948, %v1955
      %v1957 = vcombine.low %v1024, %v1027
      %v1958 = vcombine.low %v1030, %v1033
      %v1960 = vunpack.c.l.s4 1983009808
      %v1961 = vunpack.c.0.s8 %v1960
      %v1962 = vlaneseq
      %v1963 = vshrl.u32 %v1962, 7
      %v1964 = vsub.s32 %v1961, %v1963
      %v1965 = vrot.slane %v1957, %v1964
      %v1967 = vunpack.c.l.s4 1983009808
      %v1968 = vunpack.c.0.s8 %v1967
      %v1969 = vlaneseq
      %v1970 = vshrl.u32 %v1969, 7
      %v1971 = vsub.s32 %v1968, %v1970
      %v1972 = vrot.slane %v1958, %v1971
      %v1973 = vcombine.low %v1965, %v1972
      %v1974 = vcombine.low %v1036, %v1039
      %v1975 = vcombine.low %v1043, %v1046
      %v1977 = vunpack.c.l.s4 1983009808
      %v1978 = vunpack.c.0.s8 %v1977
      %v1979 = vlaneseq
      %v1980 = vshrl.u32 %v1979, 7
      %v1981 = vsub.s32 %v1978, %v1980
      %v1982 = vrot.slane %v1974, %v1981
      %v1984 = vunpack.c.l.s4 1983009808
      %v1985 = vunpack.c.0.s8 %v1984
      %v1986 = vlaneseq
      %v1987 = vshrl.u32 %v1986, 7
      %v1988 = vsub.s32 %v1985, %v1987
      %v1989 = vrot.slane %v1975, %v1988
      %v1990 = vcombine.low %v1982, %v1989
      %v1991 = vcombine.low %v1049, %v1052
      %v1992 = vcombine.low %v1055, %v1058
      %v1994 = vunpack.c.l.s4 1983009808
      %v1995 = vunpack.c.0.s8 %v1994
      %v1996 = vlaneseq
      %v1997 = vshrl.u32 %v1996, 7
      %v1998 = vsub.s32 %v1995, %v1997
      %v1999 = vrot.slane %v1991, %v1998
      %v2001 = vunpack.c.l.s4 1983009808
      %v2002 = vunpack.c.0.s8 %v2001
      %v2003 = vlaneseq
      %v2004 = vshrl.u32 %v2003, 7
      %v2005 = vsub.s32 %v2002, %v2004
      %v2006 = vrot.slane %v1992, %v2005
      %v2007 = vcombine.low %v1999, %v2006
      %v2008 = vcombine.low %v1061, %v1065
      %v2009 = vcombine.low %v1068, %v1071
      %v2011 = vunpack.c.l.s4 1983009808
      %v2012 = vunpack.c.0.s8 %v2011
      %v2013 = vlaneseq
      %v2014 = vshrl.u32 %v2013, 7
      %v2015 = vsub.s32 %v2012, %v2014
      %v2016 = vrot.slane %v2008, %v2015
      %v2018 = vunpack.c.l.s4 1983009808
      %v2019 = vunpack.c.0.s8 %v2018
      %v2020 = vlaneseq
      %v2021 = vshrl.u32 %v2020, 7
      %v2022 = vsub.s32 %v2019, %v2021
      %v2023 = vrot.slane %v2009, %v2022
      %v2024 = vcombine.low %v2016, %v2023
      %v2025 = vcombine.low %v1074, %v1077
      %v2026 = vcombine.low %v1080, %v1083
      %v2028 = vunpack.c.l.s4 1983009808
      %v2029 = vunpack.c.0.s8 %v2028
      %v2030 = vlaneseq
      %v2031 = vshrl.u32 %v2030, 7
      %v2032 = vsub.s32 %v2029, %v2031
      %v2033 = vrot.slane %v2025, %v2032
      %v2035 = vunpack.c.l.s4 1983009808
      %v2036 = vunpack.c.0.s8 %v2035
      %v2037 = vlaneseq
      %v2038 = vshrl.u32 %v2037, 7
      %v2039 = vsub.s32 %v2036, %v2038
      %v2040 = vrot.slane %v2026, %v2039
      %v2041 = vcombine.low %v2033, %v2040
      %v2042 = vcombine.low %v1087, %v1090
      %v2043 = vcombine.low %v1093, %v1096
      %v2045 = vunpack.c.l.s4 1983009808
      %v2046 = vunpack.c.0.s8 %v2045
      %v2047 = vlaneseq
      %v2048 = vshrl.u32 %v2047, 7
      %v2049 = vsub.s32 %v2046, %v2048
      %v2050 = vrot.slane %v2042, %v2049
      %v2052 = vunpack.c.l.s4 1983009808
      %v2053 = vunpack.c.0.s8 %v2052
      %v2054 = vlaneseq
      %v2055 = vshrl.u32 %v2054, 7
      %v2056 = vsub.s32 %v2053, %v2055
      %v2057 = vrot.slane %v2043, %v2056
      %v2058 = vcombine.low %v2050, %v2057
      %v2059 = vcombine.low %v1099, %v1102
      %v2060 = vcombine.low %v1105, %v1109
      %v2062 = vunpack.c.l.s4 1983009808
      %v2063 = vunpack.c.0.s8 %v2062
      %v2064 = vlaneseq
      %v2065 = vshrl.u32 %v2064, 7
      %v2066 = vsub.s32 %v2063, %v2065
      %v2067 = vrot.slane %v2059, %v2066
      %v2069 = vunpack.c.l.s4 1983009808
      %v2070 = vunpack.c.0.s8 %v2069
      %v2071 = vlaneseq
      %v2072 = vshrl.u32 %v2071, 7
      %v2073 = vsub.s32 %v2070, %v2072
      %v2074 = vrot.slane %v2060, %v2073
      %v2075 = vcombine.low %v2067, %v2074
      %v2076 = vcombine.low %v1112, %v1115
      %v2077 = vcombine.low %v1118, %v1121
      %v2079 = vunpack.c.l.s4 1983009808
      %v2080 = vunpack.c.0.s8 %v2079
      %v2081 = vlaneseq
      %v2082 = vshrl.u32 %v2081, 7
      %v2083 = vsub.s32 %v2080, %v2082
      %v2084 = vrot.slane %v2076, %v2083
      %v2086 = vunpack.c.l.s4 1983009808
      %v2087 = vunpack.c.0.s8 %v2086
      %v2088 = vlaneseq
      %v2089 = vshrl.u32 %v2088, 7
      %v2090 = vsub.s32 %v2087, %v2089
      %v2091 = vrot.slane %v2077, %v2090
      %v2092 = vcombine.low %v2084, %v2091
      %v2093 = vcombine.low %v1124, %v1127
      %v2095 = vunpack.c.l.s4 1983009808
      %v2096 = vunpack.c.0.s8 %v2095
      %v2097 = vlaneseq
      %v2098 = vshrl.u32 %v2097, 7
      %v2099 = vsub.s32 %v2096, %v2098
      %v2100 = vrot.slane %v2093, %v2099
      %2101 = vrot.lane.b32.xlu0 %v1701, 4
      %v2102 = vpop.permute.xlu0 %2101
      %2103 = vrot.lane.b32.xlu0 %v1718, 4
      %v2104 = vpop.permute.xlu0 %2103
      %2105 = vrot.lane.b32.xlu0 %v1735, 4
      %v2106 = vpop.permute.xlu0 %2105
      %2107 = vrot.lane.b32.xlu0 %v1752, 4
      %v2108 = vpop.permute.xlu0 %2107
      %2109 = vrot.lane.b32.xlu0 %v1769, 4
      %v2110 = vpop.permute.xlu0 %2109
      %2111 = vrot.lane.b32.xlu0 %v1786, 4
      %v2112 = vpop.permute.xlu0 %2111
      %2113 = vrot.lane.b32.xlu0 %v1803, 4
      %v2114 = vpop.permute.xlu0 %2113
      %2115 = vrot.lane.b32.xlu0 %v1820, 4
      %v2116 = vpop.permute.xlu0 %2115
      %2117 = vrot.lane.b32.xlu0 %v1837, 4
      %v2118 = vpop.permute.xlu0 %2117
      %2119 = vrot.lane.b32.xlu0 %v1854, 4
      %v2120 = vpop.permute.xlu0 %2119
      %2121 = vrot.lane.b32.xlu0 %v1871, 4
      %v2122 = vpop.permute.xlu0 %2121
      %2123 = vrot.lane.b32.xlu0 %v1888, 4
      %v2124 = vpop.permute.xlu0 %2123
      %2125 = vrot.lane.b32.xlu0 %v1905, 4
      %v2126 = vpop.permute.xlu0 %2125
      %2127 = vrot.lane.b32.xlu0 %v1922, 4
      %v2128 = vpop.permute.xlu0 %2127
      %2129 = vrot.lane.b32.xlu0 %v1939, 4
      %v2130 = vpop.permute.xlu0 %2129
      %2131 = vrot.lane.b32.xlu0 %v1956, 4
      %v2132 = vpop.permute.xlu0 %2131
      %2133 = vrot.lane.b32.xlu0 %v1973, 4
      %v2134 = vpop.permute.xlu0 %2133
      %2135 = vrot.lane.b32.xlu0 %v1990, 4
      %v2136 = vpop.permute.xlu0 %2135
      %2137 = vrot.lane.b32.xlu0 %v2007, 4
      %v2138 = vpop.permute.xlu0 %2137
      %2139 = vrot.lane.b32.xlu0 %v2024, 4
      %v2140 = vpop.permute.xlu0 %2139
      %2141 = vrot.lane.b32.xlu0 %v2041, 4
      %v2142 = vpop.permute.xlu0 %2141
      %2143 = vrot.lane.b32.xlu0 %v2058, 4
      %v2144 = vpop.permute.xlu0 %2143
      %2145 = vrot.lane.b32.xlu0 %v2075, 4
      %v2146 = vpop.permute.xlu0 %2145
      %2147 = vrot.lane.b32.xlu0 %v2092, 4
      %v2148 = vpop.permute.xlu0 %2147
      %2149 = vrot.lane.b32.xlu0 %v2100, 4
      %v2150 = vpop.permute.xlu0 %2149
      %v2176 = vcombine.low %v352, %v351
      %v2177 = vcombine.low %v353, %v361
      %v2179 = vunpack.c.l.s4 1983009808
      %v2180 = vunpack.c.0.s8 %v2179
      %v2181 = vlaneseq
      %v2182 = vshrl.u32 %v2181, 7
      %v2183 = vsub.s32 %v2180, %v2182
      %v2184 = vrot.slane %v2176, %v2183
      %v2186 = vunpack.c.l.s4 1983009808
      %v2187 = vunpack.c.0.s8 %v2186
      %v2188 = vlaneseq
      %v2189 = vshrl.u32 %v2188, 7
      %v2190 = vsub.s32 %v2187, %v2189
      %v2191 = vrot.slane %v2177, %v2190
      %v2192 = vcombine.low %v2184, %v2191
      %v2193 = vcombine.low %v369, %v368
      %v2194 = vcombine.low %v799, %v385
      %v2196 = vunpack.c.l.s4 1983009808
      %v2197 = vunpack.c.0.s8 %v2196
      %v2198 = vlaneseq
      %v2199 = vshrl.u32 %v2198, 7
      %v2200 = vsub.s32 %v2197, %v2199
      %v2201 = vrot.slane %v2193, %v2200
      %v2203 = vunpack.c.l.s4 1983009808
      %v2204 = vunpack.c.0.s8 %v2203
      %v2205 = vlaneseq
      %v2206 = vshrl.u32 %v2205, 7
      %v2207 = vsub.s32 %v2204, %v2206
      %v2208 = vrot.slane %v2194, %v2207
      %v2209 = vcombine.low %v2201, %v2208
      %v2210 = vcombine.low %v384, %v386
      %v2211 = vcombine.low %v394, %v402
      %v2213 = vunpack.c.l.s4 1983009808
      %v2214 = vunpack.c.0.s8 %v2213
      %v2215 = vlaneseq
      %v2216 = vshrl.u32 %v2215, 7
      %v2217 = vsub.s32 %v2214, %v2216
      %v2218 = vrot.slane %v2210, %v2217
      %v2220 = vunpack.c.l.s4 1983009808
      %v2221 = vunpack.c.0.s8 %v2220
      %v2222 = vlaneseq
      %v2223 = vshrl.u32 %v2222, 7
      %v2224 = vsub.s32 %v2221, %v2223
      %v2225 = vrot.slane %v2211, %v2224
      %v2226 = vcombine.low %v2218, %v2225
      %v2227 = vcombine.low %v401, %v800
      %v2228 = vcombine.low %v418, %v417
      %v2230 = vunpack.c.l.s4 1983009808
      %v2231 = vunpack.c.0.s8 %v2230
      %v2232 = vlaneseq
      %v2233 = vshrl.u32 %v2232, 7
      %v2234 = vsub.s32 %v2231, %v2233
      %v2235 = vrot.slane %v2227, %v2234
      %v2237 = vunpack.c.l.s4 1983009808
      %v2238 = vunpack.c.0.s8 %v2237
      %v2239 = vlaneseq
      %v2240 = vshrl.u32 %v2239, 7
      %v2241 = vsub.s32 %v2238, %v2240
      %v2242 = vrot.slane %v2228, %v2241
      %v2243 = vcombine.low %v2235, %v2242
      %v2244 = vcombine.low %v419, %v427
      %v2245 = vcombine.low %v435, %v434
      %v2247 = vunpack.c.l.s4 1983009808
      %v2248 = vunpack.c.0.s8 %v2247
      %v2249 = vlaneseq
      %v2250 = vshrl.u32 %v2249, 7
      %v2251 = vsub.s32 %v2248, %v2250
      %v2252 = vrot.slane %v2244, %v2251
      %v2254 = vunpack.c.l.s4 1983009808
      %v2255 = vunpack.c.0.s8 %v2254
      %v2256 = vlaneseq
      %v2257 = vshrl.u32 %v2256, 7
      %v2258 = vsub.s32 %v2255, %v2257
      %v2259 = vrot.slane %v2245, %v2258
      %v2260 = vcombine.low %v2252, %v2259
      %v2261 = vcombine.low %v801, %v451
      %v2262 = vcombine.low %v450, %v452
      %v2264 = vunpack.c.l.s4 1983009808
      %v2265 = vunpack.c.0.s8 %v2264
      %v2266 = vlaneseq
      %v2267 = vshrl.u32 %v2266, 7
      %v2268 = vsub.s32 %v2265, %v2267
      %v2269 = vrot.slane %v2261, %v2268
      %v2271 = vunpack.c.l.s4 1983009808
      %v2272 = vunpack.c.0.s8 %v2271
      %v2273 = vlaneseq
      %v2274 = vshrl.u32 %v2273, 7
      %v2275 = vsub.s32 %v2272, %v2274
      %v2276 = vrot.slane %v2262, %v2275
      %v2277 = vcombine.low %v2269, %v2276
      %v2278 = vcombine.low %v460, %v468
      %v2279 = vcombine.low %v467, %v802
      %v2281 = vunpack.c.l.s4 1983009808
      %v2282 = vunpack.c.0.s8 %v2281
      %v2283 = vlaneseq
      %v2284 = vshrl.u32 %v2283, 7
      %v2285 = vsub.s32 %v2282, %v2284
      %v2286 = vrot.slane %v2278, %v2285
      %v2288 = vunpack.c.l.s4 1983009808
      %v2289 = vunpack.c.0.s8 %v2288
      %v2290 = vlaneseq
      %v2291 = vshrl.u32 %v2290, 7
      %v2292 = vsub.s32 %v2289, %v2291
      %v2293 = vrot.slane %v2279, %v2292
      %v2294 = vcombine.low %v2286, %v2293
      %v2295 = vcombine.low %v484, %v483
      %v2296 = vcombine.low %v485, %v493
      %v2298 = vunpack.c.l.s4 1983009808
      %v2299 = vunpack.c.0.s8 %v2298
      %v2300 = vlaneseq
      %v2301 = vshrl.u32 %v2300, 7
      %v2302 = vsub.s32 %v2299, %v2301
      %v2303 = vrot.slane %v2295, %v2302
      %v2305 = vunpack.c.l.s4 1983009808
      %v2306 = vunpack.c.0.s8 %v2305
      %v2307 = vlaneseq
      %v2308 = vshrl.u32 %v2307, 7
      %v2309 = vsub.s32 %v2306, %v2308
      %v2310 = vrot.slane %v2296, %v2309
      %v2311 = vcombine.low %v2303, %v2310
      %v2312 = vcombine.low %v501, %v500
      %v2313 = vcombine.low %v803, %v517
      %v2315 = vunpack.c.l.s4 1983009808
      %v2316 = vunpack.c.0.s8 %v2315
      %v2317 = vlaneseq
      %v2318 = vshrl.u32 %v2317, 7
      %v2319 = vsub.s32 %v2316, %v2318
      %v2320 = vrot.slane %v2312, %v2319
      %v2322 = vunpack.c.l.s4 1983009808
      %v2323 = vunpack.c.0.s8 %v2322
      %v2324 = vlaneseq
      %v2325 = vshrl.u32 %v2324, 7
      %v2326 = vsub.s32 %v2323, %v2325
      %v2327 = vrot.slane %v2313, %v2326
      %v2328 = vcombine.low %v2320, %v2327
      %v2329 = vcombine.low %v516, %v518
      %v2330 = vcombine.low %v526, %v534
      %v2332 = vunpack.c.l.s4 1983009808
      %v2333 = vunpack.c.0.s8 %v2332
      %v2334 = vlaneseq
      %v2335 = vshrl.u32 %v2334, 7
      %v2336 = vsub.s32 %v2333, %v2335
      %v2337 = vrot.slane %v2329, %v2336
      %v2339 = vunpack.c.l.s4 1983009808
      %v2340 = vunpack.c.0.s8 %v2339
      %v2341 = vlaneseq
      %v2342 = vshrl.u32 %v2341, 7
      %v2343 = vsub.s32 %v2340, %v2342
      %v2344 = vrot.slane %v2330, %v2343
      %v2345 = vcombine.low %v2337, %v2344
      %v2346 = vcombine.low %v533, %v804
      %v2347 = vcombine.low %v550, %v549
      %v2349 = vunpack.c.l.s4 1983009808
      %v2350 = vunpack.c.0.s8 %v2349
      %v2351 = vlaneseq
      %v2352 = vshrl.u32 %v2351, 7
      %v2353 = vsub.s32 %v2350, %v2352
      %v2354 = vrot.slane %v2346, %v2353
      %v2356 = vunpack.c.l.s4 1983009808
      %v2357 = vunpack.c.0.s8 %v2356
      %v2358 = vlaneseq
      %v2359 = vshrl.u32 %v2358, 7
      %v2360 = vsub.s32 %v2357, %v2359
      %v2361 = vrot.slane %v2347, %v2360
      %v2362 = vcombine.low %v2354, %v2361
      %v2363 = vcombine.low %v551, %v559
      %v2364 = vcombine.low %v567, %v566
      %v2366 = vunpack.c.l.s4 1983009808
      %v2367 = vunpack.c.0.s8 %v2366
      %v2368 = vlaneseq
      %v2369 = vshrl.u32 %v2368, 7
      %v2370 = vsub.s32 %v2367, %v2369
      %v2371 = vrot.slane %v2363, %v2370
      %v2373 = vunpack.c.l.s4 1983009808
      %v2374 = vunpack.c.0.s8 %v2373
      %v2375 = vlaneseq
      %v2376 = vshrl.u32 %v2375, 7
      %v2377 = vsub.s32 %v2374, %v2376
      %v2378 = vrot.slane %v2364, %v2377
      %v2379 = vcombine.low %v2371, %v2378
      %v2380 = vcombine.low %v805, %v583
      %v2381 = vcombine.low %v582, %v584
      %v2383 = vunpack.c.l.s4 1983009808
      %v2384 = vunpack.c.0.s8 %v2383
      %v2385 = vlaneseq
      %v2386 = vshrl.u32 %v2385, 7
      %v2387 = vsub.s32 %v2384, %v2386
      %v2388 = vrot.slane %v2380, %v2387
      %v2390 = vunpack.c.l.s4 1983009808
      %v2391 = vunpack.c.0.s8 %v2390
      %v2392 = vlaneseq
      %v2393 = vshrl.u32 %v2392, 7
      %v2394 = vsub.s32 %v2391, %v2393
      %v2395 = vrot.slane %v2381, %v2394
      %v2396 = vcombine.low %v2388, %v2395
      %v2397 = vcombine.low %v592, %v600
      %v2398 = vcombine.low %v599, %v806
      %v2400 = vunpack.c.l.s4 1983009808
      %v2401 = vunpack.c.0.s8 %v2400
      %v2402 = vlaneseq
      %v2403 = vshrl.u32 %v2402, 7
      %v2404 = vsub.s32 %v2401, %v2403
      %v2405 = vrot.slane %v2397, %v2404
      %v2407 = vunpack.c.l.s4 1983009808
      %v2408 = vunpack.c.0.s8 %v2407
      %v2409 = vlaneseq
      %v2410 = vshrl.u32 %v2409, 7
      %v2411 = vsub.s32 %v2408, %v2410
      %v2412 = vrot.slane %v2398, %v2411
      %v2413 = vcombine.low %v2405, %v2412
      %v2414 = vcombine.low %v616, %v615
      %v2415 = vcombine.low %v617, %v625
      %v2417 = vunpack.c.l.s4 1983009808
      %v2418 = vunpack.c.0.s8 %v2417
      %v2419 = vlaneseq
      %v2420 = vshrl.u32 %v2419, 7
      %v2421 = vsub.s32 %v2418, %v2420
      %v2422 = vrot.slane %v2414, %v2421
      %v2424 = vunpack.c.l.s4 1983009808
      %v2425 = vunpack.c.0.s8 %v2424
      %v2426 = vlaneseq
      %v2427 = vshrl.u32 %v2426, 7
      %v2428 = vsub.s32 %v2425, %v2427
      %v2429 = vrot.slane %v2415, %v2428
      %v2430 = vcombine.low %v2422, %v2429
      %v2431 = vcombine.low %v633, %v632
      %v2432 = vcombine.low %v807, %v649
      %v2434 = vunpack.c.l.s4 1983009808
      %v2435 = vunpack.c.0.s8 %v2434
      %v2436 = vlaneseq
      %v2437 = vshrl.u32 %v2436, 7
      %v2438 = vsub.s32 %v2435, %v2437
      %v2439 = vrot.slane %v2431, %v2438
      %v2441 = vunpack.c.l.s4 1983009808
      %v2442 = vunpack.c.0.s8 %v2441
      %v2443 = vlaneseq
      %v2444 = vshrl.u32 %v2443, 7
      %v2445 = vsub.s32 %v2442, %v2444
      %v2446 = vrot.slane %v2432, %v2445
      %v2447 = vcombine.low %v2439, %v2446
      %v2448 = vcombine.low %v648, %v650
      %v2449 = vcombine.low %v658, %v666
      %v2451 = vunpack.c.l.s4 1983009808
      %v2452 = vunpack.c.0.s8 %v2451
      %v2453 = vlaneseq
      %v2454 = vshrl.u32 %v2453, 7
      %v2455 = vsub.s32 %v2452, %v2454
      %v2456 = vrot.slane %v2448, %v2455
      %v2458 = vunpack.c.l.s4 1983009808
      %v2459 = vunpack.c.0.s8 %v2458
      %v2460 = vlaneseq
      %v2461 = vshrl.u32 %v2460, 7
      %v2462 = vsub.s32 %v2459, %v2461
      %v2463 = vrot.slane %v2449, %v2462
      %v2464 = vcombine.low %v2456, %v2463
      %v2465 = vcombine.low %v665, %v808
      %v2466 = vcombine.low %v682, %v681
      %v2468 = vunpack.c.l.s4 1983009808
      %v2469 = vunpack.c.0.s8 %v2468
      %v2470 = vlaneseq
      %v2471 = vshrl.u32 %v2470, 7
      %v2472 = vsub.s32 %v2469, %v2471
      %v2473 = vrot.slane %v2465, %v2472
      %v2475 = vunpack.c.l.s4 1983009808
      %v2476 = vunpack.c.0.s8 %v2475
      %v2477 = vlaneseq
      %v2478 = vshrl.u32 %v2477, 7
      %v2479 = vsub.s32 %v2476, %v2478
      %v2480 = vrot.slane %v2466, %v2479
      %v2481 = vcombine.low %v2473, %v2480
      %v2482 = vcombine.low %v683, %v691
      %v2483 = vcombine.low %v699, %v698
      %v2485 = vunpack.c.l.s4 1983009808
      %v2486 = vunpack.c.0.s8 %v2485
      %v2487 = vlaneseq
      %v2488 = vshrl.u32 %v2487, 7
      %v2489 = vsub.s32 %v2486, %v2488
      %v2490 = vrot.slane %v2482, %v2489
      %v2492 = vunpack.c.l.s4 1983009808
      %v2493 = vunpack.c.0.s8 %v2492
      %v2494 = vlaneseq
      %v2495 = vshrl.u32 %v2494, 7
      %v2496 = vsub.s32 %v2493, %v2495
      %v2497 = vrot.slane %v2483, %v2496
      %v2498 = vcombine.low %v2490, %v2497
      %v2499 = vcombine.low %v809, %v715
      %v2500 = vcombine.low %v714, %v716
      %v2502 = vunpack.c.l.s4 1983009808
      %v2503 = vunpack.c.0.s8 %v2502
      %v2504 = vlaneseq
      %v2505 = vshrl.u32 %v2504, 7
      %v2506 = vsub.s32 %v2503, %v2505
      %v2507 = vrot.slane %v2499, %v2506
      %v2509 = vunpack.c.l.s4 1983009808
      %v2510 = vunpack.c.0.s8 %v2509
      %v2511 = vlaneseq
      %v2512 = vshrl.u32 %v2511, 7
      %v2513 = vsub.s32 %v2510, %v2512
      %v2514 = vrot.slane %v2500, %v2513
      %v2515 = vcombine.low %v2507, %v2514
      %v2516 = vcombine.low %v724, %v732
      %v2517 = vcombine.low %v731, %v810
      %v2519 = vunpack.c.l.s4 1983009808
      %v2520 = vunpack.c.0.s8 %v2519
      %v2521 = vlaneseq
      %v2522 = vshrl.u32 %v2521, 7
      %v2523 = vsub.s32 %v2520, %v2522
      %v2524 = vrot.slane %v2516, %v2523
      %v2526 = vunpack.c.l.s4 1983009808
      %v2527 = vunpack.c.0.s8 %v2526
      %v2528 = vlaneseq
      %v2529 = vshrl.u32 %v2528, 7
      %v2530 = vsub.s32 %v2527, %v2529
      %v2531 = vrot.slane %v2517, %v2530
      %v2532 = vcombine.low %v2524, %v2531
      %v2533 = vcombine.low %v748, %v747
      %v2534 = vcombine.low %v749, %v757
      %v2536 = vunpack.c.l.s4 1983009808
      %v2537 = vunpack.c.0.s8 %v2536
      %v2538 = vlaneseq
      %v2539 = vshrl.u32 %v2538, 7
      %v2540 = vsub.s32 %v2537, %v2539
      %v2541 = vrot.slane %v2533, %v2540
      %v2543 = vunpack.c.l.s4 1983009808
      %v2544 = vunpack.c.0.s8 %v2543
      %v2545 = vlaneseq
      %v2546 = vshrl.u32 %v2545, 7
      %v2547 = vsub.s32 %v2544, %v2546
      %v2548 = vrot.slane %v2534, %v2547
      %v2549 = vcombine.low %v2541, %v2548
      %v2550 = vcombine.low %v765, %v764
      %v2551 = vcombine.low %v811, %v781
      %v2553 = vunpack.c.l.s4 1983009808
      %v2554 = vunpack.c.0.s8 %v2553
      %v2555 = vlaneseq
      %v2556 = vshrl.u32 %v2555, 7
      %v2557 = vsub.s32 %v2554, %v2556
      %v2558 = vrot.slane %v2550, %v2557
      %v2560 = vunpack.c.l.s4 1983009808
      %v2561 = vunpack.c.0.s8 %v2560
      %v2562 = vlaneseq
      %v2563 = vshrl.u32 %v2562, 7
      %v2564 = vsub.s32 %v2561, %v2563
      %v2565 = vrot.slane %v2551, %v2564
      %v2566 = vcombine.low %v2558, %v2565
      %v2567 = vcombine.low %v780, %v782
      %v2568 = vcombine.low %v790, %v798
      %v2570 = vunpack.c.l.s4 1983009808
      %v2571 = vunpack.c.0.s8 %v2570
      %v2572 = vlaneseq
      %v2573 = vshrl.u32 %v2572, 7
      %v2574 = vsub.s32 %v2571, %v2573
      %v2575 = vrot.slane %v2567, %v2574
      %v2577 = vunpack.c.l.s4 1983009808
      %v2578 = vunpack.c.0.s8 %v2577
      %v2579 = vlaneseq
      %v2580 = vshrl.u32 %v2579, 7
      %v2581 = vsub.s32 %v2578, %v2580
      %v2582 = vrot.slane %v2568, %v2581
      %v2583 = vcombine.low %v2575, %v2582
      %v2584 = vcombine.low %v797, %v812
      %v2586 = vunpack.c.l.s4 1983009808
      %v2587 = vunpack.c.0.s8 %v2586
      %v2588 = vlaneseq
      %v2589 = vshrl.u32 %v2588, 7
      %v2590 = vsub.s32 %v2587, %v2589
      %v2591 = vrot.slane %v2584, %v2590
      %2592 = vrot.lane.b32.xlu0 %v2192, 8
      %v2593 = vpop.permute.xlu0 %2592
      %2594 = vrot.lane.b32.xlu0 %v2209, 8
      %v2595 = vpop.permute.xlu0 %2594
      %2596 = vrot.lane.b32.xlu0 %v2226, 8
      %v2597 = vpop.permute.xlu0 %2596
      %2598 = vrot.lane.b32.xlu0 %v2243, 8
      %v2599 = vpop.permute.xlu0 %2598
      %2600 = vrot.lane.b32.xlu0 %v2260, 8
      %v2601 = vpop.permute.xlu0 %2600
      %2602 = vrot.lane.b32.xlu0 %v2277, 8
      %v2603 = vpop.permute.xlu0 %2602
      %2604 = vrot.lane.b32.xlu0 %v2294, 8
      %v2605 = vpop.permute.xlu0 %2604
      %2606 = vrot.lane.b32.xlu0 %v2311, 8
      %v2607 = vpop.permute.xlu0 %2606
      %2608 = vrot.lane.b32.xlu0 %v2328, 8
      %v2609 = vpop.permute.xlu0 %2608
      %2610 = vrot.lane.b32.xlu0 %v2345, 8
      %v2611 = vpop.permute.xlu0 %2610
      %2612 = vrot.lane.b32.xlu0 %v2362, 8
      %v2613 = vpop.permute.xlu0 %2612
      %2614 = vrot.lane.b32.xlu0 %v2379, 8
      %v2615 = vpop.permute.xlu0 %2614
      %2616 = vrot.lane.b32.xlu0 %v2396, 8
      %v2617 = vpop.permute.xlu0 %2616
      %2618 = vrot.lane.b32.xlu0 %v2413, 8
      %v2619 = vpop.permute.xlu0 %2618
      %2620 = vrot.lane.b32.xlu0 %v2430, 8
      %v2621 = vpop.permute.xlu0 %2620
      %2622 = vrot.lane.b32.xlu0 %v2447, 8
      %v2623 = vpop.permute.xlu0 %2622
      %2624 = vrot.lane.b32.xlu0 %v2464, 8
      %v2625 = vpop.permute.xlu0 %2624
      %2626 = vrot.lane.b32.xlu0 %v2481, 8
      %v2627 = vpop.permute.xlu0 %2626
      %2628 = vrot.lane.b32.xlu0 %v2498, 8
      %v2629 = vpop.permute.xlu0 %2628
      %2630 = vrot.lane.b32.xlu0 %v2515, 8
      %v2631 = vpop.permute.xlu0 %2630
      %2632 = vrot.lane.b32.xlu0 %v2532, 8
      %v2633 = vpop.permute.xlu0 %2632
      %2634 = vrot.lane.b32.xlu0 %v2549, 8
      %v2635 = vpop.permute.xlu0 %2634
      %2636 = vrot.lane.b32.xlu0 %v2566, 8
      %v2637 = vpop.permute.xlu0 %2636
      %2638 = vrot.lane.b32.xlu0 %v2583, 8
      %v2639 = vpop.permute.xlu0 %2638
      %2640 = vrot.lane.b32.xlu0 %v2591, 8
      %v2641 = vpop.permute.xlu0 %2640
      %v2667 = vcombine.low %v377, %v385
      %v2669 = vunpack.c.l.s4 1983009808
      %v2670 = vunpack.c.0.s8 %v2669
      %v2671 = vlaneseq
      %v2672 = vshrl.u32 %v2671, 7
      %v2673 = vsub.s32 %v2670, %v2672
      %v2674 = vrot.slane %v2667, %v2673
      %v2675 = vcombine.low %v2674, %v2218
      %v2676 = vcombine.low %v401, %v410
      %v2678 = vunpack.c.l.s4 1983009808
      %v2679 = vunpack.c.0.s8 %v2678
      %v2680 = vlaneseq
      %v2681 = vshrl.u32 %v2680, 7
      %v2682 = vsub.s32 %v2679, %v2681
      %v2683 = vrot.slane %v2676, %v2682
      %v2684 = vcombine.low %v2225, %v2683
      %v2685 = vcombine.low %v2242, %v2252
      %v2686 = vcombine.low %v443, %v451
      %v2688 = vunpack.c.l.s4 1983009808
      %v2689 = vunpack.c.0.s8 %v2688
      %v2690 = vlaneseq
      %v2691 = vshrl.u32 %v2690, 7
      %v2692 = vsub.s32 %v2689, %v2691
      %v2693 = vrot.slane %v2686, %v2692
      %v2694 = vcombine.low %v2259, %v2693
      %v2695 = vcombine.low %v2276, %v2286
      %v2696 = vcombine.low %v467, %v476
      %v2698 = vunpack.c.l.s4 1983009808
      %v2699 = vunpack.c.0.s8 %v2698
      %v2700 = vlaneseq
      %v2701 = vshrl.u32 %v2700, 7
      %v2702 = vsub.s32 %v2699, %v2701
      %v2703 = vrot.slane %v2696, %v2702
      %v2704 = vcombine.low %v2703, %v2303
      %v2705 = vcombine.low %v2310, %v2320
      %v2706 = vcombine.low %v509, %v517
      %v2708 = vunpack.c.l.s4 1983009808
      %v2709 = vunpack.c.0.s8 %v2708
      %v2710 = vlaneseq
      %v2711 = vshrl.u32 %v2710, 7
      %v2712 = vsub.s32 %v2709, %v2711
      %v2713 = vrot.slane %v2706, %v2712
      %v2714 = vcombine.low %v2713, %v2337
      %v2715 = vcombine.low %v533, %v542
      %v2717 = vunpack.c.l.s4 1983009808
      %v2718 = vunpack.c.0.s8 %v2717
      %v2719 = vlaneseq
      %v2720 = vshrl.u32 %v2719, 7
      %v2721 = vsub.s32 %v2718, %v2720
      %v2722 = vrot.slane %v2715, %v2721
      %v2723 = vcombine.low %v2344, %v2722
      %v2724 = vcombine.low %v2361, %v2371
      %v2725 = vcombine.low %v575, %v583
      %v2727 = vunpack.c.l.s4 1983009808
      %v2728 = vunpack.c.0.s8 %v2727
      %v2729 = vlaneseq
      %v2730 = vshrl.u32 %v2729, 7
      %v2731 = vsub.s32 %v2728, %v2730
      %v2732 = vrot.slane %v2725, %v2731
      %v2733 = vcombine.low %v2378, %v2732
      %v2734 = vcombine.low %v2395, %v2405
      %v2735 = vcombine.low %v599, %v608
      %v2737 = vunpack.c.l.s4 1983009808
      %v2738 = vunpack.c.0.s8 %v2737
      %v2739 = vlaneseq
      %v2740 = vshrl.u32 %v2739, 7
      %v2741 = vsub.s32 %v2738, %v2740
      %v2742 = vrot.slane %v2735, %v2741
      %v2743 = vcombine.low %v2742, %v2422
      %v2744 = vcombine.low %v2429, %v2439
      %v2745 = vcombine.low %v641, %v649
      %v2747 = vunpack.c.l.s4 1983009808
      %v2748 = vunpack.c.0.s8 %v2747
      %v2749 = vlaneseq
      %v2750 = vshrl.u32 %v2749, 7
      %v2751 = vsub.s32 %v2748, %v2750
      %v2752 = vrot.slane %v2745, %v2751
      %v2753 = vcombine.low %v2752, %v2456
      %v2754 = vcombine.low %v665, %v674
      %v2756 = vunpack.c.l.s4 1983009808
      %v2757 = vunpack.c.0.s8 %v2756
      %v2758 = vlaneseq
      %v2759 = vshrl.u32 %v2758, 7
      %v2760 = vsub.s32 %v2757, %v2759
      %v2761 = vrot.slane %v2754, %v2760
      %v2762 = vcombine.low %v2463, %v2761
      %v2763 = vcombine.low %v2480, %v2490
      %v2764 = vcombine.low %v707, %v715
      %v2766 = vunpack.c.l.s4 1983009808
      %v2767 = vunpack.c.0.s8 %v2766
      %v2768 = vlaneseq
      %v2769 = vshrl.u32 %v2768, 7
      %v2770 = vsub.s32 %v2767, %v2769
      %v2771 = vrot.slane %v2764, %v2770
      %v2772 = vcombine.low %v2497, %v2771
      %v2773 = vcombine.low %v2514, %v2524
      %v2774 = vcombine.low %v731, %v740
      %v2776 = vunpack.c.l.s4 1983009808
      %v2777 = vunpack.c.0.s8 %v2776
      %v2778 = vlaneseq
      %v2779 = vshrl.u32 %v2778, 7
      %v2780 = vsub.s32 %v2777, %v2779
      %v2781 = vrot.slane %v2774, %v2780
      %v2782 = vcombine.low %v2781, %v2541
      %v2783 = vcombine.low %v2548, %v2558
      %v2784 = vcombine.low %v773, %v781
      %v2786 = vunpack.c.l.s4 1983009808
      %v2787 = vunpack.c.0.s8 %v2786
      %v2788 = vlaneseq
      %v2789 = vshrl.u32 %v2788, 7
      %v2790 = vsub.s32 %v2787, %v2789
      %v2791 = vrot.slane %v2784, %v2790
      %v2792 = vcombine.low %v2791, %v2575
      %v2793 = vcombine.low %v797, %v1137
      %v2795 = vunpack.c.l.s4 1983009808
      %v2796 = vunpack.c.0.s8 %v2795
      %v2797 = vlaneseq
      %v2798 = vshrl.u32 %v2797, 7
      %v2799 = vsub.s32 %v2796, %v2798
      %v2800 = vrot.slane %v2793, %v2799
      %v2801 = vcombine.low %v2582, %v2800
      %v2802 = vcombine.low %v1145, %v1144
      %v2803 = vcombine.low %v1146, %v1154
      %v2805 = vunpack.c.l.s4 1983009808
      %v2806 = vunpack.c.0.s8 %v2805
      %v2807 = vlaneseq
      %v2808 = vshrl.u32 %v2807, 7
      %v2809 = vsub.s32 %v2806, %v2808
      %v2810 = vrot.slane %v2802, %v2809
      %v2812 = vunpack.c.l.s4 1983009808
      %v2813 = vunpack.c.0.s8 %v2812
      %v2814 = vlaneseq
      %v2815 = vshrl.u32 %v2814, 7
      %v2816 = vsub.s32 %v2813, %v2815
      %v2817 = vrot.slane %v2803, %v2816
      %v2818 = vcombine.low %v2810, %v2817
      %v2819 = vcombine.low %v1162, %v1161
      %v2821 = vunpack.c.l.s4 1983009808
      %v2822 = vunpack.c.0.s8 %v2821
      %v2823 = vlaneseq
      %v2824 = vshrl.u32 %v2823, 7
      %v2825 = vsub.s32 %v2822, %v2824
      %v2826 = vrot.slane %v2819, %v2825
      %2827 = vrot.lane.b32.xlu0 %v2675, 12
      %v2828 = vpop.permute.xlu0 %2827
      %2829 = vrot.lane.b32.xlu0 %v2684, 12
      %v2830 = vpop.permute.xlu0 %2829
      %2831 = vrot.lane.b32.xlu0 %v2685, 12
      %v2832 = vpop.permute.xlu0 %2831
      %2833 = vrot.lane.b32.xlu0 %v2694, 12
      %v2834 = vpop.permute.xlu0 %2833
      %2835 = vrot.lane.b32.xlu0 %v2695, 12
      %v2836 = vpop.permute.xlu0 %2835
      %2837 = vrot.lane.b32.xlu0 %v2704, 12
      %v2838 = vpop.permute.xlu0 %2837
      %2839 = vrot.lane.b32.xlu0 %v2705, 12
      %v2840 = vpop.permute.xlu0 %2839
      %2841 = vrot.lane.b32.xlu0 %v2714, 12
      %v2842 = vpop.permute.xlu0 %2841
      %2843 = vrot.lane.b32.xlu0 %v2723, 12
      %v2844 = vpop.permute.xlu0 %2843
      %2845 = vrot.lane.b32.xlu0 %v2724, 12
      %v2846 = vpop.permute.xlu0 %2845
      %2847 = vrot.lane.b32.xlu0 %v2733, 12
      %v2848 = vpop.permute.xlu0 %2847
      %2849 = vrot.lane.b32.xlu0 %v2734, 12
      %v2850 = vpop.permute.xlu0 %2849
      %2851 = vrot.lane.b32.xlu0 %v2743, 12
      %v2852 = vpop.permute.xlu0 %2851
      %2853 = vrot.lane.b32.xlu0 %v2744, 12
      %v2854 = vpop.permute.xlu0 %2853
      %2855 = vrot.lane.b32.xlu0 %v2753, 12
      %v2856 = vpop.permute.xlu0 %2855
      %2857 = vrot.lane.b32.xlu0 %v2762, 12
      %v2858 = vpop.permute.xlu0 %2857
      %2859 = vrot.lane.b32.xlu0 %v2763, 12
      %v2860 = vpop.permute.xlu0 %2859
      %2861 = vrot.lane.b32.xlu0 %v2772, 12
      %v2862 = vpop.permute.xlu0 %2861
      %2863 = vrot.lane.b32.xlu0 %v2773, 12
      %v2864 = vpop.permute.xlu0 %2863
      %2865 = vrot.lane.b32.xlu0 %v2782, 12
      %v2866 = vpop.permute.xlu0 %2865
      %2867 = vrot.lane.b32.xlu0 %v2783, 12
      %v2868 = vpop.permute.xlu0 %2867
      %2869 = vrot.lane.b32.xlu0 %v2792, 12
      %v2870 = vpop.permute.xlu0 %2869
      %2871 = vrot.lane.b32.xlu0 %v2801, 12
      %v2872 = vpop.permute.xlu0 %2871
      %2873 = vrot.lane.b32.xlu0 %v2818, 12
      %v2874 = vpop.permute.xlu0 %2873
      %2875 = vrot.lane.b32.xlu0 %v2826, 12
      %v2876 = vpop.permute.xlu0 %2875
      %v2902 = vcombine.low %v845, %v848
      %v2903 = vcombine.low %v851, %v854
      %v2905 = vunpack.c.l.s4 1983009808
      %v2906 = vunpack.c.0.s8 %v2905
      %v2907 = vlaneseq
      %v2908 = vshrl.u32 %v2907, 7
      %v2909 = vsub.s32 %v2906, %v2908
      %v2910 = vrot.slane %v2902, %v2909
      %v2912 = vunpack.c.l.s4 1983009808
      %v2913 = vunpack.c.0.s8 %v2912
      %v2914 = vlaneseq
      %v2915 = vshrl.u32 %v2914, 7
      %v2916 = vsub.s32 %v2913, %v2915
      %v2917 = vrot.slane %v2903, %v2916
      %v2918 = vcombine.low %v2910, %v2917
      %v2919 = vcombine.low %v857, %v860
      %v2920 = vcombine.low %v863, %v867
      %v2922 = vunpack.c.l.s4 1983009808
      %v2923 = vunpack.c.0.s8 %v2922
      %v2924 = vlaneseq
      %v2925 = vshrl.u32 %v2924, 7
      %v2926 = vsub.s32 %v2923, %v2925
      %v2927 = vrot.slane %v2919, %v2926
      %v2929 = vunpack.c.l.s4 1983009808
      %v2930 = vunpack.c.0.s8 %v2929
      %v2931 = vlaneseq
      %v2932 = vshrl.u32 %v2931, 7
      %v2933 = vsub.s32 %v2930, %v2932
      %v2934 = vrot.slane %v2920, %v2933
      %v2935 = vcombine.low %v2927, %v2934
      %v2936 = vcombine.low %v870, %v873
      %v2937 = vcombine.low %v876, %v879
      %v2939 = vunpack.c.l.s4 1983009808
      %v2940 = vunpack.c.0.s8 %v2939
      %v2941 = vlaneseq
      %v2942 = vshrl.u32 %v2941, 7
      %v2943 = vsub.s32 %v2940, %v2942
      %v2944 = vrot.slane %v2936, %v2943
      %v2946 = vunpack.c.l.s4 1983009808
      %v2947 = vunpack.c.0.s8 %v2946
      %v2948 = vlaneseq
      %v2949 = vshrl.u32 %v2948, 7
      %v2950 = vsub.s32 %v2947, %v2949
      %v2951 = vrot.slane %v2937, %v2950
      %v2952 = vcombine.low %v2944, %v2951
      %v2953 = vcombine.low %v882, %v885
      %v2954 = vcombine.low %v889, %v892
      %v2956 = vunpack.c.l.s4 1983009808
      %v2957 = vunpack.c.0.s8 %v2956
      %v2958 = vlaneseq
      %v2959 = vshrl.u32 %v2958, 7
      %v2960 = vsub.s32 %v2957, %v2959
      %v2961 = vrot.slane %v2953, %v2960
      %v2963 = vunpack.c.l.s4 1983009808
      %v2964 = vunpack.c.0.s8 %v2963
      %v2965 = vlaneseq
      %v2966 = vshrl.u32 %v2965, 7
      %v2967 = vsub.s32 %v2964, %v2966
      %v2968 = vrot.slane %v2954, %v2967
      %v2969 = vcombine.low %v2961, %v2968
      %v2970 = vcombine.low %v895, %v898
      %v2971 = vcombine.low %v901, %v904
      %v2973 = vunpack.c.l.s4 1983009808
      %v2974 = vunpack.c.0.s8 %v2973
      %v2975 = vlaneseq
      %v2976 = vshrl.u32 %v2975, 7
      %v2977 = vsub.s32 %v2974, %v2976
      %v2978 = vrot.slane %v2970, %v2977
      %v2980 = vunpack.c.l.s4 1983009808
      %v2981 = vunpack.c.0.s8 %v2980
      %v2982 = vlaneseq
      %v2983 = vshrl.u32 %v2982, 7
      %v2984 = vsub.s32 %v2981, %v2983
      %v2985 = vrot.slane %v2971, %v2984
      %v2986 = vcombine.low %v2978, %v2985
      %v2987 = vcombine.low %v907, %v911
      %v2988 = vcombine.low %v914, %v917
      %v2990 = vunpack.c.l.s4 1983009808
      %v2991 = vunpack.c.0.s8 %v2990
      %v2992 = vlaneseq
      %v2993 = vshrl.u32 %v2992, 7
      %v2994 = vsub.s32 %v2991, %v2993
      %v2995 = vrot.slane %v2987, %v2994
      %v2997 = vunpack.c.l.s4 1983009808
      %v2998 = vunpack.c.0.s8 %v2997
      %v2999 = vlaneseq
      %v3000 = vshrl.u32 %v2999, 7
      %v3001 = vsub.s32 %v2998, %v3000
      %v3002 = vrot.slane %v2988, %v3001
      %v3003 = vcombine.low %v2995, %v3002
      %v3004 = vcombine.low %v920, %v923
      %v3005 = vcombine.low %v926, %v929
      %v3007 = vunpack.c.l.s4 1983009808
      %v3008 = vunpack.c.0.s8 %v3007
      %v3009 = vlaneseq
      %v3010 = vshrl.u32 %v3009, 7
      %v3011 = vsub.s32 %v3008, %v3010
      %v3012 = vrot.slane %v3004, %v3011
      %v3014 = vunpack.c.l.s4 1983009808
      %v3015 = vunpack.c.0.s8 %v3014
      %v3016 = vlaneseq
      %v3017 = vshrl.u32 %v3016, 7
      %v3018 = vsub.s32 %v3015, %v3017
      %v3019 = vrot.slane %v3005, %v3018
      %v3020 = vcombine.low %v3012, %v3019
      %v3021 = vcombine.low %v933, %v936
      %v3022 = vcombine.low %v939, %v942
      %v3024 = vunpack.c.l.s4 1983009808
      %v3025 = vunpack.c.0.s8 %v3024
      %v3026 = vlaneseq
      %v3027 = vshrl.u32 %v3026, 7
      %v3028 = vsub.s32 %v3025, %v3027
      %v3029 = vrot.slane %v3021, %v3028
      %v3031 = vunpack.c.l.s4 1983009808
      %v3032 = vunpack.c.0.s8 %v3031
      %v3033 = vlaneseq
      %v3034 = vshrl.u32 %v3033, 7
      %v3035 = vsub.s32 %v3032, %v3034
      %v3036 = vrot.slane %v3022, %v3035
      %v3037 = vcombine.low %v3029, %v3036
      %v3038 = vcombine.low %v945, %v948
      %v3039 = vcombine.low %v951, %v955
      %v3041 = vunpack.c.l.s4 1983009808
      %v3042 = vunpack.c.0.s8 %v3041
      %v3043 = vlaneseq
      %v3044 = vshrl.u32 %v3043, 7
      %v3045 = vsub.s32 %v3042, %v3044
      %v3046 = vrot.slane %v3038, %v3045
      %v3048 = vunpack.c.l.s4 1983009808
      %v3049 = vunpack.c.0.s8 %v3048
      %v3050 = vlaneseq
      %v3051 = vshrl.u32 %v3050, 7
      %v3052 = vsub.s32 %v3049, %v3051
      %v3053 = vrot.slane %v3039, %v3052
      %v3054 = vcombine.low %v3046, %v3053
      %v3055 = vcombine.low %v958, %v961
      %v3056 = vcombine.low %v964, %v967
      %v3058 = vunpack.c.l.s4 1983009808
      %v3059 = vunpack.c.0.s8 %v3058
      %v3060 = vlaneseq
      %v3061 = vshrl.u32 %v3060, 7
      %v3062 = vsub.s32 %v3059, %v3061
      %v3063 = vrot.slane %v3055, %v3062
      %v3065 = vunpack.c.l.s4 1983009808
      %v3066 = vunpack.c.0.s8 %v3065
      %v3067 = vlaneseq
      %v3068 = vshrl.u32 %v3067, 7
      %v3069 = vsub.s32 %v3066, %v3068
      %v3070 = vrot.slane %v3056, %v3069
      %v3071 = vcombine.low %v3063, %v3070
      %v3072 = vcombine.low %v970, %v973
      %v3073 = vcombine.low %v977, %v980
      %v3075 = vunpack.c.l.s4 1983009808
      %v3076 = vunpack.c.0.s8 %v3075
      %v3077 = vlaneseq
      %v3078 = vshrl.u32 %v3077, 7
      %v3079 = vsub.s32 %v3076, %v3078
      %v3080 = vrot.slane %v3072, %v3079
      %v3082 = vunpack.c.l.s4 1983009808
      %v3083 = vunpack.c.0.s8 %v3082
      %v3084 = vlaneseq
      %v3085 = vshrl.u32 %v3084, 7
      %v3086 = vsub.s32 %v3083, %v3085
      %v3087 = vrot.slane %v3073, %v3086
      %v3088 = vcombine.low %v3080, %v3087
      %v3089 = vcombine.low %v983, %v986
      %v3090 = vcombine.low %v989, %v992
      %v3092 = vunpack.c.l.s4 1983009808
      %v3093 = vunpack.c.0.s8 %v3092
      %v3094 = vlaneseq
      %v3095 = vshrl.u32 %v3094, 7
      %v3096 = vsub.s32 %v3093, %v3095
      %v3097 = vrot.slane %v3089, %v3096
      %v3099 = vunpack.c.l.s4 1983009808
      %v3100 = vunpack.c.0.s8 %v3099
      %v3101 = vlaneseq
      %v3102 = vshrl.u32 %v3101, 7
      %v3103 = vsub.s32 %v3100, %v3102
      %v3104 = vrot.slane %v3090, %v3103
      %v3105 = vcombine.low %v3097, %v3104
      %v3106 = vcombine.low %v995, %v999
      %v3107 = vcombine.low %v1002, %v1005
      %v3109 = vunpack.c.l.s4 1983009808
      %v3110 = vunpack.c.0.s8 %v3109
      %v3111 = vlaneseq
      %v3112 = vshrl.u32 %v3111, 7
      %v3113 = vsub.s32 %v3110, %v3112
      %v3114 = vrot.slane %v3106, %v3113
      %v3116 = vunpack.c.l.s4 1983009808
      %v3117 = vunpack.c.0.s8 %v3116
      %v3118 = vlaneseq
      %v3119 = vshrl.u32 %v3118, 7
      %v3120 = vsub.s32 %v3117, %v3119
      %v3121 = vrot.slane %v3107, %v3120
      %v3122 = vcombine.low %v3114, %v3121
      %v3123 = vcombine.low %v1008, %v1011
      %v3124 = vcombine.low %v1014, %v1017
      %v3126 = vunpack.c.l.s4 1983009808
      %v3127 = vunpack.c.0.s8 %v3126
      %v3128 = vlaneseq
      %v3129 = vshrl.u32 %v3128, 7
      %v3130 = vsub.s32 %v3127, %v3129
      %v3131 = vrot.slane %v3123, %v3130
      %v3133 = vunpack.c.l.s4 1983009808
      %v3134 = vunpack.c.0.s8 %v3133
      %v3135 = vlaneseq
      %v3136 = vshrl.u32 %v3135, 7
      %v3137 = vsub.s32 %v3134, %v3136
      %v3138 = vrot.slane %v3124, %v3137
      %v3139 = vcombine.low %v3131, %v3138
      %v3140 = vcombine.low %v1021, %v1024
      %v3141 = vcombine.low %v1027, %v1030
      %v3143 = vunpack.c.l.s4 1983009808
      %v3144 = vunpack.c.0.s8 %v3143
      %v3145 = vlaneseq
      %v3146 = vshrl.u32 %v3145, 7
      %v3147 = vsub.s32 %v3144, %v3146
      %v3148 = vrot.slane %v3140, %v3147
      %v3150 = vunpack.c.l.s4 1983009808
      %v3151 = vunpack.c.0.s8 %v3150
      %v3152 = vlaneseq
      %v3153 = vshrl.u32 %v3152, 7
      %v3154 = vsub.s32 %v3151, %v3153
      %v3155 = vrot.slane %v3141, %v3154
      %v3156 = vcombine.low %v3148, %v3155
      %v3157 = vcombine.low %v1033, %v1036
      %v3158 = vcombine.low %v1039, %v1043
      %v3160 = vunpack.c.l.s4 1983009808
      %v3161 = vunpack.c.0.s8 %v3160
      %v3162 = vlaneseq
      %v3163 = vshrl.u32 %v3162, 7
      %v3164 = vsub.s32 %v3161, %v3163
      %v3165 = vrot.slane %v3157, %v3164
      %v3167 = vunpack.c.l.s4 1983009808
      %v3168 = vunpack.c.0.s8 %v3167
      %v3169 = vlaneseq
      %v3170 = vshrl.u32 %v3169, 7
      %v3171 = vsub.s32 %v3168, %v3170
      %v3172 = vrot.slane %v3158, %v3171
      %v3173 = vcombine.low %v3165, %v3172
      %v3174 = vcombine.low %v1046, %v1049
      %v3175 = vcombine.low %v1052, %v1055
      %v3177 = vunpack.c.l.s4 1983009808
      %v3178 = vunpack.c.0.s8 %v3177
      %v3179 = vlaneseq
      %v3180 = vshrl.u32 %v3179, 7
      %v3181 = vsub.s32 %v3178, %v3180
      %v3182 = vrot.slane %v3174, %v3181
      %v3184 = vunpack.c.l.s4 1983009808
      %v3185 = vunpack.c.0.s8 %v3184
      %v3186 = vlaneseq
      %v3187 = vshrl.u32 %v3186, 7
      %v3188 = vsub.s32 %v3185, %v3187
      %v3189 = vrot.slane %v3175, %v3188
      %v3190 = vcombine.low %v3182, %v3189
      %v3191 = vcombine.low %v1058, %v1061
      %v3192 = vcombine.low %v1065, %v1068
      %v3194 = vunpack.c.l.s4 1983009808
      %v3195 = vunpack.c.0.s8 %v3194
      %v3196 = vlaneseq
      %v3197 = vshrl.u32 %v3196, 7
      %v3198 = vsub.s32 %v3195, %v3197
      %v3199 = vrot.slane %v3191, %v3198
      %v3201 = vunpack.c.l.s4 1983009808
      %v3202 = vunpack.c.0.s8 %v3201
      %v3203 = vlaneseq
      %v3204 = vshrl.u32 %v3203, 7
      %v3205 = vsub.s32 %v3202, %v3204
      %v3206 = vrot.slane %v3192, %v3205
      %v3207 = vcombine.low %v3199, %v3206
      %v3208 = vcombine.low %v1071, %v1074
      %v3209 = vcombine.low %v1077, %v1080
      %v3211 = vunpack.c.l.s4 1983009808
      %v3212 = vunpack.c.0.s8 %v3211
      %v3213 = vlaneseq
      %v3214 = vshrl.u32 %v3213, 7
      %v3215 = vsub.s32 %v3212, %v3214
      %v3216 = vrot.slane %v3208, %v3215
      %v3218 = vunpack.c.l.s4 1983009808
      %v3219 = vunpack.c.0.s8 %v3218
      %v3220 = vlaneseq
      %v3221 = vshrl.u32 %v3220, 7
      %v3222 = vsub.s32 %v3219, %v3221
      %v3223 = vrot.slane %v3209, %v3222
      %v3224 = vcombine.low %v3216, %v3223
      %v3225 = vcombine.low %v1083, %v1087
      %v3226 = vcombine.low %v1090, %v1093
      %v3228 = vunpack.c.l.s4 1983009808
      %v3229 = vunpack.c.0.s8 %v3228
      %v3230 = vlaneseq
      %v3231 = vshrl.u32 %v3230, 7
      %v3232 = vsub.s32 %v3229, %v3231
      %v3233 = vrot.slane %v3225, %v3232
      %v3235 = vunpack.c.l.s4 1983009808
      %v3236 = vunpack.c.0.s8 %v3235
      %v3237 = vlaneseq
      %v3238 = vshrl.u32 %v3237, 7
      %v3239 = vsub.s32 %v3236, %v3238
      %v3240 = vrot.slane %v3226, %v3239
      %v3241 = vcombine.low %v3233, %v3240
      %v3242 = vcombine.low %v1096, %v1099
      %v3243 = vcombine.low %v1102, %v1105
      %v3245 = vunpack.c.l.s4 1983009808
      %v3246 = vunpack.c.0.s8 %v3245
      %v3247 = vlaneseq
      %v3248 = vshrl.u32 %v3247, 7
      %v3249 = vsub.s32 %v3246, %v3248
      %v3250 = vrot.slane %v3242, %v3249
      %v3252 = vunpack.c.l.s4 1983009808
      %v3253 = vunpack.c.0.s8 %v3252
      %v3254 = vlaneseq
      %v3255 = vshrl.u32 %v3254, 7
      %v3256 = vsub.s32 %v3253, %v3255
      %v3257 = vrot.slane %v3243, %v3256
      %v3258 = vcombine.low %v3250, %v3257
      %v3259 = vcombine.low %v1109, %v1112
      %v3260 = vcombine.low %v1115, %v1118
      %v3262 = vunpack.c.l.s4 1983009808
      %v3263 = vunpack.c.0.s8 %v3262
      %v3264 = vlaneseq
      %v3265 = vshrl.u32 %v3264, 7
      %v3266 = vsub.s32 %v3263, %v3265
      %v3267 = vrot.slane %v3259, %v3266
      %v3269 = vunpack.c.l.s4 1983009808
      %v3270 = vunpack.c.0.s8 %v3269
      %v3271 = vlaneseq
      %v3272 = vshrl.u32 %v3271, 7
      %v3273 = vsub.s32 %v3270, %v3272
      %v3274 = vrot.slane %v3260, %v3273
      %v3275 = vcombine.low %v3267, %v3274
      %v3276 = vcombine.low %v1121, %v1124
      %v3277 = vcombine.low %v1127, %v1167
      %v3279 = vunpack.c.l.s4 1983009808
      %v3280 = vunpack.c.0.s8 %v3279
      %v3281 = vlaneseq
      %v3282 = vshrl.u32 %v3281, 7
      %v3283 = vsub.s32 %v3280, %v3282
      %v3284 = vrot.slane %v3276, %v3283
      %v3286 = vunpack.c.l.s4 1983009808
      %v3287 = vunpack.c.0.s8 %v3286
      %v3288 = vlaneseq
      %v3289 = vshrl.u32 %v3288, 7
      %v3290 = vsub.s32 %v3287, %v3289
      %v3291 = vrot.slane %v3277, %v3290
      %v3292 = vcombine.low %v3284, %v3291
      %v3293 = vcombine.low %v1170, %v1173
      %v3294 = vcombine.low %v1176, %v1179
      %v3296 = vunpack.c.l.s4 1983009808
      %v3297 = vunpack.c.0.s8 %v3296
      %v3298 = vlaneseq
      %v3299 = vshrl.u32 %v3298, 7
      %v3300 = vsub.s32 %v3297, %v3299
      %v3301 = vrot.slane %v3293, %v3300
      %v3303 = vunpack.c.l.s4 1983009808
      %v3304 = vunpack.c.0.s8 %v3303
      %v3305 = vlaneseq
      %v3306 = vshrl.u32 %v3305, 7
      %v3307 = vsub.s32 %v3304, %v3306
      %v3308 = vrot.slane %v3294, %v3307
      %v3309 = vcombine.low %v3301, %v3308
      %v3310 = vcombine.low %v1182, %v1185
      %v3312 = vunpack.c.l.s4 1983009808
      %v3313 = vunpack.c.0.s8 %v3312
      %v3314 = vlaneseq
      %v3315 = vshrl.u32 %v3314, 7
      %v3316 = vsub.s32 %v3313, %v3315
      %v3317 = vrot.slane %v3310, %v3316
      %3318 = vrot.lane.b32.xlu0 %v2918, 16
      %v3319 = vpop.permute.xlu0 %3318
      %3320 = vrot.lane.b32.xlu0 %v2935, 16
      %v3321 = vpop.permute.xlu0 %3320
      %3322 = vrot.lane.b32.xlu0 %v2952, 16
      %v3323 = vpop.permute.xlu0 %3322
      %3324 = vrot.lane.b32.xlu0 %v2969, 16
      %v3325 = vpop.permute.xlu0 %3324
      %3326 = vrot.lane.b32.xlu0 %v2986, 16
      %v3327 = vpop.permute.xlu0 %3326
      %3328 = vrot.lane.b32.xlu0 %v3003, 16
      %v3329 = vpop.permute.xlu0 %3328
      %3330 = vrot.lane.b32.xlu0 %v3020, 16
      %v3331 = vpop.permute.xlu0 %3330
      %3332 = vrot.lane.b32.xlu0 %v3037, 16
      %v3333 = vpop.permute.xlu0 %3332
      %3334 = vrot.lane.b32.xlu0 %v3054, 16
      %v3335 = vpop.permute.xlu0 %3334
      %3336 = vrot.lane.b32.xlu0 %v3071, 16
      %v3337 = vpop.permute.xlu0 %3336
      %3338 = vrot.lane.b32.xlu0 %v3088, 16
      %v3339 = vpop.permute.xlu0 %3338
      %3340 = vrot.lane.b32.xlu0 %v3105, 16
      %v3341 = vpop.permute.xlu0 %3340
      %3342 = vrot.lane.b32.xlu0 %v3122, 16
      %v3343 = vpop.permute.xlu0 %3342
      %3344 = vrot.lane.b32.xlu0 %v3139, 16
      %v3345 = vpop.permute.xlu0 %3344
      %3346 = vrot.lane.b32.xlu0 %v3156, 16
      %v3347 = vpop.permute.xlu0 %3346
      %3348 = vrot.lane.b32.xlu0 %v3173, 16
      %v3349 = vpop.permute.xlu0 %3348
      %3350 = vrot.lane.b32.xlu0 %v3190, 16
      %v3351 = vpop.permute.xlu0 %3350
      %3352 = vrot.lane.b32.xlu0 %v3207, 16
      %v3353 = vpop.permute.xlu0 %3352
      %3354 = vrot.lane.b32.xlu0 %v3224, 16
      %v3355 = vpop.permute.xlu0 %3354
      %3356 = vrot.lane.b32.xlu0 %v3241, 16
      %v3357 = vpop.permute.xlu0 %3356
      %3358 = vrot.lane.b32.xlu0 %v3258, 16
      %v3359 = vpop.permute.xlu0 %3358
      %3360 = vrot.lane.b32.xlu0 %v3275, 16
      %v3361 = vpop.permute.xlu0 %3360
      %3362 = vrot.lane.b32.xlu0 %v3292, 16
      %v3363 = vpop.permute.xlu0 %3362
      %3364 = vrot.lane.b32.xlu0 %v3309, 16
      %v3365 = vpop.permute.xlu0 %3364
      %3366 = vrot.lane.b32.xlu0 %v3317, 16
      %v3367 = vpop.permute.xlu0 %3366
      %v3393 = vcombine.low %v800, %v418
      %v3395 = vunpack.c.l.s4 1983009808
      %v3396 = vunpack.c.0.s8 %v3395
      %v3397 = vlaneseq
      %v3398 = vshrl.u32 %v3397, 7
      %v3399 = vsub.s32 %v3396, %v3398
      %v3400 = vrot.slane %v3393, %v3399
      %v3401 = vcombine.low %v1303, %v3400
      %v3402 = vcombine.low %v434, %v801
      %v3404 = vunpack.c.l.s4 1983009808
      %v3405 = vunpack.c.0.s8 %v3404
      %v3406 = vlaneseq
      %v3407 = vshrl.u32 %v3406, 7
      %v3408 = vsub.s32 %v3405, %v3407
      %v3409 = vrot.slane %v3402, %v3408
      %v3410 = vcombine.low %v3409, %v1344
      %v3411 = vcombine.low %v802, %v484
      %v3413 = vunpack.c.l.s4 1983009808
      %v3414 = vunpack.c.0.s8 %v3413
      %v3415 = vlaneseq
      %v3416 = vshrl.u32 %v3415, 7
      %v3417 = vsub.s32 %v3414, %v3416
      %v3418 = vrot.slane %v3411, %v3417
      %v3419 = vcombine.low %v3418, %v1378
      %v3420 = vcombine.low %v500, %v803
      %v3422 = vunpack.c.l.s4 1983009808
      %v3423 = vunpack.c.0.s8 %v3422
      %v3424 = vlaneseq
      %v3425 = vshrl.u32 %v3424, 7
      %v3426 = vsub.s32 %v3423, %v3425
      %v3427 = vrot.slane %v3420, %v3426
      %v3428 = vcombine.low %v1388, %v3427
      %v3429 = vcombine.low %v804, %v550
      %v3431 = vunpack.c.l.s4 1983009808
      %v3432 = vunpack.c.0.s8 %v3431
      %v3433 = vlaneseq
      %v3434 = vshrl.u32 %v3433, 7
      %v3435 = vsub.s32 %v3432, %v3434
      %v3436 = vrot.slane %v3429, %v3435
      %v3437 = vcombine.low %v1422, %v3436
      %v3438 = vcombine.low %v566, %v805
      %v3440 = vunpack.c.l.s4 1983009808
      %v3441 = vunpack.c.0.s8 %v3440
      %v3442 = vlaneseq
      %v3443 = vshrl.u32 %v3442, 7
      %v3444 = vsub.s32 %v3441, %v3443
      %v3445 = vrot.slane %v3438, %v3444
      %v3446 = vcombine.low %v3445, %v1463
      %v3447 = vcombine.low %v806, %v616
      %v3449 = vunpack.c.l.s4 1983009808
      %v3450 = vunpack.c.0.s8 %v3449
      %v3451 = vlaneseq
      %v3452 = vshrl.u32 %v3451, 7
      %v3453 = vsub.s32 %v3450, %v3452
      %v3454 = vrot.slane %v3447, %v3453
      %v3455 = vcombine.low %v3454, %v1497
      %v3456 = vcombine.low %v632, %v807
      %v3458 = vunpack.c.l.s4 1983009808
      %v3459 = vunpack.c.0.s8 %v3458
      %v3460 = vlaneseq
      %v3461 = vshrl.u32 %v3460, 7
      %v3462 = vsub.s32 %v3459, %v3461
      %v3463 = vrot.slane %v3456, %v3462
      %v3464 = vcombine.low %v1507, %v3463
      %v3465 = vcombine.low %v808, %v682
      %v3467 = vunpack.c.l.s4 1983009808
      %v3468 = vunpack.c.0.s8 %v3467
      %v3469 = vlaneseq
      %v3470 = vshrl.u32 %v3469, 7
      %v3471 = vsub.s32 %v3468, %v3470
      %v3472 = vrot.slane %v3465, %v3471
      %v3473 = vcombine.low %v1541, %v3472
      %v3474 = vcombine.low %v698, %v809
      %v3476 = vunpack.c.l.s4 1983009808
      %v3477 = vunpack.c.0.s8 %v3476
      %v3478 = vlaneseq
      %v3479 = vshrl.u32 %v3478, 7
      %v3480 = vsub.s32 %v3477, %v3479
      %v3481 = vrot.slane %v3474, %v3480
      %v3482 = vcombine.low %v3481, %v1582
      %v3483 = vcombine.low %v810, %v748
      %v3485 = vunpack.c.l.s4 1983009808
      %v3486 = vunpack.c.0.s8 %v3485
      %v3487 = vlaneseq
      %v3488 = vshrl.u32 %v3487, 7
      %v3489 = vsub.s32 %v3486, %v3488
      %v3490 = vrot.slane %v3483, %v3489
      %v3491 = vcombine.low %v3490, %v1616
      %v3492 = vcombine.low %v764, %v811
      %v3494 = vunpack.c.l.s4 1983009808
      %v3495 = vunpack.c.0.s8 %v3494
      %v3496 = vlaneseq
      %v3497 = vshrl.u32 %v3496, 7
      %v3498 = vsub.s32 %v3495, %v3497
      %v3499 = vrot.slane %v3492, %v3498
      %v3500 = vcombine.low %v1626, %v3499
      %v3501 = vcombine.low %v812, %v1145
      %v3503 = vunpack.c.l.s4 1983009808
      %v3504 = vunpack.c.0.s8 %v3503
      %v3505 = vlaneseq
      %v3506 = vshrl.u32 %v3505, 7
      %v3507 = vsub.s32 %v3504, %v3506
      %v3508 = vrot.slane %v3501, %v3507
      %v3509 = vcombine.low %v1659, %v3508
      %v3510 = vcombine.low %v1144, %v1146
      %v3511 = vcombine.low %v1154, %v1162
      %v3513 = vunpack.c.l.s4 1983009808
      %v3514 = vunpack.c.0.s8 %v3513
      %v3515 = vlaneseq
      %v3516 = vshrl.u32 %v3515, 7
      %v3517 = vsub.s32 %v3514, %v3516
      %v3518 = vrot.slane %v3510, %v3517
      %v3520 = vunpack.c.l.s4 1983009808
      %v3521 = vunpack.c.0.s8 %v3520
      %v3522 = vlaneseq
      %v3523 = vshrl.u32 %v3522, 7
      %v3524 = vsub.s32 %v3521, %v3523
      %v3525 = vrot.slane %v3511, %v3524
      %v3526 = vcombine.low %v3518, %v3525
      %v3527 = vcombine.low %v1161, %v1163
      %v3529 = vunpack.c.l.s4 1983009808
      %v3530 = vunpack.c.0.s8 %v3529
      %v3531 = vlaneseq
      %v3532 = vshrl.u32 %v3531, 7
      %v3533 = vsub.s32 %v3530, %v3532
      %v3534 = vrot.slane %v3527, %v3533
      %3535 = vrot.lane.b32.xlu0 %v1294, 20
      %v3536 = vpop.permute.xlu0 %3535
      %3537 = vrot.lane.b32.xlu0 %v3401, 20
      %v3538 = vpop.permute.xlu0 %3537
      %3539 = vrot.lane.b32.xlu0 %v1328, 20
      %v3540 = vpop.permute.xlu0 %3539
      %3541 = vrot.lane.b32.xlu0 %v3410, 20
      %v3542 = vpop.permute.xlu0 %3541
      %3543 = vrot.lane.b32.xlu0 %v1362, 20
      %v3544 = vpop.permute.xlu0 %3543
      %3545 = vrot.lane.b32.xlu0 %v3419, 20
      %v3546 = vpop.permute.xlu0 %3545
      %3547 = vrot.lane.b32.xlu0 %v3428, 20
      %v3548 = vpop.permute.xlu0 %3547
      %3549 = vrot.lane.b32.xlu0 %v1413, 20
      %v3550 = vpop.permute.xlu0 %3549
      %3551 = vrot.lane.b32.xlu0 %v3437, 20
      %v3552 = vpop.permute.xlu0 %3551
      %3553 = vrot.lane.b32.xlu0 %v1447, 20
      %v3554 = vpop.permute.xlu0 %3553
      %3555 = vrot.lane.b32.xlu0 %v3446, 20
      %v3556 = vpop.permute.xlu0 %3555
      %3557 = vrot.lane.b32.xlu0 %v1481, 20
      %v3558 = vpop.permute.xlu0 %3557
      %3559 = vrot.lane.b32.xlu0 %v3455, 20
      %v3560 = vpop.permute.xlu0 %3559
      %3561 = vrot.lane.b32.xlu0 %v3464, 20
      %v3562 = vpop.permute.xlu0 %3561
      %3563 = vrot.lane.b32.xlu0 %v1532, 20
      %v3564 = vpop.permute.xlu0 %3563
      %3565 = vrot.lane.b32.xlu0 %v3473, 20
      %v3566 = vpop.permute.xlu0 %3565
      %3567 = vrot.lane.b32.xlu0 %v1566, 20
      %v3568 = vpop.permute.xlu0 %3567
      %3569 = vrot.lane.b32.xlu0 %v3482, 20
      %v3570 = vpop.permute.xlu0 %3569
      %3571 = vrot.lane.b32.xlu0 %v1600, 20
      %v3572 = vpop.permute.xlu0 %3571
      %3573 = vrot.lane.b32.xlu0 %v3491, 20
      %v3574 = vpop.permute.xlu0 %3573
      %3575 = vrot.lane.b32.xlu0 %v3500, 20
      %v3576 = vpop.permute.xlu0 %3575
      %3577 = vrot.lane.b32.xlu0 %v1651, 20
      %v3578 = vpop.permute.xlu0 %3577
      %3579 = vrot.lane.b32.xlu0 %v3509, 20
      %v3580 = vpop.permute.xlu0 %3579
      %3581 = vrot.lane.b32.xlu0 %v3526, 20
      %v3582 = vpop.permute.xlu0 %3581
      %3583 = vrot.lane.b32.xlu0 %v3534, 20
      %v3584 = vpop.permute.xlu0 %3583
      %v3610 = vcombine.low %v1310, %v1320
      %v3611 = vcombine.low %v1327, %v1337
      %v3612 = vcombine.low %v1344, %v1354
      %v3613 = vcombine.low %v1361, %v1371
      %v3614 = vcombine.low %v1378, %v1388
      %v3615 = vcombine.low %v1395, %v1405
      %v3616 = vcombine.low %v1412, %v1422
      %v3617 = vcombine.low %v1429, %v1439
      %v3618 = vcombine.low %v1446, %v1456
      %v3619 = vcombine.low %v1463, %v1473
      %v3620 = vcombine.low %v1480, %v1490
      %v3621 = vcombine.low %v1497, %v1507
      %v3622 = vcombine.low %v1514, %v1524
      %v3623 = vcombine.low %v1531, %v1541
      %v3624 = vcombine.low %v1548, %v1558
      %v3625 = vcombine.low %v1565, %v1575
      %v3626 = vcombine.low %v1582, %v1592
      %v3627 = vcombine.low %v1599, %v1609
      %v3628 = vcombine.low %v1616, %v1626
      %v3629 = vcombine.low %v1633, %v1643
      %v3630 = vcombine.low %v1650, %v1659
      %v3631 = vcombine.low %v1137, %v1145
      %v3633 = vunpack.c.l.s4 1983009808
      %v3634 = vunpack.c.0.s8 %v3633
      %v3635 = vlaneseq
      %v3636 = vshrl.u32 %v3635, 7
      %v3637 = vsub.s32 %v3634, %v3636
      %v3638 = vrot.slane %v3631, %v3637
      %v3639 = vcombine.low %v3638, %v3518
      %v3640 = vcombine.low %v1161, %v1195
      %v3642 = vunpack.c.l.s4 1983009808
      %v3643 = vunpack.c.0.s8 %v3642
      %v3644 = vlaneseq
      %v3645 = vshrl.u32 %v3644, 7
      %v3646 = vsub.s32 %v3643, %v3645
      %v3647 = vrot.slane %v3640, %v3646
      %v3648 = vcombine.low %v3525, %v3647
      %v3649 = vcombine.low %v1203, %v1202
      %v3650 = vcombine.low %v1204, %v1212
      %v3652 = vunpack.c.l.s4 1983009808
      %v3653 = vunpack.c.0.s8 %v3652
      %v3654 = vlaneseq
      %v3655 = vshrl.u32 %v3654, 7
      %v3656 = vsub.s32 %v3653, %v3655
      %v3657 = vrot.slane %v3649, %v3656
      %v3659 = vunpack.c.l.s4 1983009808
      %v3660 = vunpack.c.0.s8 %v3659
      %v3661 = vlaneseq
      %v3662 = vshrl.u32 %v3661, 7
      %v3663 = vsub.s32 %v3660, %v3662
      %v3664 = vrot.slane %v3650, %v3663
      %v3665 = vcombine.low %v3657, %v3664
      %v3666 = vcombine.low %v1220, %v1219
      %v3668 = vunpack.c.l.s4 1983009808
      %v3669 = vunpack.c.0.s8 %v3668
      %v3670 = vlaneseq
      %v3671 = vshrl.u32 %v3670, 7
      %v3672 = vsub.s32 %v3669, %v3671
      %v3673 = vrot.slane %v3666, %v3672
      %3674 = vrot.lane.b32.xlu0 %v3610, 24
      %v3675 = vpop.permute.xlu0 %3674
      %3676 = vrot.lane.b32.xlu0 %v3611, 24
      %v3677 = vpop.permute.xlu0 %3676
      %3678 = vrot.lane.b32.xlu0 %v3612, 24
      %v3679 = vpop.permute.xlu0 %3678
      %3680 = vrot.lane.b32.xlu0 %v3613, 24
      %v3681 = vpop.permute.xlu0 %3680
      %3682 = vrot.lane.b32.xlu0 %v3614, 24
      %v3683 = vpop.permute.xlu0 %3682
      %3684 = vrot.lane.b32.xlu0 %v3615, 24
      %v3685 = vpop.permute.xlu0 %3684
      %3686 = vrot.lane.b32.xlu0 %v3616, 24
      %v3687 = vpop.permute.xlu0 %3686
      %3688 = vrot.lane.b32.xlu0 %v3617, 24
      %v3689 = vpop.permute.xlu0 %3688
      %3690 = vrot.lane.b32.xlu0 %v3618, 24
      %v3691 = vpop.permute.xlu0 %3690
      %3692 = vrot.lane.b32.xlu0 %v3619, 24
      %v3693 = vpop.permute.xlu0 %3692
      %3694 = vrot.lane.b32.xlu0 %v3620, 24
      %v3695 = vpop.permute.xlu0 %3694
      %3696 = vrot.lane.b32.xlu0 %v3621, 24
      %v3697 = vpop.permute.xlu0 %3696
      %3698 = vrot.lane.b32.xlu0 %v3622, 24
      %v3699 = vpop.permute.xlu0 %3698
      %3700 = vrot.lane.b32.xlu0 %v3623, 24
      %v3701 = vpop.permute.xlu0 %3700
      %3702 = vrot.lane.b32.xlu0 %v3624, 24
      %v3703 = vpop.permute.xlu0 %3702
      %3704 = vrot.lane.b32.xlu0 %v3625, 24
      %v3705 = vpop.permute.xlu0 %3704
      %3706 = vrot.lane.b32.xlu0 %v3626, 24
      %v3707 = vpop.permute.xlu0 %3706
      %3708 = vrot.lane.b32.xlu0 %v3627, 24
      %v3709 = vpop.permute.xlu0 %3708
      %3710 = vrot.lane.b32.xlu0 %v3628, 24
      %v3711 = vpop.permute.xlu0 %3710
      %3712 = vrot.lane.b32.xlu0 %v3629, 24
      %v3713 = vpop.permute.xlu0 %3712
      %3714 = vrot.lane.b32.xlu0 %v3630, 24
      %v3715 = vpop.permute.xlu0 %3714
      %3716 = vrot.lane.b32.xlu0 %v3639, 24
      %v3717 = vpop.permute.xlu0 %3716
      %3718 = vrot.lane.b32.xlu0 %v3648, 24
      %v3719 = vpop.permute.xlu0 %3718
      %3720 = vrot.lane.b32.xlu0 %v3665, 24
      %v3721 = vpop.permute.xlu0 %3720
      %3722 = vrot.lane.b32.xlu0 %v3673, 24
      %v3723 = vpop.permute.xlu0 %3722
      %v3749 = vcombine.low %v1751, %v1761
      %v3750 = vcombine.low %v1768, %v1778
      %v3751 = vcombine.low %v1785, %v1795
      %v3752 = vcombine.low %v1802, %v1812
      %v3753 = vcombine.low %v1819, %v1829
      %v3754 = vcombine.low %v1836, %v1846
      %v3755 = vcombine.low %v1853, %v1863
      %v3756 = vcombine.low %v1870, %v1880
      %v3757 = vcombine.low %v1887, %v1897
      %v3758 = vcombine.low %v1904, %v1914
      %v3759 = vcombine.low %v1921, %v1931
      %v3760 = vcombine.low %v1938, %v1948
      %v3761 = vcombine.low %v1955, %v1965
      %v3762 = vcombine.low %v1972, %v1982
      %v3763 = vcombine.low %v1989, %v1999
      %v3764 = vcombine.low %v2006, %v2016
      %v3765 = vcombine.low %v2023, %v2033
      %v3766 = vcombine.low %v2040, %v2050
      %v3767 = vcombine.low %v2057, %v2067
      %v3768 = vcombine.low %v2074, %v2084
      %v3769 = vcombine.low %v2091, %v2100
      %v3770 = vcombine.low %v1167, %v1170
      %v3771 = vcombine.low %v1173, %v1176
      %v3773 = vunpack.c.l.s4 1983009808
      %v3774 = vunpack.c.0.s8 %v3773
      %v3775 = vlaneseq
      %v3776 = vshrl.u32 %v3775, 7
      %v3777 = vsub.s32 %v3774, %v3776
      %v3778 = vrot.slane %v3770, %v3777
      %v3780 = vunpack.c.l.s4 1983009808
      %v3781 = vunpack.c.0.s8 %v3780
      %v3782 = vlaneseq
      %v3783 = vshrl.u32 %v3782, 7
      %v3784 = vsub.s32 %v3781, %v3783
      %v3785 = vrot.slane %v3771, %v3784
      %v3786 = vcombine.low %v3778, %v3785
      %v3787 = vcombine.low %v1179, %v1182
      %v3788 = vcombine.low %v1185, %v1225
      %v3790 = vunpack.c.l.s4 1983009808
      %v3791 = vunpack.c.0.s8 %v3790
      %v3792 = vlaneseq
      %v3793 = vshrl.u32 %v3792, 7
      %v3794 = vsub.s32 %v3791, %v3793
      %v3795 = vrot.slane %v3787, %v3794
      %v3797 = vunpack.c.l.s4 1983009808
      %v3798 = vunpack.c.0.s8 %v3797
      %v3799 = vlaneseq
      %v3800 = vshrl.u32 %v3799, 7
      %v3801 = vsub.s32 %v3798, %v3800
      %v3802 = vrot.slane %v3788, %v3801
      %v3803 = vcombine.low %v3795, %v3802
      %v3804 = vcombine.low %v1228, %v1231
      %v3805 = vcombine.low %v1234, %v1237
      %v3807 = vunpack.c.l.s4 1983009808
      %v3808 = vunpack.c.0.s8 %v3807
      %v3809 = vlaneseq
      %v3810 = vshrl.u32 %v3809, 7
      %v3811 = vsub.s32 %v3808, %v3810
      %v3812 = vrot.slane %v3804, %v3811
      %v3814 = vunpack.c.l.s4 1983009808
      %v3815 = vunpack.c.0.s8 %v3814
      %v3816 = vlaneseq
      %v3817 = vshrl.u32 %v3816, 7
      %v3818 = vsub.s32 %v3815, %v3817
      %v3819 = vrot.slane %v3805, %v3818
      %v3820 = vcombine.low %v3812, %v3819
      %v3821 = vcombine.low %v1240, %v1243
      %v3823 = vunpack.c.l.s4 1983009808
      %v3824 = vunpack.c.0.s8 %v3823
      %v3825 = vlaneseq
      %v3826 = vshrl.u32 %v3825, 7
      %v3827 = vsub.s32 %v3824, %v3826
      %v3828 = vrot.slane %v3821, %v3827
      %3829 = vrot.lane.b32.xlu0 %v3749, 28
      %v3830 = vpop.permute.xlu0 %3829
      %3831 = vrot.lane.b32.xlu0 %v3750, 28
      %v3832 = vpop.permute.xlu0 %3831
      %3833 = vrot.lane.b32.xlu0 %v3751, 28
      %v3834 = vpop.permute.xlu0 %3833
      %3835 = vrot.lane.b32.xlu0 %v3752, 28
      %v3836 = vpop.permute.xlu0 %3835
      %3837 = vrot.lane.b32.xlu0 %v3753, 28
      %v3838 = vpop.permute.xlu0 %3837
      %3839 = vrot.lane.b32.xlu0 %v3754, 28
      %v3840 = vpop.permute.xlu0 %3839
      %3841 = vrot.lane.b32.xlu0 %v3755, 28
      %v3842 = vpop.permute.xlu0 %3841
      %3843 = vrot.lane.b32.xlu0 %v3756, 28
      %v3844 = vpop.permute.xlu0 %3843
      %3845 = vrot.lane.b32.xlu0 %v3757, 28
      %v3846 = vpop.permute.xlu0 %3845
      %3847 = vrot.lane.b32.xlu0 %v3758, 28
      %v3848 = vpop.permute.xlu0 %3847
      %3849 = vrot.lane.b32.xlu0 %v3759, 28
      %v3850 = vpop.permute.xlu0 %3849
      %3851 = vrot.lane.b32.xlu0 %v3760, 28
      %v3852 = vpop.permute.xlu0 %3851
      %3853 = vrot.lane.b32.xlu0 %v3761, 28
      %v3854 = vpop.permute.xlu0 %3853
      %3855 = vrot.lane.b32.xlu0 %v3762, 28
      %v3856 = vpop.permute.xlu0 %3855
      %3857 = vrot.lane.b32.xlu0 %v3763, 28
      %v3858 = vpop.permute.xlu0 %3857
      %3859 = vrot.lane.b32.xlu0 %v3764, 28
      %v3860 = vpop.permute.xlu0 %3859
      %3861 = vrot.lane.b32.xlu0 %v3765, 28
      %v3862 = vpop.permute.xlu0 %3861
      %3863 = vrot.lane.b32.xlu0 %v3766, 28
      %v3864 = vpop.permute.xlu0 %3863
      %3865 = vrot.lane.b32.xlu0 %v3767, 28
      %v3866 = vpop.permute.xlu0 %3865
      %3867 = vrot.lane.b32.xlu0 %v3768, 28
      %v3868 = vpop.permute.xlu0 %3867
      %3869 = vrot.lane.b32.xlu0 %v3769, 28
      %v3870 = vpop.permute.xlu0 %3869
      %3871 = vrot.lane.b32.xlu0 %v3786, 28
      %v3872 = vpop.permute.xlu0 %3871
      %3873 = vrot.lane.b32.xlu0 %v3803, 28
      %v3874 = vpop.permute.xlu0 %3873
      %3875 = vrot.lane.b32.xlu0 %v3820, 28
      %v3876 = vpop.permute.xlu0 %3875
      %3877 = vrot.lane.b32.xlu0 %v3828, 28
      %v3878 = vpop.permute.xlu0 %3877
      %v3904 = vcombine.low %v2259, %v2269
      %v3905 = vcombine.low %v2293, %v2303
      %v3906 = vcombine.low %v2327, %v2337
      %v3907 = vcombine.low %v2344, %v2354
      %v3908 = vcombine.low %v2378, %v2388
      %v3909 = vcombine.low %v2412, %v2422
      %v3910 = vcombine.low %v2446, %v2456
      %v3911 = vcombine.low %v2463, %v2473
      %v3912 = vcombine.low %v2497, %v2507
      %v3913 = vcombine.low %v2531, %v2541
      %v3914 = vcombine.low %v2565, %v2575
      %v3915 = vcombine.low %v2582, %v2591
      %v3916 = vcombine.low %v1163, %v1203
      %v3918 = vunpack.c.l.s4 1983009808
      %v3919 = vunpack.c.0.s8 %v3918
      %v3920 = vlaneseq
      %v3921 = vshrl.u32 %v3920, 7
      %v3922 = vsub.s32 %v3919, %v3921
      %v3923 = vrot.slane %v3916, %v3922
      %v3924 = vcombine.low %v2826, %v3923
      %v3925 = vcombine.low %v1202, %v1204
      %v3926 = vcombine.low %v1212, %v1220
      %v3928 = vunpack.c.l.s4 1983009808
      %v3929 = vunpack.c.0.s8 %v3928
      %v3930 = vlaneseq
      %v3931 = vshrl.u32 %v3930, 7
      %v3932 = vsub.s32 %v3929, %v3931
      %v3933 = vrot.slane %v3925, %v3932
      %v3935 = vunpack.c.l.s4 1983009808
      %v3936 = vunpack.c.0.s8 %v3935
      %v3937 = vlaneseq
      %v3938 = vshrl.u32 %v3937, 7
      %v3939 = vsub.s32 %v3936, %v3938
      %v3940 = vrot.slane %v3926, %v3939
      %v3941 = vcombine.low %v3933, %v3940
      %v3942 = vcombine.low %v1219, %v1221
      %v3944 = vunpack.c.l.s4 1983009808
      %v3945 = vunpack.c.0.s8 %v3944
      %v3946 = vlaneseq
      %v3947 = vshrl.u32 %v3946, 7
      %v3948 = vsub.s32 %v3945, %v3947
      %v3949 = vrot.slane %v3942, %v3948
      %3950 = vrot.lane.b32.xlu0 %v2685, 32
      %v3951 = vpop.permute.xlu0 %3950
      %3952 = vrot.lane.b32.xlu0 %v3904, 32
      %v3953 = vpop.permute.xlu0 %3952
      %3954 = vrot.lane.b32.xlu0 %v2695, 32
      %v3955 = vpop.permute.xlu0 %3954
      %3956 = vrot.lane.b32.xlu0 %v3905, 32
      %v3957 = vpop.permute.xlu0 %3956
      %3958 = vrot.lane.b32.xlu0 %v2705, 32
      %v3959 = vpop.permute.xlu0 %3958
      %3960 = vrot.lane.b32.xlu0 %v3906, 32
      %v3961 = vpop.permute.xlu0 %3960
      %3962 = vrot.lane.b32.xlu0 %v3907, 32
      %v3963 = vpop.permute.xlu0 %3962
      %3964 = vrot.lane.b32.xlu0 %v2724, 32
      %v3965 = vpop.permute.xlu0 %3964
      %3966 = vrot.lane.b32.xlu0 %v3908, 32
      %v3967 = vpop.permute.xlu0 %3966
      %3968 = vrot.lane.b32.xlu0 %v2734, 32
      %v3969 = vpop.permute.xlu0 %3968
      %3970 = vrot.lane.b32.xlu0 %v3909, 32
      %v3971 = vpop.permute.xlu0 %3970
      %3972 = vrot.lane.b32.xlu0 %v2744, 32
      %v3973 = vpop.permute.xlu0 %3972
      %3974 = vrot.lane.b32.xlu0 %v3910, 32
      %v3975 = vpop.permute.xlu0 %3974
      %3976 = vrot.lane.b32.xlu0 %v3911, 32
      %v3977 = vpop.permute.xlu0 %3976
      %3978 = vrot.lane.b32.xlu0 %v2763, 32
      %v3979 = vpop.permute.xlu0 %3978
      %3980 = vrot.lane.b32.xlu0 %v3912, 32
      %v3981 = vpop.permute.xlu0 %3980
      %3982 = vrot.lane.b32.xlu0 %v2773, 32
      %v3983 = vpop.permute.xlu0 %3982
      %3984 = vrot.lane.b32.xlu0 %v3913, 32
      %v3985 = vpop.permute.xlu0 %3984
      %3986 = vrot.lane.b32.xlu0 %v2783, 32
      %v3987 = vpop.permute.xlu0 %3986
      %3988 = vrot.lane.b32.xlu0 %v3914, 32
      %v3989 = vpop.permute.xlu0 %3988
      %3990 = vrot.lane.b32.xlu0 %v3915, 32
      %v3991 = vpop.permute.xlu0 %3990
      %3992 = vrot.lane.b32.xlu0 %v2818, 32
      %v3993 = vpop.permute.xlu0 %3992
      %3994 = vrot.lane.b32.xlu0 %v3924, 32
      %v3995 = vpop.permute.xlu0 %3994
      %3996 = vrot.lane.b32.xlu0 %v3941, 32
      %v3997 = vpop.permute.xlu0 %3996
      %3998 = vrot.lane.b32.xlu0 %v3949, 32
      %v3999 = vpop.permute.xlu0 %3998
      %vm4025 = vcmask 31744
      %v4026 = vsel %vm4025, %v1260, %v2102
      %v4027 = vsel %vm4025, %v1277, %v2104
      %v4028 = vsel %vm4025, %v1294, %v2106
      %v4029 = vsel %vm4025, %v1311, %v2108
      %v4030 = vsel %vm4025, %v1328, %v2110
      %v4031 = vsel %vm4025, %v1345, %v2112
      %v4032 = vsel %vm4025, %v1362, %v2114
      %v4033 = vsel %vm4025, %v1379, %v2116
      %v4034 = vsel %vm4025, %v1396, %v2118
      %v4035 = vsel %vm4025, %v1413, %v2120
      %v4036 = vsel %vm4025, %v1430, %v2122
      %v4037 = vsel %vm4025, %v1447, %v2124
      %v4038 = vsel %vm4025, %v1464, %v2126
      %v4039 = vsel %vm4025, %v1481, %v2128
      %v4040 = vsel %vm4025, %v1498, %v2130
      %v4041 = vsel %vm4025, %v1515, %v2132
      %v4042 = vsel %vm4025, %v1532, %v2134
      %v4043 = vsel %vm4025, %v1549, %v2136
      %v4044 = vsel %vm4025, %v1566, %v2138
      %v4045 = vsel %vm4025, %v1583, %v2140
      %v4046 = vsel %vm4025, %v1600, %v2142
      %v4047 = vsel %vm4025, %v1617, %v2144
      %v4048 = vsel %vm4025, %v1634, %v2146
      %v4049 = vsel %vm4025, %v1651, %v2148
      %v4050 = vsel %vm4025, %v1659, %v2150
      %vm4051 = vcmask 64512
      %v4052 = vsel %vm4051, %v4026, %v2593
      %v4053 = vsel %vm4051, %v4027, %v2595
      %v4054 = vsel %vm4051, %v4028, %v2597
      %v4055 = vsel %vm4051, %v4029, %v2599
      %v4056 = vsel %vm4051, %v4030, %v2601
      %v4057 = vsel %vm4051, %v4031, %v2603
      %v4058 = vsel %vm4051, %v4032, %v2605
      %v4059 = vsel %vm4051, %v4033, %v2607
      %v4060 = vsel %vm4051, %v4034, %v2609
      %v4061 = vsel %vm4051, %v4035, %v2611
      %v4062 = vsel %vm4051, %v4036, %v2613
      %v4063 = vsel %vm4051, %v4037, %v2615
      %v4064 = vsel %vm4051, %v4038, %v2617
      %v4065 = vsel %vm4051, %v4039, %v2619
      %v4066 = vsel %vm4051, %v4040, %v2621
      %v4067 = vsel %vm4051, %v4041, %v2623
      %v4068 = vsel %vm4051, %v4042, %v2625
      %v4069 = vsel %vm4051, %v4043, %v2627
      %v4070 = vsel %vm4051, %v4044, %v2629
      %v4071 = vsel %vm4051, %v4045, %v2631
      %v4072 = vsel %vm4051, %v4046, %v2633
      %v4073 = vsel %vm4051, %v4047, %v2635
      %v4074 = vsel %vm4051, %v4048, %v2637
      %v4075 = vsel %vm4051, %v4049, %v2639
      %v4076 = vsel %vm4051, %v4050, %v2641
      %vm4077 = vcmask 97280
      %v4078 = vsel %vm4077, %v4052, %v2828
      %v4079 = vsel %vm4077, %v4053, %v2830
      %v4080 = vsel %vm4077, %v4054, %v2832
      %v4081 = vsel %vm4077, %v4055, %v2834
      %v4082 = vsel %vm4077, %v4056, %v2836
      %v4083 = vsel %vm4077, %v4057, %v2838
      %v4084 = vsel %vm4077, %v4058, %v2840
      %v4085 = vsel %vm4077, %v4059, %v2842
      %v4086 = vsel %vm4077, %v4060, %v2844
      %v4087 = vsel %vm4077, %v4061, %v2846
      %v4088 = vsel %vm4077, %v4062, %v2848
      %v4089 = vsel %vm4077, %v4063, %v2850
      %v4090 = vsel %vm4077, %v4064, %v2852
      %v4091 = vsel %vm4077, %v4065, %v2854
      %v4092 = vsel %vm4077, %v4066, %v2856
      %v4093 = vsel %vm4077, %v4067, %v2858
      %v4094 = vsel %vm4077, %v4068, %v2860
      %v4095 = vsel %vm4077, %v4069, %v2862
      %v4096 = vsel %vm4077, %v4070, %v2864
      %v4097 = vsel %vm4077, %v4071, %v2866
      %v4098 = vsel %vm4077, %v4072, %v2868
      %v4099 = vsel %vm4077, %v4073, %v2870
      %v4100 = vsel %vm4077, %v4074, %v2872
      %v4101 = vsel %vm4077, %v4075, %v2874
      %v4102 = vsel %vm4077, %v4076, %v2876
      %vm4103 = vcmask 130048
      %v4104 = vsel %vm4103, %v4078, %v3319
      %v4105 = vsel %vm4103, %v4079, %v3321
      %v4106 = vsel %vm4103, %v4080, %v3323
      %v4107 = vsel %vm4103, %v4081, %v3325
      %v4108 = vsel %vm4103, %v4082, %v3327
      %v4109 = vsel %vm4103, %v4083, %v3329
      %v4110 = vsel %vm4103, %v4084, %v3331
      %v4111 = vsel %vm4103, %v4085, %v3333
      %v4112 = vsel %vm4103, %v4086, %v3335
      %v4113 = vsel %vm4103, %v4087, %v3337
      %v4114 = vsel %vm4103, %v4088, %v3339
      %v4115 = vsel %vm4103, %v4089, %v3341
      %v4116 = vsel %vm4103, %v4090, %v3343
      %v4117 = vsel %vm4103, %v4091, %v3345
      %v4118 = vsel %vm4103, %v4092, %v3347
      %v4119 = vsel %vm4103, %v4093, %v3349
      %v4120 = vsel %vm4103, %v4094, %v3351
      %v4121 = vsel %vm4103, %v4095, %v3353
      %v4122 = vsel %vm4103, %v4096, %v3355
      %v4123 = vsel %vm4103, %v4097, %v3357
      %v4124 = vsel %vm4103, %v4098, %v3359
      %v4125 = vsel %vm4103, %v4099, %v3361
      %v4126 = vsel %vm4103, %v4100, %v3363
      %v4127 = vsel %vm4103, %v4101, %v3365
      %v4128 = vsel %vm4103, %v4102, %v3367
      %vm4129 = vcmask 162816
      %v4130 = vsel %vm4129, %v4104, %v3536
      %v4131 = vsel %vm4129, %v4105, %v3538
      %v4132 = vsel %vm4129, %v4106, %v3540
      %v4133 = vsel %vm4129, %v4107, %v3542
      %v4134 = vsel %vm4129, %v4108, %v3544
      %v4135 = vsel %vm4129, %v4109, %v3546
      %v4136 = vsel %vm4129, %v4110, %v3548
      %v4137 = vsel %vm4129, %v4111, %v3550
      %v4138 = vsel %vm4129, %v4112, %v3552
      %v4139 = vsel %vm4129, %v4113, %v3554
      %v4140 = vsel %vm4129, %v4114, %v3556
      %v4141 = vsel %vm4129, %v4115, %v3558
      %v4142 = vsel %vm4129, %v4116, %v3560
      %v4143 = vsel %vm4129, %v4117, %v3562
      %v4144 = vsel %vm4129, %v4118, %v3564
      %v4145 = vsel %vm4129, %v4119, %v3566
      %v4146 = vsel %vm4129, %v4120, %v3568
      %v4147 = vsel %vm4129, %v4121, %v3570
      %v4148 = vsel %vm4129, %v4122, %v3572
      %v4149 = vsel %vm4129, %v4123, %v3574
      %v4150 = vsel %vm4129, %v4124, %v3576
      %v4151 = vsel %vm4129, %v4125, %v3578
      %v4152 = vsel %vm4129, %v4126, %v3580
      %v4153 = vsel %vm4129, %v4127, %v3582
      %v4154 = vsel %vm4129, %v4128, %v3584
      %vm4155 = vcmask 195584
      %v4156 = vsel %vm4155, %v4130, %v3675
      %v4157 = vsel %vm4155, %v4131, %v3677
      %v4158 = vsel %vm4155, %v4132, %v3679
      %v4159 = vsel %vm4155, %v4133, %v3681
      %v4160 = vsel %vm4155, %v4134, %v3683
      %v4161 = vsel %vm4155, %v4135, %v3685
      %v4162 = vsel %vm4155, %v4136, %v3687
      %v4163 = vsel %vm4155, %v4137, %v3689
      %v4164 = vsel %vm4155, %v4138, %v3691
      %v4165 = vsel %vm4155, %v4139, %v3693
      %v4166 = vsel %vm4155, %v4140, %v3695
      %v4167 = vsel %vm4155, %v4141, %v3697
      %v4168 = vsel %vm4155, %v4142, %v3699
      %v4169 = vsel %vm4155, %v4143, %v3701
      %v4170 = vsel %vm4155, %v4144, %v3703
      %v4171 = vsel %vm4155, %v4145, %v3705
      %v4172 = vsel %vm4155, %v4146, %v3707
      %v4173 = vsel %vm4155, %v4147, %v3709
      %v4174 = vsel %vm4155, %v4148, %v3711
      %v4175 = vsel %vm4155, %v4149, %v3713
      %v4176 = vsel %vm4155, %v4150, %v3715
      %v4177 = vsel %vm4155, %v4151, %v3717
      %v4178 = vsel %vm4155, %v4152, %v3719
      %v4179 = vsel %vm4155, %v4153, %v3721
      %v4180 = vsel %vm4155, %v4154, %v3723
      %vm4181 = vcmask 228352
      %v4182 = vsel %vm4181, %v4156, %v3830
      %v4183 = vsel %vm4181, %v4157, %v3832
      %v4184 = vsel %vm4181, %v4158, %v3834
      %v4185 = vsel %vm4181, %v4159, %v3836
      %v4186 = vsel %vm4181, %v4160, %v3838
      %v4187 = vsel %vm4181, %v4161, %v3840
      %v4188 = vsel %vm4181, %v4162, %v3842
      %v4189 = vsel %vm4181, %v4163, %v3844
      %v4190 = vsel %vm4181, %v4164, %v3846
      %v4191 = vsel %vm4181, %v4165, %v3848
      %v4192 = vsel %vm4181, %v4166, %v3850
      %v4193 = vsel %vm4181, %v4167, %v3852
      %v4194 = vsel %vm4181, %v4168, %v3854
      %v4195 = vsel %vm4181, %v4169, %v3856
      %v4196 = vsel %vm4181, %v4170, %v3858
      %v4197 = vsel %vm4181, %v4171, %v3860
      %v4198 = vsel %vm4181, %v4172, %v3862
      %v4199 = vsel %vm4181, %v4173, %v3864
      %v4200 = vsel %vm4181, %v4174, %v3866
      %v4201 = vsel %vm4181, %v4175, %v3868
      %v4202 = vsel %vm4181, %v4176, %v3870
      %v4203 = vsel %vm4181, %v4177, %v3872
      %v4204 = vsel %vm4181, %v4178, %v3874
      %v4205 = vsel %vm4181, %v4179, %v3876
      %v4206 = vsel %vm4181, %v4180, %v3878
      %vm4207 = vcmask 261120
      %v4208 = vsel %vm4207, %v4182, %v3951
      %v4209 = vsel %vm4207, %v4183, %v3953
      %v4210 = vsel %vm4207, %v4184, %v3955
      %v4211 = vsel %vm4207, %v4185, %v3957
      %v4212 = vsel %vm4207, %v4186, %v3959
      %v4213 = vsel %vm4207, %v4187, %v3961
      %v4214 = vsel %vm4207, %v4188, %v3963
      %v4215 = vsel %vm4207, %v4189, %v3965
      %v4216 = vsel %vm4207, %v4190, %v3967
      %v4217 = vsel %vm4207, %v4191, %v3969
      %v4218 = vsel %vm4207, %v4192, %v3971
      %v4219 = vsel %vm4207, %v4193, %v3973
      %v4220 = vsel %vm4207, %v4194, %v3975
      %v4221 = vsel %vm4207, %v4195, %v3977
      %v4222 = vsel %vm4207, %v4196, %v3979
      %v4223 = vsel %vm4207, %v4197, %v3981
      %v4224 = vsel %vm4207, %v4198, %v3983
      %v4225 = vsel %vm4207, %v4199, %v3985
      %v4226 = vsel %vm4207, %v4200, %v3987
      %v4227 = vsel %vm4207, %v4201, %v3989
      %v4228 = vsel %vm4207, %v4202, %v3991
      %v4229 = vsel %vm4207, %v4203, %v3993
      %v4230 = vsel %vm4207, %v4204, %v3995
      %v4231 = vsel %vm4207, %v4205, %v3997
      %v4232 = vsel %vm4207, %v4206, %v3999
      %v4233 = vld [vmem:[%s1] sm:$0xff]
      %v4234 = vld [vmem:[%s1 + $0x8] sm:$0xff]
      %v4235 = vld [vmem:[%s1 + $0x10] sm:$0xff]
      %v4236 = vld [vmem:[%s1 + $0x18] sm:$0xff]
      %v4237 = vld [vmem:[%s1 + $0x20] sm:$0xf]
      %v4238 = vld [vmem:[%s2] sm:$0x1]
      %v4240 = vlaneseq
      %v4241 = vshrl.u32 %v4240, 7
      %v4242 = vsub.s32 0, %v4241
      %v4243 = vrot.slane %v4238, %v4242
      %vm4245 = vcmask 293888
      %v4247 = vsel %vm4245, %v4208, 0
      %v4250 = vsel %vm4245, %v4209, 0
      %v4253 = vsel %vm4245, %v4210, 0
      %v4256 = vsel %vm4245, %v4211, 0
      %v4259 = vsel %vm4245, %v4212, 0
      %v4262 = vsel %vm4245, %v4213, 0
      %v4265 = vsel %vm4245, %v4214, 0
      %v4268 = vsel %vm4245, %v4215, 0
      %v4271 = vsel %vm4245, %v4216, 0
      %v4274 = vsel %vm4245, %v4217, 0
      %v4277 = vsel %vm4245, %v4218, 0
      %v4280 = vsel %vm4245, %v4219, 0
      %v4283 = vsel %vm4245, %v4220, 0
      %v4286 = vsel %vm4245, %v4221, 0
      %v4289 = vsel %vm4245, %v4222, 0
      %v4292 = vsel %vm4245, %v4223, 0
      %v4295 = vsel %vm4245, %v4224, 0
      %v4298 = vsel %vm4245, %v4225, 0
      %v4301 = vsel %vm4245, %v4226, 0
      %v4304 = vsel %vm4245, %v4227, 0
      %v4307 = vsel %vm4245, %v4228, 0
      %v4310 = vsel %vm4245, %v4229, 0
      %v4313 = vsel %vm4245, %v4230, 0
      %v4316 = vsel %vm4245, %v4231, 0
      %v4319 = vsel %vm4245, %v4232, 0
      %vm4321 = vcmask 1043456
      %v4323 = vsel %vm4321, %v4237, 0
      %4325 = vmatprep.subr.mxu0 0.0
      %4326 = vmatpush1.msra.mxu0 %v4233
      %4327 = vmatprep.subr.mxu0 0.0
      %4328 = vmatpush1.msra.mxu0 %v4234
      %4329 = vmatprep.subr.mxu0 0.0
      %4330 = vmatpush1.msra.mxu0 %v4235
      %4331 = vmatprep.subr.mxu0 0.0
      %4332 = vmatpush1.msra.mxu0 %v4236
      %4333 = vmatprep.subr.mxu0 0.0
      %4334 = vmatpush1.msra.mxu0 %v4323
      %4335 = vmatprep.subr.mxu0 0.0
      %4336 = vmatpush1.msra.mxu0 0.0
      %4337 = vmatprep.subr.mxu0 0.0
      %4338 = vmatpush1.msra.mxu0 0.0
      %4339 = vmatprep.subr.mxu0 0.0
      %4340 = vmatpush1.msra.mxu0 0.0
      %4341 = vmatprep.subr.mxu0 0.0
      %4342 = vmatpush1.msra.mxu0 0.0
      %4343 = vmatprep.subr.mxu0 0.0
      %4344 = vmatpush1.msra.mxu0 0.0
      %4345 = vmatprep.subr.mxu0 0.0
      %4346 = vmatpush1.msra.mxu0 0.0
      %4347 = vmatprep.subr.mxu0 0.0
      %4348 = vmatpush1.msra.mxu0 0.0
      %4349 = vmatprep.subr.mxu0 0.0
      %4350 = vmatpush1.msra.mxu0 0.0
      %4351 = vmatprep.subr.mxu0 0.0
      %4352 = vmatpush1.msra.mxu0 0.0
      %4353 = vmatprep.subr.mxu0 0.0
      %4354 = vmatpush1.msra.mxu0 0.0
      %4355 = vmatprep.subr.mxu0 0.0
      %4356 = vmatpush1.msra.mxu0 0.0
      %4357 = vmatprep.subr.mxu0 0.0
      %4358 = vmatpush1.msra.mxu0 0.0
      %4359 = vmatprep.subr.mxu0 0.0
      %4360 = vmatpush1.msra.mxu0 0.0
      %4361 = vmatprep.subr.mxu0 0.0
      %4362 = vmatpush1.msra.mxu0 0.0
      %4363 = vmatprep.subr.mxu0 0.0
      %4364 = vmatpush1.msra.mxu0 0.0
      %4365 = vmatprep.subr.mxu0 0.0
      %4366 = vmatpush1.msra.mxu0 0.0
      %4367 = vmatprep.subr.mxu0 0.0
      %4368 = vmatpush1.msra.mxu0 0.0
      %4369 = vmatprep.subr.mxu0 0.0
      %4370 = vmatpush1.msra.mxu0 0.0
      %4371 = vmatprep.subr.mxu0 0.0
      %4372 = vmatpush1.msra.mxu0 0.0
      %4373 = vmatprep.subr.mxu0 0.0
      %4374 = vmatpush1.msra.mxu0 0.0
      %4375 = vmatprep.subr.mxu0 0.0
      %4376 = vmatpush1.msra.mxu0 0.0
      %4377 = vmatprep.subr.mxu0 0.0
      %4378 = vmatpush1.msra.mxu0 0.0
      %4379 = vmatprep.subr.mxu0 0.0
      %4380 = vmatpush1.msra.mxu0 0.0
      %4381 = vmatprep.subr.mxu0 0.0
      %4382 = vmatpush1.msra.mxu0 0.0
      %4383 = vmatprep.subr.mxu0 0.0
      %4384 = vmatpush1.msra.mxu0 0.0
      %4385 = vmatprep.subr.mxu0 0.0
      %4386 = vmatpush1.msra.mxu0 0.0
      %4387 = vmatprep.subr.mxu0 0.0
      %4388 = vmatpush1.msra.mxu0 0.0
      %4389 = vmatprep.mubr.f32.mxu0 0.0
      %4390 = vmatmul.mubr.f32.gmra.mrb[0].mxu0 %v4247
      %v4391 = vpop.f32.mrb[0].mxu0
      %v4392 = vadd.f32 %v4243, %v4391
      %v4393 = vpop.f32.mrb[0].mxu0
      %4394 = vmatprep.mubr.f32.mxu0 0.0
      %4395 = vmatmul.mubr.f32.gmra.mrb[0].mxu0 %v4250
      %v4396 = vpop.f32.mrb[0].mxu0
      %v4397 = vadd.f32 %v4243, %v4396
      %v4398 = vpop.f32.mrb[0].mxu0
      %4399 = vmatprep.mubr.f32.mxu0 0.0
      %4400 = vmatmul.mubr.f32.gmra.mrb[0].mxu0 %v4253
      %v4401 = vpop.f32.mrb[0].mxu0
      %v4402 = vadd.f32 %v4243, %v4401
      %v4403 = vpop.f32.mrb[0].mxu0
      %4404 = vmatprep.mubr.f32.mxu0 0.0
      %4405 = vmatmul.mubr.f32.gmra.mrb[0].mxu0 %v4256
      %v4406 = vpop.f32.mrb[0].mxu0
      %v4407 = vadd.f32 %v4243, %v4406
      %v4408 = vpop.f32.mrb[0].mxu0
      %4409 = vmatprep.mubr.f32.mxu0 0.0
      %4410 = vmatmul.mubr.f32.gmra.mrb[0].mxu0 %v4259
      %v4411 = vpop.f32.mrb[0].mxu0
      %v4412 = vadd.f32 %v4243, %v4411
      %v4413 = vpop.f32.mrb[0].mxu0
      %4414 = vmatprep.mubr.f32.mxu0 0.0
      %4415 = vmatmul.mubr.f32.gmra.mrb[0].mxu0 %v4262
      %v4416 = vpop.f32.mrb[0].mxu0
      %v4417 = vadd.f32 %v4243, %v4416
      %v4418 = vpop.f32.mrb[0].mxu0
      %4419 = vmatprep.mubr.f32.mxu0 0.0
      %4420 = vmatmul.mubr.f32.gmra.mrb[0].mxu0 %v4265
      %v4421 = vpop.f32.mrb[0].mxu0
      %v4422 = vadd.f32 %v4243, %v4421
      %v4423 = vpop.f32.mrb[0].mxu0
      %4424 = vmatprep.mubr.f32.mxu0 0.0
      %4425 = vmatmul.mubr.f32.gmra.mrb[0].mxu0 %v4268
      %v4426 = vpop.f32.mrb[0].mxu0
      %v4427 = vadd.f32 %v4243, %v4426
      %v4428 = vpop.f32.mrb[0].mxu0
      %4429 = vmatprep.mubr.f32.mxu0 0.0
      %4430 = vmatmul.mubr.f32.gmra.mrb[0].mxu0 %v4271
      %v4431 = vpop.f32.mrb[0].mxu0
      %v4432 = vadd.f32 %v4243, %v4431
      %v4433 = vpop.f32.mrb[0].mxu0
      %4434 = vmatprep.mubr.f32.mxu0 0.0
      %4435 = vmatmul.mubr.f32.gmra.mrb[0].mxu0 %v4274
      %v4436 = vpop.f32.mrb[0].mxu0
      %v4437 = vadd.f32 %v4243, %v4436
      %v4438 = vpop.f32.mrb[0].mxu0
      %4439 = vmatprep.mubr.f32.mxu0 0.0
      %4440 = vmatmul.mubr.f32.gmra.mrb[0].mxu0 %v4277
      %v4441 = vpop.f32.mrb[0].mxu0
      %v4442 = vadd.f32 %v4243, %v4441
      %v4443 = vpop.f32.mrb[0].mxu0
      %4444 = vmatprep.mubr.f32.mxu0 0.0
      %4445 = vmatmul.mubr.f32.gmra.mrb[0].mxu0 %v4280
      %v4446 = vpop.f32.mrb[0].mxu0
      %v4447 = vadd.f32 %v4243, %v4446
      %v4448 = vpop.f32.mrb[0].mxu0
      %4449 = vmatprep.mubr.f32.mxu0 0.0
      %4450 = vmatmul.mubr.f32.gmra.mrb[0].mxu0 %v4283
      %v4451 = vpop.f32.mrb[0].mxu0
      %v4452 = vadd.f32 %v4243, %v4451
      %v4453 = vpop.f32.mrb[0].mxu0
      %4454 = vmatprep.mubr.f32.mxu0 0.0
      %4455 = vmatmul.mubr.f32.gmra.mrb[0].mxu0 %v4286
      %v4456 = vpop.f32.mrb[0].mxu0
      %v4457 = vadd.f32 %v4243, %v4456
      %v4458 = vpop.f32.mrb[0].mxu0
      %4459 = vmatprep.mubr.f32.mxu0 0.0
      %4460 = vmatmul.mubr.f32.gmra.mrb[0].mxu0 %v4289
      %v4461 = vpop.f32.mrb[0].mxu0
      %v4462 = vadd.f32 %v4243, %v4461
      %v4463 = vpop.f32.mrb[0].mxu0
      %4464 = vmatprep.mubr.f32.mxu0 0.0
      %4465 = vmatmul.mubr.f32.gmra.mrb[0].mxu0 %v4292
      %v4466 = vpop.f32.mrb[0].mxu0
      %v4467 = vadd.f32 %v4243, %v4466
      %v4468 = vpop.f32.mrb[0].mxu0
      %4469 = vmatprep.mubr.f32.mxu0 0.0
      %4470 = vmatmul.mubr.f32.gmra.mrb[0].mxu0 %v4295
      %v4471 = vpop.f32.mrb[0].mxu0
      %v4472 = vadd.f32 %v4243, %v4471
      %v4473 = vpop.f32.mrb[0].mxu0
      %4474 = vmatprep.mubr.f32.mxu0 0.0
      %4475 = vmatmul.mubr.f32.gmra.mrb[0].mxu0 %v4298
      %v4476 = vpop.f32.mrb[0].mxu0
      %v4477 = vadd.f32 %v4243, %v4476
      %v4478 = vpop.f32.mrb[0].mxu0
      %4479 = vmatprep.mubr.f32.mxu0 0.0
      %4480 = vmatmul.mubr.f32.gmra.mrb[0].mxu0 %v4301
      %v4481 = vpop.f32.mrb[0].mxu0
      %v4482 = vadd.f32 %v4243, %v4481
      %v4483 = vpop.f32.mrb[0].mxu0
      %4484 = vmatprep.mubr.f32.mxu0 0.0
      %4485 = vmatmul.mubr.f32.gmra.mrb[0].mxu0 %v4304
      %v4486 = vpop.f32.mrb[0].mxu0
      %v4487 = vadd.f32 %v4243, %v4486
      %v4488 = vpop.f32.mrb[0].mxu0
      %4489 = vmatprep.mubr.f32.mxu0 0.0
      %4490 = vmatmul.mubr.f32.gmra.mrb[0].mxu0 %v4307
      %v4491 = vpop.f32.mrb[0].mxu0
      %v4492 = vadd.f32 %v4243, %v4491
      %v4493 = vpop.f32.mrb[0].mxu0
      %4494 = vmatprep.mubr.f32.mxu0 0.0
      %4495 = vmatmul.mubr.f32.gmra.mrb[0].mxu0 %v4310
      %v4496 = vpop.f32.mrb[0].mxu0
      %v4497 = vadd.f32 %v4243, %v4496
      %v4498 = vpop.f32.mrb[0].mxu0
      %4499 = vmatprep.mubr.f32.mxu0 0.0
      %4500 = vmatmul.mubr.f32.gmra.mrb[0].mxu0 %v4313
      %v4501 = vpop.f32.mrb[0].mxu0
      %v4502 = vadd.f32 %v4243, %v4501
      %v4503 = vpop.f32.mrb[0].mxu0
      %4504 = vmatprep.mubr.f32.mxu0 0.0
      %4505 = vmatmul.mubr.f32.gmra.mrb[0].mxu0 %v4316
      %v4506 = vpop.f32.mrb[0].mxu0
      %v4507 = vadd.f32 %v4243, %v4506
      %v4508 = vpop.f32.mrb[0].mxu0
      %4509 = vmatprep.mubr.f32.mxu0 0.0
      %4510 = vmatmul.mubr.f32.gmra.mrb[0].mxu0 %v4319
      %v4511 = vpop.f32.mrb[0].mxu0
      %v4512 = vadd.f32 %v4243, %v4511
      %v4513 = vpop.f32.mrb[0].mxu0
      %4514 = vdwg.mxu0
      %v4515 = vmax.f32 %v4392, 0.0
      %v4516 = vmax.f32 %v4397, 0.0
      %v4517 = vmax.f32 %v4402, 0.0
      %v4518 = vmax.f32 %v4407, 0.0
      %v4519 = vmax.f32 %v4412, 0.0
      %v4520 = vmax.f32 %v4417, 0.0
      %v4521 = vmax.f32 %v4422, 0.0
      %v4522 = vmax.f32 %v4427, 0.0
      %v4523 = vmax.f32 %v4432, 0.0
      %v4524 = vmax.f32 %v4437, 0.0
      %v4525 = vmax.f32 %v4442, 0.0
      %v4526 = vmax.f32 %v4447, 0.0
      %v4527 = vmax.f32 %v4452, 0.0
      %v4528 = vmax.f32 %v4457, 0.0
      %v4529 = vmax.f32 %v4462, 0.0
      %v4530 = vmax.f32 %v4467, 0.0
      %v4531 = vmax.f32 %v4472, 0.0
      %v4532 = vmax.f32 %v4477, 0.0
      %v4533 = vmax.f32 %v4482, 0.0
      %v4534 = vmax.f32 %v4487, 0.0
      %v4535 = vmax.f32 %v4492, 0.0
      %v4536 = vmax.f32 %v4497, 0.0
      %v4537 = vmax.f32 %v4502, 0.0
      %v4538 = vmax.f32 %v4507, 0.0
      %v4539 = vmax.f32 %v4512, 0.0
      %v4565 = vcombine.high %v4515, %v4515
      %v4567 = vunpack.c.l.s4 1983009808
      %v4568 = vunpack.c.0.s8 %v4567
      %v4569 = vlaneseq
      %v4570 = vshrl.u32 %v4569, 7
      %v4571 = vsub.s32 %v4568, %v4570
      %v4572 = vrot.slane %v4515, %v4571
      %v4574 = vunpack.c.l.s4 1983009808
      %v4575 = vunpack.c.0.s8 %v4574
      %v4576 = vlaneseq
      %v4577 = vshrl.u32 %v4576, 7
      %v4578 = vsub.s32 %v4575, %v4577
      %v4579 = vrot.slane %v4565, %v4578
      %v4580 = vcombine.high %v4572, %v4572
      %v4581 = vcombine.high %v4579, %v4579
      %v4582 = vcombine.high %v4516, %v4516
      %v4584 = vunpack.c.l.s4 1983009808
      %v4585 = vunpack.c.0.s8 %v4584
      %v4586 = vlaneseq
      %v4587 = vshrl.u32 %v4586, 7
      %v4588 = vsub.s32 %v4585, %v4587
      %v4589 = vrot.slane %v4516, %v4588
      %v4591 = vunpack.c.l.s4 1983009808
      %v4592 = vunpack.c.0.s8 %v4591
      %v4593 = vlaneseq
      %v4594 = vshrl.u32 %v4593, 7
      %v4595 = vsub.s32 %v4592, %v4594
      %v4596 = vrot.slane %v4582, %v4595
      %v4597 = vcombine.high %v4589, %v4589
      %v4598 = vcombine.high %v4596, %v4596
      %v4599 = vcombine.high %v4517, %v4517
      %v4601 = vunpack.c.l.s4 1983009808
      %v4602 = vunpack.c.0.s8 %v4601
      %v4603 = vlaneseq
      %v4604 = vshrl.u32 %v4603, 7
      %v4605 = vsub.s32 %v4602, %v4604
      %v4606 = vrot.slane %v4517, %v4605
      %v4608 = vunpack.c.l.s4 1983009808
      %v4609 = vunpack.c.0.s8 %v4608
      %v4610 = vlaneseq
      %v4611 = vshrl.u32 %v4610, 7
      %v4612 = vsub.s32 %v4609, %v4611
      %v4613 = vrot.slane %v4599, %v4612
      %v4614 = vcombine.high %v4606, %v4606
      %v4615 = vcombine.high %v4613, %v4613
      %v4616 = vcombine.high %v4518, %v4518
      %v4618 = vunpack.c.l.s4 1983009808
      %v4619 = vunpack.c.0.s8 %v4618
      %v4620 = vlaneseq
      %v4621 = vshrl.u32 %v4620, 7
      %v4622 = vsub.s32 %v4619, %v4621
      %v4623 = vrot.slane %v4518, %v4622
      %v4625 = vunpack.c.l.s4 1983009808
      %v4626 = vunpack.c.0.s8 %v4625
      %v4627 = vlaneseq
      %v4628 = vshrl.u32 %v4627, 7
      %v4629 = vsub.s32 %v4626, %v4628
      %v4630 = vrot.slane %v4616, %v4629
      %v4631 = vcombine.high %v4623, %v4623
      %v4632 = vcombine.high %v4630, %v4630
      %v4633 = vcombine.high %v4519, %v4519
      %v4635 = vunpack.c.l.s4 1983009808
      %v4636 = vunpack.c.0.s8 %v4635
      %v4637 = vlaneseq
      %v4638 = vshrl.u32 %v4637, 7
      %v4639 = vsub.s32 %v4636, %v4638
      %v4640 = vrot.slane %v4519, %v4639
      %v4642 = vunpack.c.l.s4 1983009808
      %v4643 = vunpack.c.0.s8 %v4642
      %v4644 = vlaneseq
      %v4645 = vshrl.u32 %v4644, 7
      %v4646 = vsub.s32 %v4643, %v4645
      %v4647 = vrot.slane %v4633, %v4646
      %v4648 = vcombine.high %v4640, %v4640
      %v4649 = vcombine.high %v4647, %v4647
      %v4650 = vcombine.high %v4520, %v4520
      %v4652 = vunpack.c.l.s4 1983009808
      %v4653 = vunpack.c.0.s8 %v4652
      %v4654 = vlaneseq
      %v4655 = vshrl.u32 %v4654, 7
      %v4656 = vsub.s32 %v4653, %v4655
      %v4657 = vrot.slane %v4520, %v4656
      %v4659 = vunpack.c.l.s4 1983009808
      %v4660 = vunpack.c.0.s8 %v4659
      %v4661 = vlaneseq
      %v4662 = vshrl.u32 %v4661, 7
      %v4663 = vsub.s32 %v4660, %v4662
      %v4664 = vrot.slane %v4650, %v4663
      %v4665 = vcombine.high %v4657, %v4657
      %v4666 = vcombine.high %v4664, %v4664
      %v4667 = vcombine.high %v4521, %v4521
      %v4669 = vunpack.c.l.s4 1983009808
      %v4670 = vunpack.c.0.s8 %v4669
      %v4671 = vlaneseq
      %v4672 = vshrl.u32 %v4671, 7
      %v4673 = vsub.s32 %v4670, %v4672
      %v4674 = vrot.slane %v4521, %v4673
      %v4676 = vunpack.c.l.s4 1983009808
      %v4677 = vunpack.c.0.s8 %v4676
      %v4678 = vlaneseq
      %v4679 = vshrl.u32 %v4678, 7
      %v4680 = vsub.s32 %v4677, %v4679
      %v4681 = vrot.slane %v4667, %v4680
      %v4682 = vcombine.high %v4674, %v4674
      %v4683 = vcombine.high %v4681, %v4681
      %v4684 = vcombine.high %v4522, %v4522
      %v4686 = vunpack.c.l.s4 1983009808
      %v4687 = vunpack.c.0.s8 %v4686
      %v4688 = vlaneseq
      %v4689 = vshrl.u32 %v4688, 7
      %v4690 = vsub.s32 %v4687, %v4689
      %v4691 = vrot.slane %v4522, %v4690
      %v4693 = vunpack.c.l.s4 1983009808
      %v4694 = vunpack.c.0.s8 %v4693
      %v4695 = vlaneseq
      %v4696 = vshrl.u32 %v4695, 7
      %v4697 = vsub.s32 %v4694, %v4696
      %v4698 = vrot.slane %v4684, %v4697
      %v4699 = vcombine.high %v4691, %v4691
      %v4700 = vcombine.high %v4698, %v4698
      %v4701 = vcombine.high %v4523, %v4523
      %v4703 = vunpack.c.l.s4 1983009808
      %v4704 = vunpack.c.0.s8 %v4703
      %v4705 = vlaneseq
      %v4706 = vshrl.u32 %v4705, 7
      %v4707 = vsub.s32 %v4704, %v4706
      %v4708 = vrot.slane %v4523, %v4707
      %v4710 = vunpack.c.l.s4 1983009808
      %v4711 = vunpack.c.0.s8 %v4710
      %v4712 = vlaneseq
      %v4713 = vshrl.u32 %v4712, 7
      %v4714 = vsub.s32 %v4711, %v4713
      %v4715 = vrot.slane %v4701, %v4714
      %v4716 = vcombine.high %v4708, %v4708
      %v4717 = vcombine.high %v4715, %v4715
      %v4718 = vcombine.high %v4524, %v4524
      %v4720 = vunpack.c.l.s4 1983009808
      %v4721 = vunpack.c.0.s8 %v4720
      %v4722 = vlaneseq
      %v4723 = vshrl.u32 %v4722, 7
      %v4724 = vsub.s32 %v4721, %v4723
      %v4725 = vrot.slane %v4524, %v4724
      %v4727 = vunpack.c.l.s4 1983009808
      %v4728 = vunpack.c.0.s8 %v4727
      %v4729 = vlaneseq
      %v4730 = vshrl.u32 %v4729, 7
      %v4731 = vsub.s32 %v4728, %v4730
      %v4732 = vrot.slane %v4718, %v4731
      %v4733 = vcombine.high %v4725, %v4725
      %v4734 = vcombine.high %v4732, %v4732
      %v4735 = vcombine.high %v4525, %v4525
      %v4737 = vunpack.c.l.s4 1983009808
      %v4738 = vunpack.c.0.s8 %v4737
      %v4739 = vlaneseq
      %v4740 = vshrl.u32 %v4739, 7
      %v4741 = vsub.s32 %v4738, %v4740
      %v4742 = vrot.slane %v4525, %v4741
      %v4744 = vunpack.c.l.s4 1983009808
      %v4745 = vunpack.c.0.s8 %v4744
      %v4746 = vlaneseq
      %v4747 = vshrl.u32 %v4746, 7
      %v4748 = vsub.s32 %v4745, %v4747
      %v4749 = vrot.slane %v4735, %v4748
      %v4750 = vcombine.high %v4742, %v4742
      %v4751 = vcombine.high %v4749, %v4749
      %v4752 = vcombine.high %v4526, %v4526
      %v4754 = vunpack.c.l.s4 1983009808
      %v4755 = vunpack.c.0.s8 %v4754
      %v4756 = vlaneseq
      %v4757 = vshrl.u32 %v4756, 7
      %v4758 = vsub.s32 %v4755, %v4757
      %v4759 = vrot.slane %v4526, %v4758
      %v4761 = vunpack.c.l.s4 1983009808
      %v4762 = vunpack.c.0.s8 %v4761
      %v4763 = vlaneseq
      %v4764 = vshrl.u32 %v4763, 7
      %v4765 = vsub.s32 %v4762, %v4764
      %v4766 = vrot.slane %v4752, %v4765
      %v4767 = vcombine.high %v4759, %v4759
      %v4768 = vcombine.high %v4766, %v4766
      %v4769 = vcombine.high %v4527, %v4527
      %v4771 = vunpack.c.l.s4 1983009808
      %v4772 = vunpack.c.0.s8 %v4771
      %v4773 = vlaneseq
      %v4774 = vshrl.u32 %v4773, 7
      %v4775 = vsub.s32 %v4772, %v4774
      %v4776 = vrot.slane %v4527, %v4775
      %v4778 = vunpack.c.l.s4 1983009808
      %v4779 = vunpack.c.0.s8 %v4778
      %v4780 = vlaneseq
      %v4781 = vshrl.u32 %v4780, 7
      %v4782 = vsub.s32 %v4779, %v4781
      %v4783 = vrot.slane %v4769, %v4782
      %v4784 = vcombine.high %v4776, %v4776
      %v4785 = vcombine.high %v4783, %v4783
      %v4786 = vcombine.high %v4528, %v4528
      %v4788 = vunpack.c.l.s4 1983009808
      %v4789 = vunpack.c.0.s8 %v4788
      %v4790 = vlaneseq
      %v4791 = vshrl.u32 %v4790, 7
      %v4792 = vsub.s32 %v4789, %v4791
      %v4793 = vrot.slane %v4528, %v4792
      %v4795 = vunpack.c.l.s4 1983009808
      %v4796 = vunpack.c.0.s8 %v4795
      %v4797 = vlaneseq
      %v4798 = vshrl.u32 %v4797, 7
      %v4799 = vsub.s32 %v4796, %v4798
      %v4800 = vrot.slane %v4786, %v4799
      %v4801 = vcombine.high %v4793, %v4793
      %v4802 = vcombine.high %v4800, %v4800
      %v4803 = vcombine.high %v4529, %v4529
      %v4805 = vunpack.c.l.s4 1983009808
      %v4806 = vunpack.c.0.s8 %v4805
      %v4807 = vlaneseq
      %v4808 = vshrl.u32 %v4807, 7
      %v4809 = vsub.s32 %v4806, %v4808
      %v4810 = vrot.slane %v4529, %v4809
      %v4812 = vunpack.c.l.s4 1983009808
      %v4813 = vunpack.c.0.s8 %v4812
      %v4814 = vlaneseq
      %v4815 = vshrl.u32 %v4814, 7
      %v4816 = vsub.s32 %v4813, %v4815
      %v4817 = vrot.slane %v4803, %v4816
      %v4818 = vcombine.high %v4810, %v4810
      %v4819 = vcombine.high %v4817, %v4817
      %v4820 = vcombine.high %v4530, %v4530
      %v4822 = vunpack.c.l.s4 1983009808
      %v4823 = vunpack.c.0.s8 %v4822
      %v4824 = vlaneseq
      %v4825 = vshrl.u32 %v4824, 7
      %v4826 = vsub.s32 %v4823, %v4825
      %v4827 = vrot.slane %v4530, %v4826
      %v4829 = vunpack.c.l.s4 1983009808
      %v4830 = vunpack.c.0.s8 %v4829
      %v4831 = vlaneseq
      %v4832 = vshrl.u32 %v4831, 7
      %v4833 = vsub.s32 %v4830, %v4832
      %v4834 = vrot.slane %v4820, %v4833
      %v4835 = vcombine.high %v4827, %v4827
      %v4836 = vcombine.high %v4834, %v4834
      %v4837 = vcombine.high %v4531, %v4531
      %v4839 = vunpack.c.l.s4 1983009808
      %v4840 = vunpack.c.0.s8 %v4839
      %v4841 = vlaneseq
      %v4842 = vshrl.u32 %v4841, 7
      %v4843 = vsub.s32 %v4840, %v4842
      %v4844 = vrot.slane %v4531, %v4843
      %v4846 = vunpack.c.l.s4 1983009808
      %v4847 = vunpack.c.0.s8 %v4846
      %v4848 = vlaneseq
      %v4849 = vshrl.u32 %v4848, 7
      %v4850 = vsub.s32 %v4847, %v4849
      %v4851 = vrot.slane %v4837, %v4850
      %v4852 = vcombine.high %v4844, %v4844
      %v4853 = vcombine.high %v4851, %v4851
      %v4854 = vcombine.high %v4532, %v4532
      %v4856 = vunpack.c.l.s4 1983009808
      %v4857 = vunpack.c.0.s8 %v4856
      %v4858 = vlaneseq
      %v4859 = vshrl.u32 %v4858, 7
      %v4860 = vsub.s32 %v4857, %v4859
      %v4861 = vrot.slane %v4532, %v4860
      %v4863 = vunpack.c.l.s4 1983009808
      %v4864 = vunpack.c.0.s8 %v4863
      %v4865 = vlaneseq
      %v4866 = vshrl.u32 %v4865, 7
      %v4867 = vsub.s32 %v4864, %v4866
      %v4868 = vrot.slane %v4854, %v4867
      %v4869 = vcombine.high %v4861, %v4861
      %v4870 = vcombine.high %v4868, %v4868
      %v4871 = vcombine.high %v4533, %v4533
      %v4873 = vunpack.c.l.s4 1983009808
      %v4874 = vunpack.c.0.s8 %v4873
      %v4875 = vlaneseq
      %v4876 = vshrl.u32 %v4875, 7
      %v4877 = vsub.s32 %v4874, %v4876
      %v4878 = vrot.slane %v4533, %v4877
      %v4880 = vunpack.c.l.s4 1983009808
      %v4881 = vunpack.c.0.s8 %v4880
      %v4882 = vlaneseq
      %v4883 = vshrl.u32 %v4882, 7
      %v4884 = vsub.s32 %v4881, %v4883
      %v4885 = vrot.slane %v4871, %v4884
      %v4886 = vcombine.high %v4878, %v4878
      %v4887 = vcombine.high %v4885, %v4885
      %v4888 = vcombine.high %v4534, %v4534
      %v4890 = vunpack.c.l.s4 1983009808
      %v4891 = vunpack.c.0.s8 %v4890
      %v4892 = vlaneseq
      %v4893 = vshrl.u32 %v4892, 7
      %v4894 = vsub.s32 %v4891, %v4893
      %v4895 = vrot.slane %v4534, %v4894
      %v4897 = vunpack.c.l.s4 1983009808
      %v4898 = vunpack.c.0.s8 %v4897
      %v4899 = vlaneseq
      %v4900 = vshrl.u32 %v4899, 7
      %v4901 = vsub.s32 %v4898, %v4900
      %v4902 = vrot.slane %v4888, %v4901
      %v4903 = vcombine.high %v4895, %v4895
      %v4904 = vcombine.high %v4902, %v4902
      %v4905 = vcombine.high %v4535, %v4535
      %v4907 = vunpack.c.l.s4 1983009808
      %v4908 = vunpack.c.0.s8 %v4907
      %v4909 = vlaneseq
      %v4910 = vshrl.u32 %v4909, 7
      %v4911 = vsub.s32 %v4908, %v4910
      %v4912 = vrot.slane %v4535, %v4911
      %v4914 = vunpack.c.l.s4 1983009808
      %v4915 = vunpack.c.0.s8 %v4914
      %v4916 = vlaneseq
      %v4917 = vshrl.u32 %v4916, 7
      %v4918 = vsub.s32 %v4915, %v4917
      %v4919 = vrot.slane %v4905, %v4918
      %v4920 = vcombine.high %v4912, %v4912
      %v4921 = vcombine.high %v4919, %v4919
      %v4922 = vcombine.high %v4536, %v4536
      %v4924 = vunpack.c.l.s4 1983009808
      %v4925 = vunpack.c.0.s8 %v4924
      %v4926 = vlaneseq
      %v4927 = vshrl.u32 %v4926, 7
      %v4928 = vsub.s32 %v4925, %v4927
      %v4929 = vrot.slane %v4536, %v4928
      %v4931 = vunpack.c.l.s4 1983009808
      %v4932 = vunpack.c.0.s8 %v4931
      %v4933 = vlaneseq
      %v4934 = vshrl.u32 %v4933, 7
      %v4935 = vsub.s32 %v4932, %v4934
      %v4936 = vrot.slane %v4922, %v4935
      %v4937 = vcombine.high %v4929, %v4929
      %v4938 = vcombine.high %v4936, %v4936
      %v4939 = vcombine.high %v4537, %v4537
      %v4941 = vunpack.c.l.s4 1983009808
      %v4942 = vunpack.c.0.s8 %v4941
      %v4943 = vlaneseq
      %v4944 = vshrl.u32 %v4943, 7
      %v4945 = vsub.s32 %v4942, %v4944
      %v4946 = vrot.slane %v4537, %v4945
      %v4948 = vunpack.c.l.s4 1983009808
      %v4949 = vunpack.c.0.s8 %v4948
      %v4950 = vlaneseq
      %v4951 = vshrl.u32 %v4950, 7
      %v4952 = vsub.s32 %v4949, %v4951
      %v4953 = vrot.slane %v4939, %v4952
      %v4954 = vcombine.high %v4946, %v4946
      %v4955 = vcombine.high %v4953, %v4953
      %v4956 = vcombine.high %v4538, %v4538
      %v4958 = vunpack.c.l.s4 1983009808
      %v4959 = vunpack.c.0.s8 %v4958
      %v4960 = vlaneseq
      %v4961 = vshrl.u32 %v4960, 7
      %v4962 = vsub.s32 %v4959, %v4961
      %v4963 = vrot.slane %v4538, %v4962
      %v4965 = vunpack.c.l.s4 1983009808
      %v4966 = vunpack.c.0.s8 %v4965
      %v4967 = vlaneseq
      %v4968 = vshrl.u32 %v4967, 7
      %v4969 = vsub.s32 %v4966, %v4968
      %v4970 = vrot.slane %v4956, %v4969
      %v4971 = vcombine.high %v4963, %v4963
      %v4972 = vcombine.high %v4970, %v4970
      %v4974 = vunpack.c.l.s4 1983009808
      %v4975 = vunpack.c.0.s8 %v4974
      %v4976 = vlaneseq
      %v4977 = vshrl.u32 %v4976, 7
      %v4978 = vsub.s32 %v4975, %v4977
      %v4979 = vrot.slane %v4539, %v4978
      %v4980 = vcombine.high %v4979, %v4979
      %v4981 = vrot.slane %v4572, 7
      %v4982 = vrot.slane %v4981, 2
      %v4983 = vrot.slane %v4580, 7
      %v4984 = vsel %vm819, %v4982, %v4983
      %v4985 = vrot.slane %v4983, 2
      %v4986 = vrot.slane %v4579, 7
      %v4987 = vsel %vm819, %v4985, %v4986
      %v4988 = vrot.slane %v4986, 2
      %v4989 = vrot.slane %v4581, 7
      %v4990 = vsel %vm819, %v4988, %v4989
      %v4991 = vrot.slane %v4989, 2
      %v4992 = vrot.slane %v4589, 7
      %v4993 = vsel %vm819, %v4991, %v4992
      %v4994 = vrot.slane %v4992, 2
      %v4995 = vrot.slane %v4597, 7
      %v4996 = vsel %vm819, %v4994, %v4995
      %v4997 = vrot.slane %v4995, 2
      %v4998 = vrot.slane %v4596, 7
      %v4999 = vsel %vm819, %v4997, %v4998
      %v5000 = vrot.slane %v4598, 7
      %v5001 = vrot.slane %v5000, 2
      %v5002 = vrot.slane %v4606, 7
      %v5003 = vsel %vm819, %v5001, %v5002
      %v5004 = vrot.slane %v5002, 2
      %v5005 = vrot.slane %v4614, 7
      %v5006 = vsel %vm819, %v5004, %v5005
      %v5007 = vrot.slane %v5005, 2
      %v5008 = vrot.slane %v4613, 7
      %v5009 = vsel %vm819, %v5007, %v5008
      %v5010 = vrot.slane %v5008, 2
      %v5011 = vrot.slane %v4615, 7
      %v5012 = vsel %vm819, %v5010, %v5011
      %v5013 = vrot.slane %v5011, 2
      %v5014 = vrot.slane %v4623, 7
      %v5015 = vsel %vm819, %v5013, %v5014
      %v5016 = vrot.slane %v5014, 2
      %v5017 = vrot.slane %v4631, 7
      %v5018 = vsel %vm819, %v5016, %v5017
      %v5019 = vrot.slane %v4630, 7
      %v5020 = vrot.slane %v5019, 2
      %v5021 = vrot.slane %v4632, 7
      %v5022 = vsel %vm819, %v5020, %v5021
      %v5023 = vrot.slane %v5021, 2
      %v5024 = vrot.slane %v4640, 7
      %v5025 = vsel %vm819, %v5023, %v5024
      %v5026 = vrot.slane %v5024, 2
      %v5027 = vrot.slane %v4648, 7
      %v5028 = vsel %vm819, %v5026, %v5027
      %v5029 = vrot.slane %v5027, 2
      %v5030 = vrot.slane %v4647, 7
      %v5031 = vsel %vm819, %v5029, %v5030
      %v5032 = vrot.slane %v5030, 2
      %v5033 = vrot.slane %v4649, 7
      %v5034 = vsel %vm819, %v5032, %v5033
      %v5035 = vrot.slane %v5033, 2
      %v5036 = vrot.slane %v4657, 7
      %v5037 = vsel %vm819, %v5035, %v5036
      %v5038 = vrot.slane %v4665, 7
      %v5039 = vrot.slane %v5038, 2
      %v5040 = vrot.slane %v4664, 7
      %v5041 = vsel %vm819, %v5039, %v5040
      %v5042 = vrot.slane %v5040, 2
      %v5043 = vrot.slane %v4666, 7
      %v5044 = vsel %vm819, %v5042, %v5043
      %v5045 = vrot.slane %v5043, 2
      %v5046 = vrot.slane %v4674, 7
      %v5047 = vsel %vm819, %v5045, %v5046
      %v5048 = vrot.slane %v5046, 2
      %v5049 = vrot.slane %v4682, 7
      %v5050 = vsel %vm819, %v5048, %v5049
      %v5051 = vrot.slane %v5049, 2
      %v5052 = vrot.slane %v4681, 7
      %v5053 = vsel %vm819, %v5051, %v5052
      %v5054 = vrot.slane %v5052, 2
      %v5055 = vrot.slane %v4683, 7
      %v5056 = vsel %vm819, %v5054, %v5055
      %v5057 = vrot.slane %v4691, 7
      %v5058 = vrot.slane %v5057, 2
      %v5059 = vrot.slane %v4699, 7
      %v5060 = vsel %vm819, %v5058, %v5059
      %v5061 = vrot.slane %v5059, 2
      %v5062 = vrot.slane %v4698, 7
      %v5063 = vsel %vm819, %v5061, %v5062
      %v5064 = vrot.slane %v5062, 2
      %v5065 = vrot.slane %v4700, 7
      %v5066 = vsel %vm819, %v5064, %v5065
      %v5067 = vrot.slane %v5065, 2
      %v5068 = vrot.slane %v4708, 7
      %v5069 = vsel %vm819, %v5067, %v5068
      %v5070 = vrot.slane %v5068, 2
      %v5071 = vrot.slane %v4716, 7
      %v5072 = vsel %vm819, %v5070, %v5071
      %v5073 = vrot.slane %v5071, 2
      %v5074 = vrot.slane %v4715, 7
      %v5075 = vsel %vm819, %v5073, %v5074
      %v5076 = vrot.slane %v4717, 7
      %v5077 = vrot.slane %v5076, 2
      %v5078 = vrot.slane %v4725, 7
      %v5079 = vsel %vm819, %v5077, %v5078
      %v5080 = vrot.slane %v5078, 2
      %v5081 = vrot.slane %v4733, 7
      %v5082 = vsel %vm819, %v5080, %v5081
      %v5083 = vrot.slane %v5081, 2
      %v5084 = vrot.slane %v4732, 7
      %v5085 = vsel %vm819, %v5083, %v5084
      %v5086 = vrot.slane %v5084, 2
      %v5087 = vrot.slane %v4734, 7
      %v5088 = vsel %vm819, %v5086, %v5087
      %v5089 = vrot.slane %v5087, 2
      %v5090 = vrot.slane %v4742, 7
      %v5091 = vsel %vm819, %v5089, %v5090
      %v5092 = vrot.slane %v5090, 2
      %v5093 = vrot.slane %v4750, 7
      %v5094 = vsel %vm819, %v5092, %v5093
      %v5095 = vrot.slane %v4749, 7
      %v5096 = vrot.slane %v5095, 2
      %v5097 = vrot.slane %v4751, 7
      %v5098 = vsel %vm819, %v5096, %v5097
      %v5099 = vrot.slane %v5097, 2
      %v5100 = vrot.slane %v4759, 7
      %v5101 = vsel %vm819, %v5099, %v5100
      %v5102 = vrot.slane %v5100, 2
      %v5103 = vrot.slane %v4767, 7
      %v5104 = vsel %vm819, %v5102, %v5103
      %v5105 = vrot.slane %v5103, 2
      %v5106 = vrot.slane %v4766, 7
      %v5107 = vsel %vm819, %v5105, %v5106
      %v5108 = vrot.slane %v5106, 2
      %v5109 = vrot.slane %v4768, 7
      %v5110 = vsel %vm819, %v5108, %v5109
      %v5111 = vrot.slane %v5109, 2
      %v5112 = vrot.slane %v4776, 7
      %v5113 = vsel %vm819, %v5111, %v5112
      %v5114 = vrot.slane %v4784, 7
      %v5115 = vrot.slane %v5114, 2
      %v5116 = vrot.slane %v4783, 7
      %v5117 = vsel %vm819, %v5115, %v5116
      %v5118 = vrot.slane %v5116, 2
      %v5119 = vrot.slane %v4785, 7
      %v5120 = vsel %vm819, %v5118, %v5119
      %v5121 = vrot.slane %v5119, 2
      %v5122 = vrot.slane %v4793, 7
      %v5123 = vsel %vm819, %v5121, %v5122
      %v5124 = vrot.slane %v5122, 2
      %v5125 = vrot.slane %v4801, 7
      %v5126 = vsel %vm819, %v5124, %v5125
      %v5127 = vrot.slane %v5125, 2
      %v5128 = vrot.slane %v4800, 7
      %v5129 = vsel %vm819, %v5127, %v5128
      %v5130 = vrot.slane %v5128, 2
      %v5131 = vrot.slane %v4802, 7
      %v5132 = vsel %vm819, %v5130, %v5131
      %v5133 = vrot.slane %v4810, 7
      %v5134 = vrot.slane %v5133, 2
      %v5135 = vrot.slane %v4818, 7
      %v5136 = vsel %vm819, %v5134, %v5135
      %v5137 = vrot.slane %v5135, 2
      %v5138 = vrot.slane %v4817, 7
      %v5139 = vsel %vm819, %v5137, %v5138
      %v5140 = vrot.slane %v5138, 2
      %v5141 = vrot.slane %v4819, 7
      %v5142 = vsel %vm819, %v5140, %v5141
      %v5143 = vrot.slane %v5141, 2
      %v5144 = vrot.slane %v4827, 7
      %v5145 = vsel %vm819, %v5143, %v5144
      %v5146 = vrot.slane %v5144, 2
      %v5147 = vrot.slane %v4835, 7
      %v5148 = vsel %vm819, %v5146, %v5147
      %v5149 = vrot.slane %v5147, 2
      %v5150 = vrot.slane %v4834, 7
      %v5151 = vsel %vm819, %v5149, %v5150
      %v5152 = vrot.slane %v4836, 7
      %v5153 = vrot.slane %v5152, 2
      %v5154 = vrot.slane %v4844, 7
      %v5155 = vsel %vm819, %v5153, %v5154
      %v5156 = vrot.slane %v5154, 2
      %v5157 = vrot.slane %v4852, 7
      %v5158 = vsel %vm819, %v5156, %v5157
      %v5159 = vrot.slane %v5157, 2
      %v5160 = vrot.slane %v4851, 7
      %v5161 = vsel %vm819, %v5159, %v5160
      %v5162 = vrot.slane %v5160, 2
      %v5163 = vrot.slane %v4853, 7
      %v5164 = vsel %vm819, %v5162, %v5163
      %v5165 = vrot.slane %v5163, 2
      %v5166 = vrot.slane %v4861, 7
      %v5167 = vsel %vm819, %v5165, %v5166
      %v5168 = vrot.slane %v5166, 2
      %v5169 = vrot.slane %v4869, 7
      %v5170 = vsel %vm819, %v5168, %v5169
      %v5171 = vrot.slane %v4868, 7
      %v5172 = vrot.slane %v5171, 2
      %v5173 = vrot.slane %v4870, 7
      %v5174 = vsel %vm819, %v5172, %v5173
      %v5175 = vrot.slane %v5173, 2
      %v5176 = vrot.slane %v4878, 7
      %v5177 = vsel %vm819, %v5175, %v5176
      %v5178 = vrot.slane %v5176, 2
      %v5179 = vrot.slane %v4886, 7
      %v5180 = vsel %vm819, %v5178, %v5179
      %v5181 = vrot.slane %v5179, 2
      %v5182 = vrot.slane %v4885, 7
      %v5183 = vsel %vm819, %v5181, %v5182
      %v5184 = vrot.slane %v5182, 2
      %v5185 = vrot.slane %v4887, 7
      %v5186 = vsel %vm819, %v5184, %v5185
      %v5187 = vrot.slane %v5185, 2
      %v5188 = vrot.slane %v4895, 7
      %v5189 = vsel %vm819, %v5187, %v5188
      %v5190 = vrot.slane %v4903, 7
      %v5191 = vrot.slane %v5190, 2
      %v5192 = vrot.slane %v4902, 7
      %v5193 = vsel %vm819, %v5191, %v5192
      %v5194 = vrot.slane %v5192, 2
      %v5195 = vrot.slane %v4904, 7
      %v5196 = vsel %vm819, %v5194, %v5195
      %v5197 = vrot.slane %v5195, 2
      %v5198 = vrot.slane %v4912, 7
      %v5199 = vsel %vm819, %v5197, %v5198
      %v5200 = vrot.slane %v5198, 2
      %v5201 = vrot.slane %v4920, 7
      %v5202 = vsel %vm819, %v5200, %v5201
      %v5203 = vrot.slane %v5201, 2
      %v5204 = vrot.slane %v4919, 7
      %v5205 = vsel %vm819, %v5203, %v5204
      %v5206 = vrot.slane %v5204, 2
      %v5207 = vrot.slane %v4921, 7
      %v5208 = vsel %vm819, %v5206, %v5207
      %v5209 = vrot.slane %v4929, 7
      %v5210 = vrot.slane %v5209, 2
      %v5211 = vrot.slane %v4937, 7
      %v5212 = vsel %vm819, %v5210, %v5211
      %v5213 = vrot.slane %v5211, 2
      %v5214 = vrot.slane %v4936, 7
      %v5215 = vsel %vm819, %v5213, %v5214
      %v5216 = vrot.slane %v5214, 2
      %v5217 = vrot.slane %v4938, 7
      %v5218 = vsel %vm819, %v5216, %v5217
      %v5219 = vrot.slane %v5217, 2
      %v5220 = vrot.slane %v4946, 7
      %v5221 = vsel %vm819, %v5219, %v5220
      %v5222 = vrot.slane %v5220, 2
      %v5223 = vrot.slane %v4954, 7
      %v5224 = vsel %vm819, %v5222, %v5223
      %v5225 = vrot.slane %v5223, 2
      %v5226 = vrot.slane %v4953, 7
      %v5227 = vsel %vm819, %v5225, %v5226
      %v5228 = vrot.slane %v4955, 7
      %v5229 = vrot.slane %v5228, 2
      %v5230 = vrot.slane %v4963, 7
      %v5231 = vsel %vm819, %v5229, %v5230
      %v5232 = vrot.slane %v5230, 2
      %v5233 = vrot.slane %v4971, 7
      %v5234 = vsel %vm819, %v5232, %v5233
      %v5235 = vrot.slane %v5233, 2
      %v5236 = vrot.slane %v4970, 7
      %v5237 = vsel %vm819, %v5235, %v5236
      %v5238 = vrot.slane %v5236, 2
      %v5239 = vrot.slane %v4972, 7
      %v5240 = vsel %vm819, %v5238, %v5239
      %v5241 = vrot.slane %v5239, 2
      %v5242 = vrot.slane %v4979, 7
      %v5243 = vsel %vm819, %v5241, %v5242
      %v5244 = vrot.slane %v5242, 2
      %v5245 = vrot.slane %v4980, 7
      %v5246 = vsel %vm819, %v5244, %v5245
      %v5247 = vcombine.low %v4572, %v4580
      %v5248 = vcombine.low %v4579, %v4581
      %v5250 = vunpack.c.l.s4 1983009808
      %v5251 = vunpack.c.0.s8 %v5250
      %v5252 = vlaneseq
      %v5253 = vshrl.u32 %v5252, 7
      %v5254 = vsub.s32 %v5251, %v5253
      %v5255 = vrot.slane %v5247, %v5254
      %v5257 = vunpack.c.l.s4 1983009808
      %v5258 = vunpack.c.0.s8 %v5257
      %v5259 = vlaneseq
      %v5260 = vshrl.u32 %v5259, 7
      %v5261 = vsub.s32 %v5258, %v5260
      %v5262 = vrot.slane %v5248, %v5261
      %v5263 = vcombine.low %v5255, %v5262
      %v5264 = vcombine.low %v4589, %v4597
      %v5265 = vcombine.low %v4598, %v4606
      %v5267 = vunpack.c.l.s4 1983009808
      %v5268 = vunpack.c.0.s8 %v5267
      %v5269 = vlaneseq
      %v5270 = vshrl.u32 %v5269, 7
      %v5271 = vsub.s32 %v5268, %v5270
      %v5272 = vrot.slane %v5264, %v5271
      %v5274 = vunpack.c.l.s4 1983009808
      %v5275 = vunpack.c.0.s8 %v5274
      %v5276 = vlaneseq
      %v5277 = vshrl.u32 %v5276, 7
      %v5278 = vsub.s32 %v5275, %v5277
      %v5279 = vrot.slane %v5265, %v5278
      %v5280 = vcombine.low %v5272, %v5279
      %v5281 = vcombine.low %v4614, %v4613
      %v5282 = vcombine.low %v4615, %v4623
      %v5284 = vunpack.c.l.s4 1983009808
      %v5285 = vunpack.c.0.s8 %v5284
      %v5286 = vlaneseq
      %v5287 = vshrl.u32 %v5286, 7
      %v5288 = vsub.s32 %v5285, %v5287
      %v5289 = vrot.slane %v5281, %v5288
      %v5291 = vunpack.c.l.s4 1983009808
      %v5292 = vunpack.c.0.s8 %v5291
      %v5293 = vlaneseq
      %v5294 = vshrl.u32 %v5293, 7
      %v5295 = vsub.s32 %v5292, %v5294
      %v5296 = vrot.slane %v5282, %v5295
      %v5297 = vcombine.low %v5289, %v5296
      %v5298 = vcombine.low %v4630, %v4632
      %v5299 = vcombine.low %v4640, %v4648
      %v5301 = vunpack.c.l.s4 1983009808
      %v5302 = vunpack.c.0.s8 %v5301
      %v5303 = vlaneseq
      %v5304 = vshrl.u32 %v5303, 7
      %v5305 = vsub.s32 %v5302, %v5304
      %v5306 = vrot.slane %v5298, %v5305
      %v5308 = vunpack.c.l.s4 1983009808
      %v5309 = vunpack.c.0.s8 %v5308
      %v5310 = vlaneseq
      %v5311 = vshrl.u32 %v5310, 7
      %v5312 = vsub.s32 %v5309, %v5311
      %v5313 = vrot.slane %v5299, %v5312
      %v5314 = vcombine.low %v5306, %v5313
      %v5315 = vcombine.low %v4647, %v4649
      %v5316 = vcombine.low %v4665, %v4664
      %v5318 = vunpack.c.l.s4 1983009808
      %v5319 = vunpack.c.0.s8 %v5318
      %v5320 = vlaneseq
      %v5321 = vshrl.u32 %v5320, 7
      %v5322 = vsub.s32 %v5319, %v5321
      %v5323 = vrot.slane %v5315, %v5322
      %v5325 = vunpack.c.l.s4 1983009808
      %v5326 = vunpack.c.0.s8 %v5325
      %v5327 = vlaneseq
      %v5328 = vshrl.u32 %v5327, 7
      %v5329 = vsub.s32 %v5326, %v5328
      %v5330 = vrot.slane %v5316, %v5329
      %v5331 = vcombine.low %v5323, %v5330
      %v5332 = vcombine.low %v4666, %v4674
      %v5333 = vcombine.low %v4682, %v4681
      %v5335 = vunpack.c.l.s4 1983009808
      %v5336 = vunpack.c.0.s8 %v5335
      %v5337 = vlaneseq
      %v5338 = vshrl.u32 %v5337, 7
      %v5339 = vsub.s32 %v5336, %v5338
      %v5340 = vrot.slane %v5332, %v5339
      %v5342 = vunpack.c.l.s4 1983009808
      %v5343 = vunpack.c.0.s8 %v5342
      %v5344 = vlaneseq
      %v5345 = vshrl.u32 %v5344, 7
      %v5346 = vsub.s32 %v5343, %v5345
      %v5347 = vrot.slane %v5333, %v5346
      %v5348 = vcombine.low %v5340, %v5347
      %v5349 = vcombine.low %v4691, %v4699
      %v5350 = vcombine.low %v4698, %v4700
      %v5352 = vunpack.c.l.s4 1983009808
      %v5353 = vunpack.c.0.s8 %v5352
      %v5354 = vlaneseq
      %v5355 = vshrl.u32 %v5354, 7
      %v5356 = vsub.s32 %v5353, %v5355
      %v5357 = vrot.slane %v5349, %v5356
      %v5359 = vunpack.c.l.s4 1983009808
      %v5360 = vunpack.c.0.s8 %v5359
      %v5361 = vlaneseq
      %v5362 = vshrl.u32 %v5361, 7
      %v5363 = vsub.s32 %v5360, %v5362
      %v5364 = vrot.slane %v5350, %v5363
      %v5365 = vcombine.low %v5357, %v5364
      %v5366 = vcombine.low %v4708, %v4716
      %v5367 = vcombine.low %v4717, %v4725
      %v5369 = vunpack.c.l.s4 1983009808
      %v5370 = vunpack.c.0.s8 %v5369
      %v5371 = vlaneseq
      %v5372 = vshrl.u32 %v5371, 7
      %v5373 = vsub.s32 %v5370, %v5372
      %v5374 = vrot.slane %v5366, %v5373
      %v5376 = vunpack.c.l.s4 1983009808
      %v5377 = vunpack.c.0.s8 %v5376
      %v5378 = vlaneseq
      %v5379 = vshrl.u32 %v5378, 7
      %v5380 = vsub.s32 %v5377, %v5379
      %v5381 = vrot.slane %v5367, %v5380
      %v5382 = vcombine.low %v5374, %v5381
      %v5383 = vcombine.low %v4733, %v4732
      %v5384 = vcombine.low %v4734, %v4742
      %v5386 = vunpack.c.l.s4 1983009808
      %v5387 = vunpack.c.0.s8 %v5386
      %v5388 = vlaneseq
      %v5389 = vshrl.u32 %v5388, 7
      %v5390 = vsub.s32 %v5387, %v5389
      %v5391 = vrot.slane %v5383, %v5390
      %v5393 = vunpack.c.l.s4 1983009808
      %v5394 = vunpack.c.0.s8 %v5393
      %v5395 = vlaneseq
      %v5396 = vshrl.u32 %v5395, 7
      %v5397 = vsub.s32 %v5394, %v5396
      %v5398 = vrot.slane %v5384, %v5397
      %v5399 = vcombine.low %v5391, %v5398
      %v5400 = vcombine.low %v4749, %v4751
      %v5401 = vcombine.low %v4759, %v4767
      %v5403 = vunpack.c.l.s4 1983009808
      %v5404 = vunpack.c.0.s8 %v5403
      %v5405 = vlaneseq
      %v5406 = vshrl.u32 %v5405, 7
      %v5407 = vsub.s32 %v5404, %v5406
      %v5408 = vrot.slane %v5400, %v5407
      %v5410 = vunpack.c.l.s4 1983009808
      %v5411 = vunpack.c.0.s8 %v5410
      %v5412 = vlaneseq
      %v5413 = vshrl.u32 %v5412, 7
      %v5414 = vsub.s32 %v5411, %v5413
      %v5415 = vrot.slane %v5401, %v5414
      %v5416 = vcombine.low %v5408, %v5415
      %v5417 = vcombine.low %v4766, %v4768
      %v5418 = vcombine.low %v4784, %v4783
      %v5420 = vunpack.c.l.s4 1983009808
      %v5421 = vunpack.c.0.s8 %v5420
      %v5422 = vlaneseq
      %v5423 = vshrl.u32 %v5422, 7
      %v5424 = vsub.s32 %v5421, %v5423
      %v5425 = vrot.slane %v5417, %v5424
      %v5427 = vunpack.c.l.s4 1983009808
      %v5428 = vunpack.c.0.s8 %v5427
      %v5429 = vlaneseq
      %v5430 = vshrl.u32 %v5429, 7
      %v5431 = vsub.s32 %v5428, %v5430
      %v5432 = vrot.slane %v5418, %v5431
      %v5433 = vcombine.low %v5425, %v5432
      %v5434 = vcombine.low %v4785, %v4793
      %v5435 = vcombine.low %v4801, %v4800
      %v5437 = vunpack.c.l.s4 1983009808
      %v5438 = vunpack.c.0.s8 %v5437
      %v5439 = vlaneseq
      %v5440 = vshrl.u32 %v5439, 7
      %v5441 = vsub.s32 %v5438, %v5440
      %v5442 = vrot.slane %v5434, %v5441
      %v5444 = vunpack.c.l.s4 1983009808
      %v5445 = vunpack.c.0.s8 %v5444
      %v5446 = vlaneseq
      %v5447 = vshrl.u32 %v5446, 7
      %v5448 = vsub.s32 %v5445, %v5447
      %v5449 = vrot.slane %v5435, %v5448
      %v5450 = vcombine.low %v5442, %v5449
      %v5451 = vcombine.low %v4810, %v4818
      %v5452 = vcombine.low %v4817, %v4819
      %v5454 = vunpack.c.l.s4 1983009808
      %v5455 = vunpack.c.0.s8 %v5454
      %v5456 = vlaneseq
      %v5457 = vshrl.u32 %v5456, 7
      %v5458 = vsub.s32 %v5455, %v5457
      %v5459 = vrot.slane %v5451, %v5458
      %v5461 = vunpack.c.l.s4 1983009808
      %v5462 = vunpack.c.0.s8 %v5461
      %v5463 = vlaneseq
      %v5464 = vshrl.u32 %v5463, 7
      %v5465 = vsub.s32 %v5462, %v5464
      %v5466 = vrot.slane %v5452, %v5465
      %v5467 = vcombine.low %v5459, %v5466
      %v5468 = vcombine.low %v4827, %v4835
      %v5469 = vcombine.low %v4836, %v4844
      %v5471 = vunpack.c.l.s4 1983009808
      %v5472 = vunpack.c.0.s8 %v5471
      %v5473 = vlaneseq
      %v5474 = vshrl.u32 %v5473, 7
      %v5475 = vsub.s32 %v5472, %v5474
      %v5476 = vrot.slane %v5468, %v5475
      %v5478 = vunpack.c.l.s4 1983009808
      %v5479 = vunpack.c.0.s8 %v5478
      %v5480 = vlaneseq
      %v5481 = vshrl.u32 %v5480, 7
      %v5482 = vsub.s32 %v5479, %v5481
      %v5483 = vrot.slane %v5469, %v5482
      %v5484 = vcombine.low %v5476, %v5483
      %v5485 = vcombine.low %v4852, %v4851
      %v5486 = vcombine.low %v4853, %v4861
      %v5488 = vunpack.c.l.s4 1983009808
      %v5489 = vunpack.c.0.s8 %v5488
      %v5490 = vlaneseq
      %v5491 = vshrl.u32 %v5490, 7
      %v5492 = vsub.s32 %v5489, %v5491
      %v5493 = vrot.slane %v5485, %v5492
      %v5495 = vunpack.c.l.s4 1983009808
      %v5496 = vunpack.c.0.s8 %v5495
      %v5497 = vlaneseq
      %v5498 = vshrl.u32 %v5497, 7
      %v5499 = vsub.s32 %v5496, %v5498
      %v5500 = vrot.slane %v5486, %v5499
      %v5501 = vcombine.low %v5493, %v5500
      %v5502 = vcombine.low %v4868, %v4870
      %v5503 = vcombine.low %v4878, %v4886
      %v5505 = vunpack.c.l.s4 1983009808
      %v5506 = vunpack.c.0.s8 %v5505
      %v5507 = vlaneseq
      %v5508 = vshrl.u32 %v5507, 7
      %v5509 = vsub.s32 %v5506, %v5508
      %v5510 = vrot.slane %v5502, %v5509
      %v5512 = vunpack.c.l.s4 1983009808
      %v5513 = vunpack.c.0.s8 %v5512
      %v5514 = vlaneseq
      %v5515 = vshrl.u32 %v5514, 7
      %v5516 = vsub.s32 %v5513, %v5515
      %v5517 = vrot.slane %v5503, %v5516
      %v5518 = vcombine.low %v5510, %v5517
      %v5519 = vcombine.low %v4885, %v4887
      %v5520 = vcombine.low %v4903, %v4902
      %v5522 = vunpack.c.l.s4 1983009808
      %v5523 = vunpack.c.0.s8 %v5522
      %v5524 = vlaneseq
      %v5525 = vshrl.u32 %v5524, 7
      %v5526 = vsub.s32 %v5523, %v5525
      %v5527 = vrot.slane %v5519, %v5526
      %v5529 = vunpack.c.l.s4 1983009808
      %v5530 = vunpack.c.0.s8 %v5529
      %v5531 = vlaneseq
      %v5532 = vshrl.u32 %v5531, 7
      %v5533 = vsub.s32 %v5530, %v5532
      %v5534 = vrot.slane %v5520, %v5533
      %v5535 = vcombine.low %v5527, %v5534
      %v5536 = vcombine.low %v4904, %v4912
      %v5537 = vcombine.low %v4920, %v4919
      %v5539 = vunpack.c.l.s4 1983009808
      %v5540 = vunpack.c.0.s8 %v5539
      %v5541 = vlaneseq
      %v5542 = vshrl.u32 %v5541, 7
      %v5543 = vsub.s32 %v5540, %v5542
      %v5544 = vrot.slane %v5536, %v5543
      %v5546 = vunpack.c.l.s4 1983009808
      %v5547 = vunpack.c.0.s8 %v5546
      %v5548 = vlaneseq
      %v5549 = vshrl.u32 %v5548, 7
      %v5550 = vsub.s32 %v5547, %v5549
      %v5551 = vrot.slane %v5537, %v5550
      %v5552 = vcombine.low %v5544, %v5551
      %v5571 = vcombine.low %v4984, %v4987
      %v5572 = vcombine.low %v4990, %v4993
      %v5574 = vunpack.c.l.s4 1983009808
      %v5575 = vunpack.c.0.s8 %v5574
      %v5576 = vlaneseq
      %v5577 = vshrl.u32 %v5576, 7
      %v5578 = vsub.s32 %v5575, %v5577
      %v5579 = vrot.slane %v5571, %v5578
      %v5581 = vunpack.c.l.s4 1983009808
      %v5582 = vunpack.c.0.s8 %v5581
      %v5583 = vlaneseq
      %v5584 = vshrl.u32 %v5583, 7
      %v5585 = vsub.s32 %v5582, %v5584
      %v5586 = vrot.slane %v5572, %v5585
      %v5587 = vcombine.low %v5579, %v5586
      %v5588 = vcombine.low %v4996, %v4999
      %v5589 = vcombine.low %v5003, %v5006
      %v5591 = vunpack.c.l.s4 1983009808
      %v5592 = vunpack.c.0.s8 %v5591
      %v5593 = vlaneseq
      %v5594 = vshrl.u32 %v5593, 7
      %v5595 = vsub.s32 %v5592, %v5594
      %v5596 = vrot.slane %v5588, %v5595
      %v5598 = vunpack.c.l.s4 1983009808
      %v5599 = vunpack.c.0.s8 %v5598
      %v5600 = vlaneseq
      %v5601 = vshrl.u32 %v5600, 7
      %v5602 = vsub.s32 %v5599, %v5601
      %v5603 = vrot.slane %v5589, %v5602
      %v5604 = vcombine.low %v5596, %v5603
      %v5605 = vcombine.low %v5009, %v5012
      %v5606 = vcombine.low %v5015, %v5018
      %v5608 = vunpack.c.l.s4 1983009808
      %v5609 = vunpack.c.0.s8 %v5608
      %v5610 = vlaneseq
      %v5611 = vshrl.u32 %v5610, 7
      %v5612 = vsub.s32 %v5609, %v5611
      %v5613 = vrot.slane %v5605, %v5612
      %v5615 = vunpack.c.l.s4 1983009808
      %v5616 = vunpack.c.0.s8 %v5615
      %v5617 = vlaneseq
      %v5618 = vshrl.u32 %v5617, 7
      %v5619 = vsub.s32 %v5616, %v5618
      %v5620 = vrot.slane %v5606, %v5619
      %v5621 = vcombine.low %v5613, %v5620
      %v5622 = vcombine.low %v5022, %v5025
      %v5623 = vcombine.low %v5028, %v5031
      %v5625 = vunpack.c.l.s4 1983009808
      %v5626 = vunpack.c.0.s8 %v5625
      %v5627 = vlaneseq
      %v5628 = vshrl.u32 %v5627, 7
      %v5629 = vsub.s32 %v5626, %v5628
      %v5630 = vrot.slane %v5622, %v5629
      %v5632 = vunpack.c.l.s4 1983009808
      %v5633 = vunpack.c.0.s8 %v5632
      %v5634 = vlaneseq
      %v5635 = vshrl.u32 %v5634, 7
      %v5636 = vsub.s32 %v5633, %v5635
      %v5637 = vrot.slane %v5623, %v5636
      %v5638 = vcombine.low %v5630, %v5637
      %v5639 = vcombine.low %v5034, %v5037
      %v5640 = vcombine.low %v5041, %v5044
      %v5642 = vunpack.c.l.s4 1983009808
      %v5643 = vunpack.c.0.s8 %v5642
      %v5644 = vlaneseq
      %v5645 = vshrl.u32 %v5644, 7
      %v5646 = vsub.s32 %v5643, %v5645
      %v5647 = vrot.slane %v5639, %v5646
      %v5649 = vunpack.c.l.s4 1983009808
      %v5650 = vunpack.c.0.s8 %v5649
      %v5651 = vlaneseq
      %v5652 = vshrl.u32 %v5651, 7
      %v5653 = vsub.s32 %v5650, %v5652
      %v5654 = vrot.slane %v5640, %v5653
      %v5655 = vcombine.low %v5647, %v5654
      %v5656 = vcombine.low %v5047, %v5050
      %v5657 = vcombine.low %v5053, %v5056
      %v5659 = vunpack.c.l.s4 1983009808
      %v5660 = vunpack.c.0.s8 %v5659
      %v5661 = vlaneseq
      %v5662 = vshrl.u32 %v5661, 7
      %v5663 = vsub.s32 %v5660, %v5662
      %v5664 = vrot.slane %v5656, %v5663
      %v5666 = vunpack.c.l.s4 1983009808
      %v5667 = vunpack.c.0.s8 %v5666
      %v5668 = vlaneseq
      %v5669 = vshrl.u32 %v5668, 7
      %v5670 = vsub.s32 %v5667, %v5669
      %v5671 = vrot.slane %v5657, %v5670
      %v5672 = vcombine.low %v5664, %v5671
      %v5673 = vcombine.low %v5060, %v5063
      %v5674 = vcombine.low %v5066, %v5069
      %v5676 = vunpack.c.l.s4 1983009808
      %v5677 = vunpack.c.0.s8 %v5676
      %v5678 = vlaneseq
      %v5679 = vshrl.u32 %v5678, 7
      %v5680 = vsub.s32 %v5677, %v5679
      %v5681 = vrot.slane %v5673, %v5680
      %v5683 = vunpack.c.l.s4 1983009808
      %v5684 = vunpack.c.0.s8 %v5683
      %v5685 = vlaneseq
      %v5686 = vshrl.u32 %v5685, 7
      %v5687 = vsub.s32 %v5684, %v5686
      %v5688 = vrot.slane %v5674, %v5687
      %v5689 = vcombine.low %v5681, %v5688
      %v5690 = vcombine.low %v5072, %v5075
      %v5691 = vcombine.low %v5079, %v5082
      %v5693 = vunpack.c.l.s4 1983009808
      %v5694 = vunpack.c.0.s8 %v5693
      %v5695 = vlaneseq
      %v5696 = vshrl.u32 %v5695, 7
      %v5697 = vsub.s32 %v5694, %v5696
      %v5698 = vrot.slane %v5690, %v5697
      %v5700 = vunpack.c.l.s4 1983009808
      %v5701 = vunpack.c.0.s8 %v5700
      %v5702 = vlaneseq
      %v5703 = vshrl.u32 %v5702, 7
      %v5704 = vsub.s32 %v5701, %v5703
      %v5705 = vrot.slane %v5691, %v5704
      %v5706 = vcombine.low %v5698, %v5705
      %v5707 = vcombine.low %v5085, %v5088
      %v5708 = vcombine.low %v5091, %v5094
      %v5710 = vunpack.c.l.s4 1983009808
      %v5711 = vunpack.c.0.s8 %v5710
      %v5712 = vlaneseq
      %v5713 = vshrl.u32 %v5712, 7
      %v5714 = vsub.s32 %v5711, %v5713
      %v5715 = vrot.slane %v5707, %v5714
      %v5717 = vunpack.c.l.s4 1983009808
      %v5718 = vunpack.c.0.s8 %v5717
      %v5719 = vlaneseq
      %v5720 = vshrl.u32 %v5719, 7
      %v5721 = vsub.s32 %v5718, %v5720
      %v5722 = vrot.slane %v5708, %v5721
      %v5723 = vcombine.low %v5715, %v5722
      %v5724 = vcombine.low %v5098, %v5101
      %v5725 = vcombine.low %v5104, %v5107
      %v5727 = vunpack.c.l.s4 1983009808
      %v5728 = vunpack.c.0.s8 %v5727
      %v5729 = vlaneseq
      %v5730 = vshrl.u32 %v5729, 7
      %v5731 = vsub.s32 %v5728, %v5730
      %v5732 = vrot.slane %v5724, %v5731
      %v5734 = vunpack.c.l.s4 1983009808
      %v5735 = vunpack.c.0.s8 %v5734
      %v5736 = vlaneseq
      %v5737 = vshrl.u32 %v5736, 7
      %v5738 = vsub.s32 %v5735, %v5737
      %v5739 = vrot.slane %v5725, %v5738
      %v5740 = vcombine.low %v5732, %v5739
      %v5741 = vcombine.low %v5110, %v5113
      %v5742 = vcombine.low %v5117, %v5120
      %v5744 = vunpack.c.l.s4 1983009808
      %v5745 = vunpack.c.0.s8 %v5744
      %v5746 = vlaneseq
      %v5747 = vshrl.u32 %v5746, 7
      %v5748 = vsub.s32 %v5745, %v5747
      %v5749 = vrot.slane %v5741, %v5748
      %v5751 = vunpack.c.l.s4 1983009808
      %v5752 = vunpack.c.0.s8 %v5751
      %v5753 = vlaneseq
      %v5754 = vshrl.u32 %v5753, 7
      %v5755 = vsub.s32 %v5752, %v5754
      %v5756 = vrot.slane %v5742, %v5755
      %v5757 = vcombine.low %v5749, %v5756
      %v5758 = vcombine.low %v5123, %v5126
      %v5759 = vcombine.low %v5129, %v5132
      %v5761 = vunpack.c.l.s4 1983009808
      %v5762 = vunpack.c.0.s8 %v5761
      %v5763 = vlaneseq
      %v5764 = vshrl.u32 %v5763, 7
      %v5765 = vsub.s32 %v5762, %v5764
      %v5766 = vrot.slane %v5758, %v5765
      %v5768 = vunpack.c.l.s4 1983009808
      %v5769 = vunpack.c.0.s8 %v5768
      %v5770 = vlaneseq
      %v5771 = vshrl.u32 %v5770, 7
      %v5772 = vsub.s32 %v5769, %v5771
      %v5773 = vrot.slane %v5759, %v5772
      %v5774 = vcombine.low %v5766, %v5773
      %v5775 = vcombine.low %v5136, %v5139
      %v5776 = vcombine.low %v5142, %v5145
      %v5778 = vunpack.c.l.s4 1983009808
      %v5779 = vunpack.c.0.s8 %v5778
      %v5780 = vlaneseq
      %v5781 = vshrl.u32 %v5780, 7
      %v5782 = vsub.s32 %v5779, %v5781
      %v5783 = vrot.slane %v5775, %v5782
      %v5785 = vunpack.c.l.s4 1983009808
      %v5786 = vunpack.c.0.s8 %v5785
      %v5787 = vlaneseq
      %v5788 = vshrl.u32 %v5787, 7
      %v5789 = vsub.s32 %v5786, %v5788
      %v5790 = vrot.slane %v5776, %v5789
      %v5791 = vcombine.low %v5783, %v5790
      %v5792 = vcombine.low %v5148, %v5151
      %v5793 = vcombine.low %v5155, %v5158
      %v5795 = vunpack.c.l.s4 1983009808
      %v5796 = vunpack.c.0.s8 %v5795
      %v5797 = vlaneseq
      %v5798 = vshrl.u32 %v5797, 7
      %v5799 = vsub.s32 %v5796, %v5798
      %v5800 = vrot.slane %v5792, %v5799
      %v5802 = vunpack.c.l.s4 1983009808
      %v5803 = vunpack.c.0.s8 %v5802
      %v5804 = vlaneseq
      %v5805 = vshrl.u32 %v5804, 7
      %v5806 = vsub.s32 %v5803, %v5805
      %v5807 = vrot.slane %v5793, %v5806
      %v5808 = vcombine.low %v5800, %v5807
      %v5809 = vcombine.low %v5161, %v5164
      %v5810 = vcombine.low %v5167, %v5170
      %v5812 = vunpack.c.l.s4 1983009808
      %v5813 = vunpack.c.0.s8 %v5812
      %v5814 = vlaneseq
      %v5815 = vshrl.u32 %v5814, 7
      %v5816 = vsub.s32 %v5813, %v5815
      %v5817 = vrot.slane %v5809, %v5816
      %v5819 = vunpack.c.l.s4 1983009808
      %v5820 = vunpack.c.0.s8 %v5819
      %v5821 = vlaneseq
      %v5822 = vshrl.u32 %v5821, 7
      %v5823 = vsub.s32 %v5820, %v5822
      %v5824 = vrot.slane %v5810, %v5823
      %v5825 = vcombine.low %v5817, %v5824
      %v5826 = vcombine.low %v5174, %v5177
      %v5827 = vcombine.low %v5180, %v5183
      %v5829 = vunpack.c.l.s4 1983009808
      %v5830 = vunpack.c.0.s8 %v5829
      %v5831 = vlaneseq
      %v5832 = vshrl.u32 %v5831, 7
      %v5833 = vsub.s32 %v5830, %v5832
      %v5834 = vrot.slane %v5826, %v5833
      %v5836 = vunpack.c.l.s4 1983009808
      %v5837 = vunpack.c.0.s8 %v5836
      %v5838 = vlaneseq
      %v5839 = vshrl.u32 %v5838, 7
      %v5840 = vsub.s32 %v5837, %v5839
      %v5841 = vrot.slane %v5827, %v5840
      %v5842 = vcombine.low %v5834, %v5841
      %v5843 = vcombine.low %v5186, %v5189
      %v5844 = vcombine.low %v5193, %v5196
      %v5846 = vunpack.c.l.s4 1983009808
      %v5847 = vunpack.c.0.s8 %v5846
      %v5848 = vlaneseq
      %v5849 = vshrl.u32 %v5848, 7
      %v5850 = vsub.s32 %v5847, %v5849
      %v5851 = vrot.slane %v5843, %v5850
      %v5853 = vunpack.c.l.s4 1983009808
      %v5854 = vunpack.c.0.s8 %v5853
      %v5855 = vlaneseq
      %v5856 = vshrl.u32 %v5855, 7
      %v5857 = vsub.s32 %v5854, %v5856
      %v5858 = vrot.slane %v5844, %v5857
      %v5859 = vcombine.low %v5851, %v5858
      %v5860 = vcombine.low %v5199, %v5202
      %v5861 = vcombine.low %v5205, %v5208
      %v5863 = vunpack.c.l.s4 1983009808
      %v5864 = vunpack.c.0.s8 %v5863
      %v5865 = vlaneseq
      %v5866 = vshrl.u32 %v5865, 7
      %v5867 = vsub.s32 %v5864, %v5866
      %v5868 = vrot.slane %v5860, %v5867
      %v5870 = vunpack.c.l.s4 1983009808
      %v5871 = vunpack.c.0.s8 %v5870
      %v5872 = vlaneseq
      %v5873 = vshrl.u32 %v5872, 7
      %v5874 = vsub.s32 %v5871, %v5873
      %v5875 = vrot.slane %v5861, %v5874
      %v5876 = vcombine.low %v5868, %v5875
      %5877 = vrot.lane.b32.xlu0 %v5587, 8
      %v5878 = vpop.permute.xlu0 %5877
      %5879 = vrot.lane.b32.xlu0 %v5604, 8
      %v5880 = vpop.permute.xlu0 %5879
      %5881 = vrot.lane.b32.xlu0 %v5621, 8
      %v5882 = vpop.permute.xlu0 %5881
      %5883 = vrot.lane.b32.xlu0 %v5638, 8
      %v5884 = vpop.permute.xlu0 %5883
      %5885 = vrot.lane.b32.xlu0 %v5655, 8
      %v5886 = vpop.permute.xlu0 %5885
      %5887 = vrot.lane.b32.xlu0 %v5672, 8
      %v5888 = vpop.permute.xlu0 %5887
      %5889 = vrot.lane.b32.xlu0 %v5689, 8
      %v5890 = vpop.permute.xlu0 %5889
      %5891 = vrot.lane.b32.xlu0 %v5706, 8
      %v5892 = vpop.permute.xlu0 %5891
      %5893 = vrot.lane.b32.xlu0 %v5723, 8
      %v5894 = vpop.permute.xlu0 %5893
      %5895 = vrot.lane.b32.xlu0 %v5740, 8
      %v5896 = vpop.permute.xlu0 %5895
      %5897 = vrot.lane.b32.xlu0 %v5757, 8
      %v5898 = vpop.permute.xlu0 %5897
      %5899 = vrot.lane.b32.xlu0 %v5774, 8
      %v5900 = vpop.permute.xlu0 %5899
      %5901 = vrot.lane.b32.xlu0 %v5791, 8
      %v5902 = vpop.permute.xlu0 %5901
      %5903 = vrot.lane.b32.xlu0 %v5808, 8
      %v5904 = vpop.permute.xlu0 %5903
      %5905 = vrot.lane.b32.xlu0 %v5825, 8
      %v5906 = vpop.permute.xlu0 %5905
      %5907 = vrot.lane.b32.xlu0 %v5842, 8
      %v5908 = vpop.permute.xlu0 %5907
      %5909 = vrot.lane.b32.xlu0 %v5859, 8
      %v5910 = vpop.permute.xlu0 %5909
      %5911 = vrot.lane.b32.xlu0 %v5876, 8
      %v5912 = vpop.permute.xlu0 %5911
      %v5931 = vcombine.low %v4580, %v4579
      %v5932 = vcombine.low %v4581, %v4589
      %v5934 = vunpack.c.l.s4 1983009808
      %v5935 = vunpack.c.0.s8 %v5934
      %v5936 = vlaneseq
      %v5937 = vshrl.u32 %v5936, 7
      %v5938 = vsub.s32 %v5935, %v5937
      %v5939 = vrot.slane %v5931, %v5938
      %v5941 = vunpack.c.l.s4 1983009808
      %v5942 = vunpack.c.0.s8 %v5941
      %v5943 = vlaneseq
      %v5944 = vshrl.u32 %v5943, 7
      %v5945 = vsub.s32 %v5942, %v5944
      %v5946 = vrot.slane %v5932, %v5945
      %v5947 = vcombine.low %v5939, %v5946
      %v5948 = vcombine.low %v4597, %v4596
      %v5949 = vcombine.low %v4606, %v4614
      %v5951 = vunpack.c.l.s4 1983009808
      %v5952 = vunpack.c.0.s8 %v5951
      %v5953 = vlaneseq
      %v5954 = vshrl.u32 %v5953, 7
      %v5955 = vsub.s32 %v5952, %v5954
      %v5956 = vrot.slane %v5948, %v5955
      %v5958 = vunpack.c.l.s4 1983009808
      %v5959 = vunpack.c.0.s8 %v5958
      %v5960 = vlaneseq
      %v5961 = vshrl.u32 %v5960, 7
      %v5962 = vsub.s32 %v5959, %v5961
      %v5963 = vrot.slane %v5949, %v5962
      %v5964 = vcombine.low %v5956, %v5963
      %v5965 = vcombine.low %v4613, %v4615
      %v5966 = vcombine.low %v4623, %v4631
      %v5968 = vunpack.c.l.s4 1983009808
      %v5969 = vunpack.c.0.s8 %v5968
      %v5970 = vlaneseq
      %v5971 = vshrl.u32 %v5970, 7
      %v5972 = vsub.s32 %v5969, %v5971
      %v5973 = vrot.slane %v5965, %v5972
      %v5975 = vunpack.c.l.s4 1983009808
      %v5976 = vunpack.c.0.s8 %v5975
      %v5977 = vlaneseq
      %v5978 = vshrl.u32 %v5977, 7
      %v5979 = vsub.s32 %v5976, %v5978
      %v5980 = vrot.slane %v5966, %v5979
      %v5981 = vcombine.low %v5973, %v5980
      %v5982 = vcombine.low %v4632, %v4640
      %v5983 = vcombine.low %v4648, %v4647
      %v5985 = vunpack.c.l.s4 1983009808
      %v5986 = vunpack.c.0.s8 %v5985
      %v5987 = vlaneseq
      %v5988 = vshrl.u32 %v5987, 7
      %v5989 = vsub.s32 %v5986, %v5988
      %v5990 = vrot.slane %v5982, %v5989
      %v5992 = vunpack.c.l.s4 1983009808
      %v5993 = vunpack.c.0.s8 %v5992
      %v5994 = vlaneseq
      %v5995 = vshrl.u32 %v5994, 7
      %v5996 = vsub.s32 %v5993, %v5995
      %v5997 = vrot.slane %v5983, %v5996
      %v5998 = vcombine.low %v5990, %v5997
      %v5999 = vcombine.low %v4649, %v4657
      %v6000 = vcombine.low %v4664, %v4666
      %v6002 = vunpack.c.l.s4 1983009808
      %v6003 = vunpack.c.0.s8 %v6002
      %v6004 = vlaneseq
      %v6005 = vshrl.u32 %v6004, 7
      %v6006 = vsub.s32 %v6003, %v6005
      %v6007 = vrot.slane %v5999, %v6006
      %v6009 = vunpack.c.l.s4 1983009808
      %v6010 = vunpack.c.0.s8 %v6009
      %v6011 = vlaneseq
      %v6012 = vshrl.u32 %v6011, 7
      %v6013 = vsub.s32 %v6010, %v6012
      %v6014 = vrot.slane %v6000, %v6013
      %v6015 = vcombine.low %v6007, %v6014
      %v6016 = vcombine.low %v4674, %v4682
      %v6017 = vcombine.low %v4681, %v4683
      %v6019 = vunpack.c.l.s4 1983009808
      %v6020 = vunpack.c.0.s8 %v6019
      %v6021 = vlaneseq
      %v6022 = vshrl.u32 %v6021, 7
      %v6023 = vsub.s32 %v6020, %v6022
      %v6024 = vrot.slane %v6016, %v6023
      %v6026 = vunpack.c.l.s4 1983009808
      %v6027 = vunpack.c.0.s8 %v6026
      %v6028 = vlaneseq
      %v6029 = vshrl.u32 %v6028, 7
      %v6030 = vsub.s32 %v6027, %v6029
      %v6031 = vrot.slane %v6017, %v6030
      %v6032 = vcombine.low %v6024, %v6031
      %v6033 = vcombine.low %v4699, %v4698
      %v6034 = vcombine.low %v4700, %v4708
      %v6036 = vunpack.c.l.s4 1983009808
      %v6037 = vunpack.c.0.s8 %v6036
      %v6038 = vlaneseq
      %v6039 = vshrl.u32 %v6038, 7
      %v6040 = vsub.s32 %v6037, %v6039
      %v6041 = vrot.slane %v6033, %v6040
      %v6043 = vunpack.c.l.s4 1983009808
      %v6044 = vunpack.c.0.s8 %v6043
      %v6045 = vlaneseq
      %v6046 = vshrl.u32 %v6045, 7
      %v6047 = vsub.s32 %v6044, %v6046
      %v6048 = vrot.slane %v6034, %v6047
      %v6049 = vcombine.low %v6041, %v6048
      %v6050 = vcombine.low %v4716, %v4715
      %v6051 = vcombine.low %v4725, %v4733
      %v6053 = vunpack.c.l.s4 1983009808
      %v6054 = vunpack.c.0.s8 %v6053
      %v6055 = vlaneseq
      %v6056 = vshrl.u32 %v6055, 7
      %v6057 = vsub.s32 %v6054, %v6056
      %v6058 = vrot.slane %v6050, %v6057
      %v6060 = vunpack.c.l.s4 1983009808
      %v6061 = vunpack.c.0.s8 %v6060
      %v6062 = vlaneseq
      %v6063 = vshrl.u32 %v6062, 7
      %v6064 = vsub.s32 %v6061, %v6063
      %v6065 = vrot.slane %v6051, %v6064
      %v6066 = vcombine.low %v6058, %v6065
      %v6067 = vcombine.low %v4732, %v4734
      %v6068 = vcombine.low %v4742, %v4750
      %v6070 = vunpack.c.l.s4 1983009808
      %v6071 = vunpack.c.0.s8 %v6070
      %v6072 = vlaneseq
      %v6073 = vshrl.u32 %v6072, 7
      %v6074 = vsub.s32 %v6071, %v6073
      %v6075 = vrot.slane %v6067, %v6074
      %v6077 = vunpack.c.l.s4 1983009808
      %v6078 = vunpack.c.0.s8 %v6077
      %v6079 = vlaneseq
      %v6080 = vshrl.u32 %v6079, 7
      %v6081 = vsub.s32 %v6078, %v6080
      %v6082 = vrot.slane %v6068, %v6081
      %v6083 = vcombine.low %v6075, %v6082
      %v6084 = vcombine.low %v4751, %v4759
      %v6085 = vcombine.low %v4767, %v4766
      %v6087 = vunpack.c.l.s4 1983009808
      %v6088 = vunpack.c.0.s8 %v6087
      %v6089 = vlaneseq
      %v6090 = vshrl.u32 %v6089, 7
      %v6091 = vsub.s32 %v6088, %v6090
      %v6092 = vrot.slane %v6084, %v6091
      %v6094 = vunpack.c.l.s4 1983009808
      %v6095 = vunpack.c.0.s8 %v6094
      %v6096 = vlaneseq
      %v6097 = vshrl.u32 %v6096, 7
      %v6098 = vsub.s32 %v6095, %v6097
      %v6099 = vrot.slane %v6085, %v6098
      %v6100 = vcombine.low %v6092, %v6099
      %v6101 = vcombine.low %v4768, %v4776
      %v6102 = vcombine.low %v4783, %v4785
      %v6104 = vunpack.c.l.s4 1983009808
      %v6105 = vunpack.c.0.s8 %v6104
      %v6106 = vlaneseq
      %v6107 = vshrl.u32 %v6106, 7
      %v6108 = vsub.s32 %v6105, %v6107
      %v6109 = vrot.slane %v6101, %v6108
      %v6111 = vunpack.c.l.s4 1983009808
      %v6112 = vunpack.c.0.s8 %v6111
      %v6113 = vlaneseq
      %v6114 = vshrl.u32 %v6113, 7
      %v6115 = vsub.s32 %v6112, %v6114
      %v6116 = vrot.slane %v6102, %v6115
      %v6117 = vcombine.low %v6109, %v6116
      %v6118 = vcombine.low %v4793, %v4801
      %v6119 = vcombine.low %v4800, %v4802
      %v6121 = vunpack.c.l.s4 1983009808
      %v6122 = vunpack.c.0.s8 %v6121
      %v6123 = vlaneseq
      %v6124 = vshrl.u32 %v6123, 7
      %v6125 = vsub.s32 %v6122, %v6124
      %v6126 = vrot.slane %v6118, %v6125
      %v6128 = vunpack.c.l.s4 1983009808
      %v6129 = vunpack.c.0.s8 %v6128
      %v6130 = vlaneseq
      %v6131 = vshrl.u32 %v6130, 7
      %v6132 = vsub.s32 %v6129, %v6131
      %v6133 = vrot.slane %v6119, %v6132
      %v6134 = vcombine.low %v6126, %v6133
      %v6135 = vcombine.low %v4818, %v4817
      %v6136 = vcombine.low %v4819, %v4827
      %v6138 = vunpack.c.l.s4 1983009808
      %v6139 = vunpack.c.0.s8 %v6138
      %v6140 = vlaneseq
      %v6141 = vshrl.u32 %v6140, 7
      %v6142 = vsub.s32 %v6139, %v6141
      %v6143 = vrot.slane %v6135, %v6142
      %v6145 = vunpack.c.l.s4 1983009808
      %v6146 = vunpack.c.0.s8 %v6145
      %v6147 = vlaneseq
      %v6148 = vshrl.u32 %v6147, 7
      %v6149 = vsub.s32 %v6146, %v6148
      %v6150 = vrot.slane %v6136, %v6149
      %v6151 = vcombine.low %v6143, %v6150
      %v6152 = vcombine.low %v4835, %v4834
      %v6153 = vcombine.low %v4844, %v4852
      %v6155 = vunpack.c.l.s4 1983009808
      %v6156 = vunpack.c.0.s8 %v6155
      %v6157 = vlaneseq
      %v6158 = vshrl.u32 %v6157, 7
      %v6159 = vsub.s32 %v6156, %v6158
      %v6160 = vrot.slane %v6152, %v6159
      %v6162 = vunpack.c.l.s4 1983009808
      %v6163 = vunpack.c.0.s8 %v6162
      %v6164 = vlaneseq
      %v6165 = vshrl.u32 %v6164, 7
      %v6166 = vsub.s32 %v6163, %v6165
      %v6167 = vrot.slane %v6153, %v6166
      %v6168 = vcombine.low %v6160, %v6167
      %v6169 = vcombine.low %v4851, %v4853
      %v6170 = vcombine.low %v4861, %v4869
      %v6172 = vunpack.c.l.s4 1983009808
      %v6173 = vunpack.c.0.s8 %v6172
      %v6174 = vlaneseq
      %v6175 = vshrl.u32 %v6174, 7
      %v6176 = vsub.s32 %v6173, %v6175
      %v6177 = vrot.slane %v6169, %v6176
      %v6179 = vunpack.c.l.s4 1983009808
      %v6180 = vunpack.c.0.s8 %v6179
      %v6181 = vlaneseq
      %v6182 = vshrl.u32 %v6181, 7
      %v6183 = vsub.s32 %v6180, %v6182
      %v6184 = vrot.slane %v6170, %v6183
      %v6185 = vcombine.low %v6177, %v6184
      %v6186 = vcombine.low %v4870, %v4878
      %v6187 = vcombine.low %v4886, %v4885
      %v6189 = vunpack.c.l.s4 1983009808
      %v6190 = vunpack.c.0.s8 %v6189
      %v6191 = vlaneseq
      %v6192 = vshrl.u32 %v6191, 7
      %v6193 = vsub.s32 %v6190, %v6192
      %v6194 = vrot.slane %v6186, %v6193
      %v6196 = vunpack.c.l.s4 1983009808
      %v6197 = vunpack.c.0.s8 %v6196
      %v6198 = vlaneseq
      %v6199 = vshrl.u32 %v6198, 7
      %v6200 = vsub.s32 %v6197, %v6199
      %v6201 = vrot.slane %v6187, %v6200
      %v6202 = vcombine.low %v6194, %v6201
      %v6203 = vcombine.low %v4887, %v4895
      %v6204 = vcombine.low %v4902, %v4904
      %v6206 = vunpack.c.l.s4 1983009808
      %v6207 = vunpack.c.0.s8 %v6206
      %v6208 = vlaneseq
      %v6209 = vshrl.u32 %v6208, 7
      %v6210 = vsub.s32 %v6207, %v6209
      %v6211 = vrot.slane %v6203, %v6210
      %v6213 = vunpack.c.l.s4 1983009808
      %v6214 = vunpack.c.0.s8 %v6213
      %v6215 = vlaneseq
      %v6216 = vshrl.u32 %v6215, 7
      %v6217 = vsub.s32 %v6214, %v6216
      %v6218 = vrot.slane %v6204, %v6217
      %v6219 = vcombine.low %v6211, %v6218
      %v6220 = vcombine.low %v4912, %v4920
      %v6221 = vcombine.low %v4919, %v4921
      %v6223 = vunpack.c.l.s4 1983009808
      %v6224 = vunpack.c.0.s8 %v6223
      %v6225 = vlaneseq
      %v6226 = vshrl.u32 %v6225, 7
      %v6227 = vsub.s32 %v6224, %v6226
      %v6228 = vrot.slane %v6220, %v6227
      %v6230 = vunpack.c.l.s4 1983009808
      %v6231 = vunpack.c.0.s8 %v6230
      %v6232 = vlaneseq
      %v6233 = vshrl.u32 %v6232, 7
      %v6234 = vsub.s32 %v6231, %v6233
      %v6235 = vrot.slane %v6221, %v6234
      %v6236 = vcombine.low %v6228, %v6235
      %6237 = vrot.lane.b32.xlu0 %v5947, 16
      %v6238 = vpop.permute.xlu0 %6237
      %6239 = vrot.lane.b32.xlu0 %v5964, 16
      %v6240 = vpop.permute.xlu0 %6239
      %6241 = vrot.lane.b32.xlu0 %v5981, 16
      %v6242 = vpop.permute.xlu0 %6241
      %6243 = vrot.lane.b32.xlu0 %v5998, 16
      %v6244 = vpop.permute.xlu0 %6243
      %6245 = vrot.lane.b32.xlu0 %v6015, 16
      %v6246 = vpop.permute.xlu0 %6245
      %6247 = vrot.lane.b32.xlu0 %v6032, 16
      %v6248 = vpop.permute.xlu0 %6247
      %6249 = vrot.lane.b32.xlu0 %v6049, 16
      %v6250 = vpop.permute.xlu0 %6249
      %6251 = vrot.lane.b32.xlu0 %v6066, 16
      %v6252 = vpop.permute.xlu0 %6251
      %6253 = vrot.lane.b32.xlu0 %v6083, 16
      %v6254 = vpop.permute.xlu0 %6253
      %6255 = vrot.lane.b32.xlu0 %v6100, 16
      %v6256 = vpop.permute.xlu0 %6255
      %6257 = vrot.lane.b32.xlu0 %v6117, 16
      %v6258 = vpop.permute.xlu0 %6257
      %6259 = vrot.lane.b32.xlu0 %v6134, 16
      %v6260 = vpop.permute.xlu0 %6259
      %6261 = vrot.lane.b32.xlu0 %v6151, 16
      %v6262 = vpop.permute.xlu0 %6261
      %6263 = vrot.lane.b32.xlu0 %v6168, 16
      %v6264 = vpop.permute.xlu0 %6263
      %6265 = vrot.lane.b32.xlu0 %v6185, 16
      %v6266 = vpop.permute.xlu0 %6265
      %6267 = vrot.lane.b32.xlu0 %v6202, 16
      %v6268 = vpop.permute.xlu0 %6267
      %6269 = vrot.lane.b32.xlu0 %v6219, 16
      %v6270 = vpop.permute.xlu0 %6269
      %6271 = vrot.lane.b32.xlu0 %v6236, 16
      %v6272 = vpop.permute.xlu0 %6271
      %v6291 = vcombine.low %v5279, %v5289
      %v6292 = vcombine.low %v5296, %v5306
      %v6293 = vcombine.low %v5313, %v5323
      %v6294 = vcombine.low %v5330, %v5340
      %v6295 = vcombine.low %v5347, %v5357
      %v6296 = vcombine.low %v5364, %v5374
      %v6297 = vcombine.low %v5381, %v5391
      %v6298 = vcombine.low %v5398, %v5408
      %v6299 = vcombine.low %v5415, %v5425
      %v6300 = vcombine.low %v5432, %v5442
      %v6301 = vcombine.low %v5449, %v5459
      %v6302 = vcombine.low %v5466, %v5476
      %v6303 = vcombine.low %v5483, %v5493
      %v6304 = vcombine.low %v5500, %v5510
      %v6305 = vcombine.low %v5517, %v5527
      %v6306 = vcombine.low %v5534, %v5544
      %v6307 = vcombine.low %v4929, %v4937
      %v6309 = vunpack.c.l.s4 1983009808
      %v6310 = vunpack.c.0.s8 %v6309
      %v6311 = vlaneseq
      %v6312 = vshrl.u32 %v6311, 7
      %v6313 = vsub.s32 %v6310, %v6312
      %v6314 = vrot.slane %v6307, %v6313
      %v6315 = vcombine.low %v5551, %v6314
      %v6316 = vcombine.low %v4936, %v4938
      %v6317 = vcombine.low %v4946, %v4954
      %v6319 = vunpack.c.l.s4 1983009808
      %v6320 = vunpack.c.0.s8 %v6319
      %v6321 = vlaneseq
      %v6322 = vshrl.u32 %v6321, 7
      %v6323 = vsub.s32 %v6320, %v6322
      %v6324 = vrot.slane %v6316, %v6323
      %v6326 = vunpack.c.l.s4 1983009808
      %v6327 = vunpack.c.0.s8 %v6326
      %v6328 = vlaneseq
      %v6329 = vshrl.u32 %v6328, 7
      %v6330 = vsub.s32 %v6327, %v6329
      %v6331 = vrot.slane %v6317, %v6330
      %v6332 = vcombine.low %v6324, %v6331
      %6333 = vrot.lane.b32.xlu0 %v6291, 24
      %v6334 = vpop.permute.xlu0 %6333
      %6335 = vrot.lane.b32.xlu0 %v6292, 24
      %v6336 = vpop.permute.xlu0 %6335
      %6337 = vrot.lane.b32.xlu0 %v6293, 24
      %v6338 = vpop.permute.xlu0 %6337
      %6339 = vrot.lane.b32.xlu0 %v6294, 24
      %v6340 = vpop.permute.xlu0 %6339
      %6341 = vrot.lane.b32.xlu0 %v6295, 24
      %v6342 = vpop.permute.xlu0 %6341
      %6343 = vrot.lane.b32.xlu0 %v6296, 24
      %v6344 = vpop.permute.xlu0 %6343
      %6345 = vrot.lane.b32.xlu0 %v6297, 24
      %v6346 = vpop.permute.xlu0 %6345
      %6347 = vrot.lane.b32.xlu0 %v6298, 24
      %v6348 = vpop.permute.xlu0 %6347
      %6349 = vrot.lane.b32.xlu0 %v6299, 24
      %v6350 = vpop.permute.xlu0 %6349
      %6351 = vrot.lane.b32.xlu0 %v6300, 24
      %v6352 = vpop.permute.xlu0 %6351
      %6353 = vrot.lane.b32.xlu0 %v6301, 24
      %v6354 = vpop.permute.xlu0 %6353
      %6355 = vrot.lane.b32.xlu0 %v6302, 24
      %v6356 = vpop.permute.xlu0 %6355
      %6357 = vrot.lane.b32.xlu0 %v6303, 24
      %v6358 = vpop.permute.xlu0 %6357
      %6359 = vrot.lane.b32.xlu0 %v6304, 24
      %v6360 = vpop.permute.xlu0 %6359
      %6361 = vrot.lane.b32.xlu0 %v6305, 24
      %v6362 = vpop.permute.xlu0 %6361
      %6363 = vrot.lane.b32.xlu0 %v6306, 24
      %v6364 = vpop.permute.xlu0 %6363
      %6365 = vrot.lane.b32.xlu0 %v6315, 24
      %v6366 = vpop.permute.xlu0 %6365
      %6367 = vrot.lane.b32.xlu0 %v6332, 24
      %v6368 = vpop.permute.xlu0 %6367
      %v6387 = vcombine.low %v5603, %v5613
      %v6388 = vcombine.low %v5620, %v5630
      %v6389 = vcombine.low %v5637, %v5647
      %v6390 = vcombine.low %v5654, %v5664
      %v6391 = vcombine.low %v5671, %v5681
      %v6392 = vcombine.low %v5688, %v5698
      %v6393 = vcombine.low %v5705, %v5715
      %v6394 = vcombine.low %v5722, %v5732
      %v6395 = vcombine.low %v5739, %v5749
      %v6396 = vcombine.low %v5756, %v5766
      %v6397 = vcombine.low %v5773, %v5783
      %v6398 = vcombine.low %v5790, %v5800
      %v6399 = vcombine.low %v5807, %v5817
      %v6400 = vcombine.low %v5824, %v5834
      %v6401 = vcombine.low %v5841, %v5851
      %v6402 = vcombine.low %v5858, %v5868
      %v6403 = vcombine.low %v5212, %v5215
      %v6405 = vunpack.c.l.s4 1983009808
      %v6406 = vunpack.c.0.s8 %v6405
      %v6407 = vlaneseq
      %v6408 = vshrl.u32 %v6407, 7
      %v6409 = vsub.s32 %v6406, %v6408
      %v6410 = vrot.slane %v6403, %v6409
      %v6411 = vcombine.low %v5875, %v6410
      %v6412 = vcombine.low %v5218, %v5221
      %v6413 = vcombine.low %v5224, %v5227
      %v6415 = vunpack.c.l.s4 1983009808
      %v6416 = vunpack.c.0.s8 %v6415
      %v6417 = vlaneseq
      %v6418 = vshrl.u32 %v6417, 7
      %v6419 = vsub.s32 %v6416, %v6418
      %v6420 = vrot.slane %v6412, %v6419
      %v6422 = vunpack.c.l.s4 1983009808
      %v6423 = vunpack.c.0.s8 %v6422
      %v6424 = vlaneseq
      %v6425 = vshrl.u32 %v6424, 7
      %v6426 = vsub.s32 %v6423, %v6425
      %v6427 = vrot.slane %v6413, %v6426
      %v6428 = vcombine.low %v6420, %v6427
      %6429 = vrot.lane.b32.xlu0 %v6387, 32
      %v6430 = vpop.permute.xlu0 %6429
      %6431 = vrot.lane.b32.xlu0 %v6388, 32
      %v6432 = vpop.permute.xlu0 %6431
      %6433 = vrot.lane.b32.xlu0 %v6389, 32
      %v6434 = vpop.permute.xlu0 %6433
      %6435 = vrot.lane.b32.xlu0 %v6390, 32
      %v6436 = vpop.permute.xlu0 %6435
      %6437 = vrot.lane.b32.xlu0 %v6391, 32
      %v6438 = vpop.permute.xlu0 %6437
      %6439 = vrot.lane.b32.xlu0 %v6392, 32
      %v6440 = vpop.permute.xlu0 %6439
      %6441 = vrot.lane.b32.xlu0 %v6393, 32
      %v6442 = vpop.permute.xlu0 %6441
      %6443 = vrot.lane.b32.xlu0 %v6394, 32
      %v6444 = vpop.permute.xlu0 %6443
      %6445 = vrot.lane.b32.xlu0 %v6395, 32
      %v6446 = vpop.permute.xlu0 %6445
      %6447 = vrot.lane.b32.xlu0 %v6396, 32
      %v6448 = vpop.permute.xlu0 %6447
      %6449 = vrot.lane.b32.xlu0 %v6397, 32
      %v6450 = vpop.permute.xlu0 %6449
      %6451 = vrot.lane.b32.xlu0 %v6398, 32
      %v6452 = vpop.permute.xlu0 %6451
      %6453 = vrot.lane.b32.xlu0 %v6399, 32
      %v6454 = vpop.permute.xlu0 %6453
      %6455 = vrot.lane.b32.xlu0 %v6400, 32
      %v6456 = vpop.permute.xlu0 %6455
      %6457 = vrot.lane.b32.xlu0 %v6401, 32
      %v6458 = vpop.permute.xlu0 %6457
      %6459 = vrot.lane.b32.xlu0 %v6402, 32
      %v6460 = vpop.permute.xlu0 %6459
      %6461 = vrot.lane.b32.xlu0 %v6411, 32
      %v6462 = vpop.permute.xlu0 %6461
      %6463 = vrot.lane.b32.xlu0 %v6428, 32
      %v6464 = vpop.permute.xlu0 %6463
      %v6483 = vcombine.low %v5963, %v5973
      %v6484 = vcombine.low %v5980, %v5990
      %v6485 = vcombine.low %v5997, %v6007
      %v6486 = vcombine.low %v6014, %v6024
      %v6487 = vcombine.low %v6031, %v6041
      %v6488 = vcombine.low %v6048, %v6058
      %v6489 = vcombine.low %v6065, %v6075
      %v6490 = vcombine.low %v6082, %v6092
      %v6491 = vcombine.low %v6099, %v6109
      %v6492 = vcombine.low %v6116, %v6126
      %v6493 = vcombine.low %v6133, %v6143
      %v6494 = vcombine.low %v6150, %v6160
      %v6495 = vcombine.low %v6167, %v6177
      %v6496 = vcombine.low %v6184, %v6194
      %v6497 = vcombine.low %v6201, %v6211
      %v6498 = vcombine.low %v6218, %v6228
      %v6499 = vcombine.low %v4937, %v4936
      %v6501 = vunpack.c.l.s4 1983009808
      %v6502 = vunpack.c.0.s8 %v6501
      %v6503 = vlaneseq
      %v6504 = vshrl.u32 %v6503, 7
      %v6505 = vsub.s32 %v6502, %v6504
      %v6506 = vrot.slane %v6499, %v6505
      %v6507 = vcombine.low %v6235, %v6506
      %v6508 = vcombine.low %v4938, %v4946
      %v6509 = vcombine.low %v4954, %v4953
      %v6511 = vunpack.c.l.s4 1983009808
      %v6512 = vunpack.c.0.s8 %v6511
      %v6513 = vlaneseq
      %v6514 = vshrl.u32 %v6513, 7
      %v6515 = vsub.s32 %v6512, %v6514
      %v6516 = vrot.slane %v6508, %v6515
      %v6518 = vunpack.c.l.s4 1983009808
      %v6519 = vunpack.c.0.s8 %v6518
      %v6520 = vlaneseq
      %v6521 = vshrl.u32 %v6520, 7
      %v6522 = vsub.s32 %v6519, %v6521
      %v6523 = vrot.slane %v6509, %v6522
      %v6524 = vcombine.low %v6516, %v6523
      %6525 = vrot.lane.b32.xlu0 %v6483, 40
      %v6526 = vpop.permute.xlu0 %6525
      %6527 = vrot.lane.b32.xlu0 %v6484, 40
      %v6528 = vpop.permute.xlu0 %6527
      %6529 = vrot.lane.b32.xlu0 %v6485, 40
      %v6530 = vpop.permute.xlu0 %6529
      %6531 = vrot.lane.b32.xlu0 %v6486, 40
      %v6532 = vpop.permute.xlu0 %6531
      %6533 = vrot.lane.b32.xlu0 %v6487, 40
      %v6534 = vpop.permute.xlu0 %6533
      %6535 = vrot.lane.b32.xlu0 %v6488, 40
      %v6536 = vpop.permute.xlu0 %6535
      %6537 = vrot.lane.b32.xlu0 %v6489, 40
      %v6538 = vpop.permute.xlu0 %6537
      %6539 = vrot.lane.b32.xlu0 %v6490, 40
      %v6540 = vpop.permute.xlu0 %6539
      %6541 = vrot.lane.b32.xlu0 %v6491, 40
      %v6542 = vpop.permute.xlu0 %6541
      %6543 = vrot.lane.b32.xlu0 %v6492, 40
      %v6544 = vpop.permute.xlu0 %6543
      %6545 = vrot.lane.b32.xlu0 %v6493, 40
      %v6546 = vpop.permute.xlu0 %6545
      %6547 = vrot.lane.b32.xlu0 %v6494, 40
      %v6548 = vpop.permute.xlu0 %6547
      %6549 = vrot.lane.b32.xlu0 %v6495, 40
      %v6550 = vpop.permute.xlu0 %6549
      %6551 = vrot.lane.b32.xlu0 %v6496, 40
      %v6552 = vpop.permute.xlu0 %6551
      %6553 = vrot.lane.b32.xlu0 %v6497, 40
      %v6554 = vpop.permute.xlu0 %6553
      %6555 = vrot.lane.b32.xlu0 %v6498, 40
      %v6556 = vpop.permute.xlu0 %6555
      %6557 = vrot.lane.b32.xlu0 %v6507, 40
      %v6558 = vpop.permute.xlu0 %6557
      %6559 = vrot.lane.b32.xlu0 %v6524, 40
      %v6560 = vpop.permute.xlu0 %6559
      %v6579 = vcombine.low %v6314, %v6324
      %v6580 = vcombine.low %v4955, %v4963
      %v6582 = vunpack.c.l.s4 1983009808
      %v6583 = vunpack.c.0.s8 %v6582
      %v6584 = vlaneseq
      %v6585 = vshrl.u32 %v6584, 7
      %v6586 = vsub.s32 %v6583, %v6585
      %v6587 = vrot.slane %v6580, %v6586
      %v6588 = vcombine.low %v6331, %v6587
      %v6589 = vcombine.low %v4971, %v4970
      %v6590 = vcombine.low %v4972, %v4979
      %v6592 = vunpack.c.l.s4 1983009808
      %v6593 = vunpack.c.0.s8 %v6592
      %v6594 = vlaneseq
      %v6595 = vshrl.u32 %v6594, 7
      %v6596 = vsub.s32 %v6593, %v6595
      %v6597 = vrot.slane %v6589, %v6596
      %v6599 = vunpack.c.l.s4 1983009808
      %v6600 = vunpack.c.0.s8 %v6599
      %v6601 = vlaneseq
      %v6602 = vshrl.u32 %v6601, 7
      %v6603 = vsub.s32 %v6600, %v6602
      %v6604 = vrot.slane %v6590, %v6603
      %v6605 = vcombine.low %v6597, %v6604
      %6606 = vrot.lane.b32.xlu0 %v5314, 48
      %v6607 = vpop.permute.xlu0 %6606
      %6608 = vrot.lane.b32.xlu0 %v5331, 48
      %v6609 = vpop.permute.xlu0 %6608
      %6610 = vrot.lane.b32.xlu0 %v5348, 48
      %v6611 = vpop.permute.xlu0 %6610
      %6612 = vrot.lane.b32.xlu0 %v5365, 48
      %v6613 = vpop.permute.xlu0 %6612
      %6614 = vrot.lane.b32.xlu0 %v5382, 48
      %v6615 = vpop.permute.xlu0 %6614
      %6616 = vrot.lane.b32.xlu0 %v5399, 48
      %v6617 = vpop.permute.xlu0 %6616
      %6618 = vrot.lane.b32.xlu0 %v5416, 48
      %v6619 = vpop.permute.xlu0 %6618
      %6620 = vrot.lane.b32.xlu0 %v5433, 48
      %v6621 = vpop.permute.xlu0 %6620
      %6622 = vrot.lane.b32.xlu0 %v5450, 48
      %v6623 = vpop.permute.xlu0 %6622
      %6624 = vrot.lane.b32.xlu0 %v5467, 48
      %v6625 = vpop.permute.xlu0 %6624
      %6626 = vrot.lane.b32.xlu0 %v5484, 48
      %v6627 = vpop.permute.xlu0 %6626
      %6628 = vrot.lane.b32.xlu0 %v5501, 48
      %v6629 = vpop.permute.xlu0 %6628
      %6630 = vrot.lane.b32.xlu0 %v5518, 48
      %v6631 = vpop.permute.xlu0 %6630
      %6632 = vrot.lane.b32.xlu0 %v5535, 48
      %v6633 = vpop.permute.xlu0 %6632
      %6634 = vrot.lane.b32.xlu0 %v5552, 48
      %v6635 = vpop.permute.xlu0 %6634
      %6636 = vrot.lane.b32.xlu0 %v6579, 48
      %v6637 = vpop.permute.xlu0 %6636
      %6638 = vrot.lane.b32.xlu0 %v6588, 48
      %v6639 = vpop.permute.xlu0 %6638
      %6640 = vrot.lane.b32.xlu0 %v6605, 48
      %v6641 = vpop.permute.xlu0 %6640
      %v6660 = vcombine.low %v6410, %v6420
      %v6661 = vcombine.low %v5231, %v5234
      %v6663 = vunpack.c.l.s4 1983009808
      %v6664 = vunpack.c.0.s8 %v6663
      %v6665 = vlaneseq
      %v6666 = vshrl.u32 %v6665, 7
      %v6667 = vsub.s32 %v6664, %v6666
      %v6668 = vrot.slane %v6661, %v6667
      %v6669 = vcombine.low %v6427, %v6668
      %v6670 = vcombine.low %v5237, %v5240
      %v6671 = vcombine.low %v5243, %v5246
      %v6673 = vunpack.c.l.s4 1983009808
      %v6674 = vunpack.c.0.s8 %v6673
      %v6675 = vlaneseq
      %v6676 = vshrl.u32 %v6675, 7
      %v6677 = vsub.s32 %v6674, %v6676
      %v6678 = vrot.slane %v6670, %v6677
      %v6680 = vunpack.c.l.s4 1983009808
      %v6681 = vunpack.c.0.s8 %v6680
      %v6682 = vlaneseq
      %v6683 = vshrl.u32 %v6682, 7
      %v6684 = vsub.s32 %v6681, %v6683
      %v6685 = vrot.slane %v6671, %v6684
      %v6686 = vcombine.low %v6678, %v6685
      %6687 = vrot.lane.b32.xlu0 %v5638, 56
      %v6688 = vpop.permute.xlu0 %6687
      %6689 = vrot.lane.b32.xlu0 %v5655, 56
      %v6690 = vpop.permute.xlu0 %6689
      %6691 = vrot.lane.b32.xlu0 %v5672, 56
      %v6692 = vpop.permute.xlu0 %6691
      %6693 = vrot.lane.b32.xlu0 %v5689, 56
      %v6694 = vpop.permute.xlu0 %6693
      %6695 = vrot.lane.b32.xlu0 %v5706, 56
      %v6696 = vpop.permute.xlu0 %6695
      %6697 = vrot.lane.b32.xlu0 %v5723, 56
      %v6698 = vpop.permute.xlu0 %6697
      %6699 = vrot.lane.b32.xlu0 %v5740, 56
      %v6700 = vpop.permute.xlu0 %6699
      %6701 = vrot.lane.b32.xlu0 %v5757, 56
      %v6702 = vpop.permute.xlu0 %6701
      %6703 = vrot.lane.b32.xlu0 %v5774, 56
      %v6704 = vpop.permute.xlu0 %6703
      %6705 = vrot.lane.b32.xlu0 %v5791, 56
      %v6706 = vpop.permute.xlu0 %6705
      %6707 = vrot.lane.b32.xlu0 %v5808, 56
      %v6708 = vpop.permute.xlu0 %6707
      %6709 = vrot.lane.b32.xlu0 %v5825, 56
      %v6710 = vpop.permute.xlu0 %6709
      %6711 = vrot.lane.b32.xlu0 %v5842, 56
      %v6712 = vpop.permute.xlu0 %6711
      %6713 = vrot.lane.b32.xlu0 %v5859, 56
      %v6714 = vpop.permute.xlu0 %6713
      %6715 = vrot.lane.b32.xlu0 %v5876, 56
      %v6716 = vpop.permute.xlu0 %6715
      %6717 = vrot.lane.b32.xlu0 %v6660, 56
      %v6718 = vpop.permute.xlu0 %6717
      %6719 = vrot.lane.b32.xlu0 %v6669, 56
      %v6720 = vpop.permute.xlu0 %6719
      %6721 = vrot.lane.b32.xlu0 %v6686, 56
      %v6722 = vpop.permute.xlu0 %6721
      %v6741 = vcombine.low %v6506, %v6516
      %v6742 = vcombine.low %v4963, %v4971
      %v6744 = vunpack.c.l.s4 1983009808
      %v6745 = vunpack.c.0.s8 %v6744
      %v6746 = vlaneseq
      %v6747 = vshrl.u32 %v6746, 7
      %v6748 = vsub.s32 %v6745, %v6747
      %v6749 = vrot.slane %v6742, %v6748
      %v6750 = vcombine.low %v6523, %v6749
      %v6751 = vcombine.low %v4970, %v4972
      %v6752 = vcombine.low %v4979, %v4980
      %v6754 = vunpack.c.l.s4 1983009808
      %v6755 = vunpack.c.0.s8 %v6754
      %v6756 = vlaneseq
      %v6757 = vshrl.u32 %v6756, 7
      %v6758 = vsub.s32 %v6755, %v6757
      %v6759 = vrot.slane %v6751, %v6758
      %v6761 = vunpack.c.l.s4 1983009808
      %v6762 = vunpack.c.0.s8 %v6761
      %v6763 = vlaneseq
      %v6764 = vshrl.u32 %v6763, 7
      %v6765 = vsub.s32 %v6762, %v6764
      %v6766 = vrot.slane %v6752, %v6765
      %v6767 = vcombine.low %v6759, %v6766
      %6768 = vrot.lane.b32.xlu0 %v5998, 64
      %v6769 = vpop.permute.xlu0 %6768
      %6770 = vrot.lane.b32.xlu0 %v6015, 64
      %v6771 = vpop.permute.xlu0 %6770
      %6772 = vrot.lane.b32.xlu0 %v6032, 64
      %v6773 = vpop.permute.xlu0 %6772
      %6774 = vrot.lane.b32.xlu0 %v6049, 64
      %v6775 = vpop.permute.xlu0 %6774
      %6776 = vrot.lane.b32.xlu0 %v6066, 64
      %v6777 = vpop.permute.xlu0 %6776
      %6778 = vrot.lane.b32.xlu0 %v6083, 64
      %v6779 = vpop.permute.xlu0 %6778
      %6780 = vrot.lane.b32.xlu0 %v6100, 64
      %v6781 = vpop.permute.xlu0 %6780
      %6782 = vrot.lane.b32.xlu0 %v6117, 64
      %v6783 = vpop.permute.xlu0 %6782
      %6784 = vrot.lane.b32.xlu0 %v6134, 64
      %v6785 = vpop.permute.xlu0 %6784
      %6786 = vrot.lane.b32.xlu0 %v6151, 64
      %v6787 = vpop.permute.xlu0 %6786
      %6788 = vrot.lane.b32.xlu0 %v6168, 64
      %v6789 = vpop.permute.xlu0 %6788
      %6790 = vrot.lane.b32.xlu0 %v6185, 64
      %v6791 = vpop.permute.xlu0 %6790
      %6792 = vrot.lane.b32.xlu0 %v6202, 64
      %v6793 = vpop.permute.xlu0 %6792
      %6794 = vrot.lane.b32.xlu0 %v6219, 64
      %v6795 = vpop.permute.xlu0 %6794
      %6796 = vrot.lane.b32.xlu0 %v6236, 64
      %v6797 = vpop.permute.xlu0 %6796
      %6798 = vrot.lane.b32.xlu0 %v6741, 64
      %v6799 = vpop.permute.xlu0 %6798
      %6800 = vrot.lane.b32.xlu0 %v6750, 64
      %v6801 = vpop.permute.xlu0 %6800
      %6802 = vrot.lane.b32.xlu0 %v6767, 64
      %v6803 = vpop.permute.xlu0 %6802
      %v6822 = vsel %vm4051, %v5263, %v5878
      %v6823 = vsel %vm4051, %v5280, %v5880
      %v6824 = vsel %vm4051, %v5297, %v5882
      %v6825 = vsel %vm4051, %v5314, %v5884
      %v6826 = vsel %vm4051, %v5331, %v5886
      %v6827 = vsel %vm4051, %v5348, %v5888
      %v6828 = vsel %vm4051, %v5365, %v5890
      %v6829 = vsel %vm4051, %v5382, %v5892
      %v6830 = vsel %vm4051, %v5399, %v5894
      %v6831 = vsel %vm4051, %v5416, %v5896
      %v6832 = vsel %vm4051, %v5433, %v5898
      %v6833 = vsel %vm4051, %v5450, %v5900
      %v6834 = vsel %vm4051, %v5467, %v5902
      %v6835 = vsel %vm4051, %v5484, %v5904
      %v6836 = vsel %vm4051, %v5501, %v5906
      %v6837 = vsel %vm4051, %v5518, %v5908
      %v6838 = vsel %vm4051, %v5535, %v5910
      %v6839 = vsel %vm4051, %v5552, %v5912
      %v6840 = vsel %vm4103, %v6822, %v6238
      %v6841 = vsel %vm4103, %v6823, %v6240
      %v6842 = vsel %vm4103, %v6824, %v6242
      %v6843 = vsel %vm4103, %v6825, %v6244
      %v6844 = vsel %vm4103, %v6826, %v6246
      %v6845 = vsel %vm4103, %v6827, %v6248
      %v6846 = vsel %vm4103, %v6828, %v6250
      %v6847 = vsel %vm4103, %v6829, %v6252
      %v6848 = vsel %vm4103, %v6830, %v6254
      %v6849 = vsel %vm4103, %v6831, %v6256
      %v6850 = vsel %vm4103, %v6832, %v6258
      %v6851 = vsel %vm4103, %v6833, %v6260
      %v6852 = vsel %vm4103, %v6834, %v6262
      %v6853 = vsel %vm4103, %v6835, %v6264
      %v6854 = vsel %vm4103, %v6836, %v6266
      %v6855 = vsel %vm4103, %v6837, %v6268
      %v6856 = vsel %vm4103, %v6838, %v6270
      %v6857 = vsel %vm4103, %v6839, %v6272
      %v6858 = vsel %vm4155, %v6840, %v6334
      %v6859 = vsel %vm4155, %v6841, %v6336
      %v6860 = vsel %vm4155, %v6842, %v6338
      %v6861 = vsel %vm4155, %v6843, %v6340
      %v6862 = vsel %vm4155, %v6844, %v6342
      %v6863 = vsel %vm4155, %v6845, %v6344
      %v6864 = vsel %vm4155, %v6846, %v6346
      %v6865 = vsel %vm4155, %v6847, %v6348
      %v6866 = vsel %vm4155, %v6848, %v6350
      %v6867 = vsel %vm4155, %v6849, %v6352
      %v6868 = vsel %vm4155, %v6850, %v6354
      %v6869 = vsel %vm4155, %v6851, %v6356
      %v6870 = vsel %vm4155, %v6852, %v6358
      %v6871 = vsel %vm4155, %v6853, %v6360
      %v6872 = vsel %vm4155, %v6854, %v6362
      %v6873 = vsel %vm4155, %v6855, %v6364
      %v6874 = vsel %vm4155, %v6856, %v6366
      %v6875 = vsel %vm4155, %v6857, %v6368
      %v6876 = vsel %vm4207, %v6858, %v6430
      %v6877 = vsel %vm4207, %v6859, %v6432
      %v6878 = vsel %vm4207, %v6860, %v6434
      %v6879 = vsel %vm4207, %v6861, %v6436
      %v6880 = vsel %vm4207, %v6862, %v6438
      %v6881 = vsel %vm4207, %v6863, %v6440
      %v6882 = vsel %vm4207, %v6864, %v6442
      %v6883 = vsel %vm4207, %v6865, %v6444
      %v6884 = vsel %vm4207, %v6866, %v6446
      %v6885 = vsel %vm4207, %v6867, %v6448
      %v6886 = vsel %vm4207, %v6868, %v6450
      %v6887 = vsel %vm4207, %v6869, %v6452
      %v6888 = vsel %vm4207, %v6870, %v6454
      %v6889 = vsel %vm4207, %v6871, %v6456
      %v6890 = vsel %vm4207, %v6872, %v6458
      %v6891 = vsel %vm4207, %v6873, %v6460
      %v6892 = vsel %vm4207, %v6874, %v6462
      %v6893 = vsel %vm4207, %v6875, %v6464
      %vm6894 = vcmask 326656
      %v6895 = vsel %vm6894, %v6876, %v6526
      %v6896 = vsel %vm6894, %v6877, %v6528
      %v6897 = vsel %vm6894, %v6878, %v6530
      %v6898 = vsel %vm6894, %v6879, %v6532
      %v6899 = vsel %vm6894, %v6880, %v6534
      %v6900 = vsel %vm6894, %v6881, %v6536
      %v6901 = vsel %vm6894, %v6882, %v6538
      %v6902 = vsel %vm6894, %v6883, %v6540
      %v6903 = vsel %vm6894, %v6884, %v6542
      %v6904 = vsel %vm6894, %v6885, %v6544
      %v6905 = vsel %vm6894, %v6886, %v6546
      %v6906 = vsel %vm6894, %v6887, %v6548
      %v6907 = vsel %vm6894, %v6888, %v6550
      %v6908 = vsel %vm6894, %v6889, %v6552
      %v6909 = vsel %vm6894, %v6890, %v6554
      %v6910 = vsel %vm6894, %v6891, %v6556
      %v6911 = vsel %vm6894, %v6892, %v6558
      %v6912 = vsel %vm6894, %v6893, %v6560
      %vm6913 = vcmask 392192
      %v6914 = vsel %vm6913, %v6895, %v6607
      %v6915 = vsel %vm6913, %v6896, %v6609
      %v6916 = vsel %vm6913, %v6897, %v6611
      %v6917 = vsel %vm6913, %v6898, %v6613
      %v6918 = vsel %vm6913, %v6899, %v6615
      %v6919 = vsel %vm6913, %v6900, %v6617
      %v6920 = vsel %vm6913, %v6901, %v6619
      %v6921 = vsel %vm6913, %v6902, %v6621
      %v6922 = vsel %vm6913, %v6903, %v6623
      %v6923 = vsel %vm6913, %v6904, %v6625
      %v6924 = vsel %vm6913, %v6905, %v6627
      %v6925 = vsel %vm6913, %v6906, %v6629
      %v6926 = vsel %vm6913, %v6907, %v6631
      %v6927 = vsel %vm6913, %v6908, %v6633
      %v6928 = vsel %vm6913, %v6909, %v6635
      %v6929 = vsel %vm6913, %v6910, %v6637
      %v6930 = vsel %vm6913, %v6911, %v6639
      %v6931 = vsel %vm6913, %v6912, %v6641
      %vm6932 = vcmask 457728
      %v6933 = vsel %vm6932, %v6914, %v6688
      %v6934 = vsel %vm6932, %v6915, %v6690
      %v6935 = vsel %vm6932, %v6916, %v6692
      %v6936 = vsel %vm6932, %v6917, %v6694
      %v6937 = vsel %vm6932, %v6918, %v6696
      %v6938 = vsel %vm6932, %v6919, %v6698
      %v6939 = vsel %vm6932, %v6920, %v6700
      %v6940 = vsel %vm6932, %v6921, %v6702
      %v6941 = vsel %vm6932, %v6922, %v6704
      %v6942 = vsel %vm6932, %v6923, %v6706
      %v6943 = vsel %vm6932, %v6924, %v6708
      %v6944 = vsel %vm6932, %v6925, %v6710
      %v6945 = vsel %vm6932, %v6926, %v6712
      %v6946 = vsel %vm6932, %v6927, %v6714
      %v6947 = vsel %vm6932, %v6928, %v6716
      %v6948 = vsel %vm6932, %v6929, %v6718
      %v6949 = vsel %vm6932, %v6930, %v6720
      %v6950 = vsel %vm6932, %v6931, %v6722
      %vm6951 = vcmask 523264
      %v6952 = vsel %vm6951, %v6933, %v6769
      %v6953 = vsel %vm6951, %v6934, %v6771
      %v6954 = vsel %vm6951, %v6935, %v6773
      %v6955 = vsel %vm6951, %v6936, %v6775
      %v6956 = vsel %vm6951, %v6937, %v6777
      %v6957 = vsel %vm6951, %v6938, %v6779
      %v6958 = vsel %vm6951, %v6939, %v6781
      %v6959 = vsel %vm6951, %v6940, %v6783
      %v6960 = vsel %vm6951, %v6941, %v6785
      %v6961 = vsel %vm6951, %v6942, %v6787
      %v6962 = vsel %vm6951, %v6943, %v6789
      %v6963 = vsel %vm6951, %v6944, %v6791
      %v6964 = vsel %vm6951, %v6945, %v6793
      %v6965 = vsel %vm6951, %v6946, %v6795
      %v6966 = vsel %vm6951, %v6947, %v6797
      %v6967 = vsel %vm6951, %v6948, %v6799
      %v6968 = vsel %vm6951, %v6949, %v6801
      %v6969 = vsel %vm6951, %v6950, %v6803
      %v6970 = vld [vmem:[%s3] sm:$0xff]
      %v6971 = vld [vmem:[%s3 + $0x8] sm:$0xff]
      %v6972 = vld [vmem:[%s3 + $0x10] sm:$0xff]
      %v6973 = vld [vmem:[%s3 + $0x18] sm:$0xff]
      %v6974 = vld [vmem:[%s3 + $0x20] sm:$0xff]
      %v6975 = vld [vmem:[%s3 + $0x28] sm:$0xff]
      %v6976 = vld [vmem:[%s3 + $0x30] sm:$0xff]
      %v6977 = vld [vmem:[%s3 + $0x38] sm:$0xff]
      %v6978 = vld [vmem:[%s3 + $0x40] sm:$0xff]
      %v6979 = vld [vmem:[%s4] sm:$0x1]
      %v6981 = vlaneseq
      %v6982 = vshrl.u32 %v6981, 7
      %v6983 = vsub.s32 0, %v6982
      %v6984 = vrot.slane %v6979, %v6983
      %vm6986 = vcmask 588800
      %v6988 = vsel %vm6986, %v6952, 0
      %v6991 = vsel %vm6986, %v6953, 0
      %v6994 = vsel %vm6986, %v6954, 0
      %v6997 = vsel %vm6986, %v6955, 0
      %v7000 = vsel %vm6986, %v6956, 0
      %v7003 = vsel %vm6986, %v6957, 0
      %v7006 = vsel %vm6986, %v6958, 0
      %v7009 = vsel %vm6986, %v6959, 0
      %v7012 = vsel %vm6986, %v6960, 0
      %v7015 = vsel %vm6986, %v6961, 0
      %v7018 = vsel %vm6986, %v6962, 0
      %v7021 = vsel %vm6986, %v6963, 0
      %v7024 = vsel %vm6986, %v6964, 0
      %v7027 = vsel %vm6986, %v6965, 0
      %v7030 = vsel %vm6986, %v6966, 0
      %v7033 = vsel %vm6986, %v6967, 0
      %v7036 = vsel %vm6986, %v6968, 0
      %v7039 = vsel %vm6986, %v6969, 0
      %7041 = vmatprep.subr.mxu0 0.0
      %7042 = vmatpush1.msra.mxu0 %v6970
      %7043 = vmatprep.subr.mxu0 0.0
      %7044 = vmatpush1.msra.mxu0 %v6971
      %7045 = vmatprep.subr.mxu0 0.0
      %7046 = vmatpush1.msra.mxu0 %v6972
      %7047 = vmatprep.subr.mxu0 0.0
      %7048 = vmatpush1.msra.mxu0 %v6973
      %7049 = vmatprep.subr.mxu0 0.0
      %7050 = vmatpush1.msra.mxu0 %v6974
      %7051 = vmatprep.subr.mxu0 0.0
      %7052 = vmatpush1.msra.mxu0 %v6975
      %7053 = vmatprep.subr.mxu0 0.0
      %7054 = vmatpush1.msra.mxu0 %v6976
      %7055 = vmatprep.subr.mxu0 0.0
      %7056 = vmatpush1.msra.mxu0 %v6977
      %7057 = vmatprep.subr.mxu0 0.0
      %7058 = vmatpush1.msra.mxu0 %v6978
      %7059 = vmatprep.subr.mxu0 0.0
      %7060 = vmatpush1.msra.mxu0 0.0
      %7061 = vmatprep.subr.mxu0 0.0
      %7062 = vmatpush1.msra.mxu0 0.0
      %7063 = vmatprep.subr.mxu0 0.0
      %7064 = vmatpush1.msra.mxu0 0.0
      %7065 = vmatprep.subr.mxu0 0.0
      %7066 = vmatpush1.msra.mxu0 0.0
      %7067 = vmatprep.subr.mxu0 0.0
      %7068 = vmatpush1.msra.mxu0 0.0
      %7069 = vmatprep.subr.mxu0 0.0
      %7070 = vmatpush1.msra.mxu0 0.0
      %7071 = vmatprep.subr.mxu0 0.0
      %7072 = vmatpush1.msra.mxu0 0.0
      %7073 = vmatprep.subr.mxu0 0.0
      %7074 = vmatpush1.msra.mxu0 0.0
      %7075 = vmatprep.subr.mxu0 0.0
      %7076 = vmatpush1.msra.mxu0 0.0
      %7077 = vmatprep.subr.mxu0 0.0
      %7078 = vmatpush1.msra.mxu0 0.0
      %7079 = vmatprep.subr.mxu0 0.0
      %7080 = vmatpush1.msra.mxu0 0.0
      %7081 = vmatprep.subr.mxu0 0.0
      %7082 = vmatpush1.msra.mxu0 0.0
      %7083 = vmatprep.subr.mxu0 0.0
      %7084 = vmatpush1.msra.mxu0 0.0
      %7085 = vmatprep.subr.mxu0 0.0
      %7086 = vmatpush1.msra.mxu0 0.0
      %7087 = vmatprep.subr.mxu0 0.0
      %7088 = vmatpush1.msra.mxu0 0.0
      %7089 = vmatprep.subr.mxu0 0.0
      %7090 = vmatpush1.msra.mxu0 0.0
      %7091 = vmatprep.subr.mxu0 0.0
      %7092 = vmatpush1.msra.mxu0 0.0
      %7093 = vmatprep.subr.mxu0 0.0
      %7094 = vmatpush1.msra.mxu0 0.0
      %7095 = vmatprep.subr.mxu0 0.0
      %7096 = vmatpush1.msra.mxu0 0.0
      %7097 = vmatprep.subr.mxu0 0.0
      %7098 = vmatpush1.msra.mxu0 0.0
      %7099 = vmatprep.subr.mxu0 0.0
      %7100 = vmatpush1.msra.mxu0 0.0
      %7101 = vmatprep.subr.mxu0 0.0
      %7102 = vmatpush1.msra.mxu0 0.0
      %7103 = vmatprep.subr.mxu0 0.0
      %7104 = vmatpush1.msra.mxu0 0.0
      %7105 = vmatprep.mubr.f32.mxu0 0.0
      %7106 = vmatmul.mubr.f32.gmra.mrb[0].mxu0 %v6988
      %v7107 = vpop.f32.mrb[0].mxu0
      %v7108 = vadd.f32 %v6984, %v7107
      %v7109 = vpop.f32.mrb[0].mxu0
      %7110 = vmatprep.mubr.f32.mxu0 0.0
      %7111 = vmatmul.mubr.f32.gmra.mrb[0].mxu0 %v6991
      %v7112 = vpop.f32.mrb[0].mxu0
      %v7113 = vadd.f32 %v6984, %v7112
      %v7114 = vpop.f32.mrb[0].mxu0
      %7115 = vmatprep.mubr.f32.mxu0 0.0
      %7116 = vmatmul.mubr.f32.gmra.mrb[0].mxu0 %v6994
      %v7117 = vpop.f32.mrb[0].mxu0
      %v7118 = vadd.f32 %v6984, %v7117
      %v7119 = vpop.f32.mrb[0].mxu0
      %7120 = vmatprep.mubr.f32.mxu0 0.0
      %7121 = vmatmul.mubr.f32.gmra.mrb[0].mxu0 %v6997
      %v7122 = vpop.f32.mrb[0].mxu0
      %v7123 = vadd.f32 %v6984, %v7122
      %v7124 = vpop.f32.mrb[0].mxu0
      %7125 = vmatprep.mubr.f32.mxu0 0.0
      %7126 = vmatmul.mubr.f32.gmra.mrb[0].mxu0 %v7000
      %v7127 = vpop.f32.mrb[0].mxu0
      %v7128 = vadd.f32 %v6984, %v7127
      %v7129 = vpop.f32.mrb[0].mxu0
      %7130 = vmatprep.mubr.f32.mxu0 0.0
      %7131 = vmatmul.mubr.f32.gmra.mrb[0].mxu0 %v7003
      %v7132 = vpop.f32.mrb[0].mxu0
      %v7133 = vadd.f32 %v6984, %v7132
      %v7134 = vpop.f32.mrb[0].mxu0
      %7135 = vmatprep.mubr.f32.mxu0 0.0
      %7136 = vmatmul.mubr.f32.gmra.mrb[0].mxu0 %v7006
      %v7137 = vpop.f32.mrb[0].mxu0
      %v7138 = vadd.f32 %v6984, %v7137
      %v7139 = vpop.f32.mrb[0].mxu0
      %7140 = vmatprep.mubr.f32.mxu0 0.0
      %7141 = vmatmul.mubr.f32.gmra.mrb[0].mxu0 %v7009
      %v7142 = vpop.f32.mrb[0].mxu0
      %v7143 = vadd.f32 %v6984, %v7142
      %v7144 = vpop.f32.mrb[0].mxu0
      %7145 = vmatprep.mubr.f32.mxu0 0.0
      %7146 = vmatmul.mubr.f32.gmra.mrb[0].mxu0 %v7012
      %v7147 = vpop.f32.mrb[0].mxu0
      %v7148 = vadd.f32 %v6984, %v7147
      %v7149 = vpop.f32.mrb[0].mxu0
      %7150 = vmatprep.mubr.f32.mxu0 0.0
      %7151 = vmatmul.mubr.f32.gmra.mrb[0].mxu0 %v7015
      %v7152 = vpop.f32.mrb[0].mxu0
      %v7153 = vadd.f32 %v6984, %v7152
      %v7154 = vpop.f32.mrb[0].mxu0
      %7155 = vmatprep.mubr.f32.mxu0 0.0
      %7156 = vmatmul.mubr.f32.gmra.mrb[0].mxu0 %v7018
      %v7157 = vpop.f32.mrb[0].mxu0
      %v7158 = vadd.f32 %v6984, %v7157
      %v7159 = vpop.f32.mrb[0].mxu0
      %7160 = vmatprep.mubr.f32.mxu0 0.0
      %7161 = vmatmul.mubr.f32.gmra.mrb[0].mxu0 %v7021
      %v7162 = vpop.f32.mrb[0].mxu0
      %v7163 = vadd.f32 %v6984, %v7162
      %v7164 = vpop.f32.mrb[0].mxu0
      %7165 = vmatprep.mubr.f32.mxu0 0.0
      %7166 = vmatmul.mubr.f32.gmra.mrb[0].mxu0 %v7024
      %v7167 = vpop.f32.mrb[0].mxu0
      %v7168 = vadd.f32 %v6984, %v7167
      %v7169 = vpop.f32.mrb[0].mxu0
      %7170 = vmatprep.mubr.f32.mxu0 0.0
      %7171 = vmatmul.mubr.f32.gmra.mrb[0].mxu0 %v7027
      %v7172 = vpop.f32.mrb[0].mxu0
      %v7173 = vadd.f32 %v6984, %v7172
      %v7174 = vpop.f32.mrb[0].mxu0
      %7175 = vmatprep.mubr.f32.mxu0 0.0
      %7176 = vmatmul.mubr.f32.gmra.mrb[0].mxu0 %v7030
      %v7177 = vpop.f32.mrb[0].mxu0
      %v7178 = vadd.f32 %v6984, %v7177
      %v7179 = vpop.f32.mrb[0].mxu0
      %7180 = vmatprep.mubr.f32.mxu0 0.0
      %7181 = vmatmul.mubr.f32.gmra.mrb[0].mxu0 %v7033
      %v7182 = vpop.f32.mrb[0].mxu0
      %v7183 = vadd.f32 %v6984, %v7182
      %v7184 = vpop.f32.mrb[0].mxu0
      %7185 = vmatprep.mubr.f32.mxu0 0.0
      %7186 = vmatmul.mubr.f32.gmra.mrb[0].mxu0 %v7036
      %v7187 = vpop.f32.mrb[0].mxu0
      %v7188 = vadd.f32 %v6984, %v7187
      %v7189 = vpop.f32.mrb[0].mxu0
      %7190 = vmatprep.mubr.f32.mxu0 0.0
      %7191 = vmatmul.mubr.f32.gmra.mrb[0].mxu0 %v7039
      %v7192 = vpop.f32.mrb[0].mxu0
      %v7193 = vadd.f32 %v6984, %v7192
      %v7194 = vpop.f32.mrb[0].mxu0
      %7195 = vdwg.mxu0
      %v7196 = vmax.f32 %v7108, 0.0
      %v7197 = vmax.f32 %v7113, 0.0
      %v7198 = vmax.f32 %v7118, 0.0
      %v7199 = vmax.f32 %v7123, 0.0
      %v7200 = vmax.f32 %v7128, 0.0
      %v7201 = vmax.f32 %v7133, 0.0
      %v7202 = vmax.f32 %v7138, 0.0
      %v7203 = vmax.f32 %v7143, 0.0
      %v7204 = vmax.f32 %v7148, 0.0
      %v7205 = vmax.f32 %v7153, 0.0
      %v7206 = vmax.f32 %v7158, 0.0
      %v7207 = vmax.f32 %v7163, 0.0
      %v7208 = vmax.f32 %v7168, 0.0
      %v7209 = vmax.f32 %v7173, 0.0
      %v7210 = vmax.f32 %v7178, 0.0
      %v7211 = vmax.f32 %v7183, 0.0
      %v7212 = vmax.f32 %v7188, 0.0
      %v7213 = vmax.f32 %v7193, 0.0
      %7232 = vrot.lane.b32.xlu0 %v7196, 127
      %v7233 = vpop.permute.xlu0 %7232
      %7234 = vrot.lane.b32.xlu0 %v7197, 127
      %v7235 = vpop.permute.xlu0 %7234
      %7236 = vrot.lane.b32.xlu0 %v7198, 127
      %v7237 = vpop.permute.xlu0 %7236
      %7238 = vrot.lane.b32.xlu0 %v7199, 127
      %v7239 = vpop.permute.xlu0 %7238
      %7240 = vrot.lane.b32.xlu0 %v7200, 127
      %v7241 = vpop.permute.xlu0 %7240
      %7242 = vrot.lane.b32.xlu0 %v7201, 127
      %v7243 = vpop.permute.xlu0 %7242
      %7244 = vrot.lane.b32.xlu0 %v7202, 127
      %v7245 = vpop.permute.xlu0 %7244
      %7246 = vrot.lane.b32.xlu0 %v7203, 127
      %v7247 = vpop.permute.xlu0 %7246
      %7248 = vrot.lane.b32.xlu0 %v7204, 127
      %v7249 = vpop.permute.xlu0 %7248
      %7250 = vrot.lane.b32.xlu0 %v7205, 127
      %v7251 = vpop.permute.xlu0 %7250
      %7252 = vrot.lane.b32.xlu0 %v7206, 127
      %v7253 = vpop.permute.xlu0 %7252
      %7254 = vrot.lane.b32.xlu0 %v7207, 127
      %v7255 = vpop.permute.xlu0 %7254
      %7256 = vrot.lane.b32.xlu0 %v7208, 127
      %v7257 = vpop.permute.xlu0 %7256
      %7258 = vrot.lane.b32.xlu0 %v7209, 127
      %v7259 = vpop.permute.xlu0 %7258
      %7260 = vrot.lane.b32.xlu0 %v7210, 127
      %v7261 = vpop.permute.xlu0 %7260
      %7262 = vrot.lane.b32.xlu0 %v7211, 127
      %v7263 = vpop.permute.xlu0 %7262
      %7264 = vrot.lane.b32.xlu0 %v7212, 127
      %v7265 = vpop.permute.xlu0 %7264
      %7266 = vrot.lane.b32.xlu0 %v7213, 127
      %v7267 = vpop.permute.xlu0 %7266
      %7286 = vrot.lane.b32.xlu0 %v7196, 126
      %v7287 = vpop.permute.xlu0 %7286
      %7288 = vrot.lane.b32.xlu0 %v7197, 126
      %v7289 = vpop.permute.xlu0 %7288
      %7290 = vrot.lane.b32.xlu0 %v7198, 126
      %v7291 = vpop.permute.xlu0 %7290
      %7292 = vrot.lane.b32.xlu0 %v7199, 126
      %v7293 = vpop.permute.xlu0 %7292
      %7294 = vrot.lane.b32.xlu0 %v7200, 126
      %v7295 = vpop.permute.xlu0 %7294
      %7296 = vrot.lane.b32.xlu0 %v7201, 126
      %v7297 = vpop.permute.xlu0 %7296
      %7298 = vrot.lane.b32.xlu0 %v7202, 126
      %v7299 = vpop.permute.xlu0 %7298
      %7300 = vrot.lane.b32.xlu0 %v7203, 126
      %v7301 = vpop.permute.xlu0 %7300
      %7302 = vrot.lane.b32.xlu0 %v7204, 126
      %v7303 = vpop.permute.xlu0 %7302
      %7304 = vrot.lane.b32.xlu0 %v7205, 126
      %v7305 = vpop.permute.xlu0 %7304
      %7306 = vrot.lane.b32.xlu0 %v7206, 126
      %v7307 = vpop.permute.xlu0 %7306
      %7308 = vrot.lane.b32.xlu0 %v7207, 126
      %v7309 = vpop.permute.xlu0 %7308
      %7310 = vrot.lane.b32.xlu0 %v7208, 126
      %v7311 = vpop.permute.xlu0 %7310
      %7312 = vrot.lane.b32.xlu0 %v7209, 126
      %v7313 = vpop.permute.xlu0 %7312
      %7314 = vrot.lane.b32.xlu0 %v7210, 126
      %v7315 = vpop.permute.xlu0 %7314
      %7316 = vrot.lane.b32.xlu0 %v7211, 126
      %v7317 = vpop.permute.xlu0 %7316
      %7318 = vrot.lane.b32.xlu0 %v7212, 126
      %v7319 = vpop.permute.xlu0 %7318
      %7320 = vrot.lane.b32.xlu0 %v7213, 126
      %v7321 = vpop.permute.xlu0 %7320
      %7340 = vrot.lane.b32.xlu0 %v7196, 125
      %v7341 = vpop.permute.xlu0 %7340
      %7342 = vrot.lane.b32.xlu0 %v7197, 125
      %v7343 = vpop.permute.xlu0 %7342
      %7344 = vrot.lane.b32.xlu0 %v7198, 125
      %v7345 = vpop.permute.xlu0 %7344
      %7346 = vrot.lane.b32.xlu0 %v7199, 125
      %v7347 = vpop.permute.xlu0 %7346
      %7348 = vrot.lane.b32.xlu0 %v7200, 125
      %v7349 = vpop.permute.xlu0 %7348
      %7350 = vrot.lane.b32.xlu0 %v7201, 125
      %v7351 = vpop.permute.xlu0 %7350
      %7352 = vrot.lane.b32.xlu0 %v7202, 125
      %v7353 = vpop.permute.xlu0 %7352
      %7354 = vrot.lane.b32.xlu0 %v7203, 125
      %v7355 = vpop.permute.xlu0 %7354
      %7356 = vrot.lane.b32.xlu0 %v7204, 125
      %v7357 = vpop.permute.xlu0 %7356
      %7358 = vrot.lane.b32.xlu0 %v7205, 125
      %v7359 = vpop.permute.xlu0 %7358
      %7360 = vrot.lane.b32.xlu0 %v7206, 125
      %v7361 = vpop.permute.xlu0 %7360
      %7362 = vrot.lane.b32.xlu0 %v7207, 125
      %v7363 = vpop.permute.xlu0 %7362
      %7364 = vrot.lane.b32.xlu0 %v7208, 125
      %v7365 = vpop.permute.xlu0 %7364
      %7366 = vrot.lane.b32.xlu0 %v7209, 125
      %v7367 = vpop.permute.xlu0 %7366
      %7368 = vrot.lane.b32.xlu0 %v7210, 125
      %v7369 = vpop.permute.xlu0 %7368
      %7370 = vrot.lane.b32.xlu0 %v7211, 125
      %v7371 = vpop.permute.xlu0 %7370
      %7372 = vrot.lane.b32.xlu0 %v7212, 125
      %v7373 = vpop.permute.xlu0 %7372
      %7374 = vrot.lane.b32.xlu0 %v7213, 125
      %v7375 = vpop.permute.xlu0 %7374
      %7394 = vrot.lane.b32.xlu0 %v7196, 124
      %v7395 = vpop.permute.xlu0 %7394
      %7396 = vrot.lane.b32.xlu0 %v7197, 124
      %v7397 = vpop.permute.xlu0 %7396
      %7398 = vrot.lane.b32.xlu0 %v7198, 124
      %v7399 = vpop.permute.xlu0 %7398
      %7400 = vrot.lane.b32.xlu0 %v7199, 124
      %v7401 = vpop.permute.xlu0 %7400
      %7402 = vrot.lane.b32.xlu0 %v7200, 124
      %v7403 = vpop.permute.xlu0 %7402
      %7404 = vrot.lane.b32.xlu0 %v7201, 124
      %v7405 = vpop.permute.xlu0 %7404
      %7406 = vrot.lane.b32.xlu0 %v7202, 124
      %v7407 = vpop.permute.xlu0 %7406
      %7408 = vrot.lane.b32.xlu0 %v7203, 124
      %v7409 = vpop.permute.xlu0 %7408
      %7410 = vrot.lane.b32.xlu0 %v7204, 124
      %v7411 = vpop.permute.xlu0 %7410
      %7412 = vrot.lane.b32.xlu0 %v7205, 124
      %v7413 = vpop.permute.xlu0 %7412
      %7414 = vrot.lane.b32.xlu0 %v7206, 124
      %v7415 = vpop.permute.xlu0 %7414
      %7416 = vrot.lane.b32.xlu0 %v7207, 124
      %v7417 = vpop.permute.xlu0 %7416
      %7418 = vrot.lane.b32.xlu0 %v7208, 124
      %v7419 = vpop.permute.xlu0 %7418
      %7420 = vrot.lane.b32.xlu0 %v7209, 124
      %v7421 = vpop.permute.xlu0 %7420
      %7422 = vrot.lane.b32.xlu0 %v7210, 124
      %v7423 = vpop.permute.xlu0 %7422
      %7424 = vrot.lane.b32.xlu0 %v7211, 124
      %v7425 = vpop.permute.xlu0 %7424
      %7426 = vrot.lane.b32.xlu0 %v7212, 124
      %v7427 = vpop.permute.xlu0 %7426
      %7428 = vrot.lane.b32.xlu0 %v7213, 124
      %v7429 = vpop.permute.xlu0 %7428
      %7448 = vrot.lane.b32.xlu0 %v7196, 123
      %v7449 = vpop.permute.xlu0 %7448
      %7450 = vrot.lane.b32.xlu0 %v7197, 123
      %v7451 = vpop.permute.xlu0 %7450
      %7452 = vrot.lane.b32.xlu0 %v7198, 123
      %v7453 = vpop.permute.xlu0 %7452
      %7454 = vrot.lane.b32.xlu0 %v7199, 123
      %v7455 = vpop.permute.xlu0 %7454
      %7456 = vrot.lane.b32.xlu0 %v7200, 123
      %v7457 = vpop.permute.xlu0 %7456
      %7458 = vrot.lane.b32.xlu0 %v7201, 123
      %v7459 = vpop.permute.xlu0 %7458
      %7460 = vrot.lane.b32.xlu0 %v7202, 123
      %v7461 = vpop.permute.xlu0 %7460
      %7462 = vrot.lane.b32.xlu0 %v7203, 123
      %v7463 = vpop.permute.xlu0 %7462
      %7464 = vrot.lane.b32.xlu0 %v7204, 123
      %v7465 = vpop.permute.xlu0 %7464
      %7466 = vrot.lane.b32.xlu0 %v7205, 123
      %v7467 = vpop.permute.xlu0 %7466
      %7468 = vrot.lane.b32.xlu0 %v7206, 123
      %v7469 = vpop.permute.xlu0 %7468
      %7470 = vrot.lane.b32.xlu0 %v7207, 123
      %v7471 = vpop.permute.xlu0 %7470
      %7472 = vrot.lane.b32.xlu0 %v7208, 123
      %v7473 = vpop.permute.xlu0 %7472
      %7474 = vrot.lane.b32.xlu0 %v7209, 123
      %v7475 = vpop.permute.xlu0 %7474
      %7476 = vrot.lane.b32.xlu0 %v7210, 123
      %v7477 = vpop.permute.xlu0 %7476
      %7478 = vrot.lane.b32.xlu0 %v7211, 123
      %v7479 = vpop.permute.xlu0 %7478
      %7480 = vrot.lane.b32.xlu0 %v7212, 123
      %v7481 = vpop.permute.xlu0 %7480
      %7482 = vrot.lane.b32.xlu0 %v7213, 123
      %v7483 = vpop.permute.xlu0 %7482
      %7502 = vrot.lane.b32.xlu0 %v7196, 122
      %v7503 = vpop.permute.xlu0 %7502
      %7504 = vrot.lane.b32.xlu0 %v7197, 122
      %v7505 = vpop.permute.xlu0 %7504
      %7506 = vrot.lane.b32.xlu0 %v7198, 122
      %v7507 = vpop.permute.xlu0 %7506
      %7508 = vrot.lane.b32.xlu0 %v7199, 122
      %v7509 = vpop.permute.xlu0 %7508
      %7510 = vrot.lane.b32.xlu0 %v7200, 122
      %v7511 = vpop.permute.xlu0 %7510
      %7512 = vrot.lane.b32.xlu0 %v7201, 122
      %v7513 = vpop.permute.xlu0 %7512
      %7514 = vrot.lane.b32.xlu0 %v7202, 122
      %v7515 = vpop.permute.xlu0 %7514
      %7516 = vrot.lane.b32.xlu0 %v7203, 122
      %v7517 = vpop.permute.xlu0 %7516
      %7518 = vrot.lane.b32.xlu0 %v7204, 122
      %v7519 = vpop.permute.xlu0 %7518
      %7520 = vrot.lane.b32.xlu0 %v7205, 122
      %v7521 = vpop.permute.xlu0 %7520
      %7522 = vrot.lane.b32.xlu0 %v7206, 122
      %v7523 = vpop.permute.xlu0 %7522
      %7524 = vrot.lane.b32.xlu0 %v7207, 122
      %v7525 = vpop.permute.xlu0 %7524
      %7526 = vrot.lane.b32.xlu0 %v7208, 122
      %v7527 = vpop.permute.xlu0 %7526
      %7528 = vrot.lane.b32.xlu0 %v7209, 122
      %v7529 = vpop.permute.xlu0 %7528
      %7530 = vrot.lane.b32.xlu0 %v7210, 122
      %v7531 = vpop.permute.xlu0 %7530
      %7532 = vrot.lane.b32.xlu0 %v7211, 122
      %v7533 = vpop.permute.xlu0 %7532
      %7534 = vrot.lane.b32.xlu0 %v7212, 122
      %v7535 = vpop.permute.xlu0 %7534
      %7536 = vrot.lane.b32.xlu0 %v7213, 122
      %v7537 = vpop.permute.xlu0 %7536
      %7556 = vrot.lane.b32.xlu0 %v7196, 121
      %v7557 = vpop.permute.xlu0 %7556
      %7558 = vrot.lane.b32.xlu0 %v7197, 121
      %v7559 = vpop.permute.xlu0 %7558
      %7560 = vrot.lane.b32.xlu0 %v7198, 121
      %v7561 = vpop.permute.xlu0 %7560
      %7562 = vrot.lane.b32.xlu0 %v7199, 121
      %v7563 = vpop.permute.xlu0 %7562
      %7564 = vrot.lane.b32.xlu0 %v7200, 121
      %v7565 = vpop.permute.xlu0 %7564
      %7566 = vrot.lane.b32.xlu0 %v7201, 121
      %v7567 = vpop.permute.xlu0 %7566
      %7568 = vrot.lane.b32.xlu0 %v7202, 121
      %v7569 = vpop.permute.xlu0 %7568
      %7570 = vrot.lane.b32.xlu0 %v7203, 121
      %v7571 = vpop.permute.xlu0 %7570
      %7572 = vrot.lane.b32.xlu0 %v7204, 121
      %v7573 = vpop.permute.xlu0 %7572
      %7574 = vrot.lane.b32.xlu0 %v7205, 121
      %v7575 = vpop.permute.xlu0 %7574
      %7576 = vrot.lane.b32.xlu0 %v7206, 121
      %v7577 = vpop.permute.xlu0 %7576
      %7578 = vrot.lane.b32.xlu0 %v7207, 121
      %v7579 = vpop.permute.xlu0 %7578
      %7580 = vrot.lane.b32.xlu0 %v7208, 121
      %v7581 = vpop.permute.xlu0 %7580
      %7582 = vrot.lane.b32.xlu0 %v7209, 121
      %v7583 = vpop.permute.xlu0 %7582
      %7584 = vrot.lane.b32.xlu0 %v7210, 121
      %v7585 = vpop.permute.xlu0 %7584
      %7586 = vrot.lane.b32.xlu0 %v7211, 121
      %v7587 = vpop.permute.xlu0 %7586
      %7588 = vrot.lane.b32.xlu0 %v7212, 121
      %v7589 = vpop.permute.xlu0 %7588
      %7590 = vrot.lane.b32.xlu0 %v7213, 121
      %v7591 = vpop.permute.xlu0 %7590
      %7610 = vrot.lane.b32.xlu0 %v7196, 120
      %v7611 = vpop.permute.xlu0 %7610
      %7612 = vrot.lane.b32.xlu0 %v7197, 120
      %v7613 = vpop.permute.xlu0 %7612
      %7614 = vrot.lane.b32.xlu0 %v7198, 120
      %v7615 = vpop.permute.xlu0 %7614
      %7616 = vrot.lane.b32.xlu0 %v7199, 120
      %v7617 = vpop.permute.xlu0 %7616
      %7618 = vrot.lane.b32.xlu0 %v7200, 120
      %v7619 = vpop.permute.xlu0 %7618
      %7620 = vrot.lane.b32.xlu0 %v7201, 120
      %v7621 = vpop.permute.xlu0 %7620
      %7622 = vrot.lane.b32.xlu0 %v7202, 120
      %v7623 = vpop.permute.xlu0 %7622
      %7624 = vrot.lane.b32.xlu0 %v7203, 120
      %v7625 = vpop.permute.xlu0 %7624
      %7626 = vrot.lane.b32.xlu0 %v7204, 120
      %v7627 = vpop.permute.xlu0 %7626
      %7628 = vrot.lane.b32.xlu0 %v7205, 120
      %v7629 = vpop.permute.xlu0 %7628
      %7630 = vrot.lane.b32.xlu0 %v7206, 120
      %v7631 = vpop.permute.xlu0 %7630
      %7632 = vrot.lane.b32.xlu0 %v7207, 120
      %v7633 = vpop.permute.xlu0 %7632
      %7634 = vrot.lane.b32.xlu0 %v7208, 120
      %v7635 = vpop.permute.xlu0 %7634
      %7636 = vrot.lane.b32.xlu0 %v7209, 120
      %v7637 = vpop.permute.xlu0 %7636
      %7638 = vrot.lane.b32.xlu0 %v7210, 120
      %v7639 = vpop.permute.xlu0 %7638
      %7640 = vrot.lane.b32.xlu0 %v7211, 120
      %v7641 = vpop.permute.xlu0 %7640
      %7642 = vrot.lane.b32.xlu0 %v7212, 120
      %v7643 = vpop.permute.xlu0 %7642
      %7644 = vrot.lane.b32.xlu0 %v7213, 120
      %v7645 = vpop.permute.xlu0 %7644
      %7664 = vrot.lane.b32.xlu0 %v7196, 119
      %v7665 = vpop.permute.xlu0 %7664
      %7666 = vrot.lane.b32.xlu0 %v7197, 119
      %v7667 = vpop.permute.xlu0 %7666
      %7668 = vrot.lane.b32.xlu0 %v7198, 119
      %v7669 = vpop.permute.xlu0 %7668
      %7670 = vrot.lane.b32.xlu0 %v7199, 119
      %v7671 = vpop.permute.xlu0 %7670
      %7672 = vrot.lane.b32.xlu0 %v7200, 119
      %v7673 = vpop.permute.xlu0 %7672
      %7674 = vrot.lane.b32.xlu0 %v7201, 119
      %v7675 = vpop.permute.xlu0 %7674
      %7676 = vrot.lane.b32.xlu0 %v7202, 119
      %v7677 = vpop.permute.xlu0 %7676
      %7678 = vrot.lane.b32.xlu0 %v7203, 119
      %v7679 = vpop.permute.xlu0 %7678
      %7680 = vrot.lane.b32.xlu0 %v7204, 119
      %v7681 = vpop.permute.xlu0 %7680
      %7682 = vrot.lane.b32.xlu0 %v7205, 119
      %v7683 = vpop.permute.xlu0 %7682
      %7684 = vrot.lane.b32.xlu0 %v7206, 119
      %v7685 = vpop.permute.xlu0 %7684
      %7686 = vrot.lane.b32.xlu0 %v7207, 119
      %v7687 = vpop.permute.xlu0 %7686
      %7688 = vrot.lane.b32.xlu0 %v7208, 119
      %v7689 = vpop.permute.xlu0 %7688
      %7690 = vrot.lane.b32.xlu0 %v7209, 119
      %v7691 = vpop.permute.xlu0 %7690
      %7692 = vrot.lane.b32.xlu0 %v7210, 119
      %v7693 = vpop.permute.xlu0 %7692
      %7694 = vrot.lane.b32.xlu0 %v7211, 119
      %v7695 = vpop.permute.xlu0 %7694
      %7696 = vrot.lane.b32.xlu0 %v7212, 119
      %v7697 = vpop.permute.xlu0 %7696
      %7698 = vrot.lane.b32.xlu0 %v7213, 119
      %v7699 = vpop.permute.xlu0 %7698
      %7718 = vrot.lane.b32.xlu0 %v7196, 118
      %v7719 = vpop.permute.xlu0 %7718
      %7720 = vrot.lane.b32.xlu0 %v7197, 118
      %v7721 = vpop.permute.xlu0 %7720
      %7722 = vrot.lane.b32.xlu0 %v7198, 118
      %v7723 = vpop.permute.xlu0 %7722
      %7724 = vrot.lane.b32.xlu0 %v7199, 118
      %v7725 = vpop.permute.xlu0 %7724
      %7726 = vrot.lane.b32.xlu0 %v7200, 118
      %v7727 = vpop.permute.xlu0 %7726
      %7728 = vrot.lane.b32.xlu0 %v7201, 118
      %v7729 = vpop.permute.xlu0 %7728
      %7730 = vrot.lane.b32.xlu0 %v7202, 118
      %v7731 = vpop.permute.xlu0 %7730
      %7732 = vrot.lane.b32.xlu0 %v7203, 118
      %v7733 = vpop.permute.xlu0 %7732
      %7734 = vrot.lane.b32.xlu0 %v7204, 118
      %v7735 = vpop.permute.xlu0 %7734
      %7736 = vrot.lane.b32.xlu0 %v7205, 118
      %v7737 = vpop.permute.xlu0 %7736
      %7738 = vrot.lane.b32.xlu0 %v7206, 118
      %v7739 = vpop.permute.xlu0 %7738
      %7740 = vrot.lane.b32.xlu0 %v7207, 118
      %v7741 = vpop.permute.xlu0 %7740
      %7742 = vrot.lane.b32.xlu0 %v7208, 118
      %v7743 = vpop.permute.xlu0 %7742
      %7744 = vrot.lane.b32.xlu0 %v7209, 118
      %v7745 = vpop.permute.xlu0 %7744
      %7746 = vrot.lane.b32.xlu0 %v7210, 118
      %v7747 = vpop.permute.xlu0 %7746
      %7748 = vrot.lane.b32.xlu0 %v7211, 118
      %v7749 = vpop.permute.xlu0 %7748
      %7750 = vrot.lane.b32.xlu0 %v7212, 118
      %v7751 = vpop.permute.xlu0 %7750
      %7752 = vrot.lane.b32.xlu0 %v7213, 118
      %v7753 = vpop.permute.xlu0 %7752
      %7772 = vrot.lane.b32.xlu0 %v7196, 117
      %v7773 = vpop.permute.xlu0 %7772
      %7774 = vrot.lane.b32.xlu0 %v7197, 117
      %v7775 = vpop.permute.xlu0 %7774
      %7776 = vrot.lane.b32.xlu0 %v7198, 117
      %v7777 = vpop.permute.xlu0 %7776
      %7778 = vrot.lane.b32.xlu0 %v7199, 117
      %v7779 = vpop.permute.xlu0 %7778
      %7780 = vrot.lane.b32.xlu0 %v7200, 117
      %v7781 = vpop.permute.xlu0 %7780
      %7782 = vrot.lane.b32.xlu0 %v7201, 117
      %v7783 = vpop.permute.xlu0 %7782
      %7784 = vrot.lane.b32.xlu0 %v7202, 117
      %v7785 = vpop.permute.xlu0 %7784
      %7786 = vrot.lane.b32.xlu0 %v7203, 117
      %v7787 = vpop.permute.xlu0 %7786
      %7788 = vrot.lane.b32.xlu0 %v7204, 117
      %v7789 = vpop.permute.xlu0 %7788
      %7790 = vrot.lane.b32.xlu0 %v7205, 117
      %v7791 = vpop.permute.xlu0 %7790
      %7792 = vrot.lane.b32.xlu0 %v7206, 117
      %v7793 = vpop.permute.xlu0 %7792
      %7794 = vrot.lane.b32.xlu0 %v7207, 117
      %v7795 = vpop.permute.xlu0 %7794
      %7796 = vrot.lane.b32.xlu0 %v7208, 117
      %v7797 = vpop.permute.xlu0 %7796
      %7798 = vrot.lane.b32.xlu0 %v7209, 117
      %v7799 = vpop.permute.xlu0 %7798
      %7800 = vrot.lane.b32.xlu0 %v7210, 117
      %v7801 = vpop.permute.xlu0 %7800
      %7802 = vrot.lane.b32.xlu0 %v7211, 117
      %v7803 = vpop.permute.xlu0 %7802
      %7804 = vrot.lane.b32.xlu0 %v7212, 117
      %v7805 = vpop.permute.xlu0 %7804
      %7806 = vrot.lane.b32.xlu0 %v7213, 117
      %v7807 = vpop.permute.xlu0 %7806
      %7826 = vrot.lane.b32.xlu0 %v7196, 116
      %v7827 = vpop.permute.xlu0 %7826
      %7828 = vrot.lane.b32.xlu0 %v7197, 116
      %v7829 = vpop.permute.xlu0 %7828
      %7830 = vrot.lane.b32.xlu0 %v7198, 116
      %v7831 = vpop.permute.xlu0 %7830
      %7832 = vrot.lane.b32.xlu0 %v7199, 116
      %v7833 = vpop.permute.xlu0 %7832
      %7834 = vrot.lane.b32.xlu0 %v7200, 116
      %v7835 = vpop.permute.xlu0 %7834
      %7836 = vrot.lane.b32.xlu0 %v7201, 116
      %v7837 = vpop.permute.xlu0 %7836
      %7838 = vrot.lane.b32.xlu0 %v7202, 116
      %v7839 = vpop.permute.xlu0 %7838
      %7840 = vrot.lane.b32.xlu0 %v7203, 116
      %v7841 = vpop.permute.xlu0 %7840
      %7842 = vrot.lane.b32.xlu0 %v7204, 116
      %v7843 = vpop.permute.xlu0 %7842
      %7844 = vrot.lane.b32.xlu0 %v7205, 116
      %v7845 = vpop.permute.xlu0 %7844
      %7846 = vrot.lane.b32.xlu0 %v7206, 116
      %v7847 = vpop.permute.xlu0 %7846
      %7848 = vrot.lane.b32.xlu0 %v7207, 116
      %v7849 = vpop.permute.xlu0 %7848
      %7850 = vrot.lane.b32.xlu0 %v7208, 116
      %v7851 = vpop.permute.xlu0 %7850
      %7852 = vrot.lane.b32.xlu0 %v7209, 116
      %v7853 = vpop.permute.xlu0 %7852
      %7854 = vrot.lane.b32.xlu0 %v7210, 116
      %v7855 = vpop.permute.xlu0 %7854
      %7856 = vrot.lane.b32.xlu0 %v7211, 116
      %v7857 = vpop.permute.xlu0 %7856
      %7858 = vrot.lane.b32.xlu0 %v7212, 116
      %v7859 = vpop.permute.xlu0 %7858
      %7860 = vrot.lane.b32.xlu0 %v7213, 116
      %v7861 = vpop.permute.xlu0 %7860
      %7880 = vrot.lane.b32.xlu0 %v7196, 115
      %v7881 = vpop.permute.xlu0 %7880
      %7882 = vrot.lane.b32.xlu0 %v7197, 115
      %v7883 = vpop.permute.xlu0 %7882
      %7884 = vrot.lane.b32.xlu0 %v7198, 115
      %v7885 = vpop.permute.xlu0 %7884
      %7886 = vrot.lane.b32.xlu0 %v7199, 115
      %v7887 = vpop.permute.xlu0 %7886
      %7888 = vrot.lane.b32.xlu0 %v7200, 115
      %v7889 = vpop.permute.xlu0 %7888
      %7890 = vrot.lane.b32.xlu0 %v7201, 115
      %v7891 = vpop.permute.xlu0 %7890
      %7892 = vrot.lane.b32.xlu0 %v7202, 115
      %v7893 = vpop.permute.xlu0 %7892
      %7894 = vrot.lane.b32.xlu0 %v7203, 115
      %v7895 = vpop.permute.xlu0 %7894
      %7896 = vrot.lane.b32.xlu0 %v7204, 115
      %v7897 = vpop.permute.xlu0 %7896
      %7898 = vrot.lane.b32.xlu0 %v7205, 115
      %v7899 = vpop.permute.xlu0 %7898
      %7900 = vrot.lane.b32.xlu0 %v7206, 115
      %v7901 = vpop.permute.xlu0 %7900
      %7902 = vrot.lane.b32.xlu0 %v7207, 115
      %v7903 = vpop.permute.xlu0 %7902
      %7904 = vrot.lane.b32.xlu0 %v7208, 115
      %v7905 = vpop.permute.xlu0 %7904
      %7906 = vrot.lane.b32.xlu0 %v7209, 115
      %v7907 = vpop.permute.xlu0 %7906
      %7908 = vrot.lane.b32.xlu0 %v7210, 115
      %v7909 = vpop.permute.xlu0 %7908
      %7910 = vrot.lane.b32.xlu0 %v7211, 115
      %v7911 = vpop.permute.xlu0 %7910
      %7912 = vrot.lane.b32.xlu0 %v7212, 115
      %v7913 = vpop.permute.xlu0 %7912
      %7914 = vrot.lane.b32.xlu0 %v7213, 115
      %v7915 = vpop.permute.xlu0 %7914
      %7934 = vrot.lane.b32.xlu0 %v7196, 114
      %v7935 = vpop.permute.xlu0 %7934
      %7936 = vrot.lane.b32.xlu0 %v7197, 114
      %v7937 = vpop.permute.xlu0 %7936
      %7938 = vrot.lane.b32.xlu0 %v7198, 114
      %v7939 = vpop.permute.xlu0 %7938
      %7940 = vrot.lane.b32.xlu0 %v7199, 114
      %v7941 = vpop.permute.xlu0 %7940
      %7942 = vrot.lane.b32.xlu0 %v7200, 114
      %v7943 = vpop.permute.xlu0 %7942
      %7944 = vrot.lane.b32.xlu0 %v7201, 114
      %v7945 = vpop.permute.xlu0 %7944
      %7946 = vrot.lane.b32.xlu0 %v7202, 114
      %v7947 = vpop.permute.xlu0 %7946
      %7948 = vrot.lane.b32.xlu0 %v7203, 114
      %v7949 = vpop.permute.xlu0 %7948
      %7950 = vrot.lane.b32.xlu0 %v7204, 114
      %v7951 = vpop.permute.xlu0 %7950
      %7952 = vrot.lane.b32.xlu0 %v7205, 114
      %v7953 = vpop.permute.xlu0 %7952
      %7954 = vrot.lane.b32.xlu0 %v7206, 114
      %v7955 = vpop.permute.xlu0 %7954
      %7956 = vrot.lane.b32.xlu0 %v7207, 114
      %v7957 = vpop.permute.xlu0 %7956
      %7958 = vrot.lane.b32.xlu0 %v7208, 114
      %v7959 = vpop.permute.xlu0 %7958
      %7960 = vrot.lane.b32.xlu0 %v7209, 114
      %v7961 = vpop.permute.xlu0 %7960
      %7962 = vrot.lane.b32.xlu0 %v7210, 114
      %v7963 = vpop.permute.xlu0 %7962
      %7964 = vrot.lane.b32.xlu0 %v7211, 114
      %v7965 = vpop.permute.xlu0 %7964
      %7966 = vrot.lane.b32.xlu0 %v7212, 114
      %v7967 = vpop.permute.xlu0 %7966
      %7968 = vrot.lane.b32.xlu0 %v7213, 114
      %v7969 = vpop.permute.xlu0 %7968
      %7988 = vrot.lane.b32.xlu0 %v7196, 113
      %v7989 = vpop.permute.xlu0 %7988
      %7990 = vrot.lane.b32.xlu0 %v7197, 113
      %v7991 = vpop.permute.xlu0 %7990
      %7992 = vrot.lane.b32.xlu0 %v7198, 113
      %v7993 = vpop.permute.xlu0 %7992
      %7994 = vrot.lane.b32.xlu0 %v7199, 113
      %v7995 = vpop.permute.xlu0 %7994
      %7996 = vrot.lane.b32.xlu0 %v7200, 113
      %v7997 = vpop.permute.xlu0 %7996
      %7998 = vrot.lane.b32.xlu0 %v7201, 113
      %v7999 = vpop.permute.xlu0 %7998
      %8000 = vrot.lane.b32.xlu0 %v7202, 113
      %v8001 = vpop.permute.xlu0 %8000
      %8002 = vrot.lane.b32.xlu0 %v7203, 113
      %v8003 = vpop.permute.xlu0 %8002
      %8004 = vrot.lane.b32.xlu0 %v7204, 113
      %v8005 = vpop.permute.xlu0 %8004
      %8006 = vrot.lane.b32.xlu0 %v7205, 113
      %v8007 = vpop.permute.xlu0 %8006
      %8008 = vrot.lane.b32.xlu0 %v7206, 113
      %v8009 = vpop.permute.xlu0 %8008
      %8010 = vrot.lane.b32.xlu0 %v7207, 113
      %v8011 = vpop.permute.xlu0 %8010
      %8012 = vrot.lane.b32.xlu0 %v7208, 113
      %v8013 = vpop.permute.xlu0 %8012
      %8014 = vrot.lane.b32.xlu0 %v7209, 113
      %v8015 = vpop.permute.xlu0 %8014
      %8016 = vrot.lane.b32.xlu0 %v7210, 113
      %v8017 = vpop.permute.xlu0 %8016
      %8018 = vrot.lane.b32.xlu0 %v7211, 113
      %v8019 = vpop.permute.xlu0 %8018
      %8020 = vrot.lane.b32.xlu0 %v7212, 113
      %v8021 = vpop.permute.xlu0 %8020
      %8022 = vrot.lane.b32.xlu0 %v7213, 113
      %v8023 = vpop.permute.xlu0 %8022
      %v8042 = vld [vmem:[%s5] sm:$0x1f]
      %v8043 = vld [vmem:[%s5 + $0x8] sm:$0x1f]
      %v8044 = vld [vmem:[%s5 + $0x10] sm:$0x1f]
      %v8045 = vld [vmem:[%s5 + $0x18] sm:$0x1f]
      %v8046 = vld [vmem:[%s5 + $0x20] sm:$0x1f]
      %v8047 = vld [vmem:[%s5 + $0x28] sm:$0x1f]
      %v8048 = vld [vmem:[%s5 + $0x30] sm:$0x1f]
      %v8049 = vld [vmem:[%s5 + $0x38] sm:$0x1f]
      %v8050 = vld [vmem:[%s5 + $0x40] sm:$0x1f]
      %v8051 = vld [vmem:[%s5 + $0x48] sm:$0x1f]
      %v8052 = vld [vmem:[%s5 + $0x50] sm:$0x1f]
      %v8053 = vld [vmem:[%s5 + $0x58] sm:$0x1f]
      %v8054 = vld [vmem:[%s5 + $0x60] sm:$0x1f]
      %v8055 = vld [vmem:[%s5 + $0x68] sm:$0x1f]
      %v8056 = vld [vmem:[%s5 + $0x70] sm:$0x1f]
      %v8057 = vld [vmem:[%s5 + $0x78] sm:$0x1f]
      %v8058 = vld [vmem:[%s5 + $0x80] sm:$0x1f]
      %v8059 = vld [vmem:[%s5 + $0x88] sm:$0x1f]
      %v8060 = vld [vmem:[%s6] sm:$0x1f]
      %8061 = vmatprep.subr.mxu0 0.0
      %8062 = vmatpush1.msra.mxu0 %v7196
      %8063 = vmatprep.subr.mxu0 0.0
      %8064 = vmatpush1.msra.mxu0 %v7197
      %8065 = vmatprep.subr.mxu0 0.0
      %8066 = vmatpush1.msra.mxu0 %v7198
      %8067 = vmatprep.subr.mxu0 0.0
      %8068 = vmatpush1.msra.mxu0 %v7199
      %8069 = vmatprep.subr.mxu0 0.0
      %8070 = vmatpush1.msra.mxu0 %v7200
      %8071 = vmatprep.subr.mxu0 0.0
      %8072 = vmatpush1.msra.mxu0 %v7201
      %8073 = vmatprep.subr.mxu0 0.0
      %8074 = vmatpush1.msra.mxu0 %v7202
      %8075 = vmatprep.subr.mxu0 0.0
      %8076 = vmatpush1.msra.mxu0 %v7203
      %8077 = vmatprep.subr.mxu0 0.0
      %8078 = vmatpush1.msra.mxu0 %v7204
      %8079 = vmatprep.subr.mxu0 0.0
      %8080 = vmatpush1.msra.mxu0 %v7205
      %8081 = vmatprep.subr.mxu0 0.0
      %8082 = vmatpush1.msra.mxu0 %v7206
      %8083 = vmatprep.subr.mxu0 0.0
      %8084 = vmatpush1.msra.mxu0 %v7207
      %8085 = vmatprep.subr.mxu0 0.0
      %8086 = vmatpush1.msra.mxu0 %v7208
      %8087 = vmatprep.subr.mxu0 0.0
      %8088 = vmatpush1.msra.mxu0 %v7209
      %8089 = vmatprep.subr.mxu0 0.0
      %8090 = vmatpush1.msra.mxu0 %v7210
      %8091 = vmatprep.subr.mxu0 0.0
      %8092 = vmatpush1.msra.mxu0 %v7211
      %8093 = vmatprep.subr.mxu0 0.0
      %8094 = vmatpush1.msra.mxu0 %v7212
      %8095 = vmatprep.subr.mxu0 0.0
      %8096 = vmatpush1.msra.mxu0 %v7213
      %8097 = vmatprep.subr.mxu0 0.0
      %8098 = vmatpush1.msra.mxu0 %v7233
      %8099 = vmatprep.subr.mxu0 0.0
      %8100 = vmatpush1.msra.mxu0 %v7235
      %8101 = vmatprep.subr.mxu0 0.0
      %8102 = vmatpush1.msra.mxu0 %v7237
      %8103 = vmatprep.subr.mxu0 0.0
      %8104 = vmatpush1.msra.mxu0 %v7239
      %8105 = vmatprep.subr.mxu0 0.0
      %8106 = vmatpush1.msra.mxu0 %v7241
      %8107 = vmatprep.subr.mxu0 0.0
      %8108 = vmatpush1.msra.mxu0 %v7243
      %8109 = vmatprep.subr.mxu0 0.0
      %8110 = vmatpush1.msra.mxu0 %v7245
      %8111 = vmatprep.subr.mxu0 0.0
      %8112 = vmatpush1.msra.mxu0 %v7247
      %8113 = vmatprep.subr.mxu0 0.0
      %8114 = vmatpush1.msra.mxu0 %v7249
      %8115 = vmatprep.subr.mxu0 0.0
      %8116 = vmatpush1.msra.mxu0 %v7251
      %8117 = vmatprep.subr.mxu0 0.0
      %8118 = vmatpush1.msra.mxu0 %v7253
      %8119 = vmatprep.subr.mxu0 0.0
      %8120 = vmatpush1.msra.mxu0 %v7255
      %8121 = vmatprep.subr.mxu0 0.0
      %8122 = vmatpush1.msra.mxu0 %v7257
      %8123 = vmatprep.subr.mxu0 0.0
      %8124 = vmatpush1.msra.mxu0 %v7259
      %8125 = vmatprep.mubr.f32.mxu0 %v8043
      %8126 = vmatmul.mubr.f32.gmra.mrb[0].mxu0 %v8042
      %v8127 = vpop.f32.mrb[0].mxu0
      %v8128 = vadd.f32 %v8060, %v8127
      %v8129 = vpop.f32.mrb[0].mxu0
      %8130 = vdwg.mxu0
      %8131 = vmatprep.subr.mxu0 0.0
      %8132 = vmatpush1.msra.mxu0 %v7261
      %8133 = vmatprep.subr.mxu0 0.0
      %8134 = vmatpush1.msra.mxu0 %v7263
      %8135 = vmatprep.subr.mxu0 0.0
      %8136 = vmatpush1.msra.mxu0 %v7265
      %8137 = vmatprep.subr.mxu0 0.0
      %8138 = vmatpush1.msra.mxu0 %v7267
      %8139 = vmatprep.subr.mxu0 0.0
      %8140 = vmatpush1.msra.mxu0 %v7287
      %8141 = vmatprep.subr.mxu0 0.0
      %8142 = vmatpush1.msra.mxu0 %v7289
      %8143 = vmatprep.subr.mxu0 0.0
      %8144 = vmatpush1.msra.mxu0 %v7291
      %8145 = vmatprep.subr.mxu0 0.0
      %8146 = vmatpush1.msra.mxu0 %v7293
      %8147 = vmatprep.subr.mxu0 0.0
      %8148 = vmatpush1.msra.mxu0 %v7295
      %8149 = vmatprep.subr.mxu0 0.0
      %8150 = vmatpush1.msra.mxu0 %v7297
      %8151 = vmatprep.subr.mxu0 0.0
      %8152 = vmatpush1.msra.mxu0 %v7299
      %8153 = vmatprep.subr.mxu0 0.0
      %8154 = vmatpush1.msra.mxu0 %v7301
      %8155 = vmatprep.subr.mxu0 0.0
      %8156 = vmatpush1.msra.mxu0 %v7303
      %8157 = vmatprep.subr.mxu0 0.0
      %8158 = vmatpush1.msra.mxu0 %v7305
      %8159 = vmatprep.subr.mxu0 0.0
      %8160 = vmatpush1.msra.mxu0 %v7307
      %8161 = vmatprep.subr.mxu0 0.0
      %8162 = vmatpush1.msra.mxu0 %v7309
      %8163 = vmatprep.subr.mxu0 0.0
      %8164 = vmatpush1.msra.mxu0 %v7311
      %8165 = vmatprep.subr.mxu0 0.0
      %8166 = vmatpush1.msra.mxu0 %v7313
      %8167 = vmatprep.subr.mxu0 0.0
      %8168 = vmatpush1.msra.mxu0 %v7315
      %8169 = vmatprep.subr.mxu0 0.0
      %8170 = vmatpush1.msra.mxu0 %v7317
      %8171 = vmatprep.subr.mxu0 0.0
      %8172 = vmatpush1.msra.mxu0 %v7319
      %8173 = vmatprep.subr.mxu0 0.0
      %8174 = vmatpush1.msra.mxu0 %v7321
      %8175 = vmatprep.subr.mxu0 0.0
      %8176 = vmatpush1.msra.mxu0 %v7341
      %8177 = vmatprep.subr.mxu0 0.0
      %8178 = vmatpush1.msra.mxu0 %v7343
      %8179 = vmatprep.subr.mxu0 0.0
      %8180 = vmatpush1.msra.mxu0 %v7345
      %8181 = vmatprep.subr.mxu0 0.0
      %8182 = vmatpush1.msra.mxu0 %v7347
      %8183 = vmatprep.subr.mxu0 0.0
      %8184 = vmatpush1.msra.mxu0 %v7349
      %8185 = vmatprep.subr.mxu0 0.0
      %8186 = vmatpush1.msra.mxu0 %v7351
      %8187 = vmatprep.subr.mxu0 0.0
      %8188 = vmatpush1.msra.mxu0 %v7353
      %8189 = vmatprep.subr.mxu0 0.0
      %8190 = vmatpush1.msra.mxu0 %v7355
      %8191 = vmatprep.subr.mxu0 0.0
      %8192 = vmatpush1.msra.mxu0 %v7357
      %8193 = vmatprep.subr.mxu0 0.0
      %8194 = vmatpush1.msra.mxu0 %v7359
      %8195 = vmatprep.mubr.f32.mxu0 %v8045
      %8196 = vmatmul.mubr.f32.gmra.mrb[0].mxu0 %v8044
      %v8197 = vpop.f32.mrb[0].mxu0
      %v8198 = vadd.f32 %v8128, %v8197
      %v8199 = vpop.f32.mrb[0].mxu0
      %8200 = vdwg.mxu0
      %8201 = vmatprep.subr.mxu0 0.0
      %8202 = vmatpush1.msra.mxu0 %v7361
      %8203 = vmatprep.subr.mxu0 0.0
      %8204 = vmatpush1.msra.mxu0 %v7363
      %8205 = vmatprep.subr.mxu0 0.0
      %8206 = vmatpush1.msra.mxu0 %v7365
      %8207 = vmatprep.subr.mxu0 0.0
      %8208 = vmatpush1.msra.mxu0 %v7367
      %8209 = vmatprep.subr.mxu0 0.0
      %8210 = vmatpush1.msra.mxu0 %v7369
      %8211 = vmatprep.subr.mxu0 0.0
      %8212 = vmatpush1.msra.mxu0 %v7371
      %8213 = vmatprep.subr.mxu0 0.0
      %8214 = vmatpush1.msra.mxu0 %v7373
      %8215 = vmatprep.subr.mxu0 0.0
      %8216 = vmatpush1.msra.mxu0 %v7375
      %8217 = vmatprep.subr.mxu0 0.0
      %8218 = vmatpush1.msra.mxu0 %v7395
      %8219 = vmatprep.subr.mxu0 0.0
      %8220 = vmatpush1.msra.mxu0 %v7397
      %8221 = vmatprep.subr.mxu0 0.0
      %8222 = vmatpush1.msra.mxu0 %v7399
      %8223 = vmatprep.subr.mxu0 0.0
      %8224 = vmatpush1.msra.mxu0 %v7401
      %8225 = vmatprep.subr.mxu0 0.0
      %8226 = vmatpush1.msra.mxu0 %v7403
      %8227 = vmatprep.subr.mxu0 0.0
      %8228 = vmatpush1.msra.mxu0 %v7405
      %8229 = vmatprep.subr.mxu0 0.0
      %8230 = vmatpush1.msra.mxu0 %v7407
      %8231 = vmatprep.subr.mxu0 0.0
      %8232 = vmatpush1.msra.mxu0 %v7409
      %8233 = vmatprep.subr.mxu0 0.0
      %8234 = vmatpush1.msra.mxu0 %v7411
      %8235 = vmatprep.subr.mxu0 0.0
      %8236 = vmatpush1.msra.mxu0 %v7413
      %8237 = vmatprep.subr.mxu0 0.0
      %8238 = vmatpush1.msra.mxu0 %v7415
      %8239 = vmatprep.subr.mxu0 0.0
      %8240 = vmatpush1.msra.mxu0 %v7417
      %8241 = vmatprep.subr.mxu0 0.0
      %8242 = vmatpush1.msra.mxu0 %v7419
      %8243 = vmatprep.subr.mxu0 0.0
      %8244 = vmatpush1.msra.mxu0 %v7421
      %8245 = vmatprep.subr.mxu0 0.0
      %8246 = vmatpush1.msra.mxu0 %v7423
      %8247 = vmatprep.subr.mxu0 0.0
      %8248 = vmatpush1.msra.mxu0 %v7425
      %8249 = vmatprep.subr.mxu0 0.0
      %8250 = vmatpush1.msra.mxu0 %v7427
      %8251 = vmatprep.subr.mxu0 0.0
      %8252 = vmatpush1.msra.mxu0 %v7429
      %8253 = vmatprep.subr.mxu0 0.0
      %8254 = vmatpush1.msra.mxu0 %v7449
      %8255 = vmatprep.subr.mxu0 0.0
      %8256 = vmatpush1.msra.mxu0 %v7451
      %8257 = vmatprep.subr.mxu0 0.0
      %8258 = vmatpush1.msra.mxu0 %v7453
      %8259 = vmatprep.subr.mxu0 0.0
      %8260 = vmatpush1.msra.mxu0 %v7455
      %8261 = vmatprep.subr.mxu0 0.0
      %8262 = vmatpush1.msra.mxu0 %v7457
      %8263 = vmatprep.subr.mxu0 0.0
      %8264 = vmatpush1.msra.mxu0 %v7459
      %8265 = vmatprep.mubr.f32.mxu0 %v8047
      %8266 = vmatmul.mubr.f32.gmra.mrb[0].mxu0 %v8046
      %v8267 = vpop.f32.mrb[0].mxu0
      %v8268 = vadd.f32 %v8198, %v8267
      %v8269 = vpop.f32.mrb[0].mxu0
      %8270 = vdwg.mxu0
      %8271 = vmatprep.subr.mxu0 0.0
      %8272 = vmatpush1.msra.mxu0 %v7461
      %8273 = vmatprep.subr.mxu0 0.0
      %8274 = vmatpush1.msra.mxu0 %v7463
      %8275 = vmatprep.subr.mxu0 0.0
      %8276 = vmatpush1.msra.mxu0 %v7465
      %8277 = vmatprep.subr.mxu0 0.0
      %8278 = vmatpush1.msra.mxu0 %v7467
      %8279 = vmatprep.subr.mxu0 0.0
      %8280 = vmatpush1.msra.mxu0 %v7469
      %8281 = vmatprep.subr.mxu0 0.0
      %8282 = vmatpush1.msra.mxu0 %v7471
      %8283 = vmatprep.subr.mxu0 0.0
      %8284 = vmatpush1.msra.mxu0 %v7473
      %8285 = vmatprep.subr.mxu0 0.0
      %8286 = vmatpush1.msra.mxu0 %v7475
      %8287 = vmatprep.subr.mxu0 0.0
      %8288 = vmatpush1.msra.mxu0 %v7477
      %8289 = vmatprep.subr.mxu0 0.0
      %8290 = vmatpush1.msra.mxu0 %v7479
      %8291 = vmatprep.subr.mxu0 0.0
      %8292 = vmatpush1.msra.mxu0 %v7481
      %8293 = vmatprep.subr.mxu0 0.0
      %8294 = vmatpush1.msra.mxu0 %v7483
      %8295 = vmatprep.subr.mxu0 0.0
      %8296 = vmatpush1.msra.mxu0 %v7503
      %8297 = vmatprep.subr.mxu0 0.0
      %8298 = vmatpush1.msra.mxu0 %v7505
      %8299 = vmatprep.subr.mxu0 0.0
      %8300 = vmatpush1.msra.mxu0 %v7507
      %8301 = vmatprep.subr.mxu0 0.0
      %8302 = vmatpush1.msra.mxu0 %v7509
      %8303 = vmatprep.subr.mxu0 0.0
      %8304 = vmatpush1.msra.mxu0 %v7511
      %8305 = vmatprep.subr.mxu0 0.0
      %8306 = vmatpush1.msra.mxu0 %v7513
      %8307 = vmatprep.subr.mxu0 0.0
      %8308 = vmatpush1.msra.mxu0 %v7515
      %8309 = vmatprep.subr.mxu0 0.0
      %8310 = vmatpush1.msra.mxu0 %v7517
      %8311 = vmatprep.subr.mxu0 0.0
      %8312 = vmatpush1.msra.mxu0 %v7519
      %8313 = vmatprep.subr.mxu0 0.0
      %8314 = vmatpush1.msra.mxu0 %v7521
      %8315 = vmatprep.subr.mxu0 0.0
      %8316 = vmatpush1.msra.mxu0 %v7523
      %8317 = vmatprep.subr.mxu0 0.0
      %8318 = vmatpush1.msra.mxu0 %v7525
      %8319 = vmatprep.subr.mxu0 0.0
      %8320 = vmatpush1.msra.mxu0 %v7527
      %8321 = vmatprep.subr.mxu0 0.0
      %8322 = vmatpush1.msra.mxu0 %v7529
      %8323 = vmatprep.subr.mxu0 0.0
      %8324 = vmatpush1.msra.mxu0 %v7531
      %8325 = vmatprep.subr.mxu0 0.0
      %8326 = vmatpush1.msra.mxu0 %v7533
      %8327 = vmatprep.subr.mxu0 0.0
      %8328 = vmatpush1.msra.mxu0 %v7535
      %8329 = vmatprep.subr.mxu0 0.0
      %8330 = vmatpush1.msra.mxu0 %v7537
      %8331 = vmatprep.subr.mxu0 0.0
      %8332 = vmatpush1.msra.mxu0 %v7557
      %8333 = vmatprep.subr.mxu0 0.0
      %8334 = vmatpush1.msra.mxu0 %v7559
      %8335 = vmatprep.mubr.f32.mxu0 %v8049
      %8336 = vmatmul.mubr.f32.gmra.mrb[0].mxu0 %v8048
      %v8337 = vpop.f32.mrb[0].mxu0
      %v8338 = vadd.f32 %v8268, %v8337
      %v8339 = vpop.f32.mrb[0].mxu0
      %8340 = vdwg.mxu0
      %8341 = vmatprep.subr.mxu0 0.0
      %8342 = vmatpush1.msra.mxu0 %v7561
      %8343 = vmatprep.subr.mxu0 0.0
      %8344 = vmatpush1.msra.mxu0 %v7563
      %8345 = vmatprep.subr.mxu0 0.0
      %8346 = vmatpush1.msra.mxu0 %v7565
      %8347 = vmatprep.subr.mxu0 0.0
      %8348 = vmatpush1.msra.mxu0 %v7567
      %8349 = vmatprep.subr.mxu0 0.0
      %8350 = vmatpush1.msra.mxu0 %v7569
      %8351 = vmatprep.subr.mxu0 0.0
      %8352 = vmatpush1.msra.mxu0 %v7571
      %8353 = vmatprep.subr.mxu0 0.0
      %8354 = vmatpush1.msra.mxu0 %v7573
      %8355 = vmatprep.subr.mxu0 0.0
      %8356 = vmatpush1.msra.mxu0 %v7575
      %8357 = vmatprep.subr.mxu0 0.0
      %8358 = vmatpush1.msra.mxu0 %v7577
      %8359 = vmatprep.subr.mxu0 0.0
      %8360 = vmatpush1.msra.mxu0 %v7579
      %8361 = vmatprep.subr.mxu0 0.0
      %8362 = vmatpush1.msra.mxu0 %v7581
      %8363 = vmatprep.subr.mxu0 0.0
      %8364 = vmatpush1.msra.mxu0 %v7583
      %8365 = vmatprep.subr.mxu0 0.0
      %8366 = vmatpush1.msra.mxu0 %v7585
      %8367 = vmatprep.subr.mxu0 0.0
      %8368 = vmatpush1.msra.mxu0 %v7587
      %8369 = vmatprep.subr.mxu0 0.0
      %8370 = vmatpush1.msra.mxu0 %v7589
      %8371 = vmatprep.subr.mxu0 0.0
      %8372 = vmatpush1.msra.mxu0 %v7591
      %8373 = vmatprep.subr.mxu0 0.0
      %8374 = vmatpush1.msra.mxu0 %v7611
      %8375 = vmatprep.subr.mxu0 0.0
      %8376 = vmatpush1.msra.mxu0 %v7613
      %8377 = vmatprep.subr.mxu0 0.0
      %8378 = vmatpush1.msra.mxu0 %v7615
      %8379 = vmatprep.subr.mxu0 0.0
      %8380 = vmatpush1.msra.mxu0 %v7617
      %8381 = vmatprep.subr.mxu0 0.0
      %8382 = vmatpush1.msra.mxu0 %v7619
      %8383 = vmatprep.subr.mxu0 0.0
      %8384 = vmatpush1.msra.mxu0 %v7621
      %8385 = vmatprep.subr.mxu0 0.0
      %8386 = vmatpush1.msra.mxu0 %v7623
      %8387 = vmatprep.subr.mxu0 0.0
      %8388 = vmatpush1.msra.mxu0 %v7625
      %8389 = vmatprep.subr.mxu0 0.0
      %8390 = vmatpush1.msra.mxu0 %v7627
      %8391 = vmatprep.subr.mxu0 0.0
      %8392 = vmatpush1.msra.mxu0 %v7629
      %8393 = vmatprep.subr.mxu0 0.0
      %8394 = vmatpush1.msra.mxu0 %v7631
      %8395 = vmatprep.subr.mxu0 0.0
      %8396 = vmatpush1.msra.mxu0 %v7633
      %8397 = vmatprep.subr.mxu0 0.0
      %8398 = vmatpush1.msra.mxu0 %v7635
      %8399 = vmatprep.subr.mxu0 0.0
      %8400 = vmatpush1.msra.mxu0 %v7637
      %8401 = vmatprep.subr.mxu0 0.0
      %8402 = vmatpush1.msra.mxu0 %v7639
      %8403 = vmatprep.subr.mxu0 0.0
      %8404 = vmatpush1.msra.mxu0 %v7641
      %8405 = vmatprep.mubr.f32.mxu0 %v8051
      %8406 = vmatmul.mubr.f32.gmra.mrb[0].mxu0 %v8050
      %v8407 = vpop.f32.mrb[0].mxu0
      %v8408 = vadd.f32 %v8338, %v8407
      %v8409 = vpop.f32.mrb[0].mxu0
      %8410 = vdwg.mxu0
      %8411 = vmatprep.subr.mxu0 0.0
      %8412 = vmatpush1.msra.mxu0 %v7643
      %8413 = vmatprep.subr.mxu0 0.0
      %8414 = vmatpush1.msra.mxu0 %v7645
      %8415 = vmatprep.subr.mxu0 0.0
      %8416 = vmatpush1.msra.mxu0 %v7665
      %8417 = vmatprep.subr.mxu0 0.0
      %8418 = vmatpush1.msra.mxu0 %v7667
      %8419 = vmatprep.subr.mxu0 0.0
      %8420 = vmatpush1.msra.mxu0 %v7669
      %8421 = vmatprep.subr.mxu0 0.0
      %8422 = vmatpush1.msra.mxu0 %v7671
      %8423 = vmatprep.subr.mxu0 0.0
      %8424 = vmatpush1.msra.mxu0 %v7673
      %8425 = vmatprep.subr.mxu0 0.0
      %8426 = vmatpush1.msra.mxu0 %v7675
      %8427 = vmatprep.subr.mxu0 0.0
      %8428 = vmatpush1.msra.mxu0 %v7677
      %8429 = vmatprep.subr.mxu0 0.0
      %8430 = vmatpush1.msra.mxu0 %v7679
      %8431 = vmatprep.subr.mxu0 0.0
      %8432 = vmatpush1.msra.mxu0 %v7681
      %8433 = vmatprep.subr.mxu0 0.0
      %8434 = vmatpush1.msra.mxu0 %v7683
      %8435 = vmatprep.subr.mxu0 0.0
      %8436 = vmatpush1.msra.mxu0 %v7685
      %8437 = vmatprep.subr.mxu0 0.0
      %8438 = vmatpush1.msra.mxu0 %v7687
      %8439 = vmatprep.subr.mxu0 0.0
      %8440 = vmatpush1.msra.mxu0 %v7689
      %8441 = vmatprep.subr.mxu0 0.0
      %8442 = vmatpush1.msra.mxu0 %v7691
      %8443 = vmatprep.subr.mxu0 0.0
      %8444 = vmatpush1.msra.mxu0 %v7693
      %8445 = vmatprep.subr.mxu0 0.0
      %8446 = vmatpush1.msra.mxu0 %v7695
      %8447 = vmatprep.subr.mxu0 0.0
      %8448 = vmatpush1.msra.mxu0 %v7697
      %8449 = vmatprep.subr.mxu0 0.0
      %8450 = vmatpush1.msra.mxu0 %v7699
      %8451 = vmatprep.subr.mxu0 0.0
      %8452 = vmatpush1.msra.mxu0 %v7719
      %8453 = vmatprep.subr.mxu0 0.0
      %8454 = vmatpush1.msra.mxu0 %v7721
      %8455 = vmatprep.subr.mxu0 0.0
      %8456 = vmatpush1.msra.mxu0 %v7723
      %8457 = vmatprep.subr.mxu0 0.0
      %8458 = vmatpush1.msra.mxu0 %v7725
      %8459 = vmatprep.subr.mxu0 0.0
      %8460 = vmatpush1.msra.mxu0 %v7727
      %8461 = vmatprep.subr.mxu0 0.0
      %8462 = vmatpush1.msra.mxu0 %v7729
      %8463 = vmatprep.subr.mxu0 0.0
      %8464 = vmatpush1.msra.mxu0 %v7731
      %8465 = vmatprep.subr.mxu0 0.0
      %8466 = vmatpush1.msra.mxu0 %v7733
      %8467 = vmatprep.subr.mxu0 0.0
      %8468 = vmatpush1.msra.mxu0 %v7735
      %8469 = vmatprep.subr.mxu0 0.0
      %8470 = vmatpush1.msra.mxu0 %v7737
      %8471 = vmatprep.subr.mxu0 0.0
      %8472 = vmatpush1.msra.mxu0 %v7739
      %8473 = vmatprep.subr.mxu0 0.0
      %8474 = vmatpush1.msra.mxu0 %v7741
      %8475 = vmatprep.mubr.f32.mxu0 %v8053
      %8476 = vmatmul.mubr.f32.gmra.mrb[0].mxu0 %v8052
      %v8477 = vpop.f32.mrb[0].mxu0
      %v8478 = vadd.f32 %v8408, %v8477
      %v8479 = vpop.f32.mrb[0].mxu0
      %8480 = vdwg.mxu0
      %8481 = vmatprep.subr.mxu0 0.0
      %8482 = vmatpush1.msra.mxu0 %v7743
      %8483 = vmatprep.subr.mxu0 0.0
      %8484 = vmatpush1.msra.mxu0 %v7745
      %8485 = vmatprep.subr.mxu0 0.0
      %8486 = vmatpush1.msra.mxu0 %v7747
      %8487 = vmatprep.subr.mxu0 0.0
      %8488 = vmatpush1.msra.mxu0 %v7749
      %8489 = vmatprep.subr.mxu0 0.0
      %8490 = vmatpush1.msra.mxu0 %v7751
      %8491 = vmatprep.subr.mxu0 0.0
      %8492 = vmatpush1.msra.mxu0 %v7753
      %8493 = vmatprep.subr.mxu0 0.0
      %8494 = vmatpush1.msra.mxu0 %v7773
      %8495 = vmatprep.subr.mxu0 0.0
      %8496 = vmatpush1.msra.mxu0 %v7775
      %8497 = vmatprep.subr.mxu0 0.0
      %8498 = vmatpush1.msra.mxu0 %v7777
      %8499 = vmatprep.subr.mxu0 0.0
      %8500 = vmatpush1.msra.mxu0 %v7779
      %8501 = vmatprep.subr.mxu0 0.0
      %8502 = vmatpush1.msra.mxu0 %v7781
      %8503 = vmatprep.subr.mxu0 0.0
      %8504 = vmatpush1.msra.mxu0 %v7783
      %8505 = vmatprep.subr.mxu0 0.0
      %8506 = vmatpush1.msra.mxu0 %v7785
      %8507 = vmatprep.subr.mxu0 0.0
      %8508 = vmatpush1.msra.mxu0 %v7787
      %8509 = vmatprep.subr.mxu0 0.0
      %8510 = vmatpush1.msra.mxu0 %v7789
      %8511 = vmatprep.subr.mxu0 0.0
      %8512 = vmatpush1.msra.mxu0 %v7791
      %8513 = vmatprep.subr.mxu0 0.0
      %8514 = vmatpush1.msra.mxu0 %v7793
      %8515 = vmatprep.subr.mxu0 0.0
      %8516 = vmatpush1.msra.mxu0 %v7795
      %8517 = vmatprep.subr.mxu0 0.0
      %8518 = vmatpush1.msra.mxu0 %v7797
      %8519 = vmatprep.subr.mxu0 0.0
      %8520 = vmatpush1.msra.mxu0 %v7799
      %8521 = vmatprep.subr.mxu0 0.0
      %8522 = vmatpush1.msra.mxu0 %v7801
      %8523 = vmatprep.subr.mxu0 0.0
      %8524 = vmatpush1.msra.mxu0 %v7803
      %8525 = vmatprep.subr.mxu0 0.0
      %8526 = vmatpush1.msra.mxu0 %v7805
      %8527 = vmatprep.subr.mxu0 0.0
      %8528 = vmatpush1.msra.mxu0 %v7807
      %8529 = vmatprep.subr.mxu0 0.0
      %8530 = vmatpush1.msra.mxu0 %v7827
      %8531 = vmatprep.subr.mxu0 0.0
      %8532 = vmatpush1.msra.mxu0 %v7829
      %8533 = vmatprep.subr.mxu0 0.0
      %8534 = vmatpush1.msra.mxu0 %v7831
      %8535 = vmatprep.subr.mxu0 0.0
      %8536 = vmatpush1.msra.mxu0 %v7833
      %8537 = vmatprep.subr.mxu0 0.0
      %8538 = vmatpush1.msra.mxu0 %v7835
      %8539 = vmatprep.subr.mxu0 0.0
      %8540 = vmatpush1.msra.mxu0 %v7837
      %8541 = vmatprep.subr.mxu0 0.0
      %8542 = vmatpush1.msra.mxu0 %v7839
      %8543 = vmatprep.subr.mxu0 0.0
      %8544 = vmatpush1.msra.mxu0 %v7841
      %8545 = vmatprep.mubr.f32.mxu0 %v8055
      %8546 = vmatmul.mubr.f32.gmra.mrb[0].mxu0 %v8054
      %v8547 = vpop.f32.mrb[0].mxu0
      %v8548 = vadd.f32 %v8478, %v8547
      %v8549 = vpop.f32.mrb[0].mxu0
      %8550 = vdwg.mxu0
      %8551 = vmatprep.subr.mxu0 0.0
      %8552 = vmatpush1.msra.mxu0 %v7843
      %8553 = vmatprep.subr.mxu0 0.0
      %8554 = vmatpush1.msra.mxu0 %v7845
      %8555 = vmatprep.subr.mxu0 0.0
      %8556 = vmatpush1.msra.mxu0 %v7847
      %8557 = vmatprep.subr.mxu0 0.0
      %8558 = vmatpush1.msra.mxu0 %v7849
      %8559 = vmatprep.subr.mxu0 0.0
      %8560 = vmatpush1.msra.mxu0 %v7851
      %8561 = vmatprep.subr.mxu0 0.0
      %8562 = vmatpush1.msra.mxu0 %v7853
      %8563 = vmatprep.subr.mxu0 0.0
      %8564 = vmatpush1.msra.mxu0 %v7855
      %8565 = vmatprep.subr.mxu0 0.0
      %8566 = vmatpush1.msra.mxu0 %v7857
      %8567 = vmatprep.subr.mxu0 0.0
      %8568 = vmatpush1.msra.mxu0 %v7859
      %8569 = vmatprep.subr.mxu0 0.0
      %8570 = vmatpush1.msra.mxu0 %v7861
      %8571 = vmatprep.subr.mxu0 0.0
      %8572 = vmatpush1.msra.mxu0 %v7881
      %8573 = vmatprep.subr.mxu0 0.0
      %8574 = vmatpush1.msra.mxu0 %v7883
      %8575 = vmatprep.subr.mxu0 0.0
      %8576 = vmatpush1.msra.mxu0 %v7885
      %8577 = vmatprep.subr.mxu0 0.0
      %8578 = vmatpush1.msra.mxu0 %v7887
      %8579 = vmatprep.subr.mxu0 0.0
      %8580 = vmatpush1.msra.mxu0 %v7889
      %8581 = vmatprep.subr.mxu0 0.0
      %8582 = vmatpush1.msra.mxu0 %v7891
      %8583 = vmatprep.subr.mxu0 0.0
      %8584 = vmatpush1.msra.mxu0 %v7893
      %8585 = vmatprep.subr.mxu0 0.0
      %8586 = vmatpush1.msra.mxu0 %v7895
      %8587 = vmatprep.subr.mxu0 0.0
      %8588 = vmatpush1.msra.mxu0 %v7897
      %8589 = vmatprep.subr.mxu0 0.0
      %8590 = vmatpush1.msra.mxu0 %v7899
      %8591 = vmatprep.subr.mxu0 0.0
      %8592 = vmatpush1.msra.mxu0 %v7901
      %8593 = vmatprep.subr.mxu0 0.0
      %8594 = vmatpush1.msra.mxu0 %v7903
      %8595 = vmatprep.subr.mxu0 0.0
      %8596 = vmatpush1.msra.mxu0 %v7905
      %8597 = vmatprep.subr.mxu0 0.0
      %8598 = vmatpush1.msra.mxu0 %v7907
      %8599 = vmatprep.subr.mxu0 0.0
      %8600 = vmatpush1.msra.mxu0 %v7909
      %8601 = vmatprep.subr.mxu0 0.0
      %8602 = vmatpush1.msra.mxu0 %v7911
      %8603 = vmatprep.subr.mxu0 0.0
      %8604 = vmatpush1.msra.mxu0 %v7913
      %8605 = vmatprep.subr.mxu0 0.0
      %8606 = vmatpush1.msra.mxu0 %v7915
      %8607 = vmatprep.subr.mxu0 0.0
      %8608 = vmatpush1.msra.mxu0 %v7935
      %8609 = vmatprep.subr.mxu0 0.0
      %8610 = vmatpush1.msra.mxu0 %v7937
      %8611 = vmatprep.subr.mxu0 0.0
      %8612 = vmatpush1.msra.mxu0 %v7939
      %8613 = vmatprep.subr.mxu0 0.0
      %8614 = vmatpush1.msra.mxu0 %v7941
      %8615 = vmatprep.mubr.f32.mxu0 %v8057
      %8616 = vmatmul.mubr.f32.gmra.mrb[0].mxu0 %v8056
      %v8617 = vpop.f32.mrb[0].mxu0
      %v8618 = vadd.f32 %v8548, %v8617
      %v8619 = vpop.f32.mrb[0].mxu0
      %8620 = vdwg.mxu0
      %8621 = vmatprep.subr.mxu0 0.0
      %8622 = vmatpush1.msra.mxu0 %v7943
      %8623 = vmatprep.subr.mxu0 0.0
      %8624 = vmatpush1.msra.mxu0 %v7945
      %8625 = vmatprep.subr.mxu0 0.0
      %8626 = vmatpush1.msra.mxu0 %v7947
      %8627 = vmatprep.subr.mxu0 0.0
      %8628 = vmatpush1.msra.mxu0 %v7949
      %8629 = vmatprep.subr.mxu0 0.0
      %8630 = vmatpush1.msra.mxu0 %v7951
      %8631 = vmatprep.subr.mxu0 0.0
      %8632 = vmatpush1.msra.mxu0 %v7953
      %8633 = vmatprep.subr.mxu0 0.0
      %8634 = vmatpush1.msra.mxu0 %v7955
      %8635 = vmatprep.subr.mxu0 0.0
      %8636 = vmatpush1.msra.mxu0 %v7957
      %8637 = vmatprep.subr.mxu0 0.0
      %8638 = vmatpush1.msra.mxu0 %v7959
      %8639 = vmatprep.subr.mxu0 0.0
      %8640 = vmatpush1.msra.mxu0 %v7961
      %8641 = vmatprep.subr.mxu0 0.0
      %8642 = vmatpush1.msra.mxu0 %v7963
      %8643 = vmatprep.subr.mxu0 0.0
      %8644 = vmatpush1.msra.mxu0 %v7965
      %8645 = vmatprep.subr.mxu0 0.0
      %8646 = vmatpush1.msra.mxu0 %v7967
      %8647 = vmatprep.subr.mxu0 0.0
      %8648 = vmatpush1.msra.mxu0 %v7969
      %8649 = vmatprep.subr.mxu0 0.0
      %8650 = vmatpush1.msra.mxu0 %v7989
      %8651 = vmatprep.subr.mxu0 0.0
      %8652 = vmatpush1.msra.mxu0 %v7991
      %8653 = vmatprep.subr.mxu0 0.0
      %8654 = vmatpush1.msra.mxu0 %v7993
      %8655 = vmatprep.subr.mxu0 0.0
      %8656 = vmatpush1.msra.mxu0 %v7995
      %8657 = vmatprep.subr.mxu0 0.0
      %8658 = vmatpush1.msra.mxu0 %v7997
      %8659 = vmatprep.subr.mxu0 0.0
      %8660 = vmatpush1.msra.mxu0 %v7999
      %8661 = vmatprep.subr.mxu0 0.0
      %8662 = vmatpush1.msra.mxu0 %v8001
      %8663 = vmatprep.subr.mxu0 0.0
      %8664 = vmatpush1.msra.mxu0 %v8003
      %8665 = vmatprep.subr.mxu0 0.0
      %8666 = vmatpush1.msra.mxu0 %v8005
      %8667 = vmatprep.subr.mxu0 0.0
      %8668 = vmatpush1.msra.mxu0 %v8007
      %8669 = vmatprep.subr.mxu0 0.0
      %8670 = vmatpush1.msra.mxu0 %v8009
      %8671 = vmatprep.subr.mxu0 0.0
      %8672 = vmatpush1.msra.mxu0 %v8011
      %8673 = vmatprep.subr.mxu0 0.0
      %8674 = vmatpush1.msra.mxu0 %v8013
      %8675 = vmatprep.subr.mxu0 0.0
      %8676 = vmatpush1.msra.mxu0 %v8015
      %8677 = vmatprep.subr.mxu0 0.0
      %8678 = vmatpush1.msra.mxu0 %v8017
      %8679 = vmatprep.subr.mxu0 0.0
      %8680 = vmatpush1.msra.mxu0 %v8019
      %8681 = vmatprep.subr.mxu0 0.0
      %8682 = vmatpush1.msra.mxu0 %v8021
      %8683 = vmatprep.subr.mxu0 0.0
      %8684 = vmatpush1.msra.mxu0 %v8023
      %8685 = vmatprep.mubr.f32.mxu0 %v8059
      %8686 = vmatmul.mubr.f32.gmra.mrb[0].mxu0 %v8058
      %v8687 = vpop.f32.mrb[0].mxu0
      %v8688 = vadd.f32 %v8618, %v8687
      %v8689 = vpop.f32.mrb[0].mxu0
      %8690 = vdwg.mxu0
      %v8691 = vmax.f32 %v8688, 0.0
      %v8692 = vand.u32 2147483647, %v8688
      %v8693 = vsub.f32 0.0, %v8692
      %v8694 = vmul.f32 %v8693, 1.442695
      %v8695 = vpow.pop %v8694
      %v8696 = vadd.f32 %v8695, 1.0
      %v8697 = vlog2.pop %v8696
      %v8698 = vmul.f32 %v8697, 0.6931472
      %v8699 = vmul.f32 -0.5, %v8695
      %v8700 = vadd.f32 %v8699, 1.0
      %v8701 = vmul.f32 %v8700, %v8695
      %v8702 = vand.u32 2147483647, %v8695
      %vm8703 = vcmp.lt.f32.partialorder %v8702, 0.0004427343
      %v8704 = vsel %vm8703, %v8701, %v8698
      %v8705 = vadd.f32 %v8691, %v8704
      %vm8706 = vcmask 4096
      %8707 = vst.msk [vmem:[%s276] sm:$0x1f] %vm8706, %v8705
      %p8708 = scmp.lt.s32.totalorder %s18, 1
      %s8709 = scalar_select %p8708, %s18, 1
      %s8710 = smul.addr %s8709, 8
      %s8711 = scalar_lea.vmem %s7, %s8710
      // Predicated region
      $region49: #{deep_retina_forward.1} parent=47 // pred_check
        %p8712 = pneg %p188
      $region50: #{deep_retina_forward.1} parent=47 // pred_check_branch
        %8714 = sbr.rel (%p8712) target = $region52
      $region51: #{deep_retina_forward.1} parent=47 // pred_region
        _
      $region52: #{deep_retina_forward.1} parent=47 // pred_fallthru
        _
    $region48: #{deep_retina_forward.1} parent=5 // pred_fallthru
      _
    %p8715 = scmp.le.s32.totalorder 2, %s13
    // Predicated region
    $region53: #{deep_retina_forward.1} parent=5 // pred_check
      %p8716 = pneg %p8715
    $region54: #{deep_retina_forward.1} parent=5 // pred_check_branch
      %8718 = sbr.rel (%p8716) target = $region56
    $region55: #{deep_retina_forward.1} parent=5 // pred_region
      %s8719 = ssub.s32 %s13, 2
      // Predicated region
      $region57: #{deep_retina_forward.1} parent=55 // pred_check
        %p8720 = pneg %p194
      $region58: #{deep_retina_forward.1} parent=55 // pred_check_branch
        %8722 = sbr.rel (%p8720) target = $region60
      $region59: #{deep_retina_forward.1} parent=55 // pred_region
        %p8723 = scmp.lt.s32.totalorder %s19, 1
        %s8724 = scalar_select %p8723, %s19, 1
        %s8725 = smul.addr %s8724, 8
        %s8726 = scalar_lea.vmem %s7, %s8725
      $region60: #{deep_retina_forward.1} parent=55 // pred_fallthru
        _
    $region56: #{deep_retina_forward.1} parent=5 // pred_fallthru
      _
  $region6: #{deep_retina_forward.1} parent=0 // loop_footer
    %s17 = sadd.s32 1, %s13
  $region7: #{deep_retina_forward.1} parent=0 // loop_footer_branch
    %12 = sbr.rel target = $region3
  $region8: #{deep_retina_forward.1} parent=0 // loop_exit
    _

</llo_original>
